<compile_context>
chip_gen: v7x
topology: tpu7x:2x2x1
jax: 0.10.0
libtpu: 0.0.40
codegen_flags: <defaults>
</compile_context>

<pallas_src>
import jax
import jax.numpy as jnp
from jax.experimental import pallas as pl
from jax.experimental.pallas import tpu as pltpu

# Small synthetic shapes consistent with the module structure
# (inplanes -> CIN, planes -> COUT), scaled down from (512, 32).
N, CIN, H, W = 2, 32, 16, 16
COUT = 8
DILS = (3, 5, 7)
PMAX = max(DILS)            # halo needed for the largest dilation
BN_EPS = 1e-5

CC = 4 * COUT               # channels of the concatenated feature map
NHW = N * H * W

# Left pad rounded up to a sublane multiple (8) so interior *stores* into the
# padded scratch refs are tile aligned; window *reads* may be unaligned.
XL = 8
XPH = H + 2 * PMAX          # 30  padded height (not a tiled axis, offset free)
XPW = XL + W + PMAX         # 31  padded width  (sublane axis)
CL = 8
CPH = H + 2                 # 18
CPW = CL + W + 1            # 25

# Tap table shared by the kernel (window offsets) and the wrapper (weight
# packing).  Tap 0 is the *shared* centre tap: the 1x1 conv and the three
# dilated convs' centre weights are fused into one K-block.
TAPS = [(-1, 1, 1, PMAX, XL)]
for _bi, _d in enumerate(DILS):
    for _ky in range(3):
        for _kx in range(3):
            if (_ky, _kx) == (1, 1):
                continue
            TAPS.append((_bi, _ky, _kx, PMAX + (_ky - 1) * _d, XL + (_kx - 1) * _d))
NTAPS = len(TAPS)           # 25


def cpfe_kernel(x_ref, wbr_ref, wft_ref, gamma_ref, beta_ref, out_ref,
                xpad_ref, catp_ref):
    f32 = jnp.float32

    # ---- in-kernel zero padding of the input (fused jnp.pad) ---------------
    xpad_ref[...] = jnp.zeros_like(xpad_ref)
    xpad_ref[:, PMAX:PMAX + H, XL:XL + W, :] = x_ref[...]     # aligned interior

    # ---- all four conv branches as ONE im2col matmul ------------------------
    # LHS: 25 shifted windows concatenated on the lane axis -> (NHW, 25*CIN)
    # RHS: block-packed weight (25*CIN, 4*COUT); centre tap shared by branches.
    cols = [xpad_ref[:, r0:r0 + H, c0:c0 + W, :].reshape(NHW, CIN)
            for (_, _, _, r0, c0) in TAPS]
    col = jnp.concatenate(cols, axis=-1)                       # (NHW, 25*CIN) f32
    cat = jnp.dot(col, wbr_ref[...], preferred_element_type=f32)   # (NHW, 4*COUT)

    # ---- zero-padded concat feature map lives in a VMEM scratch -------------
    catp_ref[...] = jnp.zeros_like(catp_ref)
    catp_ref[:, 1:1 + H, CL:CL + W, :] = cat.reshape(N, H, W, CC)

    # ---- final 3x3 conv: one im2col matmul, transposed (lane dense) output --
    fcols = [catp_ref[:, ky:ky + H, CL - 1 + kx:CL - 1 + kx + W, :].reshape(NHW, CC)
             for ky in range(3) for kx in range(3)]
    colf = jnp.concatenate(fcols, axis=-1)                     # (NHW, 9*4*COUT) f32
    acc_t = jax.lax.dot_general(                               # (COUT, NHW)
        wft_ref[...], colf,
        dimension_numbers=(((1,), (1,)), ((), ())),
        preferred_element_type=f32)

    # ---- BatchNorm2d (training-mode batch stats, biased var) + ReLU ---------
    mean = jnp.mean(acc_t, axis=1, keepdims=True)              # (COUT, 1)
    var = jnp.mean(jnp.square(acc_t - mean), axis=1, keepdims=True)
    y = (acc_t - mean) * jax.lax.rsqrt(var + BN_EPS)
    y = y * gamma_ref[...] + beta_ref[...]
    out_ref[...] = jnp.maximum(y, 0.0)                         # dense (8, 512) store


def init_params(key):
    k1, k3, k5, k7, kf = jax.random.split(key, 5)
    s = 0.05
    return dict(
        w1=s * jax.random.normal(k1, (CIN, COUT), jnp.float32),
        w3=s * jax.random.normal(k3, (3, 3, CIN, COUT), jnp.float32),
        w5=s * jax.random.normal(k5, (3, 3, CIN, COUT), jnp.float32),
        w7=s * jax.random.normal(k7, (3, 3, CIN, COUT), jnp.float32),
        wf=s * jax.random.normal(kf, (3, 3, CC, COUT), jnp.float32),
        gamma=jnp.ones((COUT,), jnp.float32),   # BN default weight
        beta=jnp.zeros((COUT,), jnp.float32),   # BN default bias
    )


def pack_branch_weight(p):
    """Block-packed (25*CIN, 4*COUT) f32 weight matching the TAPS ordering."""
    ws = (p['w3'], p['w5'], p['w7'])
    blocks = []
    for (bi, ky, kx, _, _) in TAPS:
        if bi < 0:   # shared centre tap: [w1 | w3_c | w5_c | w7_c]
            blk = jnp.concatenate(
                [p['w1'], p['w3'][1, 1], p['w5'][1, 1], p['w7'][1, 1]], axis=-1)
        else:        # off-centre tap of one dilated branch, zeros elsewhere
            blk = jnp.pad(ws[bi][ky, kx],
                          ((0, 0), ((bi + 1) * COUT, (2 - bi) * COUT)))
        blocks.append(blk)
    return jnp.concatenate(blocks, axis=0).astype(jnp.float32)


@jax.jit
def cpfe_forward(x_nchw, p):
    x_nhwc = jnp.transpose(x_nchw, (0, 2, 3, 1))
    wbr = pack_branch_weight(p)                                          # (800, 32)
    wft = jnp.transpose(p['wf'].reshape(9 * CC, COUT)).astype(jnp.float32)  # (8, 288)
    gamma = p['gamma'].reshape(COUT, 1)
    beta = p['beta'].reshape(COUT, 1)

    vmem = pl.BlockSpec(memory_space=pltpu.MemorySpace.VMEM)
    out = pl.pallas_call(
        cpfe_kernel,
        out_shape=jax.ShapeDtypeStruct((COUT, NHW), jnp.float32),
        in_specs=[vmem] * 5,
        out_specs=vmem,
        scratch_shapes=[
            pltpu.VMEM((N, XPH, XPW, CIN), jnp.float32),   # zero-padded input
            pltpu.VMEM((N, CPH, CPW, CC), jnp.float32),    # zero-padded cat
        ],
    )(x_nhwc, wbr, wft, gamma, beta)
    # (COUT, N*H*W) -> NCHW
    return jnp.transpose(out.reshape(COUT, N, H, W), (1, 0, 2, 3))


def cpfe_reference(x_nchw, p):
    """Pure-JAX reference of the CPFE forward pass (all f32)."""
    x = jnp.transpose(x_nchw, (0, 2, 3, 1)).astype(jnp.float32)
    dn = ('NHWC', 'HWIO', 'NHWC')

    def dconv(xx, w, d):
        return jax.lax.conv_general_dilated(
            xx, w, window_strides=(1, 1), padding=[(d, d), (d, d)],
            rhs_dilation=(d, d), dimension_numbers=dn)

    b1 = jax.lax.conv_general_dilated(
        x, p['w1'].reshape(1, 1, CIN, COUT), (1, 1), 'VALID',
        dimension_numbers=dn)
    b3 = dconv(x, p['w3'], DILS[0])
    b5 = dconv(x, p['w5'], DILS[1])
    b7 = dconv(x, p['w7'], DILS[2])
    cat = jnp.concatenate([b1, b3, b5, b7], axis=-1)
    c = jax.lax.conv_general_dilated(
        cat, p['wf'], (1, 1), [(1, 1), (1, 1)], dimension_numbers=dn)
    mean = jnp.mean(c, axis=(0, 1, 2), keepdims=True)
    var = jnp.mean(jnp.square(c - mean), axis=(0, 1, 2), keepdims=True)
    y = (c - mean) * jax.lax.rsqrt(var + BN_EPS)
    y = y * p['gamma'].reshape(1, 1, 1, COUT) + p['beta'].reshape(1, 1, 1, COUT)
    y = jnp.maximum(y, 0.0)
    return jnp.transpose(y, (0, 3, 1, 2))


if __name__ == "__main__":
    key = jax.random.PRNGKey(0)
    kx, kp = jax.random.split(key)
    x = jax.random.normal(kx, (N, CIN, H, W), jnp.float32)   # NCHW input
    params = init_params(kp)

    out = jax.block_until_ready(cpfe_forward(x, params))
    ref = jax.block_until_ready(cpfe_reference(x, params))

    assert out.shape == (N, COUT, H, W), out.shape
    err = float(jnp.max(jnp.abs(out - ref)))
    assert jnp.allclose(out, ref, atol=5e-3, rtol=5e-3), err
    print("KERNEL_OK")
</pallas_src>

<mosaic_0001>
module attributes {stable_mosaic.version = 11 : i64} {
  func.func @cpfe_kernel(%arg0: memref<2x16x16x32xf32, #tpu.memory_space<vmem>>, %arg1: memref<800x32xf32, #tpu.memory_space<vmem>>, %arg2: memref<8x288xf32, #tpu.memory_space<vmem>>, %arg3: memref<8x1xf32, #tpu.memory_space<vmem>>, %arg4: memref<8x1xf32, #tpu.memory_space<vmem>>, %arg5: memref<8x512xf32, #tpu.memory_space<vmem>>, %arg6: memref<2x30x31x32xf32, #tpu.memory_space<vmem>>, %arg7: memref<2x18x25x32xf32, #tpu.memory_space<vmem>>) attributes {dimension_semantics = [], scalar_prefetch = 0 : i64, scratch_operands = 2 : i64, tpu.core_type = #tpu.core_type<tc>} {
    %cst = arith.constant 0.000000e+00 : f32
    %0 = vector.broadcast %cst : f32 to vector<2x30x31x32xf32>
    %c0 = arith.constant 0 : index
    %c0_0 = arith.constant 0 : index
    %c0_1 = arith.constant 0 : index
    %c0_2 = arith.constant 0 : index
    %1 = vector.load %arg6[%c0, %c0_0, %c0_1, %c0_2] : memref<2x30x31x32xf32, #tpu.memory_space<vmem>>, vector<2x30x31x32xf32>
    tpu.vector_store %arg6[%c0, %c0_0, %c0_1, %c0_2], %0 {strides = array<i32>} : memref<2x30x31x32xf32, #tpu.memory_space<vmem>>, vector<2x30x31x32xf32>,
    %c0_3 = arith.constant 0 : index
    %c0_4 = arith.constant 0 : index
    %c0_5 = arith.constant 0 : index
    %c0_6 = arith.constant 0 : index
    %2 = vector.load %arg0[%c0_3, %c0_4, %c0_5, %c0_6] : memref<2x16x16x32xf32, #tpu.memory_space<vmem>>, vector<2x16x16x32xf32>
    %c0_7 = arith.constant 0 : index
    %c7 = arith.constant 7 : index
    %c8 = arith.constant 8 : index
    %c0_8 = arith.constant 0 : index
    %3 = vector.load %arg6[%c0_7, %c7, %c8, %c0_8] : memref<2x30x31x32xf32, #tpu.memory_space<vmem>>, vector<2x16x16x32xf32>
    tpu.vector_store %arg6[%c0_7, %c7, %c8, %c0_8], %2 {strides = array<i32>} : memref<2x30x31x32xf32, #tpu.memory_space<vmem>>, vector<2x16x16x32xf32>,
    %c0_9 = arith.constant 0 : index
    %c7_10 = arith.constant 7 : index
    %c8_11 = arith.constant 8 : index
    %c0_12 = arith.constant 0 : index
    %4 = vector.load %arg6[%c0_9, %c7_10, %c8_11, %c0_12] : memref<2x30x31x32xf32, #tpu.memory_space<vmem>>, vector<2x16x16x32xf32>
    %5 = vector.shape_cast %4 : vector<2x16x16x32xf32> to vector<512x32xf32>
    %c0_13 = arith.constant 0 : index
    %c4 = arith.constant 4 : index
    %c5 = arith.constant 5 : index
    %c0_14 = arith.constant 0 : index
    %6 = vector.load %arg6[%c0_13, %c4, %c5, %c0_14] : memref<2x30x31x32xf32, #tpu.memory_space<vmem>>, vector<2x16x16x32xf32>
    %7 = vector.shape_cast %6 : vector<2x16x16x32xf32> to vector<512x32xf32>
    %c0_15 = arith.constant 0 : index
    %c4_16 = arith.constant 4 : index
    %c8_17 = arith.constant 8 : index
    %c0_18 = arith.constant 0 : index
    %8 = vector.load %arg6[%c0_15, %c4_16, %c8_17, %c0_18] : memref<2x30x31x32xf32, #tpu.memory_space<vmem>>, vector<2x16x16x32xf32>
    %9 = vector.shape_cast %8 : vector<2x16x16x32xf32> to vector<512x32xf32>
    %c0_19 = arith.constant 0 : index
    %c4_20 = arith.constant 4 : index
    %c11 = arith.constant 11 : index
    %c0_21 = arith.constant 0 : index
    %10 = vector.load %arg6[%c0_19, %c4_20, %c11, %c0_21] : memref<2x30x31x32xf32, #tpu.memory_space<vmem>>, vector<2x16x16x32xf32>
    %11 = vector.shape_cast %10 : vector<2x16x16x32xf32> to vector<512x32xf32>
    %c0_22 = arith.constant 0 : index
    %c7_23 = arith.constant 7 : index
    %c5_24 = arith.constant 5 : index
    %c0_25 = arith.constant 0 : index
    %12 = vector.load %arg6[%c0_22, %c7_23, %c5_24, %c0_25] : memref<2x30x31x32xf32, #tpu.memory_space<vmem>>, vector<2x16x16x32xf32>
    %13 = vector.shape_cast %12 : vector<2x16x16x32xf32> to vector<512x32xf32>
    %c0_26 = arith.constant 0 : index
    %c7_27 = arith.constant 7 : index
    %c11_28 = arith.constant 11 : index
    %c0_29 = arith.constant 0 : index
    %14 = vector.load %arg6[%c0_26, %c7_27, %c11_28, %c0_29] : memref<2x30x31x32xf32, #tpu.memory_space<vmem>>, vector<2x16x16x32xf32>
    %15 = vector.shape_cast %14 : vector<2x16x16x32xf32> to vector<512x32xf32>
    %c0_30 = arith.constant 0 : index
    %c10 = arith.constant 10 : index
    %c5_31 = arith.constant 5 : index
    %c0_32 = arith.constant 0 : index
    %16 = vector.load %arg6[%c0_30, %c10, %c5_31, %c0_32] : memref<2x30x31x32xf32, #tpu.memory_space<vmem>>, vector<2x16x16x32xf32>
    %17 = vector.shape_cast %16 : vector<2x16x16x32xf32> to vector<512x32xf32>
    %c0_33 = arith.constant 0 : index
    %c10_34 = arith.constant 10 : index
    %c8_35 = arith.constant 8 : index
    %c0_36 = arith.constant 0 : index
    %18 = vector.load %arg6[%c0_33, %c10_34, %c8_35, %c0_36] : memref<2x30x31x32xf32, #tpu.memory_space<vmem>>, vector<2x16x16x32xf32>
    %19 = vector.shape_cast %18 : vector<2x16x16x32xf32> to vector<512x32xf32>
    %c0_37 = arith.constant 0 : index
    %c10_38 = arith.constant 10 : index
    %c11_39 = arith.constant 11 : index
    %c0_40 = arith.constant 0 : index
    %20 = vector.load %arg6[%c0_37, %c10_38, %c11_39, %c0_40] : memref<2x30x31x32xf32, #tpu.memory_space<vmem>>, vector<2x16x16x32xf32>
    %21 = vector.shape_cast %20 : vector<2x16x16x32xf32> to vector<512x32xf32>
    %c0_41 = arith.constant 0 : index
    %c2 = arith.constant 2 : index
    %c3 = arith.constant 3 : index
    %c0_42 = arith.constant 0 : index
    %22 = vector.load %arg6[%c0_41, %c2, %c3, %c0_42] : memref<2x30x31x32xf32, #tpu.memory_space<vmem>>, vector<2x16x16x32xf32>
    %23 = vector.shape_cast %22 : vector<2x16x16x32xf32> to vector<512x32xf32>
    %c0_43 = arith.constant 0 : index
    %c2_44 = arith.constant 2 : index
    %c8_45 = arith.constant 8 : index
    %c0_46 = arith.constant 0 : index
    %24 = vector.load %arg6[%c0_43, %c2_44, %c8_45, %c0_46] : memref<2x30x31x32xf32, #tpu.memory_space<vmem>>, vector<2x16x16x32xf32>
    %25 = vector.shape_cast %24 : vector<2x16x16x32xf32> to vector<512x32xf32>
    %c0_47 = arith.constant 0 : index
    %c2_48 = arith.constant 2 : index
    %c13 = arith.constant 13 : index
    %c0_49 = arith.constant 0 : index
    %26 = vector.load %arg6[%c0_47, %c2_48, %c13, %c0_49] : memref<2x30x31x32xf32, #tpu.memory_space<vmem>>, vector<2x16x16x32xf32>
    %27 = vector.shape_cast %26 : vector<2x16x16x32xf32> to vector<512x32xf32>
    %c0_50 = arith.constant 0 : index
    %c7_51 = arith.constant 7 : index
    %c3_52 = arith.constant 3 : index
    %c0_53 = arith.constant 0 : index
    %28 = vector.load %arg6[%c0_50, %c7_51, %c3_52, %c0_53] : memref<2x30x31x32xf32, #tpu.memory_space<vmem>>, vector<2x16x16x32xf32>
    %29 = vector.shape_cast %28 : vector<2x16x16x32xf32> to vector<512x32xf32>
    %c0_54 = arith.constant 0 : index
    %c7_55 = arith.constant 7 : index
    %c13_56 = arith.constant 13 : index
    %c0_57 = arith.constant 0 : index
    %30 = vector.load %arg6[%c0_54, %c7_55, %c13_56, %c0_57] : memref<2x30x31x32xf32, #tpu.memory_space<vmem>>, vector<2x16x16x32xf32>
    %31 = vector.shape_cast %30 : vector<2x16x16x32xf32> to vector<512x32xf32>
    %c0_58 = arith.constant 0 : index
    %c12 = arith.constant 12 : index
    %c3_59 = arith.constant 3 : index
    %c0_60 = arith.constant 0 : index
    %32 = vector.load %arg6[%c0_58, %c12, %c3_59, %c0_60] : memref<2x30x31x32xf32, #tpu.memory_space<vmem>>, vector<2x16x16x32xf32>
    %33 = vector.shape_cast %32 : vector<2x16x16x32xf32> to vector<512x32xf32>
    %c0_61 = arith.constant 0 : index
    %c12_62 = arith.constant 12 : index
    %c8_63 = arith.constant 8 : index
    %c0_64 = arith.constant 0 : index
    %34 = vector.load %arg6[%c0_61, %c12_62, %c8_63, %c0_64] : memref<2x30x31x32xf32, #tpu.memory_space<vmem>>, vector<2x16x16x32xf32>
    %35 = vector.shape_cast %34 : vector<2x16x16x32xf32> to vector<512x32xf32>
    %c0_65 = arith.constant 0 : index
    %c12_66 = arith.constant 12 : index
    %c13_67 = arith.constant 13 : index
    %c0_68 = arith.constant 0 : index
    %36 = vector.load %arg6[%c0_65, %c12_66, %c13_67, %c0_68] : memref<2x30x31x32xf32, #tpu.memory_space<vmem>>, vector<2x16x16x32xf32>
    %37 = vector.shape_cast %36 : vector<2x16x16x32xf32> to vector<512x32xf32>
    %c0_69 = arith.constant 0 : index
    %c0_70 = arith.constant 0 : index
    %c1 = arith.constant 1 : index
    %c0_71 = arith.constant 0 : index
    %38 = vector.load %arg6[%c0_69, %c0_70, %c1, %c0_71] : memref<2x30x31x32xf32, #tpu.memory_space<vmem>>, vector<2x16x16x32xf32>
    %39 = vector.shape_cast %38 : vector<2x16x16x32xf32> to vector<512x32xf32>
    %c0_72 = arith.constant 0 : index
    %c0_73 = arith.constant 0 : index
    %c8_74 = arith.constant 8 : index
    %c0_75 = arith.constant 0 : index
    %40 = vector.load %arg6[%c0_72, %c0_73, %c8_74, %c0_75] : memref<2x30x31x32xf32, #tpu.memory_space<vmem>>, vector<2x16x16x32xf32>
    %41 = vector.shape_cast %40 : vector<2x16x16x32xf32> to vector<512x32xf32>
    %c0_76 = arith.constant 0 : index
    %c0_77 = arith.constant 0 : index
    %c15 = arith.constant 15 : index
    %c0_78 = arith.constant 0 : index
    %42 = vector.load %arg6[%c0_76, %c0_77, %c15, %c0_78] : memref<2x30x31x32xf32, #tpu.memory_space<vmem>>, vector<2x16x16x32xf32>
    %43 = vector.shape_cast %42 : vector<2x16x16x32xf32> to vector<512x32xf32>
    %c0_79 = arith.constant 0 : index
    %c7_80 = arith.constant 7 : index
    %c1_81 = arith.constant 1 : index
    %c0_82 = arith.constant 0 : index
    %44 = vector.load %arg6[%c0_79, %c7_80, %c1_81, %c0_82] : memref<2x30x31x32xf32, #tpu.memory_space<vmem>>, vector<2x16x16x32xf32>
    %45 = vector.shape_cast %44 : vector<2x16x16x32xf32> to vector<512x32xf32>
    %c0_83 = arith.constant 0 : index
    %c7_84 = arith.constant 7 : index
    %c15_85 = arith.constant 15 : index
    %c0_86 = arith.constant 0 : index
    %46 = vector.load %arg6[%c0_83, %c7_84, %c15_85, %c0_86] : memref<2x30x31x32xf32, #tpu.memory_space<vmem>>, vector<2x16x16x32xf32>
    %47 = vector.shape_cast %46 : vector<2x16x16x32xf32> to vector<512x32xf32>
    %c0_87 = arith.constant 0 : index
    %c14 = arith.constant 14 : index
    %c1_88 = arith.constant 1 : index
    %c0_89 = arith.constant 0 : index
    %48 = vector.load %arg6[%c0_87, %c14, %c1_88, %c0_89] : memref<2x30x31x32xf32, #tpu.memory_space<vmem>>, vector<2x16x16x32xf32>
    %49 = vector.shape_cast %48 : vector<2x16x16x32xf32> to vector<512x32xf32>
    %c0_90 = arith.constant 0 : index
    %c14_91 = arith.constant 14 : index
    %c8_92 = arith.constant 8 : index
    %c0_93 = arith.constant 0 : index
    %50 = vector.load %arg6[%c0_90, %c14_91, %c8_92, %c0_93] : memref<2x30x31x32xf32, #tpu.memory_space<vmem>>, vector<2x16x16x32xf32>
    %51 = vector.shape_cast %50 : vector<2x16x16x32xf32> to vector<512x32xf32>
    %c0_94 = arith.constant 0 : index
    %c14_95 = arith.constant 14 : index
    %c15_96 = arith.constant 15 : index
    %c0_97 = arith.constant 0 : index
    %52 = vector.load %arg6[%c0_94, %c14_95, %c15_96, %c0_97] : memref<2x30x31x32xf32, #tpu.memory_space<vmem>>, vector<2x16x16x32xf32>
    %53 = vector.shape_cast %52 : vector<2x16x16x32xf32> to vector<512x32xf32>
    %54 = tpu.concatenate %5, %7, %9, %11, %13, %15, %17, %19, %21, %23, %25, %27, %29, %31, %33, %35 in 1 : vector<512x32xf32>, vector<512x32xf32>, vector<512x32xf32>, vector<512x32xf32>, vector<512x32xf32>, vector<512x32xf32>, vector<512x32xf32>, vector<512x32xf32>, vector<512x32xf32>, vector<512x32xf32>, vector<512x32xf32>, vector<512x32xf32>, vector<512x32xf32>, vector<512x32xf32>, vector<512x32xf32>, vector<512x32xf32> -> vector<512x512xf32>
    %55 = tpu.concatenate %37, %39, %41, %43, %45, %47, %49, %51, %53 in 1 : vector<512x32xf32>, vector<512x32xf32>, vector<512x32xf32>, vector<512x32xf32>, vector<512x32xf32>, vector<512x32xf32>, vector<512x32xf32>, vector<512x32xf32>, vector<512x32xf32> -> vector<512x288xf32>
    %56 = tpu.concatenate %54, %55 in 1 : vector<512x512xf32>, vector<512x288xf32> -> vector<512x800xf32>
    %c0_98 = arith.constant 0 : index
    %c0_99 = arith.constant 0 : index
    %57 = vector.load %arg1[%c0_98, %c0_99] : memref<800x32xf32, #tpu.memory_space<vmem>>, vector<800x32xf32>
    %cst_100 = arith.constant dense<0.000000e+00> : vector<512x32xf32>
    %58 = tpu.matmul %56, %57, %cst_100 {dimension_numbers = #tpu.dot_dimension_numbers<[1], [0], [0], [1], [0, 0, 1, 1], [], []>} : vector<512x800xf32>, vector<800x32xf32>, vector<512x32xf32> -> vector<512x32xf32>
    %cst_101 = arith.constant 0.000000e+00 : f32
    %59 = vector.broadcast %cst_101 : f32 to vector<2x18x25x32xf32>
    %c0_102 = arith.constant 0 : index
    %c0_103 = arith.constant 0 : index
    %c0_104 = arith.constant 0 : index
    %c0_105 = arith.constant 0 : index
    %60 = vector.load %arg7[%c0_102, %c0_103, %c0_104, %c0_105] : memref<2x18x25x32xf32, #tpu.memory_space<vmem>>, vector<2x18x25x32xf32>
    tpu.vector_store %arg7[%c0_102, %c0_103, %c0_104, %c0_105], %59 {strides = array<i32>} : memref<2x18x25x32xf32, #tpu.memory_space<vmem>>, vector<2x18x25x32xf32>,
    %61 = vector.shape_cast %58 : vector<512x32xf32> to vector<2x16x16x32xf32>
    %c0_106 = arith.constant 0 : index
    %c1_107 = arith.constant 1 : index
    %c8_108 = arith.constant 8 : index
    %c0_109 = arith.constant 0 : index
    %62 = vector.load %arg7[%c0_106, %c1_107, %c8_108, %c0_109] : memref<2x18x25x32xf32, #tpu.memory_space<vmem>>, vector<2x16x16x32xf32>
    tpu.vector_store %arg7[%c0_106, %c1_107, %c8_108, %c0_109], %61 {strides = array<i32>} : memref<2x18x25x32xf32, #tpu.memory_space<vmem>>, vector<2x16x16x32xf32>,
    %c0_110 = arith.constant 0 : index
    %c0_111 = arith.constant 0 : index
    %c7_112 = arith.constant 7 : index
    %c0_113 = arith.constant 0 : index
    %63 = vector.load %arg7[%c0_110, %c0_111, %c7_112, %c0_113] : memref<2x18x25x32xf32, #tpu.memory_space<vmem>>, vector<2x16x16x32xf32>
    %64 = vector.shape_cast %63 : vector<2x16x16x32xf32> to vector<512x32xf32>
    %c0_114 = arith.constant 0 : index
    %c0_115 = arith.constant 0 : index
    %c8_116 = arith.constant 8 : index
    %c0_117 = arith.constant 0 : index
    %65 = vector.load %arg7[%c0_114, %c0_115, %c8_116, %c0_117] : memref<2x18x25x32xf32, #tpu.memory_space<vmem>>, vector<2x16x16x32xf32>
    %66 = vector.shape_cast %65 : vector<2x16x16x32xf32> to vector<512x32xf32>
    %c0_118 = arith.constant 0 : index
    %c0_119 = arith.constant 0 : index
    %c9 = arith.constant 9 : index
    %c0_120 = arith.constant 0 : index
    %67 = vector.load %arg7[%c0_118, %c0_119, %c9, %c0_120] : memref<2x18x25x32xf32, #tpu.memory_space<vmem>>, vector<2x16x16x32xf32>
    %68 = vector.shape_cast %67 : vector<2x16x16x32xf32> to vector<512x32xf32>
    %c0_121 = arith.constant 0 : index
    %c1_122 = arith.constant 1 : index
    %c7_123 = arith.constant 7 : index
    %c0_124 = arith.constant 0 : index
    %69 = vector.load %arg7[%c0_121, %c1_122, %c7_123, %c0_124] : memref<2x18x25x32xf32, #tpu.memory_space<vmem>>, vector<2x16x16x32xf32>
    %70 = vector.shape_cast %69 : vector<2x16x16x32xf32> to vector<512x32xf32>
    %c0_125 = arith.constant 0 : index
    %c1_126 = arith.constant 1 : index
    %c8_127 = arith.constant 8 : index
    %c0_128 = arith.constant 0 : index
    %71 = vector.load %arg7[%c0_125, %c1_126, %c8_127, %c0_128] : memref<2x18x25x32xf32, #tpu.memory_space<vmem>>, vector<2x16x16x32xf32>
    %72 = vector.shape_cast %71 : vector<2x16x16x32xf32> to vector<512x32xf32>
    %c0_129 = arith.constant 0 : index
    %c1_130 = arith.constant 1 : index
    %c9_131 = arith.constant 9 : index
    %c0_132 = arith.constant 0 : index
    %73 = vector.load %arg7[%c0_129, %c1_130, %c9_131, %c0_132] : memref<2x18x25x32xf32, #tpu.memory_space<vmem>>, vector<2x16x16x32xf32>
    %74 = vector.shape_cast %73 : vector<2x16x16x32xf32> to vector<512x32xf32>
    %c0_133 = arith.constant 0 : index
    %c2_134 = arith.constant 2 : index
    %c7_135 = arith.constant 7 : index
    %c0_136 = arith.constant 0 : index
    %75 = vector.load %arg7[%c0_133, %c2_134, %c7_135, %c0_136] : memref<2x18x25x32xf32, #tpu.memory_space<vmem>>, vector<2x16x16x32xf32>
    %76 = vector.shape_cast %75 : vector<2x16x16x32xf32> to vector<512x32xf32>
    %c0_137 = arith.constant 0 : index
    %c2_138 = arith.constant 2 : index
    %c8_139 = arith.constant 8 : index
    %c0_140 = arith.constant 0 : index
    %77 = vector.load %arg7[%c0_137, %c2_138, %c8_139, %c0_140] : memref<2x18x25x32xf32, #tpu.memory_space<vmem>>, vector<2x16x16x32xf32>
    %78 = vector.shape_cast %77 : vector<2x16x16x32xf32> to vector<512x32xf32>
    %c0_141 = arith.constant 0 : index
    %c2_142 = arith.constant 2 : index
    %c9_143 = arith.constant 9 : index
    %c0_144 = arith.constant 0 : index
    %79 = vector.load %arg7[%c0_141, %c2_142, %c9_143, %c0_144] : memref<2x18x25x32xf32, #tpu.memory_space<vmem>>, vector<2x16x16x32xf32>
    %80 = vector.shape_cast %79 : vector<2x16x16x32xf32> to vector<512x32xf32>
    %81 = tpu.concatenate %64, %66, %68, %70, %72, %74, %76, %78, %80 in 1 : vector<512x32xf32>, vector<512x32xf32>, vector<512x32xf32>, vector<512x32xf32>, vector<512x32xf32>, vector<512x32xf32>, vector<512x32xf32>, vector<512x32xf32>, vector<512x32xf32> -> vector<512x288xf32>
    %c0_145 = arith.constant 0 : index
    %c0_146 = arith.constant 0 : index
    %82 = vector.load %arg2[%c0_145, %c0_146] : memref<8x288xf32, #tpu.memory_space<vmem>>, vector<8x288xf32>
    %cst_147 = arith.constant dense<0.000000e+00> : vector<8x512xf32>
    %83 = tpu.matmul %82, %81, %cst_147 {dimension_numbers = #tpu.dot_dimension_numbers<[1], [1], [0], [0], [0, 0, 1, 0], [], []>} : vector<8x288xf32>, vector<512x288xf32>, vector<8x512xf32> -> vector<8x512xf32>
    %cst_148 = arith.constant dense<0.000000e+00> : vector<8xf32>
    %84 = vector.multi_reduction <add>, %83, %cst_148 [1] : vector<8x512xf32> to vector<8xf32>
    %85 = vector.shape_cast %84 : vector<8xf32> to vector<8x1xf32>
    %cst_149 = arith.constant 5.120000e+02 : f32
    %86 = vector.broadcast %cst_149 : f32 to vector<8x1xf32>
    %87 = arith.divf %85, %86 : vector<8x1xf32>
    %88 = vector.broadcast %87 : vector<8x1xf32> to vector<8x512xf32>
    %89 = arith.subf %83, %88 : vector<8x512xf32>
    %90 = arith.mulf %89, %89 : vector<8x512xf32>
    %cst_150 = arith.constant dense<0.000000e+00> : vector<8xf32>
    %91 = vector.multi_reduction <add>, %90, %cst_150 [1] : vector<8x512xf32> to vector<8xf32>
    %92 = vector.shape_cast %91 : vector<8xf32> to vector<8x1xf32>
    %cst_151 = arith.constant 5.120000e+02 : f32
    %93 = vector.broadcast %cst_151 : f32 to vector<8x1xf32>
    %94 = arith.divf %92, %93 : vector<8x1xf32>
    %95 = vector.broadcast %87 : vector<8x1xf32> to vector<8x512xf32>
    %96 = arith.subf %83, %95 : vector<8x512xf32>
    %cst_152 = arith.constant 9.99999974E-6 : f32
    %97 = vector.broadcast %cst_152 : f32 to vector<8x1xf32>
    %98 = arith.addf %94, %97 : vector<8x1xf32>
    %99 = math.rsqrt %98 : vector<8x1xf32>
    %100 = vector.broadcast %99 : vector<8x1xf32> to vector<8x512xf32>
    %101 = arith.mulf %96, %100 : vector<8x512xf32>
    %c0_153 = arith.constant 0 : index
    %c0_154 = arith.constant 0 : index
    %102 = vector.load %arg3[%c0_153, %c0_154] : memref<8x1xf32, #tpu.memory_space<vmem>>, vector<8x1xf32>
    %103 = vector.broadcast %102 : vector<8x1xf32> to vector<8x512xf32>
    %104 = arith.mulf %101, %103 : vector<8x512xf32>
    %c0_155 = arith.constant 0 : index
    %c0_156 = arith.constant 0 : index
    %105 = vector.load %arg4[%c0_155, %c0_156] : memref<8x1xf32, #tpu.memory_space<vmem>>, vector<8x1xf32>
    %106 = vector.broadcast %105 : vector<8x1xf32> to vector<8x512xf32>
    %107 = arith.addf %104, %106 : vector<8x512xf32>
    %cst_157 = arith.constant 0.000000e+00 : f32
    %108 = vector.broadcast %cst_157 : f32 to vector<8x512xf32>
    %109 = arith.maximumf %107, %108 : vector<8x512xf32>
    %c0_158 = arith.constant 0 : index
    %c0_159 = arith.constant 0 : index
    %110 = vector.load %arg5[%c0_158, %c0_159] : memref<8x512xf32, #tpu.memory_space<vmem>>, vector<8x512xf32>
    tpu.vector_store %arg5[%c0_158, %c0_159], %109 {strides = array<i32>} : memref<8x512xf32, #tpu.memory_space<vmem>>, vector<8x512xf32>,
    return
  }
}

</mosaic_0001>

<llo_original>
// kernel: cpfe_forward.1
$region0: #{cpfe_forward.1}
  #allocation0 [shape = 'u32[]', space=smem, size = 0x4, offset = 0x4, fixed_abs, tag = 'smem constant byte address 0x4 - core index']
  #allocation1 [shape = 'u32[144,128]{1,0:T(1,128)}', space=vmem, size = 0x12000, scoped, tag = 'internal scratch']
  #allocation2 [shape = 'f32[2,30,31,32]{3,2,1,0:T(8,128)}', space=vmem, size = 0xf0000, scoped, tag = 'scratch operand']
  #allocation3 [shape = 'f32[2,18,25,32]{3,2,1,0:T(8,128)}', space=vmem, size = 0x90000, scoped, tag = 'scratch operand']
  %s0 = inlined_call_operand.vmem [shape: f32[2,16,16,32], index: 0, kind: input, shape index: {}]
  %s1 = inlined_call_operand.vmem [shape: f32[800,32], index: 1, kind: input, shape index: {}]
  %s2 = inlined_call_operand.vmem [shape: f32[8,288], index: 2, kind: input, shape index: {}]
  %s3 = inlined_call_operand.vmem [shape: f32[8,1], index: 3, kind: input, shape index: {}]
  %s4 = inlined_call_operand.vmem [shape: f32[8,1], index: 4, kind: input, shape index: {}]
  %s5 = inlined_call_operand.vmem [shape: f32[8,512], index: 5, kind: output, shape index: {}]
  %s6 = sld [smem:[#allocation0]]
  $region30: #{cpfe_forward.1} parent=0
    _
  %s8 = ssub.s32 1, %s6
  %s9 = scalar_select 0, %s8, %s6
  // Predicated region
  $region2: #{cpfe_forward.1} parent=0 // pred_check
    _
  $region3: #{cpfe_forward.1} parent=0 // pred_check_branch
    %11 = sbr.rel (0) target = $region5
  $region4: #{cpfe_forward.1} parent=0 // pred_region
    _
  $region5: #{cpfe_forward.1} parent=0 // pred_fallthru
    _
  // Predicated region
  $region6: #{cpfe_forward.1} parent=0 // pred_check
    _
  $region7: #{cpfe_forward.1} parent=0 // pred_check_branch
    %13 = sbr.rel (0) target = $region9
  $region8: #{cpfe_forward.1} parent=0 // pred_region
    _
  $region9: #{cpfe_forward.1} parent=0 // pred_fallthru
    _
  // Predicated region
  $region10: #{cpfe_forward.1} parent=0 // pred_check
    _
  $region11: #{cpfe_forward.1} parent=0 // pred_check_branch
    %15 = sbr.rel (0) target = $region13
  $region12: #{cpfe_forward.1} parent=0 // pred_region
    _
  $region13: #{cpfe_forward.1} parent=0 // pred_fallthru
    _
  // Predicated region
  $region14: #{cpfe_forward.1} parent=0 // pred_check
    _
  $region15: #{cpfe_forward.1} parent=0 // pred_check_branch
    %17 = sbr.rel (0) target = $region17
  $region16: #{cpfe_forward.1} parent=0 // pred_region
    _
  $region17: #{cpfe_forward.1} parent=0 // pred_fallthru
    _
  // Predicated region
  $region18: #{cpfe_forward.1} parent=0 // pred_check
    _
  $region19: #{cpfe_forward.1} parent=0 // pred_check_branch
    %19 = sbr.rel (0) target = $region21
  $region20: #{cpfe_forward.1} parent=0 // pred_region
    _
  $region21: #{cpfe_forward.1} parent=0 // pred_fallthru
    _
  %vm20 = vcmask 261120
  %21 = vst.msk [vmem:[#allocation2] sm:$0xff] %vm20, 0.0
  %22 = vst.msk [vmem:[#allocation2 + $0x8] sm:$0xff] %vm20, 0.0
  %23 = vst.msk [vmem:[#allocation2 + $0x10] sm:$0xff] %vm20, 0.0
  %vm24 = vcmask 260096
  %25 = vst.msk [vmem:[#allocation2 + $0x18] sm:$0x7f] %vm24, 0.0
  %26 = vst.msk [vmem:[#allocation2 + $0x20] sm:$0xff] %vm20, 0.0
  %27 = vst.msk [vmem:[#allocation2 + $0x28] sm:$0xff] %vm20, 0.0
  %28 = vst.msk [vmem:[#allocation2 + $0x30] sm:$0xff] %vm20, 0.0
  %29 = vst.msk [vmem:[#allocation2 + $0x38] sm:$0x7f] %vm24, 0.0
  %30 = vst.msk [vmem:[#allocation2 + $0x40] sm:$0xff] %vm20, 0.0
  %31 = vst.msk [vmem:[#allocation2 + $0x48] sm:$0xff] %vm20, 0.0
  %32 = vst.msk [vmem:[#allocation2 + $0x50] sm:$0xff] %vm20, 0.0
  %33 = vst.msk [vmem:[#allocation2 + $0x58] sm:$0x7f] %vm24, 0.0
  %34 = vst.msk [vmem:[#allocation2 + $0x60] sm:$0xff] %vm20, 0.0
  %35 = vst.msk [vmem:[#allocation2 + $0x68] sm:$0xff] %vm20, 0.0
  %36 = vst.msk [vmem:[#allocation2 + $0x70] sm:$0xff] %vm20, 0.0
  %37 = vst.msk [vmem:[#allocation2 + $0x78] sm:$0x7f] %vm24, 0.0
  %38 = vst.msk [vmem:[#allocation2 + $0x80] sm:$0xff] %vm20, 0.0
  %39 = vst.msk [vmem:[#allocation2 + $0x88] sm:$0xff] %vm20, 0.0
  %40 = vst.msk [vmem:[#allocation2 + $0x90] sm:$0xff] %vm20, 0.0
  %41 = vst.msk [vmem:[#allocation2 + $0x98] sm:$0x7f] %vm24, 0.0
  %42 = vst.msk [vmem:[#allocation2 + $0xa0] sm:$0xff] %vm20, 0.0
  %43 = vst.msk [vmem:[#allocation2 + $0xa8] sm:$0xff] %vm20, 0.0
  %44 = vst.msk [vmem:[#allocation2 + $0xb0] sm:$0xff] %vm20, 0.0
  %45 = vst.msk [vmem:[#allocation2 + $0xb8] sm:$0x7f] %vm24, 0.0
  %46 = vst.msk [vmem:[#allocation2 + $0xc0] sm:$0xff] %vm20, 0.0
  %47 = vst.msk [vmem:[#allocation2 + $0xc8] sm:$0xff] %vm20, 0.0
  %48 = vst.msk [vmem:[#allocation2 + $0xd0] sm:$0xff] %vm20, 0.0
  %49 = vst.msk [vmem:[#allocation2 + $0xd8] sm:$0x7f] %vm24, 0.0
  %50 = vst.msk [vmem:[#allocation2 + $0xe0] sm:$0xff] %vm20, 0.0
  %51 = vst.msk [vmem:[#allocation2 + $0xe8] sm:$0xff] %vm20, 0.0
  %52 = vst.msk [vmem:[#allocation2 + $0xf0] sm:$0xff] %vm20, 0.0
  %53 = vst.msk [vmem:[#allocation2 + $0xf8] sm:$0x7f] %vm24, 0.0
  %54 = vst.msk [vmem:[#allocation2 + $0x100] sm:$0xff] %vm20, 0.0
  %55 = vst.msk [vmem:[#allocation2 + $0x108] sm:$0xff] %vm20, 0.0
  %56 = vst.msk [vmem:[#allocation2 + $0x110] sm:$0xff] %vm20, 0.0
  %57 = vst.msk [vmem:[#allocation2 + $0x118] sm:$0x7f] %vm24, 0.0
  %58 = vst.msk [vmem:[#allocation2 + $0x120] sm:$0xff] %vm20, 0.0
  %59 = vst.msk [vmem:[#allocation2 + $0x128] sm:$0xff] %vm20, 0.0
  %60 = vst.msk [vmem:[#allocation2 + $0x130] sm:$0xff] %vm20, 0.0
  %61 = vst.msk [vmem:[#allocation2 + $0x138] sm:$0x7f] %vm24, 0.0
  %62 = vst.msk [vmem:[#allocation2 + $0x140] sm:$0xff] %vm20, 0.0
  %63 = vst.msk [vmem:[#allocation2 + $0x148] sm:$0xff] %vm20, 0.0
  %64 = vst.msk [vmem:[#allocation2 + $0x150] sm:$0xff] %vm20, 0.0
  %65 = vst.msk [vmem:[#allocation2 + $0x158] sm:$0x7f] %vm24, 0.0
  %66 = vst.msk [vmem:[#allocation2 + $0x160] sm:$0xff] %vm20, 0.0
  %67 = vst.msk [vmem:[#allocation2 + $0x168] sm:$0xff] %vm20, 0.0
  %68 = vst.msk [vmem:[#allocation2 + $0x170] sm:$0xff] %vm20, 0.0
  %69 = vst.msk [vmem:[#allocation2 + $0x178] sm:$0x7f] %vm24, 0.0
  %70 = vst.msk [vmem:[#allocation2 + $0x180] sm:$0xff] %vm20, 0.0
  %71 = vst.msk [vmem:[#allocation2 + $0x188] sm:$0xff] %vm20, 0.0
  %72 = vst.msk [vmem:[#allocation2 + $0x190] sm:$0xff] %vm20, 0.0
  %73 = vst.msk [vmem:[#allocation2 + $0x198] sm:$0x7f] %vm24, 0.0
  %74 = vst.msk [vmem:[#allocation2 + $0x1a0] sm:$0xff] %vm20, 0.0
  %75 = vst.msk [vmem:[#allocation2 + $0x1a8] sm:$0xff] %vm20, 0.0
  %76 = vst.msk [vmem:[#allocation2 + $0x1b0] sm:$0xff] %vm20, 0.0
  %77 = vst.msk [vmem:[#allocation2 + $0x1b8] sm:$0x7f] %vm24, 0.0
  %78 = vst.msk [vmem:[#allocation2 + $0x1c0] sm:$0xff] %vm20, 0.0
  %79 = vst.msk [vmem:[#allocation2 + $0x1c8] sm:$0xff] %vm20, 0.0
  %80 = vst.msk [vmem:[#allocation2 + $0x1d0] sm:$0xff] %vm20, 0.0
  %81 = vst.msk [vmem:[#allocation2 + $0x1d8] sm:$0x7f] %vm24, 0.0
  %82 = vst.msk [vmem:[#allocation2 + $0x1e0] sm:$0xff] %vm20, 0.0
  %83 = vst.msk [vmem:[#allocation2 + $0x1e8] sm:$0xff] %vm20, 0.0
  %84 = vst.msk [vmem:[#allocation2 + $0x1f0] sm:$0xff] %vm20, 0.0
  %85 = vst.msk [vmem:[#allocation2 + $0x1f8] sm:$0x7f] %vm24, 0.0
  %86 = vst.msk [vmem:[#allocation2 + $0x200] sm:$0xff] %vm20, 0.0
  %87 = vst.msk [vmem:[#allocation2 + $0x208] sm:$0xff] %vm20, 0.0
  %88 = vst.msk [vmem:[#allocation2 + $0x210] sm:$0xff] %vm20, 0.0
  %89 = vst.msk [vmem:[#allocation2 + $0x218] sm:$0x7f] %vm24, 0.0
  %90 = vst.msk [vmem:[#allocation2 + $0x220] sm:$0xff] %vm20, 0.0
  %91 = vst.msk [vmem:[#allocation2 + $0x228] sm:$0xff] %vm20, 0.0
  %92 = vst.msk [vmem:[#allocation2 + $0x230] sm:$0xff] %vm20, 0.0
  %93 = vst.msk [vmem:[#allocation2 + $0x238] sm:$0x7f] %vm24, 0.0
  %94 = vst.msk [vmem:[#allocation2 + $0x240] sm:$0xff] %vm20, 0.0
  %95 = vst.msk [vmem:[#allocation2 + $0x248] sm:$0xff] %vm20, 0.0
  %96 = vst.msk [vmem:[#allocation2 + $0x250] sm:$0xff] %vm20, 0.0
  %97 = vst.msk [vmem:[#allocation2 + $0x258] sm:$0x7f] %vm24, 0.0
  %98 = vst.msk [vmem:[#allocation2 + $0x260] sm:$0xff] %vm20, 0.0
  %99 = vst.msk [vmem:[#allocation2 + $0x268] sm:$0xff] %vm20, 0.0
  %100 = vst.msk [vmem:[#allocation2 + $0x270] sm:$0xff] %vm20, 0.0
  %101 = vst.msk [vmem:[#allocation2 + $0x278] sm:$0x7f] %vm24, 0.0
  %102 = vst.msk [vmem:[#allocation2 + $0x280] sm:$0xff] %vm20, 0.0
  %103 = vst.msk [vmem:[#allocation2 + $0x288] sm:$0xff] %vm20, 0.0
  %104 = vst.msk [vmem:[#allocation2 + $0x290] sm:$0xff] %vm20, 0.0
  %105 = vst.msk [vmem:[#allocation2 + $0x298] sm:$0x7f] %vm24, 0.0
  %106 = vst.msk [vmem:[#allocation2 + $0x2a0] sm:$0xff] %vm20, 0.0
  %107 = vst.msk [vmem:[#allocation2 + $0x2a8] sm:$0xff] %vm20, 0.0
  %108 = vst.msk [vmem:[#allocation2 + $0x2b0] sm:$0xff] %vm20, 0.0
  %109 = vst.msk [vmem:[#allocation2 + $0x2b8] sm:$0x7f] %vm24, 0.0
  %110 = vst.msk [vmem:[#allocation2 + $0x2c0] sm:$0xff] %vm20, 0.0
  %111 = vst.msk [vmem:[#allocation2 + $0x2c8] sm:$0xff] %vm20, 0.0
  %112 = vst.msk [vmem:[#allocation2 + $0x2d0] sm:$0xff] %vm20, 0.0
  %113 = vst.msk [vmem:[#allocation2 + $0x2d8] sm:$0x7f] %vm24, 0.0
  %114 = vst.msk [vmem:[#allocation2 + $0x2e0] sm:$0xff] %vm20, 0.0
  %115 = vst.msk [vmem:[#allocation2 + $0x2e8] sm:$0xff] %vm20, 0.0
  %116 = vst.msk [vmem:[#allocation2 + $0x2f0] sm:$0xff] %vm20, 0.0
  %117 = vst.msk [vmem:[#allocation2 + $0x2f8] sm:$0x7f] %vm24, 0.0
  %118 = vst.msk [vmem:[#allocation2 + $0x300] sm:$0xff] %vm20, 0.0
  %119 = vst.msk [vmem:[#allocation2 + $0x308] sm:$0xff] %vm20, 0.0
  %120 = vst.msk [vmem:[#allocation2 + $0x310] sm:$0xff] %vm20, 0.0
  %121 = vst.msk [vmem:[#allocation2 + $0x318] sm:$0x7f] %vm24, 0.0
  %122 = vst.msk [vmem:[#allocation2 + $0x320] sm:$0xff] %vm20, 0.0
  %123 = vst.msk [vmem:[#allocation2 + $0x328] sm:$0xff] %vm20, 0.0
  %124 = vst.msk [vmem:[#allocation2 + $0x330] sm:$0xff] %vm20, 0.0
  %125 = vst.msk [vmem:[#allocation2 + $0x338] sm:$0x7f] %vm24, 0.0
  %126 = vst.msk [vmem:[#allocation2 + $0x340] sm:$0xff] %vm20, 0.0
  %127 = vst.msk [vmem:[#allocation2 + $0x348] sm:$0xff] %vm20, 0.0
  %128 = vst.msk [vmem:[#allocation2 + $0x350] sm:$0xff] %vm20, 0.0
  %129 = vst.msk [vmem:[#allocation2 + $0x358] sm:$0x7f] %vm24, 0.0
  %130 = vst.msk [vmem:[#allocation2 + $0x360] sm:$0xff] %vm20, 0.0
  %131 = vst.msk [vmem:[#allocation2 + $0x368] sm:$0xff] %vm20, 0.0
  %132 = vst.msk [vmem:[#allocation2 + $0x370] sm:$0xff] %vm20, 0.0
  %133 = vst.msk [vmem:[#allocation2 + $0x378] sm:$0x7f] %vm24, 0.0
  %134 = vst.msk [vmem:[#allocation2 + $0x380] sm:$0xff] %vm20, 0.0
  %135 = vst.msk [vmem:[#allocation2 + $0x388] sm:$0xff] %vm20, 0.0
  %136 = vst.msk [vmem:[#allocation2 + $0x390] sm:$0xff] %vm20, 0.0
  %137 = vst.msk [vmem:[#allocation2 + $0x398] sm:$0x7f] %vm24, 0.0
  %138 = vst.msk [vmem:[#allocation2 + $0x3a0] sm:$0xff] %vm20, 0.0
  %139 = vst.msk [vmem:[#allocation2 + $0x3a8] sm:$0xff] %vm20, 0.0
  %140 = vst.msk [vmem:[#allocation2 + $0x3b0] sm:$0xff] %vm20, 0.0
  %141 = vst.msk [vmem:[#allocation2 + $0x3b8] sm:$0x7f] %vm24, 0.0
  %142 = vst.msk [vmem:[#allocation2 + $0x3c0] sm:$0xff] %vm20, 0.0
  %143 = vst.msk [vmem:[#allocation2 + $0x3c8] sm:$0xff] %vm20, 0.0
  %144 = vst.msk [vmem:[#allocation2 + $0x3d0] sm:$0xff] %vm20, 0.0
  %145 = vst.msk [vmem:[#allocation2 + $0x3d8] sm:$0x7f] %vm24, 0.0
  %146 = vst.msk [vmem:[#allocation2 + $0x3e0] sm:$0xff] %vm20, 0.0
  %147 = vst.msk [vmem:[#allocation2 + $0x3e8] sm:$0xff] %vm20, 0.0
  %148 = vst.msk [vmem:[#allocation2 + $0x3f0] sm:$0xff] %vm20, 0.0
  %149 = vst.msk [vmem:[#allocation2 + $0x3f8] sm:$0x7f] %vm24, 0.0
  %150 = vst.msk [vmem:[#allocation2 + $0x400] sm:$0xff] %vm20, 0.0
  %151 = vst.msk [vmem:[#allocation2 + $0x408] sm:$0xff] %vm20, 0.0
  %152 = vst.msk [vmem:[#allocation2 + $0x410] sm:$0xff] %vm20, 0.0
  %153 = vst.msk [vmem:[#allocation2 + $0x418] sm:$0x7f] %vm24, 0.0
  %154 = vst.msk [vmem:[#allocation2 + $0x420] sm:$0xff] %vm20, 0.0
  %155 = vst.msk [vmem:[#allocation2 + $0x428] sm:$0xff] %vm20, 0.0
  %156 = vst.msk [vmem:[#allocation2 + $0x430] sm:$0xff] %vm20, 0.0
  %157 = vst.msk [vmem:[#allocation2 + $0x438] sm:$0x7f] %vm24, 0.0
  %158 = vst.msk [vmem:[#allocation2 + $0x440] sm:$0xff] %vm20, 0.0
  %159 = vst.msk [vmem:[#allocation2 + $0x448] sm:$0xff] %vm20, 0.0
  %160 = vst.msk [vmem:[#allocation2 + $0x450] sm:$0xff] %vm20, 0.0
  %161 = vst.msk [vmem:[#allocation2 + $0x458] sm:$0x7f] %vm24, 0.0
  %162 = vst.msk [vmem:[#allocation2 + $0x460] sm:$0xff] %vm20, 0.0
  %163 = vst.msk [vmem:[#allocation2 + $0x468] sm:$0xff] %vm20, 0.0
  %164 = vst.msk [vmem:[#allocation2 + $0x470] sm:$0xff] %vm20, 0.0
  %165 = vst.msk [vmem:[#allocation2 + $0x478] sm:$0x7f] %vm24, 0.0
  %166 = vst.msk [vmem:[#allocation2 + $0x480] sm:$0xff] %vm20, 0.0
  %167 = vst.msk [vmem:[#allocation2 + $0x488] sm:$0xff] %vm20, 0.0
  %168 = vst.msk [vmem:[#allocation2 + $0x490] sm:$0xff] %vm20, 0.0
  %169 = vst.msk [vmem:[#allocation2 + $0x498] sm:$0x7f] %vm24, 0.0
  %170 = vst.msk [vmem:[#allocation2 + $0x4a0] sm:$0xff] %vm20, 0.0
  %171 = vst.msk [vmem:[#allocation2 + $0x4a8] sm:$0xff] %vm20, 0.0
  %172 = vst.msk [vmem:[#allocation2 + $0x4b0] sm:$0xff] %vm20, 0.0
  %173 = vst.msk [vmem:[#allocation2 + $0x4b8] sm:$0x7f] %vm24, 0.0
  %174 = vst.msk [vmem:[#allocation2 + $0x4c0] sm:$0xff] %vm20, 0.0
  %175 = vst.msk [vmem:[#allocation2 + $0x4c8] sm:$0xff] %vm20, 0.0
  %176 = vst.msk [vmem:[#allocation2 + $0x4d0] sm:$0xff] %vm20, 0.0
  %177 = vst.msk [vmem:[#allocation2 + $0x4d8] sm:$0x7f] %vm24, 0.0
  %178 = vst.msk [vmem:[#allocation2 + $0x4e0] sm:$0xff] %vm20, 0.0
  %179 = vst.msk [vmem:[#allocation2 + $0x4e8] sm:$0xff] %vm20, 0.0
  %180 = vst.msk [vmem:[#allocation2 + $0x4f0] sm:$0xff] %vm20, 0.0
  %181 = vst.msk [vmem:[#allocation2 + $0x4f8] sm:$0x7f] %vm24, 0.0
  %182 = vst.msk [vmem:[#allocation2 + $0x500] sm:$0xff] %vm20, 0.0
  %183 = vst.msk [vmem:[#allocation2 + $0x508] sm:$0xff] %vm20, 0.0
  %184 = vst.msk [vmem:[#allocation2 + $0x510] sm:$0xff] %vm20, 0.0
  %185 = vst.msk [vmem:[#allocation2 + $0x518] sm:$0x7f] %vm24, 0.0
  %186 = vst.msk [vmem:[#allocation2 + $0x520] sm:$0xff] %vm20, 0.0
  %187 = vst.msk [vmem:[#allocation2 + $0x528] sm:$0xff] %vm20, 0.0
  %188 = vst.msk [vmem:[#allocation2 + $0x530] sm:$0xff] %vm20, 0.0
  %189 = vst.msk [vmem:[#allocation2 + $0x538] sm:$0x7f] %vm24, 0.0
  %190 = vst.msk [vmem:[#allocation2 + $0x540] sm:$0xff] %vm20, 0.0
  %191 = vst.msk [vmem:[#allocation2 + $0x548] sm:$0xff] %vm20, 0.0
  %192 = vst.msk [vmem:[#allocation2 + $0x550] sm:$0xff] %vm20, 0.0
  %193 = vst.msk [vmem:[#allocation2 + $0x558] sm:$0x7f] %vm24, 0.0
  %194 = vst.msk [vmem:[#allocation2 + $0x560] sm:$0xff] %vm20, 0.0
  %195 = vst.msk [vmem:[#allocation2 + $0x568] sm:$0xff] %vm20, 0.0
  %196 = vst.msk [vmem:[#allocation2 + $0x570] sm:$0xff] %vm20, 0.0
  %197 = vst.msk [vmem:[#allocation2 + $0x578] sm:$0x7f] %vm24, 0.0
  %198 = vst.msk [vmem:[#allocation2 + $0x580] sm:$0xff] %vm20, 0.0
  %199 = vst.msk [vmem:[#allocation2 + $0x588] sm:$0xff] %vm20, 0.0
  %200 = vst.msk [vmem:[#allocation2 + $0x590] sm:$0xff] %vm20, 0.0
  %201 = vst.msk [vmem:[#allocation2 + $0x598] sm:$0x7f] %vm24, 0.0
  %202 = vst.msk [vmem:[#allocation2 + $0x5a0] sm:$0xff] %vm20, 0.0
  %203 = vst.msk [vmem:[#allocation2 + $0x5a8] sm:$0xff] %vm20, 0.0
  %204 = vst.msk [vmem:[#allocation2 + $0x5b0] sm:$0xff] %vm20, 0.0
  %205 = vst.msk [vmem:[#allocation2 + $0x5b8] sm:$0x7f] %vm24, 0.0
  %206 = vst.msk [vmem:[#allocation2 + $0x5c0] sm:$0xff] %vm20, 0.0
  %207 = vst.msk [vmem:[#allocation2 + $0x5c8] sm:$0xff] %vm20, 0.0
  %208 = vst.msk [vmem:[#allocation2 + $0x5d0] sm:$0xff] %vm20, 0.0
  %209 = vst.msk [vmem:[#allocation2 + $0x5d8] sm:$0x7f] %vm24, 0.0
  %210 = vst.msk [vmem:[#allocation2 + $0x5e0] sm:$0xff] %vm20, 0.0
  %211 = vst.msk [vmem:[#allocation2 + $0x5e8] sm:$0xff] %vm20, 0.0
  %212 = vst.msk [vmem:[#allocation2 + $0x5f0] sm:$0xff] %vm20, 0.0
  %213 = vst.msk [vmem:[#allocation2 + $0x5f8] sm:$0x7f] %vm24, 0.0
  %214 = vst.msk [vmem:[#allocation2 + $0x600] sm:$0xff] %vm20, 0.0
  %215 = vst.msk [vmem:[#allocation2 + $0x608] sm:$0xff] %vm20, 0.0
  %216 = vst.msk [vmem:[#allocation2 + $0x610] sm:$0xff] %vm20, 0.0
  %217 = vst.msk [vmem:[#allocation2 + $0x618] sm:$0x7f] %vm24, 0.0
  %218 = vst.msk [vmem:[#allocation2 + $0x620] sm:$0xff] %vm20, 0.0
  %219 = vst.msk [vmem:[#allocation2 + $0x628] sm:$0xff] %vm20, 0.0
  %220 = vst.msk [vmem:[#allocation2 + $0x630] sm:$0xff] %vm20, 0.0
  %221 = vst.msk [vmem:[#allocation2 + $0x638] sm:$0x7f] %vm24, 0.0
  %222 = vst.msk [vmem:[#allocation2 + $0x640] sm:$0xff] %vm20, 0.0
  %223 = vst.msk [vmem:[#allocation2 + $0x648] sm:$0xff] %vm20, 0.0
  %224 = vst.msk [vmem:[#allocation2 + $0x650] sm:$0xff] %vm20, 0.0
  %225 = vst.msk [vmem:[#allocation2 + $0x658] sm:$0x7f] %vm24, 0.0
  %226 = vst.msk [vmem:[#allocation2 + $0x660] sm:$0xff] %vm20, 0.0
  %227 = vst.msk [vmem:[#allocation2 + $0x668] sm:$0xff] %vm20, 0.0
  %228 = vst.msk [vmem:[#allocation2 + $0x670] sm:$0xff] %vm20, 0.0
  %229 = vst.msk [vmem:[#allocation2 + $0x678] sm:$0x7f] %vm24, 0.0
  %230 = vst.msk [vmem:[#allocation2 + $0x680] sm:$0xff] %vm20, 0.0
  %231 = vst.msk [vmem:[#allocation2 + $0x688] sm:$0xff] %vm20, 0.0
  %232 = vst.msk [vmem:[#allocation2 + $0x690] sm:$0xff] %vm20, 0.0
  %233 = vst.msk [vmem:[#allocation2 + $0x698] sm:$0x7f] %vm24, 0.0
  %234 = vst.msk [vmem:[#allocation2 + $0x6a0] sm:$0xff] %vm20, 0.0
  %235 = vst.msk [vmem:[#allocation2 + $0x6a8] sm:$0xff] %vm20, 0.0
  %236 = vst.msk [vmem:[#allocation2 + $0x6b0] sm:$0xff] %vm20, 0.0
  %237 = vst.msk [vmem:[#allocation2 + $0x6b8] sm:$0x7f] %vm24, 0.0
  %238 = vst.msk [vmem:[#allocation2 + $0x6c0] sm:$0xff] %vm20, 0.0
  %239 = vst.msk [vmem:[#allocation2 + $0x6c8] sm:$0xff] %vm20, 0.0
  %240 = vst.msk [vmem:[#allocation2 + $0x6d0] sm:$0xff] %vm20, 0.0
  %241 = vst.msk [vmem:[#allocation2 + $0x6d8] sm:$0x7f] %vm24, 0.0
  %242 = vst.msk [vmem:[#allocation2 + $0x6e0] sm:$0xff] %vm20, 0.0
  %243 = vst.msk [vmem:[#allocation2 + $0x6e8] sm:$0xff] %vm20, 0.0
  %244 = vst.msk [vmem:[#allocation2 + $0x6f0] sm:$0xff] %vm20, 0.0
  %245 = vst.msk [vmem:[#allocation2 + $0x6f8] sm:$0x7f] %vm24, 0.0
  %246 = vst.msk [vmem:[#allocation2 + $0x700] sm:$0xff] %vm20, 0.0
  %247 = vst.msk [vmem:[#allocation2 + $0x708] sm:$0xff] %vm20, 0.0
  %248 = vst.msk [vmem:[#allocation2 + $0x710] sm:$0xff] %vm20, 0.0
  %249 = vst.msk [vmem:[#allocation2 + $0x718] sm:$0x7f] %vm24, 0.0
  %250 = vst.msk [vmem:[#allocation2 + $0x720] sm:$0xff] %vm20, 0.0
  %251 = vst.msk [vmem:[#allocation2 + $0x728] sm:$0xff] %vm20, 0.0
  %252 = vst.msk [vmem:[#allocation2 + $0x730] sm:$0xff] %vm20, 0.0
  %253 = vst.msk [vmem:[#allocation2 + $0x738] sm:$0x7f] %vm24, 0.0
  %254 = vst.msk [vmem:[#allocation2 + $0x740] sm:$0xff] %vm20, 0.0
  %255 = vst.msk [vmem:[#allocation2 + $0x748] sm:$0xff] %vm20, 0.0
  %256 = vst.msk [vmem:[#allocation2 + $0x750] sm:$0xff] %vm20, 0.0
  %257 = vst.msk [vmem:[#allocation2 + $0x758] sm:$0x7f] %vm24, 0.0
  %258 = vst.msk [vmem:[#allocation2 + $0x760] sm:$0xff] %vm20, 0.0
  %259 = vst.msk [vmem:[#allocation2 + $0x768] sm:$0xff] %vm20, 0.0
  %260 = vst.msk [vmem:[#allocation2 + $0x770] sm:$0xff] %vm20, 0.0
  %261 = vst.msk [vmem:[#allocation2 + $0x778] sm:$0x7f] %vm24, 0.0
  %v262 = vld [vmem:[%s0] sm:$0xff]
  %v263 = vld [vmem:[%s0 + $0x8] sm:$0xff]
  %v264 = vld [vmem:[%s0 + $0x10] sm:$0xff]
  %v265 = vld [vmem:[%s0 + $0x18] sm:$0xff]
  %v266 = vld [vmem:[%s0 + $0x20] sm:$0xff]
  %v267 = vld [vmem:[%s0 + $0x28] sm:$0xff]
  %v268 = vld [vmem:[%s0 + $0x30] sm:$0xff]
  %v269 = vld [vmem:[%s0 + $0x38] sm:$0xff]
  %v270 = vld [vmem:[%s0 + $0x40] sm:$0xff]
  %v271 = vld [vmem:[%s0 + $0x48] sm:$0xff]
  %v272 = vld [vmem:[%s0 + $0x50] sm:$0xff]
  %v273 = vld [vmem:[%s0 + $0x58] sm:$0xff]
  %v274 = vld [vmem:[%s0 + $0x60] sm:$0xff]
  %v275 = vld [vmem:[%s0 + $0x68] sm:$0xff]
  %v276 = vld [vmem:[%s0 + $0x70] sm:$0xff]
  %v277 = vld [vmem:[%s0 + $0x78] sm:$0xff]
  %v278 = vld [vmem:[%s0 + $0x80] sm:$0xff]
  %v279 = vld [vmem:[%s0 + $0x88] sm:$0xff]
  %v280 = vld [vmem:[%s0 + $0x90] sm:$0xff]
  %v281 = vld [vmem:[%s0 + $0x98] sm:$0xff]
  %v282 = vld [vmem:[%s0 + $0xa0] sm:$0xff]
  %v283 = vld [vmem:[%s0 + $0xa8] sm:$0xff]
  %v284 = vld [vmem:[%s0 + $0xb0] sm:$0xff]
  %v285 = vld [vmem:[%s0 + $0xb8] sm:$0xff]
  %v286 = vld [vmem:[%s0 + $0xc0] sm:$0xff]
  %v287 = vld [vmem:[%s0 + $0xc8] sm:$0xff]
  %v288 = vld [vmem:[%s0 + $0xd0] sm:$0xff]
  %v289 = vld [vmem:[%s0 + $0xd8] sm:$0xff]
  %v290 = vld [vmem:[%s0 + $0xe0] sm:$0xff]
  %v291 = vld [vmem:[%s0 + $0xe8] sm:$0xff]
  %v292 = vld [vmem:[%s0 + $0xf0] sm:$0xff]
  %v293 = vld [vmem:[%s0 + $0xf8] sm:$0xff]
  %v294 = vld [vmem:[%s0 + $0x100] sm:$0xff]
  %v295 = vld [vmem:[%s0 + $0x108] sm:$0xff]
  %v296 = vld [vmem:[%s0 + $0x110] sm:$0xff]
  %v297 = vld [vmem:[%s0 + $0x118] sm:$0xff]
  %v298 = vld [vmem:[%s0 + $0x120] sm:$0xff]
  %v299 = vld [vmem:[%s0 + $0x128] sm:$0xff]
  %v300 = vld [vmem:[%s0 + $0x130] sm:$0xff]
  %v301 = vld [vmem:[%s0 + $0x138] sm:$0xff]
  %v302 = vld [vmem:[%s0 + $0x140] sm:$0xff]
  %v303 = vld [vmem:[%s0 + $0x148] sm:$0xff]
  %v304 = vld [vmem:[%s0 + $0x150] sm:$0xff]
  %v305 = vld [vmem:[%s0 + $0x158] sm:$0xff]
  %v306 = vld [vmem:[%s0 + $0x160] sm:$0xff]
  %v307 = vld [vmem:[%s0 + $0x168] sm:$0xff]
  %v308 = vld [vmem:[%s0 + $0x170] sm:$0xff]
  %v309 = vld [vmem:[%s0 + $0x178] sm:$0xff]
  %v310 = vld [vmem:[%s0 + $0x180] sm:$0xff]
  %v311 = vld [vmem:[%s0 + $0x188] sm:$0xff]
  %v312 = vld [vmem:[%s0 + $0x190] sm:$0xff]
  %v313 = vld [vmem:[%s0 + $0x198] sm:$0xff]
  %v314 = vld [vmem:[%s0 + $0x1a0] sm:$0xff]
  %v315 = vld [vmem:[%s0 + $0x1a8] sm:$0xff]
  %v316 = vld [vmem:[%s0 + $0x1b0] sm:$0xff]
  %v317 = vld [vmem:[%s0 + $0x1b8] sm:$0xff]
  %v318 = vld [vmem:[%s0 + $0x1c0] sm:$0xff]
  %v319 = vld [vmem:[%s0 + $0x1c8] sm:$0xff]
  %v320 = vld [vmem:[%s0 + $0x1d0] sm:$0xff]
  %v321 = vld [vmem:[%s0 + $0x1d8] sm:$0xff]
  %v322 = vld [vmem:[%s0 + $0x1e0] sm:$0xff]
  %v323 = vld [vmem:[%s0 + $0x1e8] sm:$0xff]
  %v324 = vld [vmem:[%s0 + $0x1f0] sm:$0xff]
  %v325 = vld [vmem:[%s0 + $0x1f8] sm:$0xff]
  %s326 = scalar_lea.vmem [#allocation2], 224
  %327 = vst.msk [vmem:[%s326 + $0x8] sm:$0xff] %vm20, %v262
  %328 = vst.msk [vmem:[%s326 + $0x10] sm:$0xff] %vm20, %v263
  %329 = vst.msk [vmem:[%s326 + $0x28] sm:$0xff] %vm20, %v264
  %330 = vst.msk [vmem:[%s326 + $0x30] sm:$0xff] %vm20, %v265
  %331 = vst.msk [vmem:[%s326 + $0x48] sm:$0xff] %vm20, %v266
  %332 = vst.msk [vmem:[%s326 + $0x50] sm:$0xff] %vm20, %v267
  %333 = vst.msk [vmem:[%s326 + $0x68] sm:$0xff] %vm20, %v268
  %334 = vst.msk [vmem:[%s326 + $0x70] sm:$0xff] %vm20, %v269
  %335 = vst.msk [vmem:[%s326 + $0x88] sm:$0xff] %vm20, %v270
  %336 = vst.msk [vmem:[%s326 + $0x90] sm:$0xff] %vm20, %v271
  %337 = vst.msk [vmem:[%s326 + $0xa8] sm:$0xff] %vm20, %v272
  %338 = vst.msk [vmem:[%s326 + $0xb0] sm:$0xff] %vm20, %v273
  %339 = vst.msk [vmem:[%s326 + $0xc8] sm:$0xff] %vm20, %v274
  %340 = vst.msk [vmem:[%s326 + $0xd0] sm:$0xff] %vm20, %v275
  %341 = vst.msk [vmem:[%s326 + $0xe8] sm:$0xff] %vm20, %v276
  %342 = vst.msk [vmem:[%s326 + $0xf0] sm:$0xff] %vm20, %v277
  %343 = vst.msk [vmem:[%s326 + $0x108] sm:$0xff] %vm20, %v278
  %344 = vst.msk [vmem:[%s326 + $0x110] sm:$0xff] %vm20, %v279
  %345 = vst.msk [vmem:[%s326 + $0x128] sm:$0xff] %vm20, %v280
  %346 = vst.msk [vmem:[%s326 + $0x130] sm:$0xff] %vm20, %v281
  %347 = vst.msk [vmem:[%s326 + $0x148] sm:$0xff] %vm20, %v282
  %348 = vst.msk [vmem:[%s326 + $0x150] sm:$0xff] %vm20, %v283
  %349 = vst.msk [vmem:[%s326 + $0x168] sm:$0xff] %vm20, %v284
  %350 = vst.msk [vmem:[%s326 + $0x170] sm:$0xff] %vm20, %v285
  %351 = vst.msk [vmem:[%s326 + $0x188] sm:$0xff] %vm20, %v286
  %352 = vst.msk [vmem:[%s326 + $0x190] sm:$0xff] %vm20, %v287
  %353 = vst.msk [vmem:[%s326 + $0x1a8] sm:$0xff] %vm20, %v288
  %354 = vst.msk [vmem:[%s326 + $0x1b0] sm:$0xff] %vm20, %v289
  %355 = vst.msk [vmem:[%s326 + $0x1c8] sm:$0xff] %vm20, %v290
  %356 = vst.msk [vmem:[%s326 + $0x1d0] sm:$0xff] %vm20, %v291
  %357 = vst.msk [vmem:[%s326 + $0x1e8] sm:$0xff] %vm20, %v292
  %358 = vst.msk [vmem:[%s326 + $0x1f0] sm:$0xff] %vm20, %v293
  %359 = vst.msk [vmem:[%s326 + $0x3c8] sm:$0xff] %vm20, %v294
  %360 = vst.msk [vmem:[%s326 + $0x3d0] sm:$0xff] %vm20, %v295
  %361 = vst.msk [vmem:[%s326 + $0x3e8] sm:$0xff] %vm20, %v296
  %362 = vst.msk [vmem:[%s326 + $0x3f0] sm:$0xff] %vm20, %v297
  %363 = vst.msk [vmem:[%s326 + $0x408] sm:$0xff] %vm20, %v298
  %364 = vst.msk [vmem:[%s326 + $0x410] sm:$0xff] %vm20, %v299
  %365 = vst.msk [vmem:[%s326 + $0x428] sm:$0xff] %vm20, %v300
  %366 = vst.msk [vmem:[%s326 + $0x430] sm:$0xff] %vm20, %v301
  %367 = vst.msk [vmem:[%s326 + $0x448] sm:$0xff] %vm20, %v302
  %368 = vst.msk [vmem:[%s326 + $0x450] sm:$0xff] %vm20, %v303
  %369 = vst.msk [vmem:[%s326 + $0x468] sm:$0xff] %vm20, %v304
  %370 = vst.msk [vmem:[%s326 + $0x470] sm:$0xff] %vm20, %v305
  %371 = vst.msk [vmem:[%s326 + $0x488] sm:$0xff] %vm20, %v306
  %372 = vst.msk [vmem:[%s326 + $0x490] sm:$0xff] %vm20, %v307
  %373 = vst.msk [vmem:[%s326 + $0x4a8] sm:$0xff] %vm20, %v308
  %374 = vst.msk [vmem:[%s326 + $0x4b0] sm:$0xff] %vm20, %v309
  %375 = vst.msk [vmem:[%s326 + $0x4c8] sm:$0xff] %vm20, %v310
  %376 = vst.msk [vmem:[%s326 + $0x4d0] sm:$0xff] %vm20, %v311
  %377 = vst.msk [vmem:[%s326 + $0x4e8] sm:$0xff] %vm20, %v312
  %378 = vst.msk [vmem:[%s326 + $0x4f0] sm:$0xff] %vm20, %v313
  %379 = vst.msk [vmem:[%s326 + $0x508] sm:$0xff] %vm20, %v314
  %380 = vst.msk [vmem:[%s326 + $0x510] sm:$0xff] %vm20, %v315
  %381 = vst.msk [vmem:[%s326 + $0x528] sm:$0xff] %vm20, %v316
  %382 = vst.msk [vmem:[%s326 + $0x530] sm:$0xff] %vm20, %v317
  %383 = vst.msk [vmem:[%s326 + $0x548] sm:$0xff] %vm20, %v318
  %384 = vst.msk [vmem:[%s326 + $0x550] sm:$0xff] %vm20, %v319
  %385 = vst.msk [vmem:[%s326 + $0x568] sm:$0xff] %vm20, %v320
  %386 = vst.msk [vmem:[%s326 + $0x570] sm:$0xff] %vm20, %v321
  %387 = vst.msk [vmem:[%s326 + $0x588] sm:$0xff] %vm20, %v322
  %388 = vst.msk [vmem:[%s326 + $0x590] sm:$0xff] %vm20, %v323
  %389 = vst.msk [vmem:[%s326 + $0x5a8] sm:$0xff] %vm20, %v324
  %390 = vst.msk [vmem:[%s326 + $0x5b0] sm:$0xff] %vm20, %v325
  %v391 = vld [vmem:[%s326 + $0x8] sm:$0xff]
  %v392 = vld [vmem:[%s326 + $0x10] sm:$0xff]
  %v393 = vld [vmem:[%s326 + $0x28] sm:$0xff]
  %v394 = vld [vmem:[%s326 + $0x30] sm:$0xff]
  %v395 = vld [vmem:[%s326 + $0x48] sm:$0xff]
  %v396 = vld [vmem:[%s326 + $0x50] sm:$0xff]
  %v397 = vld [vmem:[%s326 + $0x68] sm:$0xff]
  %v398 = vld [vmem:[%s326 + $0x70] sm:$0xff]
  %v399 = vld [vmem:[%s326 + $0x88] sm:$0xff]
  %v400 = vld [vmem:[%s326 + $0x90] sm:$0xff]
  %v401 = vld [vmem:[%s326 + $0xa8] sm:$0xff]
  %v402 = vld [vmem:[%s326 + $0xb0] sm:$0xff]
  %v403 = vld [vmem:[%s326 + $0xc8] sm:$0xff]
  %v404 = vld [vmem:[%s326 + $0xd0] sm:$0xff]
  %v405 = vld [vmem:[%s326 + $0xe8] sm:$0xff]
  %v406 = vld [vmem:[%s326 + $0xf0] sm:$0xff]
  %v407 = vld [vmem:[%s326 + $0x108] sm:$0xff]
  %v408 = vld [vmem:[%s326 + $0x110] sm:$0xff]
  %v409 = vld [vmem:[%s326 + $0x128] sm:$0xff]
  %v410 = vld [vmem:[%s326 + $0x130] sm:$0xff]
  %v411 = vld [vmem:[%s326 + $0x148] sm:$0xff]
  %v412 = vld [vmem:[%s326 + $0x150] sm:$0xff]
  %v413 = vld [vmem:[%s326 + $0x168] sm:$0xff]
  %v414 = vld [vmem:[%s326 + $0x170] sm:$0xff]
  %v415 = vld [vmem:[%s326 + $0x188] sm:$0xff]
  %v416 = vld [vmem:[%s326 + $0x190] sm:$0xff]
  %v417 = vld [vmem:[%s326 + $0x1a8] sm:$0xff]
  %v418 = vld [vmem:[%s326 + $0x1b0] sm:$0xff]
  %v419 = vld [vmem:[%s326 + $0x1c8] sm:$0xff]
  %v420 = vld [vmem:[%s326 + $0x1d0] sm:$0xff]
  %v421 = vld [vmem:[%s326 + $0x1e8] sm:$0xff]
  %v422 = vld [vmem:[%s326 + $0x1f0] sm:$0xff]
  %v423 = vld [vmem:[%s326 + $0x3c8] sm:$0xff]
  %v424 = vld [vmem:[%s326 + $0x3d0] sm:$0xff]
  %v425 = vld [vmem:[%s326 + $0x3e8] sm:$0xff]
  %v426 = vld [vmem:[%s326 + $0x3f0] sm:$0xff]
  %v427 = vld [vmem:[%s326 + $0x408] sm:$0xff]
  %v428 = vld [vmem:[%s326 + $0x410] sm:$0xff]
  %v429 = vld [vmem:[%s326 + $0x428] sm:$0xff]
  %v430 = vld [vmem:[%s326 + $0x430] sm:$0xff]
  %v431 = vld [vmem:[%s326 + $0x448] sm:$0xff]
  %v432 = vld [vmem:[%s326 + $0x450] sm:$0xff]
  %v433 = vld [vmem:[%s326 + $0x468] sm:$0xff]
  %v434 = vld [vmem:[%s326 + $0x470] sm:$0xff]
  %v435 = vld [vmem:[%s326 + $0x488] sm:$0xff]
  %v436 = vld [vmem:[%s326 + $0x490] sm:$0xff]
  %v437 = vld [vmem:[%s326 + $0x4a8] sm:$0xff]
  %v438 = vld [vmem:[%s326 + $0x4b0] sm:$0xff]
  %v439 = vld [vmem:[%s326 + $0x4c8] sm:$0xff]
  %v440 = vld [vmem:[%s326 + $0x4d0] sm:$0xff]
  %v441 = vld [vmem:[%s326 + $0x4e8] sm:$0xff]
  %v442 = vld [vmem:[%s326 + $0x4f0] sm:$0xff]
  %v443 = vld [vmem:[%s326 + $0x508] sm:$0xff]
  %v444 = vld [vmem:[%s326 + $0x510] sm:$0xff]
  %v445 = vld [vmem:[%s326 + $0x528] sm:$0xff]
  %v446 = vld [vmem:[%s326 + $0x530] sm:$0xff]
  %v447 = vld [vmem:[%s326 + $0x548] sm:$0xff]
  %v448 = vld [vmem:[%s326 + $0x550] sm:$0xff]
  %v449 = vld [vmem:[%s326 + $0x568] sm:$0xff]
  %v450 = vld [vmem:[%s326 + $0x570] sm:$0xff]
  %v451 = vld [vmem:[%s326 + $0x588] sm:$0xff]
  %v452 = vld [vmem:[%s326 + $0x590] sm:$0xff]
  %v453 = vld [vmem:[%s326 + $0x5a8] sm:$0xff]
  %v454 = vld [vmem:[%s326 + $0x5b0] sm:$0xff]
  %s455 = scalar_lea.vmem [#allocation2], 128
  %v456 = vld [vmem:[%s455 + $0x5] sm:$0xff]
  %v457 = vld [vmem:[%s455 + $0xd] sm:$0xff]
  %v458 = vld [vmem:[%s455 + $0x25] sm:$0xff]
  %v459 = vld [vmem:[%s455 + $0x2d] sm:$0xff]
  %v460 = vld [vmem:[%s455 + $0x45] sm:$0xff]
  %v461 = vld [vmem:[%s455 + $0x4d] sm:$0xff]
  %v462 = vld [vmem:[%s455 + $0x65] sm:$0xff]
  %v463 = vld [vmem:[%s455 + $0x6d] sm:$0xff]
  %v464 = vld [vmem:[%s455 + $0x85] sm:$0xff]
  %v465 = vld [vmem:[%s455 + $0x8d] sm:$0xff]
  %v466 = vld [vmem:[%s455 + $0xa5] sm:$0xff]
  %v467 = vld [vmem:[%s455 + $0xad] sm:$0xff]
  %v468 = vld [vmem:[%s455 + $0xc5] sm:$0xff]
  %v469 = vld [vmem:[%s455 + $0xcd] sm:$0xff]
  %v470 = vld [vmem:[%s455 + $0xe5] sm:$0xff]
  %v471 = vld [vmem:[%s455 + $0xed] sm:$0xff]
  %v472 = vld [vmem:[%s455 + $0x105] sm:$0xff]
  %v473 = vld [vmem:[%s455 + $0x10d] sm:$0xff]
  %v474 = vld [vmem:[%s455 + $0x125] sm:$0xff]
  %v475 = vld [vmem:[%s455 + $0x12d] sm:$0xff]
  %v476 = vld [vmem:[%s455 + $0x145] sm:$0xff]
  %v477 = vld [vmem:[%s455 + $0x14d] sm:$0xff]
  %v478 = vld [vmem:[%s455 + $0x165] sm:$0xff]
  %v479 = vld [vmem:[%s455 + $0x16d] sm:$0xff]
  %v480 = vld [vmem:[%s455 + $0x185] sm:$0xff]
  %v481 = vld [vmem:[%s455 + $0x18d] sm:$0xff]
  %v482 = vld [vmem:[%s455 + $0x1a5] sm:$0xff]
  %v483 = vld [vmem:[%s455 + $0x1ad] sm:$0xff]
  %v484 = vld [vmem:[%s455 + $0x1c5] sm:$0xff]
  %v485 = vld [vmem:[%s455 + $0x1cd] sm:$0xff]
  %v486 = vld [vmem:[%s455 + $0x1e5] sm:$0xff]
  %v487 = vld [vmem:[%s455 + $0x1ed] sm:$0xff]
  %v488 = vld [vmem:[%s455 + $0x3c5] sm:$0xff]
  %v489 = vld [vmem:[%s455 + $0x3cd] sm:$0xff]
  %v490 = vld [vmem:[%s455 + $0x3e5] sm:$0xff]
  %v491 = vld [vmem:[%s455 + $0x3ed] sm:$0xff]
  %v492 = vld [vmem:[%s455 + $0x405] sm:$0xff]
  %v493 = vld [vmem:[%s455 + $0x40d] sm:$0xff]
  %v494 = vld [vmem:[%s455 + $0x425] sm:$0xff]
  %v495 = vld [vmem:[%s455 + $0x42d] sm:$0xff]
  %v496 = vld [vmem:[%s455 + $0x445] sm:$0xff]
  %v497 = vld [vmem:[%s455 + $0x44d] sm:$0xff]
  %v498 = vld [vmem:[%s455 + $0x465] sm:$0xff]
  %v499 = vld [vmem:[%s455 + $0x46d] sm:$0xff]
  %v500 = vld [vmem:[%s455 + $0x485] sm:$0xff]
  %v501 = vld [vmem:[%s455 + $0x48d] sm:$0xff]
  %v502 = vld [vmem:[%s455 + $0x4a5] sm:$0xff]
  %v503 = vld [vmem:[%s455 + $0x4ad] sm:$0xff]
  %v504 = vld [vmem:[%s455 + $0x4c5] sm:$0xff]
  %v505 = vld [vmem:[%s455 + $0x4cd] sm:$0xff]
  %v506 = vld [vmem:[%s455 + $0x4e5] sm:$0xff]
  %v507 = vld [vmem:[%s455 + $0x4ed] sm:$0xff]
  %v508 = vld [vmem:[%s455 + $0x505] sm:$0xff]
  %v509 = vld [vmem:[%s455 + $0x50d] sm:$0xff]
  %v510 = vld [vmem:[%s455 + $0x525] sm:$0xff]
  %v511 = vld [vmem:[%s455 + $0x52d] sm:$0xff]
  %v512 = vld [vmem:[%s455 + $0x545] sm:$0xff]
  %v513 = vld [vmem:[%s455 + $0x54d] sm:$0xff]
  %v514 = vld [vmem:[%s455 + $0x565] sm:$0xff]
  %v515 = vld [vmem:[%s455 + $0x56d] sm:$0xff]
  %v516 = vld [vmem:[%s455 + $0x585] sm:$0xff]
  %v517 = vld [vmem:[%s455 + $0x58d] sm:$0xff]
  %v518 = vld [vmem:[%s455 + $0x5a5] sm:$0xff]
  %v519 = vld [vmem:[%s455 + $0x5ad] sm:$0xff]
  %v520 = vld [vmem:[%s455 + $0x8] sm:$0xff]
  %v521 = vld [vmem:[%s455 + $0x10] sm:$0xff]
  %v522 = vld [vmem:[%s455 + $0x28] sm:$0xff]
  %v523 = vld [vmem:[%s455 + $0x30] sm:$0xff]
  %v524 = vld [vmem:[%s455 + $0x48] sm:$0xff]
  %v525 = vld [vmem:[%s455 + $0x50] sm:$0xff]
  %v526 = vld [vmem:[%s455 + $0x68] sm:$0xff]
  %v527 = vld [vmem:[%s455 + $0x70] sm:$0xff]
  %v528 = vld [vmem:[%s455 + $0x88] sm:$0xff]
  %v529 = vld [vmem:[%s455 + $0x90] sm:$0xff]
  %v530 = vld [vmem:[%s455 + $0xa8] sm:$0xff]
  %v531 = vld [vmem:[%s455 + $0xb0] sm:$0xff]
  %v532 = vld [vmem:[%s455 + $0xc8] sm:$0xff]
  %v533 = vld [vmem:[%s455 + $0xd0] sm:$0xff]
  %v534 = vld [vmem:[%s455 + $0xe8] sm:$0xff]
  %v535 = vld [vmem:[%s455 + $0xf0] sm:$0xff]
  %v536 = vld [vmem:[%s455 + $0x108] sm:$0xff]
  %v537 = vld [vmem:[%s455 + $0x110] sm:$0xff]
  %v538 = vld [vmem:[%s455 + $0x128] sm:$0xff]
  %v539 = vld [vmem:[%s455 + $0x130] sm:$0xff]
  %v540 = vld [vmem:[%s455 + $0x148] sm:$0xff]
  %v541 = vld [vmem:[%s455 + $0x150] sm:$0xff]
  %v542 = vld [vmem:[%s455 + $0x168] sm:$0xff]
  %v543 = vld [vmem:[%s455 + $0x170] sm:$0xff]
  %v544 = vld [vmem:[%s455 + $0x188] sm:$0xff]
  %v545 = vld [vmem:[%s455 + $0x190] sm:$0xff]
  %v546 = vld [vmem:[%s455 + $0x1a8] sm:$0xff]
  %v547 = vld [vmem:[%s455 + $0x1b0] sm:$0xff]
  %v548 = vld [vmem:[%s455 + $0x1c8] sm:$0xff]
  %v549 = vld [vmem:[%s455 + $0x1d0] sm:$0xff]
  %v550 = vld [vmem:[%s455 + $0x1e8] sm:$0xff]
  %v551 = vld [vmem:[%s455 + $0x1f0] sm:$0xff]
  %v552 = vld [vmem:[%s455 + $0x3c8] sm:$0xff]
  %v553 = vld [vmem:[%s455 + $0x3d0] sm:$0xff]
  %v554 = vld [vmem:[%s455 + $0x3e8] sm:$0xff]
  %v555 = vld [vmem:[%s455 + $0x3f0] sm:$0xff]
  %v556 = vld [vmem:[%s455 + $0x408] sm:$0xff]
  %v557 = vld [vmem:[%s455 + $0x410] sm:$0xff]
  %v558 = vld [vmem:[%s455 + $0x428] sm:$0xff]
  %v559 = vld [vmem:[%s455 + $0x430] sm:$0xff]
  %v560 = vld [vmem:[%s455 + $0x448] sm:$0xff]
  %v561 = vld [vmem:[%s455 + $0x450] sm:$0xff]
  %v562 = vld [vmem:[%s455 + $0x468] sm:$0xff]
  %v563 = vld [vmem:[%s455 + $0x470] sm:$0xff]
  %v564 = vld [vmem:[%s455 + $0x488] sm:$0xff]
  %v565 = vld [vmem:[%s455 + $0x490] sm:$0xff]
  %v566 = vld [vmem:[%s455 + $0x4a8] sm:$0xff]
  %v567 = vld [vmem:[%s455 + $0x4b0] sm:$0xff]
  %v568 = vld [vmem:[%s455 + $0x4c8] sm:$0xff]
  %v569 = vld [vmem:[%s455 + $0x4d0] sm:$0xff]
  %v570 = vld [vmem:[%s455 + $0x4e8] sm:$0xff]
  %v571 = vld [vmem:[%s455 + $0x4f0] sm:$0xff]
  %v572 = vld [vmem:[%s455 + $0x508] sm:$0xff]
  %v573 = vld [vmem:[%s455 + $0x510] sm:$0xff]
  %v574 = vld [vmem:[%s455 + $0x528] sm:$0xff]
  %v575 = vld [vmem:[%s455 + $0x530] sm:$0xff]
  %v576 = vld [vmem:[%s455 + $0x548] sm:$0xff]
  %v577 = vld [vmem:[%s455 + $0x550] sm:$0xff]
  %v578 = vld [vmem:[%s455 + $0x568] sm:$0xff]
  %v579 = vld [vmem:[%s455 + $0x570] sm:$0xff]
  %v580 = vld [vmem:[%s455 + $0x588] sm:$0xff]
  %v581 = vld [vmem:[%s455 + $0x590] sm:$0xff]
  %v582 = vld [vmem:[%s455 + $0x5a8] sm:$0xff]
  %v583 = vld [vmem:[%s455 + $0x5b0] sm:$0xff]
  %v584 = vld [vmem:[%s455 + $0xb] sm:$0xff]
  %v585 = vld [vmem:[%s455 + $0x13] sm:$0xff]
  %v586 = vld [vmem:[%s455 + $0x2b] sm:$0xff]
  %v587 = vld [vmem:[%s455 + $0x33] sm:$0xff]
  %v588 = vld [vmem:[%s455 + $0x4b] sm:$0xff]
  %v589 = vld [vmem:[%s455 + $0x53] sm:$0xff]
  %v590 = vld [vmem:[%s455 + $0x6b] sm:$0xff]
  %v591 = vld [vmem:[%s455 + $0x73] sm:$0xff]
  %v592 = vld [vmem:[%s455 + $0x8b] sm:$0xff]
  %v593 = vld [vmem:[%s455 + $0x93] sm:$0xff]
  %v594 = vld [vmem:[%s455 + $0xab] sm:$0xff]
  %v595 = vld [vmem:[%s455 + $0xb3] sm:$0xff]
  %v596 = vld [vmem:[%s455 + $0xcb] sm:$0xff]
  %v597 = vld [vmem:[%s455 + $0xd3] sm:$0xff]
  %v598 = vld [vmem:[%s455 + $0xeb] sm:$0xff]
  %v599 = vld [vmem:[%s455 + $0xf3] sm:$0xff]
  %v600 = vld [vmem:[%s455 + $0x10b] sm:$0xff]
  %v601 = vld [vmem:[%s455 + $0x113] sm:$0xff]
  %v602 = vld [vmem:[%s455 + $0x12b] sm:$0xff]
  %v603 = vld [vmem:[%s455 + $0x133] sm:$0xff]
  %v604 = vld [vmem:[%s455 + $0x14b] sm:$0xff]
  %v605 = vld [vmem:[%s455 + $0x153] sm:$0xff]
  %v606 = vld [vmem:[%s455 + $0x16b] sm:$0xff]
  %v607 = vld [vmem:[%s455 + $0x173] sm:$0xff]
  %v608 = vld [vmem:[%s455 + $0x18b] sm:$0xff]
  %v609 = vld [vmem:[%s455 + $0x193] sm:$0xff]
  %v610 = vld [vmem:[%s455 + $0x1ab] sm:$0xff]
  %v611 = vld [vmem:[%s455 + $0x1b3] sm:$0xff]
  %v612 = vld [vmem:[%s455 + $0x1cb] sm:$0xff]
  %v613 = vld [vmem:[%s455 + $0x1d3] sm:$0xff]
  %v614 = vld [vmem:[%s455 + $0x1eb] sm:$0xff]
  %v615 = vld [vmem:[%s455 + $0x1f3] sm:$0xff]
  %v616 = vld [vmem:[%s455 + $0x3cb] sm:$0xff]
  %v617 = vld [vmem:[%s455 + $0x3d3] sm:$0xff]
  %v618 = vld [vmem:[%s455 + $0x3eb] sm:$0xff]
  %v619 = vld [vmem:[%s455 + $0x3f3] sm:$0xff]
  %v620 = vld [vmem:[%s455 + $0x40b] sm:$0xff]
  %v621 = vld [vmem:[%s455 + $0x413] sm:$0xff]
  %v622 = vld [vmem:[%s455 + $0x42b] sm:$0xff]
  %v623 = vld [vmem:[%s455 + $0x433] sm:$0xff]
  %v624 = vld [vmem:[%s455 + $0x44b] sm:$0xff]
  %v625 = vld [vmem:[%s455 + $0x453] sm:$0xff]
  %v626 = vld [vmem:[%s455 + $0x46b] sm:$0xff]
  %v627 = vld [vmem:[%s455 + $0x473] sm:$0xff]
  %v628 = vld [vmem:[%s455 + $0x48b] sm:$0xff]
  %v629 = vld [vmem:[%s455 + $0x493] sm:$0xff]
  %v630 = vld [vmem:[%s455 + $0x4ab] sm:$0xff]
  %v631 = vld [vmem:[%s455 + $0x4b3] sm:$0xff]
  %v632 = vld [vmem:[%s455 + $0x4cb] sm:$0xff]
  %v633 = vld [vmem:[%s455 + $0x4d3] sm:$0xff]
  %v634 = vld [vmem:[%s455 + $0x4eb] sm:$0xff]
  %v635 = vld [vmem:[%s455 + $0x4f3] sm:$0xff]
  %v636 = vld [vmem:[%s455 + $0x50b] sm:$0xff]
  %v637 = vld [vmem:[%s455 + $0x513] sm:$0xff]
  %v638 = vld [vmem:[%s455 + $0x52b] sm:$0xff]
  %v639 = vld [vmem:[%s455 + $0x533] sm:$0xff]
  %v640 = vld [vmem:[%s455 + $0x54b] sm:$0xff]
  %v641 = vld [vmem:[%s455 + $0x553] sm:$0xff]
  %v642 = vld [vmem:[%s455 + $0x56b] sm:$0xff]
  %v643 = vld [vmem:[%s455 + $0x573] sm:$0xff]
  %v644 = vld [vmem:[%s455 + $0x58b] sm:$0xff]
  %v645 = vld [vmem:[%s455 + $0x593] sm:$0xff]
  %v646 = vld [vmem:[%s455 + $0x5ab] sm:$0xff]
  %v647 = vld [vmem:[%s455 + $0x5b3] sm:$0xff]
  %v648 = vld [vmem:[%s326 + $0x5] sm:$0xff]
  %v649 = vld [vmem:[%s326 + $0xd] sm:$0xff]
  %v650 = vld [vmem:[%s326 + $0x25] sm:$0xff]
  %v651 = vld [vmem:[%s326 + $0x2d] sm:$0xff]
  %v652 = vld [vmem:[%s326 + $0x45] sm:$0xff]
  %v653 = vld [vmem:[%s326 + $0x4d] sm:$0xff]
  %v654 = vld [vmem:[%s326 + $0x65] sm:$0xff]
  %v655 = vld [vmem:[%s326 + $0x6d] sm:$0xff]
  %v656 = vld [vmem:[%s326 + $0x85] sm:$0xff]
  %v657 = vld [vmem:[%s326 + $0x8d] sm:$0xff]
  %v658 = vld [vmem:[%s326 + $0xa5] sm:$0xff]
  %v659 = vld [vmem:[%s326 + $0xad] sm:$0xff]
  %v660 = vld [vmem:[%s326 + $0xc5] sm:$0xff]
  %v661 = vld [vmem:[%s326 + $0xcd] sm:$0xff]
  %v662 = vld [vmem:[%s326 + $0xe5] sm:$0xff]
  %v663 = vld [vmem:[%s326 + $0xed] sm:$0xff]
  %v664 = vld [vmem:[%s326 + $0x105] sm:$0xff]
  %v665 = vld [vmem:[%s326 + $0x10d] sm:$0xff]
  %v666 = vld [vmem:[%s326 + $0x125] sm:$0xff]
  %v667 = vld [vmem:[%s326 + $0x12d] sm:$0xff]
  %v668 = vld [vmem:[%s326 + $0x145] sm:$0xff]
  %v669 = vld [vmem:[%s326 + $0x14d] sm:$0xff]
  %v670 = vld [vmem:[%s326 + $0x165] sm:$0xff]
  %v671 = vld [vmem:[%s326 + $0x16d] sm:$0xff]
  %v672 = vld [vmem:[%s326 + $0x185] sm:$0xff]
  %v673 = vld [vmem:[%s326 + $0x18d] sm:$0xff]
  %v674 = vld [vmem:[%s326 + $0x1a5] sm:$0xff]
  %v675 = vld [vmem:[%s326 + $0x1ad] sm:$0xff]
  %v676 = vld [vmem:[%s326 + $0x1c5] sm:$0xff]
  %v677 = vld [vmem:[%s326 + $0x1cd] sm:$0xff]
  %v678 = vld [vmem:[%s326 + $0x1e5] sm:$0xff]
  %v679 = vld [vmem:[%s326 + $0x1ed] sm:$0xff]
  %v680 = vld [vmem:[%s326 + $0x3c5] sm:$0xff]
  %v681 = vld [vmem:[%s326 + $0x3cd] sm:$0xff]
  %v682 = vld [vmem:[%s326 + $0x3e5] sm:$0xff]
  %v683 = vld [vmem:[%s326 + $0x3ed] sm:$0xff]
  %v684 = vld [vmem:[%s326 + $0x405] sm:$0xff]
  %v685 = vld [vmem:[%s326 + $0x40d] sm:$0xff]
  %v686 = vld [vmem:[%s326 + $0x425] sm:$0xff]
  %v687 = vld [vmem:[%s326 + $0x42d] sm:$0xff]
  %v688 = vld [vmem:[%s326 + $0x445] sm:$0xff]
  %v689 = vld [vmem:[%s326 + $0x44d] sm:$0xff]
  %v690 = vld [vmem:[%s326 + $0x465] sm:$0xff]
  %v691 = vld [vmem:[%s326 + $0x46d] sm:$0xff]
  %v692 = vld [vmem:[%s326 + $0x485] sm:$0xff]
  %v693 = vld [vmem:[%s326 + $0x48d] sm:$0xff]
  %v694 = vld [vmem:[%s326 + $0x4a5] sm:$0xff]
  %v695 = vld [vmem:[%s326 + $0x4ad] sm:$0xff]
  %v696 = vld [vmem:[%s326 + $0x4c5] sm:$0xff]
  %v697 = vld [vmem:[%s326 + $0x4cd] sm:$0xff]
  %v698 = vld [vmem:[%s326 + $0x4e5] sm:$0xff]
  %v699 = vld [vmem:[%s326 + $0x4ed] sm:$0xff]
  %v700 = vld [vmem:[%s326 + $0x505] sm:$0xff]
  %v701 = vld [vmem:[%s326 + $0x50d] sm:$0xff]
  %v702 = vld [vmem:[%s326 + $0x525] sm:$0xff]
  %v703 = vld [vmem:[%s326 + $0x52d] sm:$0xff]
  %v704 = vld [vmem:[%s326 + $0x545] sm:$0xff]
  %v705 = vld [vmem:[%s326 + $0x54d] sm:$0xff]
  %v706 = vld [vmem:[%s326 + $0x565] sm:$0xff]
  %v707 = vld [vmem:[%s326 + $0x56d] sm:$0xff]
  %v708 = vld [vmem:[%s326 + $0x585] sm:$0xff]
  %v709 = vld [vmem:[%s326 + $0x58d] sm:$0xff]
  %v710 = vld [vmem:[%s326 + $0x5a5] sm:$0xff]
  %v711 = vld [vmem:[%s326 + $0x5ad] sm:$0xff]
  %v712 = vld [vmem:[%s326 + $0xb] sm:$0xff]
  %v713 = vld [vmem:[%s326 + $0x13] sm:$0xff]
  %v714 = vld [vmem:[%s326 + $0x2b] sm:$0xff]
  %v715 = vld [vmem:[%s326 + $0x33] sm:$0xff]
  %v716 = vld [vmem:[%s326 + $0x4b] sm:$0xff]
  %v717 = vld [vmem:[%s326 + $0x53] sm:$0xff]
  %v718 = vld [vmem:[%s326 + $0x6b] sm:$0xff]
  %v719 = vld [vmem:[%s326 + $0x73] sm:$0xff]
  %v720 = vld [vmem:[%s326 + $0x8b] sm:$0xff]
  %v721 = vld [vmem:[%s326 + $0x93] sm:$0xff]
  %v722 = vld [vmem:[%s326 + $0xab] sm:$0xff]
  %v723 = vld [vmem:[%s326 + $0xb3] sm:$0xff]
  %v724 = vld [vmem:[%s326 + $0xcb] sm:$0xff]
  %v725 = vld [vmem:[%s326 + $0xd3] sm:$0xff]
  %v726 = vld [vmem:[%s326 + $0xeb] sm:$0xff]
  %v727 = vld [vmem:[%s326 + $0xf3] sm:$0xff]
  %v728 = vld [vmem:[%s326 + $0x10b] sm:$0xff]
  %v729 = vld [vmem:[%s326 + $0x113] sm:$0xff]
  %v730 = vld [vmem:[%s326 + $0x12b] sm:$0xff]
  %v731 = vld [vmem:[%s326 + $0x133] sm:$0xff]
  %v732 = vld [vmem:[%s326 + $0x14b] sm:$0xff]
  %v733 = vld [vmem:[%s326 + $0x153] sm:$0xff]
  %v734 = vld [vmem:[%s326 + $0x16b] sm:$0xff]
  %v735 = vld [vmem:[%s326 + $0x173] sm:$0xff]
  %v736 = vld [vmem:[%s326 + $0x18b] sm:$0xff]
  %v737 = vld [vmem:[%s326 + $0x193] sm:$0xff]
  %v738 = vld [vmem:[%s326 + $0x1ab] sm:$0xff]
  %v739 = vld [vmem:[%s326 + $0x1b3] sm:$0xff]
  %v740 = vld [vmem:[%s326 + $0x1cb] sm:$0xff]
  %v741 = vld [vmem:[%s326 + $0x1d3] sm:$0xff]
  %v742 = vld [vmem:[%s326 + $0x1eb] sm:$0xff]
  %v743 = vld [vmem:[%s326 + $0x1f3] sm:$0xff]
  %v744 = vld [vmem:[%s326 + $0x3cb] sm:$0xff]
  %v745 = vld [vmem:[%s326 + $0x3d3] sm:$0xff]
  %v746 = vld [vmem:[%s326 + $0x3eb] sm:$0xff]
  %v747 = vld [vmem:[%s326 + $0x3f3] sm:$0xff]
  %v748 = vld [vmem:[%s326 + $0x40b] sm:$0xff]
  %v749 = vld [vmem:[%s326 + $0x413] sm:$0xff]
  %v750 = vld [vmem:[%s326 + $0x42b] sm:$0xff]
  %v751 = vld [vmem:[%s326 + $0x433] sm:$0xff]
  %v752 = vld [vmem:[%s326 + $0x44b] sm:$0xff]
  %v753 = vld [vmem:[%s326 + $0x453] sm:$0xff]
  %v754 = vld [vmem:[%s326 + $0x46b] sm:$0xff]
  %v755 = vld [vmem:[%s326 + $0x473] sm:$0xff]
  %v756 = vld [vmem:[%s326 + $0x48b] sm:$0xff]
  %v757 = vld [vmem:[%s326 + $0x493] sm:$0xff]
  %v758 = vld [vmem:[%s326 + $0x4ab] sm:$0xff]
  %v759 = vld [vmem:[%s326 + $0x4b3] sm:$0xff]
  %v760 = vld [vmem:[%s326 + $0x4cb] sm:$0xff]
  %v761 = vld [vmem:[%s326 + $0x4d3] sm:$0xff]
  %v762 = vld [vmem:[%s326 + $0x4eb] sm:$0xff]
  %v763 = vld [vmem:[%s326 + $0x4f3] sm:$0xff]
  %v764 = vld [vmem:[%s326 + $0x50b] sm:$0xff]
  %v765 = vld [vmem:[%s326 + $0x513] sm:$0xff]
  %v766 = vld [vmem:[%s326 + $0x52b] sm:$0xff]
  %v767 = vld [vmem:[%s326 + $0x533] sm:$0xff]
  %v768 = vld [vmem:[%s326 + $0x54b] sm:$0xff]
  %v769 = vld [vmem:[%s326 + $0x553] sm:$0xff]
  %v770 = vld [vmem:[%s326 + $0x56b] sm:$0xff]
  %v771 = vld [vmem:[%s326 + $0x573] sm:$0xff]
  %v772 = vld [vmem:[%s326 + $0x58b] sm:$0xff]
  %v773 = vld [vmem:[%s326 + $0x593] sm:$0xff]
  %v774 = vld [vmem:[%s326 + $0x5ab] sm:$0xff]
  %v775 = vld [vmem:[%s326 + $0x5b3] sm:$0xff]
  %s776 = scalar_lea.vmem [#allocation2], 320
  %v777 = vld [vmem:[%s776 + $0x5] sm:$0xff]
  %v778 = vld [vmem:[%s776 + $0xd] sm:$0xff]
  %v779 = vld [vmem:[%s776 + $0x25] sm:$0xff]
  %v780 = vld [vmem:[%s776 + $0x2d] sm:$0xff]
  %v781 = vld [vmem:[%s776 + $0x45] sm:$0xff]
  %v782 = vld [vmem:[%s776 + $0x4d] sm:$0xff]
  %v783 = vld [vmem:[%s776 + $0x65] sm:$0xff]
  %v784 = vld [vmem:[%s776 + $0x6d] sm:$0xff]
  %v785 = vld [vmem:[%s776 + $0x85] sm:$0xff]
  %v786 = vld [vmem:[%s776 + $0x8d] sm:$0xff]
  %v787 = vld [vmem:[%s776 + $0xa5] sm:$0xff]
  %v788 = vld [vmem:[%s776 + $0xad] sm:$0xff]
  %v789 = vld [vmem:[%s776 + $0xc5] sm:$0xff]
  %v790 = vld [vmem:[%s776 + $0xcd] sm:$0xff]
  %v791 = vld [vmem:[%s776 + $0xe5] sm:$0xff]
  %v792 = vld [vmem:[%s776 + $0xed] sm:$0xff]
  %v793 = vld [vmem:[%s776 + $0x105] sm:$0xff]
  %v794 = vld [vmem:[%s776 + $0x10d] sm:$0xff]
  %v795 = vld [vmem:[%s776 + $0x125] sm:$0xff]
  %v796 = vld [vmem:[%s776 + $0x12d] sm:$0xff]
  %v797 = vld [vmem:[%s776 + $0x145] sm:$0xff]
  %v798 = vld [vmem:[%s776 + $0x14d] sm:$0xff]
  %v799 = vld [vmem:[%s776 + $0x165] sm:$0xff]
  %v800 = vld [vmem:[%s776 + $0x16d] sm:$0xff]
  %v801 = vld [vmem:[%s776 + $0x185] sm:$0xff]
  %v802 = vld [vmem:[%s776 + $0x18d] sm:$0xff]
  %v803 = vld [vmem:[%s776 + $0x1a5] sm:$0xff]
  %v804 = vld [vmem:[%s776 + $0x1ad] sm:$0xff]
  %v805 = vld [vmem:[%s776 + $0x1c5] sm:$0xff]
  %v806 = vld [vmem:[%s776 + $0x1cd] sm:$0xff]
  %v807 = vld [vmem:[%s776 + $0x1e5] sm:$0xff]
  %v808 = vld [vmem:[%s776 + $0x1ed] sm:$0xff]
  %v809 = vld [vmem:[%s776 + $0x3c5] sm:$0xff]
  %v810 = vld [vmem:[%s776 + $0x3cd] sm:$0xff]
  %v811 = vld [vmem:[%s776 + $0x3e5] sm:$0xff]
  %v812 = vld [vmem:[%s776 + $0x3ed] sm:$0xff]
  %v813 = vld [vmem:[%s776 + $0x405] sm:$0xff]
  %v814 = vld [vmem:[%s776 + $0x40d] sm:$0xff]
  %v815 = vld [vmem:[%s776 + $0x425] sm:$0xff]
  %v816 = vld [vmem:[%s776 + $0x42d] sm:$0xff]
  %v817 = vld [vmem:[%s776 + $0x445] sm:$0xff]
  %v818 = vld [vmem:[%s776 + $0x44d] sm:$0xff]
  %v819 = vld [vmem:[%s776 + $0x465] sm:$0xff]
  %v820 = vld [vmem:[%s776 + $0x46d] sm:$0xff]
  %v821 = vld [vmem:[%s776 + $0x485] sm:$0xff]
  %v822 = vld [vmem:[%s776 + $0x48d] sm:$0xff]
  %v823 = vld [vmem:[%s776 + $0x4a5] sm:$0xff]
  %v824 = vld [vmem:[%s776 + $0x4ad] sm:$0xff]
  %v825 = vld [vmem:[%s776 + $0x4c5] sm:$0xff]
  %v826 = vld [vmem:[%s776 + $0x4cd] sm:$0xff]
  %v827 = vld [vmem:[%s776 + $0x4e5] sm:$0xff]
  %v828 = vld [vmem:[%s776 + $0x4ed] sm:$0xff]
  %v829 = vld [vmem:[%s776 + $0x505] sm:$0xff]
  %v830 = vld [vmem:[%s776 + $0x50d] sm:$0xff]
  %v831 = vld [vmem:[%s776 + $0x525] sm:$0xff]
  %v832 = vld [vmem:[%s776 + $0x52d] sm:$0xff]
  %v833 = vld [vmem:[%s776 + $0x545] sm:$0xff]
  %v834 = vld [vmem:[%s776 + $0x54d] sm:$0xff]
  %v835 = vld [vmem:[%s776 + $0x565] sm:$0xff]
  %v836 = vld [vmem:[%s776 + $0x56d] sm:$0xff]
  %v837 = vld [vmem:[%s776 + $0x585] sm:$0xff]
  %v838 = vld [vmem:[%s776 + $0x58d] sm:$0xff]
  %v839 = vld [vmem:[%s776 + $0x5a5] sm:$0xff]
  %v840 = vld [vmem:[%s776 + $0x5ad] sm:$0xff]
  %v841 = vld [vmem:[%s776 + $0x8] sm:$0xff]
  %v842 = vld [vmem:[%s776 + $0x10] sm:$0xff]
  %v843 = vld [vmem:[%s776 + $0x28] sm:$0xff]
  %v844 = vld [vmem:[%s776 + $0x30] sm:$0xff]
  %v845 = vld [vmem:[%s776 + $0x48] sm:$0xff]
  %v846 = vld [vmem:[%s776 + $0x50] sm:$0xff]
  %v847 = vld [vmem:[%s776 + $0x68] sm:$0xff]
  %v848 = vld [vmem:[%s776 + $0x70] sm:$0xff]
  %v849 = vld [vmem:[%s776 + $0x88] sm:$0xff]
  %v850 = vld [vmem:[%s776 + $0x90] sm:$0xff]
  %v851 = vld [vmem:[%s776 + $0xa8] sm:$0xff]
  %v852 = vld [vmem:[%s776 + $0xb0] sm:$0xff]
  %v853 = vld [vmem:[%s776 + $0xc8] sm:$0xff]
  %v854 = vld [vmem:[%s776 + $0xd0] sm:$0xff]
  %v855 = vld [vmem:[%s776 + $0xe8] sm:$0xff]
  %v856 = vld [vmem:[%s776 + $0xf0] sm:$0xff]
  %v857 = vld [vmem:[%s776 + $0x108] sm:$0xff]
  %v858 = vld [vmem:[%s776 + $0x110] sm:$0xff]
  %v859 = vld [vmem:[%s776 + $0x128] sm:$0xff]
  %v860 = vld [vmem:[%s776 + $0x130] sm:$0xff]
  %v861 = vld [vmem:[%s776 + $0x148] sm:$0xff]
  %v862 = vld [vmem:[%s776 + $0x150] sm:$0xff]
  %v863 = vld [vmem:[%s776 + $0x168] sm:$0xff]
  %v864 = vld [vmem:[%s776 + $0x170] sm:$0xff]
  %v865 = vld [vmem:[%s776 + $0x188] sm:$0xff]
  %v866 = vld [vmem:[%s776 + $0x190] sm:$0xff]
  %v867 = vld [vmem:[%s776 + $0x1a8] sm:$0xff]
  %v868 = vld [vmem:[%s776 + $0x1b0] sm:$0xff]
  %v869 = vld [vmem:[%s776 + $0x1c8] sm:$0xff]
  %v870 = vld [vmem:[%s776 + $0x1d0] sm:$0xff]
  %v871 = vld [vmem:[%s776 + $0x1e8] sm:$0xff]
  %v872 = vld [vmem:[%s776 + $0x1f0] sm:$0xff]
  %v873 = vld [vmem:[%s776 + $0x3c8] sm:$0xff]
  %v874 = vld [vmem:[%s776 + $0x3d0] sm:$0xff]
  %v875 = vld [vmem:[%s776 + $0x3e8] sm:$0xff]
  %v876 = vld [vmem:[%s776 + $0x3f0] sm:$0xff]
  %v877 = vld [vmem:[%s776 + $0x408] sm:$0xff]
  %v878 = vld [vmem:[%s776 + $0x410] sm:$0xff]
  %v879 = vld [vmem:[%s776 + $0x428] sm:$0xff]
  %v880 = vld [vmem:[%s776 + $0x430] sm:$0xff]
  %v881 = vld [vmem:[%s776 + $0x448] sm:$0xff]
  %v882 = vld [vmem:[%s776 + $0x450] sm:$0xff]
  %v883 = vld [vmem:[%s776 + $0x468] sm:$0xff]
  %v884 = vld [vmem:[%s776 + $0x470] sm:$0xff]
  %v885 = vld [vmem:[%s776 + $0x488] sm:$0xff]
  %v886 = vld [vmem:[%s776 + $0x490] sm:$0xff]
  %v887 = vld [vmem:[%s776 + $0x4a8] sm:$0xff]
  %v888 = vld [vmem:[%s776 + $0x4b0] sm:$0xff]
  %v889 = vld [vmem:[%s776 + $0x4c8] sm:$0xff]
  %v890 = vld [vmem:[%s776 + $0x4d0] sm:$0xff]
  %v891 = vld [vmem:[%s776 + $0x4e8] sm:$0xff]
  %v892 = vld [vmem:[%s776 + $0x4f0] sm:$0xff]
  %v893 = vld [vmem:[%s776 + $0x508] sm:$0xff]
  %v894 = vld [vmem:[%s776 + $0x510] sm:$0xff]
  %v895 = vld [vmem:[%s776 + $0x528] sm:$0xff]
  %v896 = vld [vmem:[%s776 + $0x530] sm:$0xff]
  %v897 = vld [vmem:[%s776 + $0x548] sm:$0xff]
  %v898 = vld [vmem:[%s776 + $0x550] sm:$0xff]
  %v899 = vld [vmem:[%s776 + $0x568] sm:$0xff]
  %v900 = vld [vmem:[%s776 + $0x570] sm:$0xff]
  %v901 = vld [vmem:[%s776 + $0x588] sm:$0xff]
  %v902 = vld [vmem:[%s776 + $0x590] sm:$0xff]
  %v903 = vld [vmem:[%s776 + $0x5a8] sm:$0xff]
  %v904 = vld [vmem:[%s776 + $0x5b0] sm:$0xff]
  %v905 = vld [vmem:[%s776 + $0xb] sm:$0xff]
  %v906 = vld [vmem:[%s776 + $0x13] sm:$0xff]
  %v907 = vld [vmem:[%s776 + $0x2b] sm:$0xff]
  %v908 = vld [vmem:[%s776 + $0x33] sm:$0xff]
  %v909 = vld [vmem:[%s776 + $0x4b] sm:$0xff]
  %v910 = vld [vmem:[%s776 + $0x53] sm:$0xff]
  %v911 = vld [vmem:[%s776 + $0x6b] sm:$0xff]
  %v912 = vld [vmem:[%s776 + $0x73] sm:$0xff]
  %v913 = vld [vmem:[%s776 + $0x8b] sm:$0xff]
  %v914 = vld [vmem:[%s776 + $0x93] sm:$0xff]
  %v915 = vld [vmem:[%s776 + $0xab] sm:$0xff]
  %v916 = vld [vmem:[%s776 + $0xb3] sm:$0xff]
  %v917 = vld [vmem:[%s776 + $0xcb] sm:$0xff]
  %v918 = vld [vmem:[%s776 + $0xd3] sm:$0xff]
  %v919 = vld [vmem:[%s776 + $0xeb] sm:$0xff]
  %v920 = vld [vmem:[%s776 + $0xf3] sm:$0xff]
  %v921 = vld [vmem:[%s776 + $0x10b] sm:$0xff]
  %v922 = vld [vmem:[%s776 + $0x113] sm:$0xff]
  %v923 = vld [vmem:[%s776 + $0x12b] sm:$0xff]
  %v924 = vld [vmem:[%s776 + $0x133] sm:$0xff]
  %v925 = vld [vmem:[%s776 + $0x14b] sm:$0xff]
  %v926 = vld [vmem:[%s776 + $0x153] sm:$0xff]
  %v927 = vld [vmem:[%s776 + $0x16b] sm:$0xff]
  %v928 = vld [vmem:[%s776 + $0x173] sm:$0xff]
  %v929 = vld [vmem:[%s776 + $0x18b] sm:$0xff]
  %v930 = vld [vmem:[%s776 + $0x193] sm:$0xff]
  %v931 = vld [vmem:[%s776 + $0x1ab] sm:$0xff]
  %v932 = vld [vmem:[%s776 + $0x1b3] sm:$0xff]
  %v933 = vld [vmem:[%s776 + $0x1cb] sm:$0xff]
  %v934 = vld [vmem:[%s776 + $0x1d3] sm:$0xff]
  %v935 = vld [vmem:[%s776 + $0x1eb] sm:$0xff]
  %v936 = vld [vmem:[%s776 + $0x1f3] sm:$0xff]
  %v937 = vld [vmem:[%s776 + $0x3cb] sm:$0xff]
  %v938 = vld [vmem:[%s776 + $0x3d3] sm:$0xff]
  %v939 = vld [vmem:[%s776 + $0x3eb] sm:$0xff]
  %v940 = vld [vmem:[%s776 + $0x3f3] sm:$0xff]
  %v941 = vld [vmem:[%s776 + $0x40b] sm:$0xff]
  %v942 = vld [vmem:[%s776 + $0x413] sm:$0xff]
  %v943 = vld [vmem:[%s776 + $0x42b] sm:$0xff]
  %v944 = vld [vmem:[%s776 + $0x433] sm:$0xff]
  %v945 = vld [vmem:[%s776 + $0x44b] sm:$0xff]
  %v946 = vld [vmem:[%s776 + $0x453] sm:$0xff]
  %v947 = vld [vmem:[%s776 + $0x46b] sm:$0xff]
  %v948 = vld [vmem:[%s776 + $0x473] sm:$0xff]
  %v949 = vld [vmem:[%s776 + $0x48b] sm:$0xff]
  %v950 = vld [vmem:[%s776 + $0x493] sm:$0xff]
  %v951 = vld [vmem:[%s776 + $0x4ab] sm:$0xff]
  %v952 = vld [vmem:[%s776 + $0x4b3] sm:$0xff]
  %v953 = vld [vmem:[%s776 + $0x4cb] sm:$0xff]
  %v954 = vld [vmem:[%s776 + $0x4d3] sm:$0xff]
  %v955 = vld [vmem:[%s776 + $0x4eb] sm:$0xff]
  %v956 = vld [vmem:[%s776 + $0x4f3] sm:$0xff]
  %v957 = vld [vmem:[%s776 + $0x50b] sm:$0xff]
  %v958 = vld [vmem:[%s776 + $0x513] sm:$0xff]
  %v959 = vld [vmem:[%s776 + $0x52b] sm:$0xff]
  %v960 = vld [vmem:[%s776 + $0x533] sm:$0xff]
  %v961 = vld [vmem:[%s776 + $0x54b] sm:$0xff]
  %v962 = vld [vmem:[%s776 + $0x553] sm:$0xff]
  %v963 = vld [vmem:[%s776 + $0x56b] sm:$0xff]
  %v964 = vld [vmem:[%s776 + $0x573] sm:$0xff]
  %v965 = vld [vmem:[%s776 + $0x58b] sm:$0xff]
  %v966 = vld [vmem:[%s776 + $0x593] sm:$0xff]
  %v967 = vld [vmem:[%s776 + $0x5ab] sm:$0xff]
  %v968 = vld [vmem:[%s776 + $0x5b3] sm:$0xff]
  %s969 = scalar_lea.vmem [#allocation2], 64
  %v970 = vld [vmem:[%s969 + $0x3] sm:$0xff]
  %v971 = vld [vmem:[%s969 + $0xb] sm:$0xff]
  %v972 = vld [vmem:[%s969 + $0x23] sm:$0xff]
  %v973 = vld [vmem:[%s969 + $0x2b] sm:$0xff]
  %v974 = vld [vmem:[%s969 + $0x43] sm:$0xff]
  %v975 = vld [vmem:[%s969 + $0x4b] sm:$0xff]
  %v976 = vld [vmem:[%s969 + $0x63] sm:$0xff]
  %v977 = vld [vmem:[%s969 + $0x6b] sm:$0xff]
  %v978 = vld [vmem:[%s969 + $0x83] sm:$0xff]
  %v979 = vld [vmem:[%s969 + $0x8b] sm:$0xff]
  %v980 = vld [vmem:[%s969 + $0xa3] sm:$0xff]
  %v981 = vld [vmem:[%s969 + $0xab] sm:$0xff]
  %v982 = vld [vmem:[%s969 + $0xc3] sm:$0xff]
  %v983 = vld [vmem:[%s969 + $0xcb] sm:$0xff]
  %v984 = vld [vmem:[%s969 + $0xe3] sm:$0xff]
  %v985 = vld [vmem:[%s969 + $0xeb] sm:$0xff]
  %v986 = vld [vmem:[%s969 + $0x103] sm:$0xff]
  %v987 = vld [vmem:[%s969 + $0x10b] sm:$0xff]
  %v988 = vld [vmem:[%s969 + $0x123] sm:$0xff]
  %v989 = vld [vmem:[%s969 + $0x12b] sm:$0xff]
  %v990 = vld [vmem:[%s969 + $0x143] sm:$0xff]
  %v991 = vld [vmem:[%s969 + $0x14b] sm:$0xff]
  %v992 = vld [vmem:[%s969 + $0x163] sm:$0xff]
  %v993 = vld [vmem:[%s969 + $0x16b] sm:$0xff]
  %v994 = vld [vmem:[%s969 + $0x183] sm:$0xff]
  %v995 = vld [vmem:[%s969 + $0x18b] sm:$0xff]
  %v996 = vld [vmem:[%s969 + $0x1a3] sm:$0xff]
  %v997 = vld [vmem:[%s969 + $0x1ab] sm:$0xff]
  %v998 = vld [vmem:[%s969 + $0x1c3] sm:$0xff]
  %v999 = vld [vmem:[%s969 + $0x1cb] sm:$0xff]
  %v1000 = vld [vmem:[%s969 + $0x1e3] sm:$0xff]
  %v1001 = vld [vmem:[%s969 + $0x1eb] sm:$0xff]
  %v1002 = vld [vmem:[%s969 + $0x3c3] sm:$0xff]
  %v1003 = vld [vmem:[%s969 + $0x3cb] sm:$0xff]
  %v1004 = vld [vmem:[%s969 + $0x3e3] sm:$0xff]
  %v1005 = vld [vmem:[%s969 + $0x3eb] sm:$0xff]
  %v1006 = vld [vmem:[%s969 + $0x403] sm:$0xff]
  %v1007 = vld [vmem:[%s969 + $0x40b] sm:$0xff]
  %v1008 = vld [vmem:[%s969 + $0x423] sm:$0xff]
  %v1009 = vld [vmem:[%s969 + $0x42b] sm:$0xff]
  %v1010 = vld [vmem:[%s969 + $0x443] sm:$0xff]
  %v1011 = vld [vmem:[%s969 + $0x44b] sm:$0xff]
  %v1012 = vld [vmem:[%s969 + $0x463] sm:$0xff]
  %v1013 = vld [vmem:[%s969 + $0x46b] sm:$0xff]
  %v1014 = vld [vmem:[%s969 + $0x483] sm:$0xff]
  %v1015 = vld [vmem:[%s969 + $0x48b] sm:$0xff]
  %v1016 = vld [vmem:[%s969 + $0x4a3] sm:$0xff]
  %v1017 = vld [vmem:[%s969 + $0x4ab] sm:$0xff]
  %v1018 = vld [vmem:[%s969 + $0x4c3] sm:$0xff]
  %v1019 = vld [vmem:[%s969 + $0x4cb] sm:$0xff]
  %v1020 = vld [vmem:[%s969 + $0x4e3] sm:$0xff]
  %v1021 = vld [vmem:[%s969 + $0x4eb] sm:$0xff]
  %v1022 = vld [vmem:[%s969 + $0x503] sm:$0xff]
  %v1023 = vld [vmem:[%s969 + $0x50b] sm:$0xff]
  %v1024 = vld [vmem:[%s969 + $0x523] sm:$0xff]
  %v1025 = vld [vmem:[%s969 + $0x52b] sm:$0xff]
  %v1026 = vld [vmem:[%s969 + $0x543] sm:$0xff]
  %v1027 = vld [vmem:[%s969 + $0x54b] sm:$0xff]
  %v1028 = vld [vmem:[%s969 + $0x563] sm:$0xff]
  %v1029 = vld [vmem:[%s969 + $0x56b] sm:$0xff]
  %v1030 = vld [vmem:[%s969 + $0x583] sm:$0xff]
  %v1031 = vld [vmem:[%s969 + $0x58b] sm:$0xff]
  %v1032 = vld [vmem:[%s969 + $0x5a3] sm:$0xff]
  %v1033 = vld [vmem:[%s969 + $0x5ab] sm:$0xff]
  %v1034 = vld [vmem:[%s969 + $0x8] sm:$0xff]
  %v1035 = vld [vmem:[%s969 + $0x10] sm:$0xff]
  %v1036 = vld [vmem:[%s969 + $0x28] sm:$0xff]
  %v1037 = vld [vmem:[%s969 + $0x30] sm:$0xff]
  %v1038 = vld [vmem:[%s969 + $0x48] sm:$0xff]
  %v1039 = vld [vmem:[%s969 + $0x50] sm:$0xff]
  %v1040 = vld [vmem:[%s969 + $0x68] sm:$0xff]
  %v1041 = vld [vmem:[%s969 + $0x70] sm:$0xff]
  %v1042 = vld [vmem:[%s969 + $0x88] sm:$0xff]
  %v1043 = vld [vmem:[%s969 + $0x90] sm:$0xff]
  %v1044 = vld [vmem:[%s969 + $0xa8] sm:$0xff]
  %v1045 = vld [vmem:[%s969 + $0xb0] sm:$0xff]
  %v1046 = vld [vmem:[%s969 + $0xc8] sm:$0xff]
  %v1047 = vld [vmem:[%s969 + $0xd0] sm:$0xff]
  %v1048 = vld [vmem:[%s969 + $0xe8] sm:$0xff]
  %v1049 = vld [vmem:[%s969 + $0xf0] sm:$0xff]
  %v1050 = vld [vmem:[%s969 + $0x108] sm:$0xff]
  %v1051 = vld [vmem:[%s969 + $0x110] sm:$0xff]
  %v1052 = vld [vmem:[%s969 + $0x128] sm:$0xff]
  %v1053 = vld [vmem:[%s969 + $0x130] sm:$0xff]
  %v1054 = vld [vmem:[%s969 + $0x148] sm:$0xff]
  %v1055 = vld [vmem:[%s969 + $0x150] sm:$0xff]
  %v1056 = vld [vmem:[%s969 + $0x168] sm:$0xff]
  %v1057 = vld [vmem:[%s969 + $0x170] sm:$0xff]
  %v1058 = vld [vmem:[%s969 + $0x188] sm:$0xff]
  %v1059 = vld [vmem:[%s969 + $0x190] sm:$0xff]
  %v1060 = vld [vmem:[%s969 + $0x1a8] sm:$0xff]
  %v1061 = vld [vmem:[%s969 + $0x1b0] sm:$0xff]
  %v1062 = vld [vmem:[%s969 + $0x1c8] sm:$0xff]
  %v1063 = vld [vmem:[%s969 + $0x1d0] sm:$0xff]
  %v1064 = vld [vmem:[%s969 + $0x1e8] sm:$0xff]
  %v1065 = vld [vmem:[%s969 + $0x1f0] sm:$0xff]
  %v1066 = vld [vmem:[%s969 + $0x3c8] sm:$0xff]
  %v1067 = vld [vmem:[%s969 + $0x3d0] sm:$0xff]
  %v1068 = vld [vmem:[%s969 + $0x3e8] sm:$0xff]
  %v1069 = vld [vmem:[%s969 + $0x3f0] sm:$0xff]
  %v1070 = vld [vmem:[%s969 + $0x408] sm:$0xff]
  %v1071 = vld [vmem:[%s969 + $0x410] sm:$0xff]
  %v1072 = vld [vmem:[%s969 + $0x428] sm:$0xff]
  %v1073 = vld [vmem:[%s969 + $0x430] sm:$0xff]
  %v1074 = vld [vmem:[%s969 + $0x448] sm:$0xff]
  %v1075 = vld [vmem:[%s969 + $0x450] sm:$0xff]
  %v1076 = vld [vmem:[%s969 + $0x468] sm:$0xff]
  %v1077 = vld [vmem:[%s969 + $0x470] sm:$0xff]
  %v1078 = vld [vmem:[%s969 + $0x488] sm:$0xff]
  %v1079 = vld [vmem:[%s969 + $0x490] sm:$0xff]
  %v1080 = vld [vmem:[%s969 + $0x4a8] sm:$0xff]
  %v1081 = vld [vmem:[%s969 + $0x4b0] sm:$0xff]
  %v1082 = vld [vmem:[%s969 + $0x4c8] sm:$0xff]
  %v1083 = vld [vmem:[%s969 + $0x4d0] sm:$0xff]
  %v1084 = vld [vmem:[%s969 + $0x4e8] sm:$0xff]
  %v1085 = vld [vmem:[%s969 + $0x4f0] sm:$0xff]
  %v1086 = vld [vmem:[%s969 + $0x508] sm:$0xff]
  %v1087 = vld [vmem:[%s969 + $0x510] sm:$0xff]
  %v1088 = vld [vmem:[%s969 + $0x528] sm:$0xff]
  %v1089 = vld [vmem:[%s969 + $0x530] sm:$0xff]
  %v1090 = vld [vmem:[%s969 + $0x548] sm:$0xff]
  %v1091 = vld [vmem:[%s969 + $0x550] sm:$0xff]
  %v1092 = vld [vmem:[%s969 + $0x568] sm:$0xff]
  %v1093 = vld [vmem:[%s969 + $0x570] sm:$0xff]
  %v1094 = vld [vmem:[%s969 + $0x588] sm:$0xff]
  %v1095 = vld [vmem:[%s969 + $0x590] sm:$0xff]
  %v1096 = vld [vmem:[%s969 + $0x5a8] sm:$0xff]
  %v1097 = vld [vmem:[%s969 + $0x5b0] sm:$0xff]
  %v1098 = vld [vmem:[%s969 + $0xd] sm:$0xff]
  %v1099 = vld [vmem:[%s969 + $0x15] sm:$0xff]
  %v1100 = vld [vmem:[%s969 + $0x2d] sm:$0xff]
  %v1101 = vld [vmem:[%s969 + $0x35] sm:$0xff]
  %v1102 = vld [vmem:[%s969 + $0x4d] sm:$0xff]
  %v1103 = vld [vmem:[%s969 + $0x55] sm:$0xff]
  %v1104 = vld [vmem:[%s969 + $0x6d] sm:$0xff]
  %v1105 = vld [vmem:[%s969 + $0x75] sm:$0xff]
  %v1106 = vld [vmem:[%s969 + $0x8d] sm:$0xff]
  %v1107 = vld [vmem:[%s969 + $0x95] sm:$0xff]
  %v1108 = vld [vmem:[%s969 + $0xad] sm:$0xff]
  %v1109 = vld [vmem:[%s969 + $0xb5] sm:$0xff]
  %v1110 = vld [vmem:[%s969 + $0xcd] sm:$0xff]
  %v1111 = vld [vmem:[%s969 + $0xd5] sm:$0xff]
  %v1112 = vld [vmem:[%s969 + $0xed] sm:$0xff]
  %v1113 = vld [vmem:[%s969 + $0xf5] sm:$0xff]
  %v1114 = vld [vmem:[%s969 + $0x10d] sm:$0xff]
  %v1115 = vld [vmem:[%s969 + $0x115] sm:$0xff]
  %v1116 = vld [vmem:[%s969 + $0x12d] sm:$0xff]
  %v1117 = vld [vmem:[%s969 + $0x135] sm:$0xff]
  %v1118 = vld [vmem:[%s969 + $0x14d] sm:$0xff]
  %v1119 = vld [vmem:[%s969 + $0x155] sm:$0xff]
  %v1120 = vld [vmem:[%s969 + $0x16d] sm:$0xff]
  %v1121 = vld [vmem:[%s969 + $0x175] sm:$0xff]
  %v1122 = vld [vmem:[%s969 + $0x18d] sm:$0xff]
  %v1123 = vld [vmem:[%s969 + $0x195] sm:$0xff]
  %v1124 = vld [vmem:[%s969 + $0x1ad] sm:$0xff]
  %v1125 = vld [vmem:[%s969 + $0x1b5] sm:$0xff]
  %v1126 = vld [vmem:[%s969 + $0x1cd] sm:$0xff]
  %v1127 = vld [vmem:[%s969 + $0x1d5] sm:$0xff]
  %v1128 = vld [vmem:[%s969 + $0x1ed] sm:$0xff]
  %v1129 = vld [vmem:[%s969 + $0x1f5] sm:$0xff]
  %v1130 = vld [vmem:[%s969 + $0x3cd] sm:$0xff]
  %v1131 = vld [vmem:[%s969 + $0x3d5] sm:$0xff]
  %v1132 = vld [vmem:[%s969 + $0x3ed] sm:$0xff]
  %v1133 = vld [vmem:[%s969 + $0x3f5] sm:$0xff]
  %v1134 = vld [vmem:[%s969 + $0x40d] sm:$0xff]
  %v1135 = vld [vmem:[%s969 + $0x415] sm:$0xff]
  %v1136 = vld [vmem:[%s969 + $0x42d] sm:$0xff]
  %v1137 = vld [vmem:[%s969 + $0x435] sm:$0xff]
  %v1138 = vld [vmem:[%s969 + $0x44d] sm:$0xff]
  %v1139 = vld [vmem:[%s969 + $0x455] sm:$0xff]
  %v1140 = vld [vmem:[%s969 + $0x46d] sm:$0xff]
  %v1141 = vld [vmem:[%s969 + $0x475] sm:$0xff]
  %v1142 = vld [vmem:[%s969 + $0x48d] sm:$0xff]
  %v1143 = vld [vmem:[%s969 + $0x495] sm:$0xff]
  %v1144 = vld [vmem:[%s969 + $0x4ad] sm:$0xff]
  %v1145 = vld [vmem:[%s969 + $0x4b5] sm:$0xff]
  %v1146 = vld [vmem:[%s969 + $0x4cd] sm:$0xff]
  %v1147 = vld [vmem:[%s969 + $0x4d5] sm:$0xff]
  %v1148 = vld [vmem:[%s969 + $0x4ed] sm:$0xff]
  %v1149 = vld [vmem:[%s969 + $0x4f5] sm:$0xff]
  %v1150 = vld [vmem:[%s969 + $0x50d] sm:$0xff]
  %v1151 = vld [vmem:[%s969 + $0x515] sm:$0xff]
  %v1152 = vld [vmem:[%s969 + $0x52d] sm:$0xff]
  %v1153 = vld [vmem:[%s969 + $0x535] sm:$0xff]
  %v1154 = vld [vmem:[%s969 + $0x54d] sm:$0xff]
  %v1155 = vld [vmem:[%s969 + $0x555] sm:$0xff]
  %v1156 = vld [vmem:[%s969 + $0x56d] sm:$0xff]
  %v1157 = vld [vmem:[%s969 + $0x575] sm:$0xff]
  %v1158 = vld [vmem:[%s969 + $0x58d] sm:$0xff]
  %v1159 = vld [vmem:[%s969 + $0x595] sm:$0xff]
  %v1160 = vld [vmem:[%s969 + $0x5ad] sm:$0xff]
  %v1161 = vld [vmem:[%s969 + $0x5b5] sm:$0xff]
  %v1162 = vld [vmem:[%s326 + $0x3] sm:$0xff]
  %v1163 = vld [vmem:[%s326 + $0x23] sm:$0xff]
  %v1164 = vld [vmem:[%s326 + $0x43] sm:$0xff]
  %v1165 = vld [vmem:[%s326 + $0x63] sm:$0xff]
  %v1166 = vld [vmem:[%s326 + $0x83] sm:$0xff]
  %v1167 = vld [vmem:[%s326 + $0xa3] sm:$0xff]
  %v1168 = vld [vmem:[%s326 + $0xc3] sm:$0xff]
  %v1169 = vld [vmem:[%s326 + $0xe3] sm:$0xff]
  %v1170 = vld [vmem:[%s326 + $0x103] sm:$0xff]
  %v1171 = vld [vmem:[%s326 + $0x123] sm:$0xff]
  %v1172 = vld [vmem:[%s326 + $0x143] sm:$0xff]
  %v1173 = vld [vmem:[%s326 + $0x163] sm:$0xff]
  %v1174 = vld [vmem:[%s326 + $0x183] sm:$0xff]
  %v1175 = vld [vmem:[%s326 + $0x1a3] sm:$0xff]
  %v1176 = vld [vmem:[%s326 + $0x1c3] sm:$0xff]
  %v1177 = vld [vmem:[%s326 + $0x1e3] sm:$0xff]
  %v1178 = vld [vmem:[%s326 + $0x3c3] sm:$0xff]
  %v1179 = vld [vmem:[%s326 + $0x3e3] sm:$0xff]
  %v1180 = vld [vmem:[%s326 + $0x403] sm:$0xff]
  %v1181 = vld [vmem:[%s326 + $0x423] sm:$0xff]
  %v1182 = vld [vmem:[%s326 + $0x443] sm:$0xff]
  %v1183 = vld [vmem:[%s326 + $0x463] sm:$0xff]
  %v1184 = vld [vmem:[%s326 + $0x483] sm:$0xff]
  %v1185 = vld [vmem:[%s326 + $0x4a3] sm:$0xff]
  %v1186 = vld [vmem:[%s326 + $0x4c3] sm:$0xff]
  %v1187 = vld [vmem:[%s326 + $0x4e3] sm:$0xff]
  %v1188 = vld [vmem:[%s326 + $0x503] sm:$0xff]
  %v1189 = vld [vmem:[%s326 + $0x523] sm:$0xff]
  %v1190 = vld [vmem:[%s326 + $0x543] sm:$0xff]
  %v1191 = vld [vmem:[%s326 + $0x563] sm:$0xff]
  %v1192 = vld [vmem:[%s326 + $0x583] sm:$0xff]
  %v1193 = vld [vmem:[%s326 + $0x5a3] sm:$0xff]
  %v1194 = vld [vmem:[%s326 + $0x15] sm:$0xff]
  %v1195 = vld [vmem:[%s326 + $0x35] sm:$0xff]
  %v1196 = vld [vmem:[%s326 + $0x55] sm:$0xff]
  %v1197 = vld [vmem:[%s326 + $0x75] sm:$0xff]
  %v1198 = vld [vmem:[%s326 + $0x95] sm:$0xff]
  %v1199 = vld [vmem:[%s326 + $0xb5] sm:$0xff]
  %v1200 = vld [vmem:[%s326 + $0xd5] sm:$0xff]
  %v1201 = vld [vmem:[%s326 + $0xf5] sm:$0xff]
  %v1202 = vld [vmem:[%s326 + $0x115] sm:$0xff]
  %v1203 = vld [vmem:[%s326 + $0x135] sm:$0xff]
  %v1204 = vld [vmem:[%s326 + $0x155] sm:$0xff]
  %v1205 = vld [vmem:[%s326 + $0x175] sm:$0xff]
  %v1206 = vld [vmem:[%s326 + $0x195] sm:$0xff]
  %v1207 = vld [vmem:[%s326 + $0x1b5] sm:$0xff]
  %v1208 = vld [vmem:[%s326 + $0x1d5] sm:$0xff]
  %v1209 = vld [vmem:[%s326 + $0x1f5] sm:$0xff]
  %v1210 = vld [vmem:[%s326 + $0x3d5] sm:$0xff]
  %v1211 = vld [vmem:[%s326 + $0x3f5] sm:$0xff]
  %v1212 = vld [vmem:[%s326 + $0x415] sm:$0xff]
  %v1213 = vld [vmem:[%s326 + $0x435] sm:$0xff]
  %v1214 = vld [vmem:[%s326 + $0x455] sm:$0xff]
  %v1215 = vld [vmem:[%s326 + $0x475] sm:$0xff]
  %v1216 = vld [vmem:[%s326 + $0x495] sm:$0xff]
  %v1217 = vld [vmem:[%s326 + $0x4b5] sm:$0xff]
  %v1218 = vld [vmem:[%s326 + $0x4d5] sm:$0xff]
  %v1219 = vld [vmem:[%s326 + $0x4f5] sm:$0xff]
  %v1220 = vld [vmem:[%s326 + $0x515] sm:$0xff]
  %v1221 = vld [vmem:[%s326 + $0x535] sm:$0xff]
  %v1222 = vld [vmem:[%s326 + $0x555] sm:$0xff]
  %v1223 = vld [vmem:[%s326 + $0x575] sm:$0xff]
  %v1224 = vld [vmem:[%s326 + $0x595] sm:$0xff]
  %v1225 = vld [vmem:[%s326 + $0x5b5] sm:$0xff]
  %s1226 = scalar_lea.vmem [#allocation2], 384
  %v1227 = vld [vmem:[%s1226 + $0x3] sm:$0xff]
  %v1228 = vld [vmem:[%s1226 + $0xb] sm:$0xff]
  %v1229 = vld [vmem:[%s1226 + $0x23] sm:$0xff]
  %v1230 = vld [vmem:[%s1226 + $0x2b] sm:$0xff]
  %v1231 = vld [vmem:[%s1226 + $0x43] sm:$0xff]
  %v1232 = vld [vmem:[%s1226 + $0x4b] sm:$0xff]
  %v1233 = vld [vmem:[%s1226 + $0x63] sm:$0xff]
  %v1234 = vld [vmem:[%s1226 + $0x6b] sm:$0xff]
  %v1235 = vld [vmem:[%s1226 + $0x83] sm:$0xff]
  %v1236 = vld [vmem:[%s1226 + $0x8b] sm:$0xff]
  %v1237 = vld [vmem:[%s1226 + $0xa3] sm:$0xff]
  %v1238 = vld [vmem:[%s1226 + $0xab] sm:$0xff]
  %v1239 = vld [vmem:[%s1226 + $0xc3] sm:$0xff]
  %v1240 = vld [vmem:[%s1226 + $0xcb] sm:$0xff]
  %v1241 = vld [vmem:[%s1226 + $0xe3] sm:$0xff]
  %v1242 = vld [vmem:[%s1226 + $0xeb] sm:$0xff]
  %v1243 = vld [vmem:[%s1226 + $0x103] sm:$0xff]
  %v1244 = vld [vmem:[%s1226 + $0x10b] sm:$0xff]
  %v1245 = vld [vmem:[%s1226 + $0x123] sm:$0xff]
  %v1246 = vld [vmem:[%s1226 + $0x12b] sm:$0xff]
  %v1247 = vld [vmem:[%s1226 + $0x143] sm:$0xff]
  %v1248 = vld [vmem:[%s1226 + $0x14b] sm:$0xff]
  %v1249 = vld [vmem:[%s1226 + $0x163] sm:$0xff]
  %v1250 = vld [vmem:[%s1226 + $0x16b] sm:$0xff]
  %v1251 = vld [vmem:[%s1226 + $0x183] sm:$0xff]
  %v1252 = vld [vmem:[%s1226 + $0x18b] sm:$0xff]
  %v1253 = vld [vmem:[%s1226 + $0x1a3] sm:$0xff]
  %v1254 = vld [vmem:[%s1226 + $0x1ab] sm:$0xff]
  %v1255 = vld [vmem:[%s1226 + $0x1c3] sm:$0xff]
  %v1256 = vld [vmem:[%s1226 + $0x1cb] sm:$0xff]
  %v1257 = vld [vmem:[%s1226 + $0x1e3] sm:$0xff]
  %v1258 = vld [vmem:[%s1226 + $0x1eb] sm:$0xff]
  %v1259 = vld [vmem:[%s1226 + $0x3c3] sm:$0xff]
  %v1260 = vld [vmem:[%s1226 + $0x3cb] sm:$0xff]
  %v1261 = vld [vmem:[%s1226 + $0x3e3] sm:$0xff]
  %v1262 = vld [vmem:[%s1226 + $0x3eb] sm:$0xff]
  %v1263 = vld [vmem:[%s1226 + $0x403] sm:$0xff]
  %v1264 = vld [vmem:[%s1226 + $0x40b] sm:$0xff]
  %v1265 = vld [vmem:[%s1226 + $0x423] sm:$0xff]
  %v1266 = vld [vmem:[%s1226 + $0x42b] sm:$0xff]
  %v1267 = vld [vmem:[%s1226 + $0x443] sm:$0xff]
  %v1268 = vld [vmem:[%s1226 + $0x44b] sm:$0xff]
  %v1269 = vld [vmem:[%s1226 + $0x463] sm:$0xff]
  %v1270 = vld [vmem:[%s1226 + $0x46b] sm:$0xff]
  %v1271 = vld [vmem:[%s1226 + $0x483] sm:$0xff]
  %v1272 = vld [vmem:[%s1226 + $0x48b] sm:$0xff]
  %v1273 = vld [vmem:[%s1226 + $0x4a3] sm:$0xff]
  %v1274 = vld [vmem:[%s1226 + $0x4ab] sm:$0xff]
  %v1275 = vld [vmem:[%s1226 + $0x4c3] sm:$0xff]
  %v1276 = vld [vmem:[%s1226 + $0x4cb] sm:$0xff]
  %v1277 = vld [vmem:[%s1226 + $0x4e3] sm:$0xff]
  %v1278 = vld [vmem:[%s1226 + $0x4eb] sm:$0xff]
  %v1279 = vld [vmem:[%s1226 + $0x503] sm:$0xff]
  %v1280 = vld [vmem:[%s1226 + $0x50b] sm:$0xff]
  %v1281 = vld [vmem:[%s1226 + $0x523] sm:$0xff]
  %v1282 = vld [vmem:[%s1226 + $0x52b] sm:$0xff]
  %v1283 = vld [vmem:[%s1226 + $0x543] sm:$0xff]
  %v1284 = vld [vmem:[%s1226 + $0x54b] sm:$0xff]
  %v1285 = vld [vmem:[%s1226 + $0x563] sm:$0xff]
  %v1286 = vld [vmem:[%s1226 + $0x56b] sm:$0xff]
  %v1287 = vld [vmem:[%s1226 + $0x583] sm:$0xff]
  %v1288 = vld [vmem:[%s1226 + $0x58b] sm:$0xff]
  %v1289 = vld [vmem:[%s1226 + $0x5a3] sm:$0xff]
  %v1290 = vld [vmem:[%s1226 + $0x5ab] sm:$0xff]
  %v1291 = vld [vmem:[%s1226 + $0x8] sm:$0xff]
  %v1292 = vld [vmem:[%s1226 + $0x10] sm:$0xff]
  %v1293 = vld [vmem:[%s1226 + $0x28] sm:$0xff]
  %v1294 = vld [vmem:[%s1226 + $0x30] sm:$0xff]
  %v1295 = vld [vmem:[%s1226 + $0x48] sm:$0xff]
  %v1296 = vld [vmem:[%s1226 + $0x50] sm:$0xff]
  %v1297 = vld [vmem:[%s1226 + $0x68] sm:$0xff]
  %v1298 = vld [vmem:[%s1226 + $0x70] sm:$0xff]
  %v1299 = vld [vmem:[%s1226 + $0x88] sm:$0xff]
  %v1300 = vld [vmem:[%s1226 + $0x90] sm:$0xff]
  %v1301 = vld [vmem:[%s1226 + $0xa8] sm:$0xff]
  %v1302 = vld [vmem:[%s1226 + $0xb0] sm:$0xff]
  %v1303 = vld [vmem:[%s1226 + $0xc8] sm:$0xff]
  %v1304 = vld [vmem:[%s1226 + $0xd0] sm:$0xff]
  %v1305 = vld [vmem:[%s1226 + $0xe8] sm:$0xff]
  %v1306 = vld [vmem:[%s1226 + $0xf0] sm:$0xff]
  %v1307 = vld [vmem:[%s1226 + $0x108] sm:$0xff]
  %v1308 = vld [vmem:[%s1226 + $0x110] sm:$0xff]
  %v1309 = vld [vmem:[%s1226 + $0x128] sm:$0xff]
  %v1310 = vld [vmem:[%s1226 + $0x130] sm:$0xff]
  %v1311 = vld [vmem:[%s1226 + $0x148] sm:$0xff]
  %v1312 = vld [vmem:[%s1226 + $0x150] sm:$0xff]
  %v1313 = vld [vmem:[%s1226 + $0x168] sm:$0xff]
  %v1314 = vld [vmem:[%s1226 + $0x170] sm:$0xff]
  %v1315 = vld [vmem:[%s1226 + $0x188] sm:$0xff]
  %v1316 = vld [vmem:[%s1226 + $0x190] sm:$0xff]
  %v1317 = vld [vmem:[%s1226 + $0x1a8] sm:$0xff]
  %v1318 = vld [vmem:[%s1226 + $0x1b0] sm:$0xff]
  %v1319 = vld [vmem:[%s1226 + $0x1c8] sm:$0xff]
  %v1320 = vld [vmem:[%s1226 + $0x1d0] sm:$0xff]
  %v1321 = vld [vmem:[%s1226 + $0x1e8] sm:$0xff]
  %v1322 = vld [vmem:[%s1226 + $0x1f0] sm:$0xff]
  %v1323 = vld [vmem:[%s1226 + $0x3c8] sm:$0xff]
  %v1324 = vld [vmem:[%s1226 + $0x3d0] sm:$0xff]
  %v1325 = vld [vmem:[%s1226 + $0x3e8] sm:$0xff]
  %v1326 = vld [vmem:[%s1226 + $0x3f0] sm:$0xff]
  %v1327 = vld [vmem:[%s1226 + $0x408] sm:$0xff]
  %v1328 = vld [vmem:[%s1226 + $0x410] sm:$0xff]
  %v1329 = vld [vmem:[%s1226 + $0x428] sm:$0xff]
  %v1330 = vld [vmem:[%s1226 + $0x430] sm:$0xff]
  %v1331 = vld [vmem:[%s1226 + $0x448] sm:$0xff]
  %v1332 = vld [vmem:[%s1226 + $0x450] sm:$0xff]
  %v1333 = vld [vmem:[%s1226 + $0x468] sm:$0xff]
  %v1334 = vld [vmem:[%s1226 + $0x470] sm:$0xff]
  %v1335 = vld [vmem:[%s1226 + $0x488] sm:$0xff]
  %v1336 = vld [vmem:[%s1226 + $0x490] sm:$0xff]
  %v1337 = vld [vmem:[%s1226 + $0x4a8] sm:$0xff]
  %v1338 = vld [vmem:[%s1226 + $0x4b0] sm:$0xff]
  %v1339 = vld [vmem:[%s1226 + $0x4c8] sm:$0xff]
  %v1340 = vld [vmem:[%s1226 + $0x4d0] sm:$0xff]
  %v1341 = vld [vmem:[%s1226 + $0x4e8] sm:$0xff]
  %v1342 = vld [vmem:[%s1226 + $0x4f0] sm:$0xff]
  %v1343 = vld [vmem:[%s1226 + $0x508] sm:$0xff]
  %v1344 = vld [vmem:[%s1226 + $0x510] sm:$0xff]
  %v1345 = vld [vmem:[%s1226 + $0x528] sm:$0xff]
  %v1346 = vld [vmem:[%s1226 + $0x530] sm:$0xff]
  %v1347 = vld [vmem:[%s1226 + $0x548] sm:$0xff]
  %v1348 = vld [vmem:[%s1226 + $0x550] sm:$0xff]
  %v1349 = vld [vmem:[%s1226 + $0x568] sm:$0xff]
  %v1350 = vld [vmem:[%s1226 + $0x570] sm:$0xff]
  %v1351 = vld [vmem:[%s1226 + $0x588] sm:$0xff]
  %v1352 = vld [vmem:[%s1226 + $0x590] sm:$0xff]
  %v1353 = vld [vmem:[%s1226 + $0x5a8] sm:$0xff]
  %v1354 = vld [vmem:[%s1226 + $0x5b0] sm:$0xff]
  %v1355 = vld [vmem:[%s1226 + $0xd] sm:$0xff]
  %v1356 = vld [vmem:[%s1226 + $0x15] sm:$0xff]
  %v1357 = vld [vmem:[%s1226 + $0x2d] sm:$0xff]
  %v1358 = vld [vmem:[%s1226 + $0x35] sm:$0xff]
  %v1359 = vld [vmem:[%s1226 + $0x4d] sm:$0xff]
  %v1360 = vld [vmem:[%s1226 + $0x55] sm:$0xff]
  %v1361 = vld [vmem:[%s1226 + $0x6d] sm:$0xff]
  %v1362 = vld [vmem:[%s1226 + $0x75] sm:$0xff]
  %v1363 = vld [vmem:[%s1226 + $0x8d] sm:$0xff]
  %v1364 = vld [vmem:[%s1226 + $0x95] sm:$0xff]
  %v1365 = vld [vmem:[%s1226 + $0xad] sm:$0xff]
  %v1366 = vld [vmem:[%s1226 + $0xb5] sm:$0xff]
  %v1367 = vld [vmem:[%s1226 + $0xcd] sm:$0xff]
  %v1368 = vld [vmem:[%s1226 + $0xd5] sm:$0xff]
  %v1369 = vld [vmem:[%s1226 + $0xed] sm:$0xff]
  %v1370 = vld [vmem:[%s1226 + $0xf5] sm:$0xff]
  %v1371 = vld [vmem:[%s1226 + $0x10d] sm:$0xff]
  %v1372 = vld [vmem:[%s1226 + $0x115] sm:$0xff]
  %v1373 = vld [vmem:[%s1226 + $0x12d] sm:$0xff]
  %v1374 = vld [vmem:[%s1226 + $0x135] sm:$0xff]
  %v1375 = vld [vmem:[%s1226 + $0x14d] sm:$0xff]
  %v1376 = vld [vmem:[%s1226 + $0x155] sm:$0xff]
  %v1377 = vld [vmem:[%s1226 + $0x16d] sm:$0xff]
  %v1378 = vld [vmem:[%s1226 + $0x175] sm:$0xff]
  %v1379 = vld [vmem:[%s1226 + $0x18d] sm:$0xff]
  %v1380 = vld [vmem:[%s1226 + $0x195] sm:$0xff]
  %v1381 = vld [vmem:[%s1226 + $0x1ad] sm:$0xff]
  %v1382 = vld [vmem:[%s1226 + $0x1b5] sm:$0xff]
  %v1383 = vld [vmem:[%s1226 + $0x1cd] sm:$0xff]
  %v1384 = vld [vmem:[%s1226 + $0x1d5] sm:$0xff]
  %v1385 = vld [vmem:[%s1226 + $0x1ed] sm:$0xff]
  %v1386 = vld [vmem:[%s1226 + $0x1f5] sm:$0xff]
  %v1387 = vld [vmem:[%s1226 + $0x3cd] sm:$0xff]
  %v1388 = vld [vmem:[%s1226 + $0x3d5] sm:$0xff]
  %v1389 = vld [vmem:[%s1226 + $0x3ed] sm:$0xff]
  %v1390 = vld [vmem:[%s1226 + $0x3f5] sm:$0xff]
  %v1391 = vld [vmem:[%s1226 + $0x40d] sm:$0xff]
  %v1392 = vld [vmem:[%s1226 + $0x415] sm:$0xff]
  %v1393 = vld [vmem:[%s1226 + $0x42d] sm:$0xff]
  %v1394 = vld [vmem:[%s1226 + $0x435] sm:$0xff]
  %v1395 = vld [vmem:[%s1226 + $0x44d] sm:$0xff]
  %v1396 = vld [vmem:[%s1226 + $0x455] sm:$0xff]
  %v1397 = vld [vmem:[%s1226 + $0x46d] sm:$0xff]
  %v1398 = vld [vmem:[%s1226 + $0x475] sm:$0xff]
  %v1399 = vld [vmem:[%s1226 + $0x48d] sm:$0xff]
  %v1400 = vld [vmem:[%s1226 + $0x495] sm:$0xff]
  %v1401 = vld [vmem:[%s1226 + $0x4ad] sm:$0xff]
  %v1402 = vld [vmem:[%s1226 + $0x4b5] sm:$0xff]
  %v1403 = vld [vmem:[%s1226 + $0x4cd] sm:$0xff]
  %v1404 = vld [vmem:[%s1226 + $0x4d5] sm:$0xff]
  %v1405 = vld [vmem:[%s1226 + $0x4ed] sm:$0xff]
  %v1406 = vld [vmem:[%s1226 + $0x4f5] sm:$0xff]
  %v1407 = vld [vmem:[%s1226 + $0x50d] sm:$0xff]
  %v1408 = vld [vmem:[%s1226 + $0x515] sm:$0xff]
  %v1409 = vld [vmem:[%s1226 + $0x52d] sm:$0xff]
  %v1410 = vld [vmem:[%s1226 + $0x535] sm:$0xff]
  %v1411 = vld [vmem:[%s1226 + $0x54d] sm:$0xff]
  %v1412 = vld [vmem:[%s1226 + $0x555] sm:$0xff]
  %v1413 = vld [vmem:[%s1226 + $0x56d] sm:$0xff]
  %v1414 = vld [vmem:[%s1226 + $0x575] sm:$0xff]
  %v1415 = vld [vmem:[%s1226 + $0x58d] sm:$0xff]
  %v1416 = vld [vmem:[%s1226 + $0x595] sm:$0xff]
  %v1417 = vld [vmem:[%s1226 + $0x5ad] sm:$0xff]
  %v1418 = vld [vmem:[%s1226 + $0x5b5] sm:$0xff]
  %v1419 = vld [vmem:[#allocation2 + $0x1] sm:$0xff]
  %v1420 = vld [vmem:[#allocation2 + $0x9] sm:$0xff]
  %v1421 = vld [vmem:[#allocation2 + $0x21] sm:$0xff]
  %v1422 = vld [vmem:[#allocation2 + $0x29] sm:$0xff]
  %v1423 = vld [vmem:[#allocation2 + $0x41] sm:$0xff]
  %v1424 = vld [vmem:[#allocation2 + $0x49] sm:$0xff]
  %v1425 = vld [vmem:[#allocation2 + $0x61] sm:$0xff]
  %v1426 = vld [vmem:[#allocation2 + $0x69] sm:$0xff]
  %v1427 = vld [vmem:[#allocation2 + $0x81] sm:$0xff]
  %v1428 = vld [vmem:[#allocation2 + $0x89] sm:$0xff]
  %v1429 = vld [vmem:[#allocation2 + $0xa1] sm:$0xff]
  %v1430 = vld [vmem:[#allocation2 + $0xa9] sm:$0xff]
  %v1431 = vld [vmem:[#allocation2 + $0xc1] sm:$0xff]
  %v1432 = vld [vmem:[#allocation2 + $0xc9] sm:$0xff]
  %v1433 = vld [vmem:[#allocation2 + $0xe1] sm:$0xff]
  %v1434 = vld [vmem:[#allocation2 + $0xe9] sm:$0xff]
  %v1435 = vld [vmem:[#allocation2 + $0x101] sm:$0xff]
  %v1436 = vld [vmem:[#allocation2 + $0x109] sm:$0xff]
  %v1437 = vld [vmem:[#allocation2 + $0x121] sm:$0xff]
  %v1438 = vld [vmem:[#allocation2 + $0x129] sm:$0xff]
  %v1439 = vld [vmem:[#allocation2 + $0x141] sm:$0xff]
  %v1440 = vld [vmem:[#allocation2 + $0x149] sm:$0xff]
  %v1441 = vld [vmem:[#allocation2 + $0x161] sm:$0xff]
  %v1442 = vld [vmem:[#allocation2 + $0x169] sm:$0xff]
  %v1443 = vld [vmem:[#allocation2 + $0x181] sm:$0xff]
  %v1444 = vld [vmem:[#allocation2 + $0x189] sm:$0xff]
  %v1445 = vld [vmem:[#allocation2 + $0x1a1] sm:$0xff]
  %v1446 = vld [vmem:[#allocation2 + $0x1a9] sm:$0xff]
  %v1447 = vld [vmem:[#allocation2 + $0x1c1] sm:$0xff]
  %v1448 = vld [vmem:[#allocation2 + $0x1c9] sm:$0xff]
  %v1449 = vld [vmem:[#allocation2 + $0x1e1] sm:$0xff]
  %v1450 = vld [vmem:[#allocation2 + $0x1e9] sm:$0xff]
  %v1451 = vld [vmem:[#allocation2 + $0x3c1] sm:$0xff]
  %v1452 = vld [vmem:[#allocation2 + $0x3c9] sm:$0xff]
  %v1453 = vld [vmem:[#allocation2 + $0x3e1] sm:$0xff]
  %v1454 = vld [vmem:[#allocation2 + $0x3e9] sm:$0xff]
  %v1455 = vld [vmem:[#allocation2 + $0x401] sm:$0xff]
  %v1456 = vld [vmem:[#allocation2 + $0x409] sm:$0xff]
  %v1457 = vld [vmem:[#allocation2 + $0x421] sm:$0xff]
  %v1458 = vld [vmem:[#allocation2 + $0x429] sm:$0xff]
  %v1459 = vld [vmem:[#allocation2 + $0x441] sm:$0xff]
  %v1460 = vld [vmem:[#allocation2 + $0x449] sm:$0xff]
  %v1461 = vld [vmem:[#allocation2 + $0x461] sm:$0xff]
  %v1462 = vld [vmem:[#allocation2 + $0x469] sm:$0xff]
  %v1463 = vld [vmem:[#allocation2 + $0x481] sm:$0xff]
  %v1464 = vld [vmem:[#allocation2 + $0x489] sm:$0xff]
  %v1465 = vld [vmem:[#allocation2 + $0x4a1] sm:$0xff]
  %v1466 = vld [vmem:[#allocation2 + $0x4a9] sm:$0xff]
  %v1467 = vld [vmem:[#allocation2 + $0x4c1] sm:$0xff]
  %v1468 = vld [vmem:[#allocation2 + $0x4c9] sm:$0xff]
  %v1469 = vld [vmem:[#allocation2 + $0x4e1] sm:$0xff]
  %v1470 = vld [vmem:[#allocation2 + $0x4e9] sm:$0xff]
  %v1471 = vld [vmem:[#allocation2 + $0x501] sm:$0xff]
  %v1472 = vld [vmem:[#allocation2 + $0x509] sm:$0xff]
  %v1473 = vld [vmem:[#allocation2 + $0x521] sm:$0xff]
  %v1474 = vld [vmem:[#allocation2 + $0x529] sm:$0xff]
  %v1475 = vld [vmem:[#allocation2 + $0x541] sm:$0xff]
  %v1476 = vld [vmem:[#allocation2 + $0x549] sm:$0xff]
  %v1477 = vld [vmem:[#allocation2 + $0x561] sm:$0xff]
  %v1478 = vld [vmem:[#allocation2 + $0x569] sm:$0xff]
  %v1479 = vld [vmem:[#allocation2 + $0x581] sm:$0xff]
  %v1480 = vld [vmem:[#allocation2 + $0x589] sm:$0xff]
  %v1481 = vld [vmem:[#allocation2 + $0x5a1] sm:$0xff]
  %v1482 = vld [vmem:[#allocation2 + $0x5a9] sm:$0xff]
  %v1483 = vld [vmem:[#allocation2 + $0x8] sm:$0xff]
  %v1484 = vld [vmem:[#allocation2 + $0x10] sm:$0xff]
  %v1485 = vld [vmem:[#allocation2 + $0x28] sm:$0xff]
  %v1486 = vld [vmem:[#allocation2 + $0x30] sm:$0xff]
  %v1487 = vld [vmem:[#allocation2 + $0x48] sm:$0xff]
  %v1488 = vld [vmem:[#allocation2 + $0x50] sm:$0xff]
  %v1489 = vld [vmem:[#allocation2 + $0x68] sm:$0xff]
  %v1490 = vld [vmem:[#allocation2 + $0x70] sm:$0xff]
  %v1491 = vld [vmem:[#allocation2 + $0x88] sm:$0xff]
  %v1492 = vld [vmem:[#allocation2 + $0x90] sm:$0xff]
  %v1493 = vld [vmem:[#allocation2 + $0xa8] sm:$0xff]
  %v1494 = vld [vmem:[#allocation2 + $0xb0] sm:$0xff]
  %v1495 = vld [vmem:[#allocation2 + $0xc8] sm:$0xff]
  %v1496 = vld [vmem:[#allocation2 + $0xd0] sm:$0xff]
  %v1497 = vld [vmem:[#allocation2 + $0xe8] sm:$0xff]
  %v1498 = vld [vmem:[#allocation2 + $0xf0] sm:$0xff]
  %v1499 = vld [vmem:[#allocation2 + $0x108] sm:$0xff]
  %v1500 = vld [vmem:[#allocation2 + $0x110] sm:$0xff]
  %v1501 = vld [vmem:[#allocation2 + $0x128] sm:$0xff]
  %v1502 = vld [vmem:[#allocation2 + $0x130] sm:$0xff]
  %v1503 = vld [vmem:[#allocation2 + $0x148] sm:$0xff]
  %v1504 = vld [vmem:[#allocation2 + $0x150] sm:$0xff]
  %v1505 = vld [vmem:[#allocation2 + $0x168] sm:$0xff]
  %v1506 = vld [vmem:[#allocation2 + $0x170] sm:$0xff]
  %v1507 = vld [vmem:[#allocation2 + $0x188] sm:$0xff]
  %v1508 = vld [vmem:[#allocation2 + $0x190] sm:$0xff]
  %v1509 = vld [vmem:[#allocation2 + $0x1a8] sm:$0xff]
  %v1510 = vld [vmem:[#allocation2 + $0x1b0] sm:$0xff]
  %v1511 = vld [vmem:[#allocation2 + $0x1c8] sm:$0xff]
  %v1512 = vld [vmem:[#allocation2 + $0x1d0] sm:$0xff]
  %v1513 = vld [vmem:[#allocation2 + $0x1e8] sm:$0xff]
  %v1514 = vld [vmem:[#allocation2 + $0x1f0] sm:$0xff]
  %v1515 = vld [vmem:[#allocation2 + $0x3c8] sm:$0xff]
  %v1516 = vld [vmem:[#allocation2 + $0x3d0] sm:$0xff]
  %v1517 = vld [vmem:[#allocation2 + $0x3e8] sm:$0xff]
  %v1518 = vld [vmem:[#allocation2 + $0x3f0] sm:$0xff]
  %v1519 = vld [vmem:[#allocation2 + $0x408] sm:$0xff]
  %v1520 = vld [vmem:[#allocation2 + $0x410] sm:$0xff]
  %v1521 = vld [vmem:[#allocation2 + $0x428] sm:$0xff]
  %v1522 = vld [vmem:[#allocation2 + $0x430] sm:$0xff]
  %v1523 = vld [vmem:[#allocation2 + $0x448] sm:$0xff]
  %v1524 = vld [vmem:[#allocation2 + $0x450] sm:$0xff]
  %v1525 = vld [vmem:[#allocation2 + $0x468] sm:$0xff]
  %v1526 = vld [vmem:[#allocation2 + $0x470] sm:$0xff]
  %v1527 = vld [vmem:[#allocation2 + $0x488] sm:$0xff]
  %v1528 = vld [vmem:[#allocation2 + $0x490] sm:$0xff]
  %v1529 = vld [vmem:[#allocation2 + $0x4a8] sm:$0xff]
  %v1530 = vld [vmem:[#allocation2 + $0x4b0] sm:$0xff]
  %v1531 = vld [vmem:[#allocation2 + $0x4c8] sm:$0xff]
  %v1532 = vld [vmem:[#allocation2 + $0x4d0] sm:$0xff]
  %v1533 = vld [vmem:[#allocation2 + $0x4e8] sm:$0xff]
  %v1534 = vld [vmem:[#allocation2 + $0x4f0] sm:$0xff]
  %v1535 = vld [vmem:[#allocation2 + $0x508] sm:$0xff]
  %v1536 = vld [vmem:[#allocation2 + $0x510] sm:$0xff]
  %v1537 = vld [vmem:[#allocation2 + $0x528] sm:$0xff]
  %v1538 = vld [vmem:[#allocation2 + $0x530] sm:$0xff]
  %v1539 = vld [vmem:[#allocation2 + $0x548] sm:$0xff]
  %v1540 = vld [vmem:[#allocation2 + $0x550] sm:$0xff]
  %v1541 = vld [vmem:[#allocation2 + $0x568] sm:$0xff]
  %v1542 = vld [vmem:[#allocation2 + $0x570] sm:$0xff]
  %v1543 = vld [vmem:[#allocation2 + $0x588] sm:$0xff]
  %v1544 = vld [vmem:[#allocation2 + $0x590] sm:$0xff]
  %v1545 = vld [vmem:[#allocation2 + $0x5a8] sm:$0xff]
  %v1546 = vld [vmem:[#allocation2 + $0x5b0] sm:$0xff]
  %v1547 = vld [vmem:[#allocation2 + $0xf] sm:$0xff]
  %v1548 = vld [vmem:[#allocation2 + $0x17] sm:$0xff]
  %v1549 = vld [vmem:[#allocation2 + $0x2f] sm:$0xff]
  %v1550 = vld [vmem:[#allocation2 + $0x37] sm:$0xff]
  %v1551 = vld [vmem:[#allocation2 + $0x4f] sm:$0xff]
  %v1552 = vld [vmem:[#allocation2 + $0x57] sm:$0xff]
  %v1553 = vld [vmem:[#allocation2 + $0x6f] sm:$0xff]
  %v1554 = vld [vmem:[#allocation2 + $0x77] sm:$0xff]
  %v1555 = vld [vmem:[#allocation2 + $0x8f] sm:$0xff]
  %v1556 = vld [vmem:[#allocation2 + $0x97] sm:$0xff]
  %v1557 = vld [vmem:[#allocation2 + $0xaf] sm:$0xff]
  %v1558 = vld [vmem:[#allocation2 + $0xb7] sm:$0xff]
  %v1559 = vld [vmem:[#allocation2 + $0xcf] sm:$0xff]
  %v1560 = vld [vmem:[#allocation2 + $0xd7] sm:$0xff]
  %v1561 = vld [vmem:[#allocation2 + $0xef] sm:$0xff]
  %v1562 = vld [vmem:[#allocation2 + $0xf7] sm:$0xff]
  %v1563 = vld [vmem:[#allocation2 + $0x10f] sm:$0xff]
  %v1564 = vld [vmem:[#allocation2 + $0x117] sm:$0xff]
  %v1565 = vld [vmem:[#allocation2 + $0x12f] sm:$0xff]
  %v1566 = vld [vmem:[#allocation2 + $0x137] sm:$0xff]
  %v1567 = vld [vmem:[#allocation2 + $0x14f] sm:$0xff]
  %v1568 = vld [vmem:[#allocation2 + $0x157] sm:$0xff]
  %v1569 = vld [vmem:[#allocation2 + $0x16f] sm:$0xff]
  %v1570 = vld [vmem:[#allocation2 + $0x177] sm:$0xff]
  %v1571 = vld [vmem:[#allocation2 + $0x18f] sm:$0xff]
  %v1572 = vld [vmem:[#allocation2 + $0x197] sm:$0xff]
  %v1573 = vld [vmem:[#allocation2 + $0x1af] sm:$0xff]
  %v1574 = vld [vmem:[#allocation2 + $0x1b7] sm:$0xff]
  %v1575 = vld [vmem:[#allocation2 + $0x1cf] sm:$0xff]
  %v1576 = vld [vmem:[#allocation2 + $0x1d7] sm:$0xff]
  %v1577 = vld [vmem:[#allocation2 + $0x1ef] sm:$0xff]
  %v1578 = vld [vmem:[#allocation2 + $0x1f7] sm:$0xff]
  %v1579 = vld [vmem:[#allocation2 + $0x3cf] sm:$0xff]
  %v1580 = vld [vmem:[#allocation2 + $0x3d7] sm:$0xff]
  %v1581 = vld [vmem:[#allocation2 + $0x3ef] sm:$0xff]
  %v1582 = vld [vmem:[#allocation2 + $0x3f7] sm:$0xff]
  %v1583 = vld [vmem:[#allocation2 + $0x40f] sm:$0xff]
  %v1584 = vld [vmem:[#allocation2 + $0x417] sm:$0xff]
  %v1585 = vld [vmem:[#allocation2 + $0x42f] sm:$0xff]
  %v1586 = vld [vmem:[#allocation2 + $0x437] sm:$0xff]
  %v1587 = vld [vmem:[#allocation2 + $0x44f] sm:$0xff]
  %v1588 = vld [vmem:[#allocation2 + $0x457] sm:$0xff]
  %v1589 = vld [vmem:[#allocation2 + $0x46f] sm:$0xff]
  %v1590 = vld [vmem:[#allocation2 + $0x477] sm:$0xff]
  %v1591 = vld [vmem:[#allocation2 + $0x48f] sm:$0xff]
  %v1592 = vld [vmem:[#allocation2 + $0x497] sm:$0xff]
  %v1593 = vld [vmem:[#allocation2 + $0x4af] sm:$0xff]
  %v1594 = vld [vmem:[#allocation2 + $0x4b7] sm:$0xff]
  %v1595 = vld [vmem:[#allocation2 + $0x4cf] sm:$0xff]
  %v1596 = vld [vmem:[#allocation2 + $0x4d7] sm:$0xff]
  %v1597 = vld [vmem:[#allocation2 + $0x4ef] sm:$0xff]
  %v1598 = vld [vmem:[#allocation2 + $0x4f7] sm:$0xff]
  %v1599 = vld [vmem:[#allocation2 + $0x50f] sm:$0xff]
  %v1600 = vld [vmem:[#allocation2 + $0x517] sm:$0xff]
  %v1601 = vld [vmem:[#allocation2 + $0x52f] sm:$0xff]
  %v1602 = vld [vmem:[#allocation2 + $0x537] sm:$0xff]
  %v1603 = vld [vmem:[#allocation2 + $0x54f] sm:$0xff]
  %v1604 = vld [vmem:[#allocation2 + $0x557] sm:$0xff]
  %v1605 = vld [vmem:[#allocation2 + $0x56f] sm:$0xff]
  %v1606 = vld [vmem:[#allocation2 + $0x577] sm:$0xff]
  %v1607 = vld [vmem:[#allocation2 + $0x58f] sm:$0xff]
  %v1608 = vld [vmem:[#allocation2 + $0x597] sm:$0xff]
  %v1609 = vld [vmem:[#allocation2 + $0x5af] sm:$0xff]
  %v1610 = vld [vmem:[#allocation2 + $0x5b7] sm:$0xff]
  %v1611 = vld [vmem:[%s326 + $0x1] sm:$0xff]
  %v1612 = vld [vmem:[%s326 + $0x9] sm:$0xff]
  %v1613 = vld [vmem:[%s326 + $0x21] sm:$0xff]
  %v1614 = vld [vmem:[%s326 + $0x29] sm:$0xff]
  %v1615 = vld [vmem:[%s326 + $0x41] sm:$0xff]
  %v1616 = vld [vmem:[%s326 + $0x49] sm:$0xff]
  %v1617 = vld [vmem:[%s326 + $0x61] sm:$0xff]
  %v1618 = vld [vmem:[%s326 + $0x69] sm:$0xff]
  %v1619 = vld [vmem:[%s326 + $0x81] sm:$0xff]
  %v1620 = vld [vmem:[%s326 + $0x89] sm:$0xff]
  %v1621 = vld [vmem:[%s326 + $0xa1] sm:$0xff]
  %v1622 = vld [vmem:[%s326 + $0xa9] sm:$0xff]
  %v1623 = vld [vmem:[%s326 + $0xc1] sm:$0xff]
  %v1624 = vld [vmem:[%s326 + $0xc9] sm:$0xff]
  %v1625 = vld [vmem:[%s326 + $0xe1] sm:$0xff]
  %v1626 = vld [vmem:[%s326 + $0xe9] sm:$0xff]
  %v1627 = vld [vmem:[%s326 + $0x101] sm:$0xff]
  %v1628 = vld [vmem:[%s326 + $0x109] sm:$0xff]
  %v1629 = vld [vmem:[%s326 + $0x121] sm:$0xff]
  %v1630 = vld [vmem:[%s326 + $0x129] sm:$0xff]
  %v1631 = vld [vmem:[%s326 + $0x141] sm:$0xff]
  %v1632 = vld [vmem:[%s326 + $0x149] sm:$0xff]
  %v1633 = vld [vmem:[%s326 + $0x161] sm:$0xff]
  %v1634 = vld [vmem:[%s326 + $0x169] sm:$0xff]
  %v1635 = vld [vmem:[%s326 + $0x181] sm:$0xff]
  %v1636 = vld [vmem:[%s326 + $0x189] sm:$0xff]
  %v1637 = vld [vmem:[%s326 + $0x1a1] sm:$0xff]
  %v1638 = vld [vmem:[%s326 + $0x1a9] sm:$0xff]
  %v1639 = vld [vmem:[%s326 + $0x1c1] sm:$0xff]
  %v1640 = vld [vmem:[%s326 + $0x1c9] sm:$0xff]
  %v1641 = vld [vmem:[%s326 + $0x1e1] sm:$0xff]
  %v1642 = vld [vmem:[%s326 + $0x1e9] sm:$0xff]
  %v1643 = vld [vmem:[%s326 + $0x3c1] sm:$0xff]
  %v1644 = vld [vmem:[%s326 + $0x3c9] sm:$0xff]
  %v1645 = vld [vmem:[%s326 + $0x3e1] sm:$0xff]
  %v1646 = vld [vmem:[%s326 + $0x3e9] sm:$0xff]
  %v1647 = vld [vmem:[%s326 + $0x401] sm:$0xff]
  %v1648 = vld [vmem:[%s326 + $0x409] sm:$0xff]
  %v1649 = vld [vmem:[%s326 + $0x421] sm:$0xff]
  %v1650 = vld [vmem:[%s326 + $0x429] sm:$0xff]
  %v1651 = vld [vmem:[%s326 + $0x441] sm:$0xff]
  %v1652 = vld [vmem:[%s326 + $0x449] sm:$0xff]
  %v1653 = vld [vmem:[%s326 + $0x461] sm:$0xff]
  %v1654 = vld [vmem:[%s326 + $0x469] sm:$0xff]
  %v1655 = vld [vmem:[%s326 + $0x481] sm:$0xff]
  %v1656 = vld [vmem:[%s326 + $0x489] sm:$0xff]
  %v1657 = vld [vmem:[%s326 + $0x4a1] sm:$0xff]
  %v1658 = vld [vmem:[%s326 + $0x4a9] sm:$0xff]
  %v1659 = vld [vmem:[%s326 + $0x4c1] sm:$0xff]
  %v1660 = vld [vmem:[%s326 + $0x4c9] sm:$0xff]
  %v1661 = vld [vmem:[%s326 + $0x4e1] sm:$0xff]
  %v1662 = vld [vmem:[%s326 + $0x4e9] sm:$0xff]
  %v1663 = vld [vmem:[%s326 + $0x501] sm:$0xff]
  %v1664 = vld [vmem:[%s326 + $0x509] sm:$0xff]
  %v1665 = vld [vmem:[%s326 + $0x521] sm:$0xff]
  %v1666 = vld [vmem:[%s326 + $0x529] sm:$0xff]
  %v1667 = vld [vmem:[%s326 + $0x541] sm:$0xff]
  %v1668 = vld [vmem:[%s326 + $0x549] sm:$0xff]
  %v1669 = vld [vmem:[%s326 + $0x561] sm:$0xff]
  %v1670 = vld [vmem:[%s326 + $0x569] sm:$0xff]
  %v1671 = vld [vmem:[%s326 + $0x581] sm:$0xff]
  %v1672 = vld [vmem:[%s326 + $0x589] sm:$0xff]
  %v1673 = vld [vmem:[%s326 + $0x5a1] sm:$0xff]
  %v1674 = vld [vmem:[%s326 + $0x5a9] sm:$0xff]
  %v1675 = vld [vmem:[%s326 + $0xf] sm:$0xff]
  %v1676 = vld [vmem:[%s326 + $0x17] sm:$0xff]
  %v1677 = vld [vmem:[%s326 + $0x2f] sm:$0xff]
  %v1678 = vld [vmem:[%s326 + $0x37] sm:$0xff]
  %v1679 = vld [vmem:[%s326 + $0x4f] sm:$0xff]
  %v1680 = vld [vmem:[%s326 + $0x57] sm:$0xff]
  %v1681 = vld [vmem:[%s326 + $0x6f] sm:$0xff]
  %v1682 = vld [vmem:[%s326 + $0x77] sm:$0xff]
  %v1683 = vld [vmem:[%s326 + $0x8f] sm:$0xff]
  %v1684 = vld [vmem:[%s326 + $0x97] sm:$0xff]
  %v1685 = vld [vmem:[%s326 + $0xaf] sm:$0xff]
  %v1686 = vld [vmem:[%s326 + $0xb7] sm:$0xff]
  %v1687 = vld [vmem:[%s326 + $0xcf] sm:$0xff]
  %v1688 = vld [vmem:[%s326 + $0xd7] sm:$0xff]
  %v1689 = vld [vmem:[%s326 + $0xef] sm:$0xff]
  %v1690 = vld [vmem:[%s326 + $0xf7] sm:$0xff]
  %v1691 = vld [vmem:[%s326 + $0x10f] sm:$0xff]
  %v1692 = vld [vmem:[%s326 + $0x117] sm:$0xff]
  %v1693 = vld [vmem:[%s326 + $0x12f] sm:$0xff]
  %v1694 = vld [vmem:[%s326 + $0x137] sm:$0xff]
  %v1695 = vld [vmem:[%s326 + $0x14f] sm:$0xff]
  %v1696 = vld [vmem:[%s326 + $0x157] sm:$0xff]
  %v1697 = vld [vmem:[%s326 + $0x16f] sm:$0xff]
  %v1698 = vld [vmem:[%s326 + $0x177] sm:$0xff]
  %v1699 = vld [vmem:[%s326 + $0x18f] sm:$0xff]
  %v1700 = vld [vmem:[%s326 + $0x197] sm:$0xff]
  %v1701 = vld [vmem:[%s326 + $0x1af] sm:$0xff]
  %v1702 = vld [vmem:[%s326 + $0x1b7] sm:$0xff]
  %v1703 = vld [vmem:[%s326 + $0x1cf] sm:$0xff]
  %v1704 = vld [vmem:[%s326 + $0x1d7] sm:$0xff]
  %v1705 = vld [vmem:[%s326 + $0x1ef] sm:$0xff]
  %v1706 = vld [vmem:[%s326 + $0x1f7] sm:$0xff]
  %v1707 = vld [vmem:[%s326 + $0x3cf] sm:$0xff]
  %v1708 = vld [vmem:[%s326 + $0x3d7] sm:$0xff]
  %v1709 = vld [vmem:[%s326 + $0x3ef] sm:$0xff]
  %v1710 = vld [vmem:[%s326 + $0x3f7] sm:$0xff]
  %v1711 = vld [vmem:[%s326 + $0x40f] sm:$0xff]
  %v1712 = vld [vmem:[%s326 + $0x417] sm:$0xff]
  %v1713 = vld [vmem:[%s326 + $0x42f] sm:$0xff]
  %v1714 = vld [vmem:[%s326 + $0x437] sm:$0xff]
  %v1715 = vld [vmem:[%s326 + $0x44f] sm:$0xff]
  %v1716 = vld [vmem:[%s326 + $0x457] sm:$0xff]
  %v1717 = vld [vmem:[%s326 + $0x46f] sm:$0xff]
  %v1718 = vld [vmem:[%s326 + $0x477] sm:$0xff]
  %v1719 = vld [vmem:[%s326 + $0x48f] sm:$0xff]
  %v1720 = vld [vmem:[%s326 + $0x497] sm:$0xff]
  %v1721 = vld [vmem:[%s326 + $0x4af] sm:$0xff]
  %v1722 = vld [vmem:[%s326 + $0x4b7] sm:$0xff]
  %v1723 = vld [vmem:[%s326 + $0x4cf] sm:$0xff]
  %v1724 = vld [vmem:[%s326 + $0x4d7] sm:$0xff]
  %v1725 = vld [vmem:[%s326 + $0x4ef] sm:$0xff]
  %v1726 = vld [vmem:[%s326 + $0x4f7] sm:$0xff]
  %v1727 = vld [vmem:[%s326 + $0x50f] sm:$0xff]
  %v1728 = vld [vmem:[%s326 + $0x517] sm:$0xff]
  %v1729 = vld [vmem:[%s326 + $0x52f] sm:$0xff]
  %v1730 = vld [vmem:[%s326 + $0x537] sm:$0xff]
  %v1731 = vld [vmem:[%s326 + $0x54f] sm:$0xff]
  %v1732 = vld [vmem:[%s326 + $0x557] sm:$0xff]
  %v1733 = vld [vmem:[%s326 + $0x56f] sm:$0xff]
  %v1734 = vld [vmem:[%s326 + $0x577] sm:$0xff]
  %v1735 = vld [vmem:[%s326 + $0x58f] sm:$0xff]
  %v1736 = vld [vmem:[%s326 + $0x597] sm:$0xff]
  %v1737 = vld [vmem:[%s326 + $0x5af] sm:$0xff]
  %v1738 = vld [vmem:[%s326 + $0x5b7] sm:$0xff]
  %s1739 = scalar_lea.vmem [#allocation2], 448
  %v1740 = vld [vmem:[%s1739 + $0x1] sm:$0xff]
  %v1741 = vld [vmem:[%s1739 + $0x9] sm:$0xff]
  %v1742 = vld [vmem:[%s1739 + $0x21] sm:$0xff]
  %v1743 = vld [vmem:[%s1739 + $0x29] sm:$0xff]
  %v1744 = vld [vmem:[%s1739 + $0x41] sm:$0xff]
  %v1745 = vld [vmem:[%s1739 + $0x49] sm:$0xff]
  %v1746 = vld [vmem:[%s1739 + $0x61] sm:$0xff]
  %v1747 = vld [vmem:[%s1739 + $0x69] sm:$0xff]
  %v1748 = vld [vmem:[%s1739 + $0x81] sm:$0xff]
  %v1749 = vld [vmem:[%s1739 + $0x89] sm:$0xff]
  %v1750 = vld [vmem:[%s1739 + $0xa1] sm:$0xff]
  %v1751 = vld [vmem:[%s1739 + $0xa9] sm:$0xff]
  %v1752 = vld [vmem:[%s1739 + $0xc1] sm:$0xff]
  %v1753 = vld [vmem:[%s1739 + $0xc9] sm:$0xff]
  %v1754 = vld [vmem:[%s1739 + $0xe1] sm:$0xff]
  %v1755 = vld [vmem:[%s1739 + $0xe9] sm:$0xff]
  %v1756 = vld [vmem:[%s1739 + $0x101] sm:$0xff]
  %v1757 = vld [vmem:[%s1739 + $0x109] sm:$0xff]
  %v1758 = vld [vmem:[%s1739 + $0x121] sm:$0xff]
  %v1759 = vld [vmem:[%s1739 + $0x129] sm:$0xff]
  %v1760 = vld [vmem:[%s1739 + $0x141] sm:$0xff]
  %v1761 = vld [vmem:[%s1739 + $0x149] sm:$0xff]
  %v1762 = vld [vmem:[%s1739 + $0x161] sm:$0xff]
  %v1763 = vld [vmem:[%s1739 + $0x169] sm:$0xff]
  %v1764 = vld [vmem:[%s1739 + $0x181] sm:$0xff]
  %v1765 = vld [vmem:[%s1739 + $0x189] sm:$0xff]
  %v1766 = vld [vmem:[%s1739 + $0x1a1] sm:$0xff]
  %v1767 = vld [vmem:[%s1739 + $0x1a9] sm:$0xff]
  %v1768 = vld [vmem:[%s1739 + $0x1c1] sm:$0xff]
  %v1769 = vld [vmem:[%s1739 + $0x1c9] sm:$0xff]
  %v1770 = vld [vmem:[%s1739 + $0x1e1] sm:$0xff]
  %v1771 = vld [vmem:[%s1739 + $0x1e9] sm:$0xff]
  %v1772 = vld [vmem:[%s1739 + $0x3c1] sm:$0xff]
  %v1773 = vld [vmem:[%s1739 + $0x3c9] sm:$0xff]
  %v1774 = vld [vmem:[%s1739 + $0x3e1] sm:$0xff]
  %v1775 = vld [vmem:[%s1739 + $0x3e9] sm:$0xff]
  %v1776 = vld [vmem:[%s1739 + $0x401] sm:$0xff]
  %v1777 = vld [vmem:[%s1739 + $0x409] sm:$0xff]
  %v1778 = vld [vmem:[%s1739 + $0x421] sm:$0xff]
  %v1779 = vld [vmem:[%s1739 + $0x429] sm:$0xff]
  %v1780 = vld [vmem:[%s1739 + $0x441] sm:$0xff]
  %v1781 = vld [vmem:[%s1739 + $0x449] sm:$0xff]
  %v1782 = vld [vmem:[%s1739 + $0x461] sm:$0xff]
  %v1783 = vld [vmem:[%s1739 + $0x469] sm:$0xff]
  %v1784 = vld [vmem:[%s1739 + $0x481] sm:$0xff]
  %v1785 = vld [vmem:[%s1739 + $0x489] sm:$0xff]
  %v1786 = vld [vmem:[%s1739 + $0x4a1] sm:$0xff]
  %v1787 = vld [vmem:[%s1739 + $0x4a9] sm:$0xff]
  %v1788 = vld [vmem:[%s1739 + $0x4c1] sm:$0xff]
  %v1789 = vld [vmem:[%s1739 + $0x4c9] sm:$0xff]
  %v1790 = vld [vmem:[%s1739 + $0x4e1] sm:$0xff]
  %v1791 = vld [vmem:[%s1739 + $0x4e9] sm:$0xff]
  %v1792 = vld [vmem:[%s1739 + $0x501] sm:$0xff]
  %v1793 = vld [vmem:[%s1739 + $0x509] sm:$0xff]
  %v1794 = vld [vmem:[%s1739 + $0x521] sm:$0xff]
  %v1795 = vld [vmem:[%s1739 + $0x529] sm:$0xff]
  %v1796 = vld [vmem:[%s1739 + $0x541] sm:$0xff]
  %v1797 = vld [vmem:[%s1739 + $0x549] sm:$0xff]
  %v1798 = vld [vmem:[%s1739 + $0x561] sm:$0xff]
  %v1799 = vld [vmem:[%s1739 + $0x569] sm:$0xff]
  %v1800 = vld [vmem:[%s1739 + $0x581] sm:$0xff]
  %v1801 = vld [vmem:[%s1739 + $0x589] sm:$0xff]
  %v1802 = vld [vmem:[%s1739 + $0x5a1] sm:$0xff]
  %v1803 = vld [vmem:[%s1739 + $0x5a9] sm:$0xff]
  %v1804 = vld [vmem:[%s1739 + $0x8] sm:$0xff]
  %v1805 = vld [vmem:[%s1739 + $0x10] sm:$0xff]
  %v1806 = vld [vmem:[%s1739 + $0x28] sm:$0xff]
  %v1807 = vld [vmem:[%s1739 + $0x30] sm:$0xff]
  %v1808 = vld [vmem:[%s1739 + $0x48] sm:$0xff]
  %v1809 = vld [vmem:[%s1739 + $0x50] sm:$0xff]
  %v1810 = vld [vmem:[%s1739 + $0x68] sm:$0xff]
  %v1811 = vld [vmem:[%s1739 + $0x70] sm:$0xff]
  %v1812 = vld [vmem:[%s1739 + $0x88] sm:$0xff]
  %v1813 = vld [vmem:[%s1739 + $0x90] sm:$0xff]
  %v1814 = vld [vmem:[%s1739 + $0xa8] sm:$0xff]
  %v1815 = vld [vmem:[%s1739 + $0xb0] sm:$0xff]
  %v1816 = vld [vmem:[%s1739 + $0xc8] sm:$0xff]
  %v1817 = vld [vmem:[%s1739 + $0xd0] sm:$0xff]
  %v1818 = vld [vmem:[%s1739 + $0xe8] sm:$0xff]
  %v1819 = vld [vmem:[%s1739 + $0xf0] sm:$0xff]
  %v1820 = vld [vmem:[%s1739 + $0x108] sm:$0xff]
  %v1821 = vld [vmem:[%s1739 + $0x110] sm:$0xff]
  %v1822 = vld [vmem:[%s1739 + $0x128] sm:$0xff]
  %v1823 = vld [vmem:[%s1739 + $0x130] sm:$0xff]
  %v1824 = vld [vmem:[%s1739 + $0x148] sm:$0xff]
  %v1825 = vld [vmem:[%s1739 + $0x150] sm:$0xff]
  %v1826 = vld [vmem:[%s1739 + $0x168] sm:$0xff]
  %v1827 = vld [vmem:[%s1739 + $0x170] sm:$0xff]
  %v1828 = vld [vmem:[%s1739 + $0x188] sm:$0xff]
  %v1829 = vld [vmem:[%s1739 + $0x190] sm:$0xff]
  %v1830 = vld [vmem:[%s1739 + $0x1a8] sm:$0xff]
  %v1831 = vld [vmem:[%s1739 + $0x1b0] sm:$0xff]
  %v1832 = vld [vmem:[%s1739 + $0x1c8] sm:$0xff]
  %v1833 = vld [vmem:[%s1739 + $0x1d0] sm:$0xff]
  %v1834 = vld [vmem:[%s1739 + $0x1e8] sm:$0xff]
  %v1835 = vld [vmem:[%s1739 + $0x1f0] sm:$0xff]
  %v1836 = vld [vmem:[%s1739 + $0x3c8] sm:$0xff]
  %v1837 = vld [vmem:[%s1739 + $0x3d0] sm:$0xff]
  %v1838 = vld [vmem:[%s1739 + $0x3e8] sm:$0xff]
  %v1839 = vld [vmem:[%s1739 + $0x3f0] sm:$0xff]
  %v1840 = vld [vmem:[%s1739 + $0x408] sm:$0xff]
  %v1841 = vld [vmem:[%s1739 + $0x410] sm:$0xff]
  %v1842 = vld [vmem:[%s1739 + $0x428] sm:$0xff]
  %v1843 = vld [vmem:[%s1739 + $0x430] sm:$0xff]
  %v1844 = vld [vmem:[%s1739 + $0x448] sm:$0xff]
  %v1845 = vld [vmem:[%s1739 + $0x450] sm:$0xff]
  %v1846 = vld [vmem:[%s1739 + $0x468] sm:$0xff]
  %v1847 = vld [vmem:[%s1739 + $0x470] sm:$0xff]
  %v1848 = vld [vmem:[%s1739 + $0x488] sm:$0xff]
  %v1849 = vld [vmem:[%s1739 + $0x490] sm:$0xff]
  %v1850 = vld [vmem:[%s1739 + $0x4a8] sm:$0xff]
  %v1851 = vld [vmem:[%s1739 + $0x4b0] sm:$0xff]
  %v1852 = vld [vmem:[%s1739 + $0x4c8] sm:$0xff]
  %v1853 = vld [vmem:[%s1739 + $0x4d0] sm:$0xff]
  %v1854 = vld [vmem:[%s1739 + $0x4e8] sm:$0xff]
  %v1855 = vld [vmem:[%s1739 + $0x4f0] sm:$0xff]
  %v1856 = vld [vmem:[%s1739 + $0x508] sm:$0xff]
  %v1857 = vld [vmem:[%s1739 + $0x510] sm:$0xff]
  %v1858 = vld [vmem:[%s1739 + $0x528] sm:$0xff]
  %v1859 = vld [vmem:[%s1739 + $0x530] sm:$0xff]
  %v1860 = vld [vmem:[%s1739 + $0x548] sm:$0xff]
  %v1861 = vld [vmem:[%s1739 + $0x550] sm:$0xff]
  %v1862 = vld [vmem:[%s1739 + $0x568] sm:$0xff]
  %v1863 = vld [vmem:[%s1739 + $0x570] sm:$0xff]
  %v1864 = vld [vmem:[%s1739 + $0x588] sm:$0xff]
  %v1865 = vld [vmem:[%s1739 + $0x590] sm:$0xff]
  %v1866 = vld [vmem:[%s1739 + $0x5a8] sm:$0xff]
  %v1867 = vld [vmem:[%s1739 + $0x5b0] sm:$0xff]
  %v1868 = vld [vmem:[%s1739 + $0xf] sm:$0xff]
  %v1869 = vld [vmem:[%s1739 + $0x17] sm:$0xff]
  %v1870 = vld [vmem:[%s1739 + $0x2f] sm:$0xff]
  %v1871 = vld [vmem:[%s1739 + $0x37] sm:$0xff]
  %v1872 = vld [vmem:[%s1739 + $0x4f] sm:$0xff]
  %v1873 = vld [vmem:[%s1739 + $0x57] sm:$0xff]
  %v1874 = vld [vmem:[%s1739 + $0x6f] sm:$0xff]
  %v1875 = vld [vmem:[%s1739 + $0x77] sm:$0xff]
  %v1876 = vld [vmem:[%s1739 + $0x8f] sm:$0xff]
  %v1877 = vld [vmem:[%s1739 + $0x97] sm:$0xff]
  %v1878 = vld [vmem:[%s1739 + $0xaf] sm:$0xff]
  %v1879 = vld [vmem:[%s1739 + $0xb7] sm:$0xff]
  %v1880 = vld [vmem:[%s1739 + $0xcf] sm:$0xff]
  %v1881 = vld [vmem:[%s1739 + $0xd7] sm:$0xff]
  %v1882 = vld [vmem:[%s1739 + $0xef] sm:$0xff]
  %v1883 = vld [vmem:[%s1739 + $0xf7] sm:$0xff]
  %v1884 = vld [vmem:[%s1739 + $0x10f] sm:$0xff]
  %v1885 = vld [vmem:[%s1739 + $0x117] sm:$0xff]
  %v1886 = vld [vmem:[%s1739 + $0x12f] sm:$0xff]
  %v1887 = vld [vmem:[%s1739 + $0x137] sm:$0xff]
  %v1888 = vld [vmem:[%s1739 + $0x14f] sm:$0xff]
  %v1889 = vld [vmem:[%s1739 + $0x157] sm:$0xff]
  %v1890 = vld [vmem:[%s1739 + $0x16f] sm:$0xff]
  %v1891 = vld [vmem:[%s1739 + $0x177] sm:$0xff]
  %v1892 = vld [vmem:[%s1739 + $0x18f] sm:$0xff]
  %v1893 = vld [vmem:[%s1739 + $0x197] sm:$0xff]
  %v1894 = vld [vmem:[%s1739 + $0x1af] sm:$0xff]
  %v1895 = vld [vmem:[%s1739 + $0x1b7] sm:$0xff]
  %v1896 = vld [vmem:[%s1739 + $0x1cf] sm:$0xff]
  %v1897 = vld [vmem:[%s1739 + $0x1d7] sm:$0xff]
  %v1898 = vld [vmem:[%s1739 + $0x1ef] sm:$0xff]
  %v1899 = vld [vmem:[%s1739 + $0x1f7] sm:$0xff]
  %v1900 = vld [vmem:[%s1739 + $0x3cf] sm:$0xff]
  %v1901 = vld [vmem:[%s1739 + $0x3d7] sm:$0xff]
  %v1902 = vld [vmem:[%s1739 + $0x3ef] sm:$0xff]
  %v1903 = vld [vmem:[%s1739 + $0x3f7] sm:$0xff]
  %v1904 = vld [vmem:[%s1739 + $0x40f] sm:$0xff]
  %v1905 = vld [vmem:[%s1739 + $0x417] sm:$0xff]
  %v1906 = vld [vmem:[%s1739 + $0x42f] sm:$0xff]
  %v1907 = vld [vmem:[%s1739 + $0x437] sm:$0xff]
  %v1908 = vld [vmem:[%s1739 + $0x44f] sm:$0xff]
  %v1909 = vld [vmem:[%s1739 + $0x457] sm:$0xff]
  %v1910 = vld [vmem:[%s1739 + $0x46f] sm:$0xff]
  %v1911 = vld [vmem:[%s1739 + $0x477] sm:$0xff]
  %v1912 = vld [vmem:[%s1739 + $0x48f] sm:$0xff]
  %v1913 = vld [vmem:[%s1739 + $0x497] sm:$0xff]
  %v1914 = vld [vmem:[%s1739 + $0x4af] sm:$0xff]
  %v1915 = vld [vmem:[%s1739 + $0x4b7] sm:$0xff]
  %v1916 = vld [vmem:[%s1739 + $0x4cf] sm:$0xff]
  %v1917 = vld [vmem:[%s1739 + $0x4d7] sm:$0xff]
  %v1918 = vld [vmem:[%s1739 + $0x4ef] sm:$0xff]
  %v1919 = vld [vmem:[%s1739 + $0x4f7] sm:$0xff]
  %v1920 = vld [vmem:[%s1739 + $0x50f] sm:$0xff]
  %v1921 = vld [vmem:[%s1739 + $0x517] sm:$0xff]
  %v1922 = vld [vmem:[%s1739 + $0x52f] sm:$0xff]
  %v1923 = vld [vmem:[%s1739 + $0x537] sm:$0xff]
  %v1924 = vld [vmem:[%s1739 + $0x54f] sm:$0xff]
  %v1925 = vld [vmem:[%s1739 + $0x557] sm:$0xff]
  %v1926 = vld [vmem:[%s1739 + $0x56f] sm:$0xff]
  %v1927 = vld [vmem:[%s1739 + $0x577] sm:$0xff]
  %v1928 = vld [vmem:[%s1739 + $0x58f] sm:$0xff]
  %v1929 = vld [vmem:[%s1739 + $0x597] sm:$0xff]
  %v1930 = vld [vmem:[%s1739 + $0x5af] sm:$0xff]
  %v1931 = vld [vmem:[%s1739 + $0x5b7] sm:$0xff]
  %1996 = vrot.lane.b32.xlu0 %v456, 32
  %v1997 = vpop.permute.xlu0 %1996
  %1998 = vrot.lane.b32.xlu0 %v457, 32
  %v1999 = vpop.permute.xlu0 %1998
  %2000 = vrot.lane.b32.xlu0 %v458, 32
  %v2001 = vpop.permute.xlu0 %2000
  %2002 = vrot.lane.b32.xlu0 %v459, 32
  %v2003 = vpop.permute.xlu0 %2002
  %2004 = vrot.lane.b32.xlu0 %v460, 32
  %v2005 = vpop.permute.xlu0 %2004
  %2006 = vrot.lane.b32.xlu0 %v461, 32
  %v2007 = vpop.permute.xlu0 %2006
  %2008 = vrot.lane.b32.xlu0 %v462, 32
  %v2009 = vpop.permute.xlu0 %2008
  %2010 = vrot.lane.b32.xlu0 %v463, 32
  %v2011 = vpop.permute.xlu0 %2010
  %2012 = vrot.lane.b32.xlu0 %v464, 32
  %v2013 = vpop.permute.xlu0 %2012
  %2014 = vrot.lane.b32.xlu0 %v465, 32
  %v2015 = vpop.permute.xlu0 %2014
  %2016 = vrot.lane.b32.xlu0 %v466, 32
  %v2017 = vpop.permute.xlu0 %2016
  %2018 = vrot.lane.b32.xlu0 %v467, 32
  %v2019 = vpop.permute.xlu0 %2018
  %2020 = vrot.lane.b32.xlu0 %v468, 32
  %v2021 = vpop.permute.xlu0 %2020
  %2022 = vrot.lane.b32.xlu0 %v469, 32
  %v2023 = vpop.permute.xlu0 %2022
  %2024 = vrot.lane.b32.xlu0 %v470, 32
  %v2025 = vpop.permute.xlu0 %2024
  %2026 = vrot.lane.b32.xlu0 %v471, 32
  %v2027 = vpop.permute.xlu0 %2026
  %2028 = vrot.lane.b32.xlu0 %v472, 32
  %v2029 = vpop.permute.xlu0 %2028
  %2030 = vrot.lane.b32.xlu0 %v473, 32
  %v2031 = vpop.permute.xlu0 %2030
  %2032 = vrot.lane.b32.xlu0 %v474, 32
  %v2033 = vpop.permute.xlu0 %2032
  %2034 = vrot.lane.b32.xlu0 %v475, 32
  %v2035 = vpop.permute.xlu0 %2034
  %2036 = vrot.lane.b32.xlu0 %v476, 32
  %v2037 = vpop.permute.xlu0 %2036
  %2038 = vrot.lane.b32.xlu0 %v477, 32
  %v2039 = vpop.permute.xlu0 %2038
  %2040 = vrot.lane.b32.xlu0 %v478, 32
  %v2041 = vpop.permute.xlu0 %2040
  %2042 = vrot.lane.b32.xlu0 %v479, 32
  %v2043 = vpop.permute.xlu0 %2042
  %2044 = vrot.lane.b32.xlu0 %v480, 32
  %v2045 = vpop.permute.xlu0 %2044
  %2046 = vrot.lane.b32.xlu0 %v481, 32
  %v2047 = vpop.permute.xlu0 %2046
  %2048 = vrot.lane.b32.xlu0 %v482, 32
  %v2049 = vpop.permute.xlu0 %2048
  %2050 = vrot.lane.b32.xlu0 %v483, 32
  %v2051 = vpop.permute.xlu0 %2050
  %2052 = vrot.lane.b32.xlu0 %v484, 32
  %v2053 = vpop.permute.xlu0 %2052
  %2054 = vrot.lane.b32.xlu0 %v485, 32
  %v2055 = vpop.permute.xlu0 %2054
  %2056 = vrot.lane.b32.xlu0 %v486, 32
  %v2057 = vpop.permute.xlu0 %2056
  %2058 = vrot.lane.b32.xlu0 %v487, 32
  %v2059 = vpop.permute.xlu0 %2058
  %2060 = vrot.lane.b32.xlu0 %v488, 32
  %v2061 = vpop.permute.xlu0 %2060
  %2062 = vrot.lane.b32.xlu0 %v489, 32
  %v2063 = vpop.permute.xlu0 %2062
  %2064 = vrot.lane.b32.xlu0 %v490, 32
  %v2065 = vpop.permute.xlu0 %2064
  %2066 = vrot.lane.b32.xlu0 %v491, 32
  %v2067 = vpop.permute.xlu0 %2066
  %2068 = vrot.lane.b32.xlu0 %v492, 32
  %v2069 = vpop.permute.xlu0 %2068
  %2070 = vrot.lane.b32.xlu0 %v493, 32
  %v2071 = vpop.permute.xlu0 %2070
  %2072 = vrot.lane.b32.xlu0 %v494, 32
  %v2073 = vpop.permute.xlu0 %2072
  %2074 = vrot.lane.b32.xlu0 %v495, 32
  %v2075 = vpop.permute.xlu0 %2074
  %2076 = vrot.lane.b32.xlu0 %v496, 32
  %v2077 = vpop.permute.xlu0 %2076
  %2078 = vrot.lane.b32.xlu0 %v497, 32
  %v2079 = vpop.permute.xlu0 %2078
  %2080 = vrot.lane.b32.xlu0 %v498, 32
  %v2081 = vpop.permute.xlu0 %2080
  %2082 = vrot.lane.b32.xlu0 %v499, 32
  %v2083 = vpop.permute.xlu0 %2082
  %2084 = vrot.lane.b32.xlu0 %v500, 32
  %v2085 = vpop.permute.xlu0 %2084
  %2086 = vrot.lane.b32.xlu0 %v501, 32
  %v2087 = vpop.permute.xlu0 %2086
  %2088 = vrot.lane.b32.xlu0 %v502, 32
  %v2089 = vpop.permute.xlu0 %2088
  %2090 = vrot.lane.b32.xlu0 %v503, 32
  %v2091 = vpop.permute.xlu0 %2090
  %2092 = vrot.lane.b32.xlu0 %v504, 32
  %v2093 = vpop.permute.xlu0 %2092
  %2094 = vrot.lane.b32.xlu0 %v505, 32
  %v2095 = vpop.permute.xlu0 %2094
  %2096 = vrot.lane.b32.xlu0 %v506, 32
  %v2097 = vpop.permute.xlu0 %2096
  %2098 = vrot.lane.b32.xlu0 %v507, 32
  %v2099 = vpop.permute.xlu0 %2098
  %2100 = vrot.lane.b32.xlu0 %v508, 32
  %v2101 = vpop.permute.xlu0 %2100
  %2102 = vrot.lane.b32.xlu0 %v509, 32
  %v2103 = vpop.permute.xlu0 %2102
  %2104 = vrot.lane.b32.xlu0 %v510, 32
  %v2105 = vpop.permute.xlu0 %2104
  %2106 = vrot.lane.b32.xlu0 %v511, 32
  %v2107 = vpop.permute.xlu0 %2106
  %2108 = vrot.lane.b32.xlu0 %v512, 32
  %v2109 = vpop.permute.xlu0 %2108
  %2110 = vrot.lane.b32.xlu0 %v513, 32
  %v2111 = vpop.permute.xlu0 %2110
  %2112 = vrot.lane.b32.xlu0 %v514, 32
  %v2113 = vpop.permute.xlu0 %2112
  %2114 = vrot.lane.b32.xlu0 %v515, 32
  %v2115 = vpop.permute.xlu0 %2114
  %2116 = vrot.lane.b32.xlu0 %v516, 32
  %v2117 = vpop.permute.xlu0 %2116
  %2118 = vrot.lane.b32.xlu0 %v517, 32
  %v2119 = vpop.permute.xlu0 %2118
  %2120 = vrot.lane.b32.xlu0 %v518, 32
  %v2121 = vpop.permute.xlu0 %2120
  %2122 = vrot.lane.b32.xlu0 %v519, 32
  %v2123 = vpop.permute.xlu0 %2122
  %2252 = vrot.lane.b32.xlu0 %v520, 64
  %v2253 = vpop.permute.xlu0 %2252
  %2254 = vrot.lane.b32.xlu0 %v521, 64
  %v2255 = vpop.permute.xlu0 %2254
  %2256 = vrot.lane.b32.xlu0 %v522, 64
  %v2257 = vpop.permute.xlu0 %2256
  %2258 = vrot.lane.b32.xlu0 %v523, 64
  %v2259 = vpop.permute.xlu0 %2258
  %2260 = vrot.lane.b32.xlu0 %v524, 64
  %v2261 = vpop.permute.xlu0 %2260
  %2262 = vrot.lane.b32.xlu0 %v525, 64
  %v2263 = vpop.permute.xlu0 %2262
  %2264 = vrot.lane.b32.xlu0 %v526, 64
  %v2265 = vpop.permute.xlu0 %2264
  %2266 = vrot.lane.b32.xlu0 %v527, 64
  %v2267 = vpop.permute.xlu0 %2266
  %2268 = vrot.lane.b32.xlu0 %v528, 64
  %v2269 = vpop.permute.xlu0 %2268
  %2270 = vrot.lane.b32.xlu0 %v529, 64
  %v2271 = vpop.permute.xlu0 %2270
  %2272 = vrot.lane.b32.xlu0 %v530, 64
  %v2273 = vpop.permute.xlu0 %2272
  %2274 = vrot.lane.b32.xlu0 %v531, 64
  %v2275 = vpop.permute.xlu0 %2274
  %2276 = vrot.lane.b32.xlu0 %v532, 64
  %v2277 = vpop.permute.xlu0 %2276
  %2278 = vrot.lane.b32.xlu0 %v533, 64
  %v2279 = vpop.permute.xlu0 %2278
  %2280 = vrot.lane.b32.xlu0 %v534, 64
  %v2281 = vpop.permute.xlu0 %2280
  %2282 = vrot.lane.b32.xlu0 %v535, 64
  %v2283 = vpop.permute.xlu0 %2282
  %2284 = vrot.lane.b32.xlu0 %v536, 64
  %v2285 = vpop.permute.xlu0 %2284
  %2286 = vrot.lane.b32.xlu0 %v537, 64
  %v2287 = vpop.permute.xlu0 %2286
  %2288 = vrot.lane.b32.xlu0 %v538, 64
  %v2289 = vpop.permute.xlu0 %2288
  %2290 = vrot.lane.b32.xlu0 %v539, 64
  %v2291 = vpop.permute.xlu0 %2290
  %2292 = vrot.lane.b32.xlu0 %v540, 64
  %v2293 = vpop.permute.xlu0 %2292
  %2294 = vrot.lane.b32.xlu0 %v541, 64
  %v2295 = vpop.permute.xlu0 %2294
  %2296 = vrot.lane.b32.xlu0 %v542, 64
  %v2297 = vpop.permute.xlu0 %2296
  %2298 = vrot.lane.b32.xlu0 %v543, 64
  %v2299 = vpop.permute.xlu0 %2298
  %2300 = vrot.lane.b32.xlu0 %v544, 64
  %v2301 = vpop.permute.xlu0 %2300
  %2302 = vrot.lane.b32.xlu0 %v545, 64
  %v2303 = vpop.permute.xlu0 %2302
  %2304 = vrot.lane.b32.xlu0 %v546, 64
  %v2305 = vpop.permute.xlu0 %2304
  %2306 = vrot.lane.b32.xlu0 %v547, 64
  %v2307 = vpop.permute.xlu0 %2306
  %2308 = vrot.lane.b32.xlu0 %v548, 64
  %v2309 = vpop.permute.xlu0 %2308
  %2310 = vrot.lane.b32.xlu0 %v549, 64
  %v2311 = vpop.permute.xlu0 %2310
  %2312 = vrot.lane.b32.xlu0 %v550, 64
  %v2313 = vpop.permute.xlu0 %2312
  %2314 = vrot.lane.b32.xlu0 %v551, 64
  %v2315 = vpop.permute.xlu0 %2314
  %2316 = vrot.lane.b32.xlu0 %v552, 64
  %v2317 = vpop.permute.xlu0 %2316
  %2318 = vrot.lane.b32.xlu0 %v553, 64
  %v2319 = vpop.permute.xlu0 %2318
  %2320 = vrot.lane.b32.xlu0 %v554, 64
  %v2321 = vpop.permute.xlu0 %2320
  %2322 = vrot.lane.b32.xlu0 %v555, 64
  %v2323 = vpop.permute.xlu0 %2322
  %2324 = vrot.lane.b32.xlu0 %v556, 64
  %v2325 = vpop.permute.xlu0 %2324
  %2326 = vrot.lane.b32.xlu0 %v557, 64
  %v2327 = vpop.permute.xlu0 %2326
  %2328 = vrot.lane.b32.xlu0 %v558, 64
  %v2329 = vpop.permute.xlu0 %2328
  %2330 = vrot.lane.b32.xlu0 %v559, 64
  %v2331 = vpop.permute.xlu0 %2330
  %2332 = vrot.lane.b32.xlu0 %v560, 64
  %v2333 = vpop.permute.xlu0 %2332
  %2334 = vrot.lane.b32.xlu0 %v561, 64
  %v2335 = vpop.permute.xlu0 %2334
  %2336 = vrot.lane.b32.xlu0 %v562, 64
  %v2337 = vpop.permute.xlu0 %2336
  %2338 = vrot.lane.b32.xlu0 %v563, 64
  %v2339 = vpop.permute.xlu0 %2338
  %2340 = vrot.lane.b32.xlu0 %v564, 64
  %v2341 = vpop.permute.xlu0 %2340
  %2342 = vrot.lane.b32.xlu0 %v565, 64
  %v2343 = vpop.permute.xlu0 %2342
  %2344 = vrot.lane.b32.xlu0 %v566, 64
  %v2345 = vpop.permute.xlu0 %2344
  %2346 = vrot.lane.b32.xlu0 %v567, 64
  %v2347 = vpop.permute.xlu0 %2346
  %2348 = vrot.lane.b32.xlu0 %v568, 64
  %v2349 = vpop.permute.xlu0 %2348
  %2350 = vrot.lane.b32.xlu0 %v569, 64
  %v2351 = vpop.permute.xlu0 %2350
  %2352 = vrot.lane.b32.xlu0 %v570, 64
  %v2353 = vpop.permute.xlu0 %2352
  %2354 = vrot.lane.b32.xlu0 %v571, 64
  %v2355 = vpop.permute.xlu0 %2354
  %2356 = vrot.lane.b32.xlu0 %v572, 64
  %v2357 = vpop.permute.xlu0 %2356
  %2358 = vrot.lane.b32.xlu0 %v573, 64
  %v2359 = vpop.permute.xlu0 %2358
  %2360 = vrot.lane.b32.xlu0 %v574, 64
  %v2361 = vpop.permute.xlu0 %2360
  %2362 = vrot.lane.b32.xlu0 %v575, 64
  %v2363 = vpop.permute.xlu0 %2362
  %2364 = vrot.lane.b32.xlu0 %v576, 64
  %v2365 = vpop.permute.xlu0 %2364
  %2366 = vrot.lane.b32.xlu0 %v577, 64
  %v2367 = vpop.permute.xlu0 %2366
  %2368 = vrot.lane.b32.xlu0 %v578, 64
  %v2369 = vpop.permute.xlu0 %2368
  %2370 = vrot.lane.b32.xlu0 %v579, 64
  %v2371 = vpop.permute.xlu0 %2370
  %2372 = vrot.lane.b32.xlu0 %v580, 64
  %v2373 = vpop.permute.xlu0 %2372
  %2374 = vrot.lane.b32.xlu0 %v581, 64
  %v2375 = vpop.permute.xlu0 %2374
  %2376 = vrot.lane.b32.xlu0 %v582, 64
  %v2377 = vpop.permute.xlu0 %2376
  %2378 = vrot.lane.b32.xlu0 %v583, 64
  %v2379 = vpop.permute.xlu0 %2378
  %2508 = vrot.lane.b32.xlu0 %v584, 96
  %v2509 = vpop.permute.xlu0 %2508
  %2510 = vrot.lane.b32.xlu0 %v585, 96
  %v2511 = vpop.permute.xlu0 %2510
  %2512 = vrot.lane.b32.xlu0 %v586, 96
  %v2513 = vpop.permute.xlu0 %2512
  %2514 = vrot.lane.b32.xlu0 %v587, 96
  %v2515 = vpop.permute.xlu0 %2514
  %2516 = vrot.lane.b32.xlu0 %v588, 96
  %v2517 = vpop.permute.xlu0 %2516
  %2518 = vrot.lane.b32.xlu0 %v589, 96
  %v2519 = vpop.permute.xlu0 %2518
  %2520 = vrot.lane.b32.xlu0 %v590, 96
  %v2521 = vpop.permute.xlu0 %2520
  %2522 = vrot.lane.b32.xlu0 %v591, 96
  %v2523 = vpop.permute.xlu0 %2522
  %2524 = vrot.lane.b32.xlu0 %v592, 96
  %v2525 = vpop.permute.xlu0 %2524
  %2526 = vrot.lane.b32.xlu0 %v593, 96
  %v2527 = vpop.permute.xlu0 %2526
  %2528 = vrot.lane.b32.xlu0 %v594, 96
  %v2529 = vpop.permute.xlu0 %2528
  %2530 = vrot.lane.b32.xlu0 %v595, 96
  %v2531 = vpop.permute.xlu0 %2530
  %2532 = vrot.lane.b32.xlu0 %v596, 96
  %v2533 = vpop.permute.xlu0 %2532
  %2534 = vrot.lane.b32.xlu0 %v597, 96
  %v2535 = vpop.permute.xlu0 %2534
  %2536 = vrot.lane.b32.xlu0 %v598, 96
  %v2537 = vpop.permute.xlu0 %2536
  %2538 = vrot.lane.b32.xlu0 %v599, 96
  %v2539 = vpop.permute.xlu0 %2538
  %2540 = vrot.lane.b32.xlu0 %v600, 96
  %v2541 = vpop.permute.xlu0 %2540
  %2542 = vrot.lane.b32.xlu0 %v601, 96
  %v2543 = vpop.permute.xlu0 %2542
  %2544 = vrot.lane.b32.xlu0 %v602, 96
  %v2545 = vpop.permute.xlu0 %2544
  %2546 = vrot.lane.b32.xlu0 %v603, 96
  %v2547 = vpop.permute.xlu0 %2546
  %2548 = vrot.lane.b32.xlu0 %v604, 96
  %v2549 = vpop.permute.xlu0 %2548
  %2550 = vrot.lane.b32.xlu0 %v605, 96
  %v2551 = vpop.permute.xlu0 %2550
  %2552 = vrot.lane.b32.xlu0 %v606, 96
  %v2553 = vpop.permute.xlu0 %2552
  %2554 = vrot.lane.b32.xlu0 %v607, 96
  %v2555 = vpop.permute.xlu0 %2554
  %2556 = vrot.lane.b32.xlu0 %v608, 96
  %v2557 = vpop.permute.xlu0 %2556
  %2558 = vrot.lane.b32.xlu0 %v609, 96
  %v2559 = vpop.permute.xlu0 %2558
  %2560 = vrot.lane.b32.xlu0 %v610, 96
  %v2561 = vpop.permute.xlu0 %2560
  %2562 = vrot.lane.b32.xlu0 %v611, 96
  %v2563 = vpop.permute.xlu0 %2562
  %2564 = vrot.lane.b32.xlu0 %v612, 96
  %v2565 = vpop.permute.xlu0 %2564
  %2566 = vrot.lane.b32.xlu0 %v613, 96
  %v2567 = vpop.permute.xlu0 %2566
  %2568 = vrot.lane.b32.xlu0 %v614, 96
  %v2569 = vpop.permute.xlu0 %2568
  %2570 = vrot.lane.b32.xlu0 %v615, 96
  %v2571 = vpop.permute.xlu0 %2570
  %2572 = vrot.lane.b32.xlu0 %v616, 96
  %v2573 = vpop.permute.xlu0 %2572
  %2574 = vrot.lane.b32.xlu0 %v617, 96
  %v2575 = vpop.permute.xlu0 %2574
  %2576 = vrot.lane.b32.xlu0 %v618, 96
  %v2577 = vpop.permute.xlu0 %2576
  %2578 = vrot.lane.b32.xlu0 %v619, 96
  %v2579 = vpop.permute.xlu0 %2578
  %2580 = vrot.lane.b32.xlu0 %v620, 96
  %v2581 = vpop.permute.xlu0 %2580
  %2582 = vrot.lane.b32.xlu0 %v621, 96
  %v2583 = vpop.permute.xlu0 %2582
  %2584 = vrot.lane.b32.xlu0 %v622, 96
  %v2585 = vpop.permute.xlu0 %2584
  %2586 = vrot.lane.b32.xlu0 %v623, 96
  %v2587 = vpop.permute.xlu0 %2586
  %2588 = vrot.lane.b32.xlu0 %v624, 96
  %v2589 = vpop.permute.xlu0 %2588
  %2590 = vrot.lane.b32.xlu0 %v625, 96
  %v2591 = vpop.permute.xlu0 %2590
  %2592 = vrot.lane.b32.xlu0 %v626, 96
  %v2593 = vpop.permute.xlu0 %2592
  %2594 = vrot.lane.b32.xlu0 %v627, 96
  %v2595 = vpop.permute.xlu0 %2594
  %2596 = vrot.lane.b32.xlu0 %v628, 96
  %v2597 = vpop.permute.xlu0 %2596
  %2598 = vrot.lane.b32.xlu0 %v629, 96
  %v2599 = vpop.permute.xlu0 %2598
  %2600 = vrot.lane.b32.xlu0 %v630, 96
  %v2601 = vpop.permute.xlu0 %2600
  %2602 = vrot.lane.b32.xlu0 %v631, 96
  %v2603 = vpop.permute.xlu0 %2602
  %2604 = vrot.lane.b32.xlu0 %v632, 96
  %v2605 = vpop.permute.xlu0 %2604
  %2606 = vrot.lane.b32.xlu0 %v633, 96
  %v2607 = vpop.permute.xlu0 %2606
  %2608 = vrot.lane.b32.xlu0 %v634, 96
  %v2609 = vpop.permute.xlu0 %2608
  %2610 = vrot.lane.b32.xlu0 %v635, 96
  %v2611 = vpop.permute.xlu0 %2610
  %2612 = vrot.lane.b32.xlu0 %v636, 96
  %v2613 = vpop.permute.xlu0 %2612
  %2614 = vrot.lane.b32.xlu0 %v637, 96
  %v2615 = vpop.permute.xlu0 %2614
  %2616 = vrot.lane.b32.xlu0 %v638, 96
  %v2617 = vpop.permute.xlu0 %2616
  %2618 = vrot.lane.b32.xlu0 %v639, 96
  %v2619 = vpop.permute.xlu0 %2618
  %2620 = vrot.lane.b32.xlu0 %v640, 96
  %v2621 = vpop.permute.xlu0 %2620
  %2622 = vrot.lane.b32.xlu0 %v641, 96
  %v2623 = vpop.permute.xlu0 %2622
  %2624 = vrot.lane.b32.xlu0 %v642, 96
  %v2625 = vpop.permute.xlu0 %2624
  %2626 = vrot.lane.b32.xlu0 %v643, 96
  %v2627 = vpop.permute.xlu0 %2626
  %2628 = vrot.lane.b32.xlu0 %v644, 96
  %v2629 = vpop.permute.xlu0 %2628
  %2630 = vrot.lane.b32.xlu0 %v645, 96
  %v2631 = vpop.permute.xlu0 %2630
  %2632 = vrot.lane.b32.xlu0 %v646, 96
  %v2633 = vpop.permute.xlu0 %2632
  %2634 = vrot.lane.b32.xlu0 %v647, 96
  %v2635 = vpop.permute.xlu0 %2634
  %2764 = vrot.lane.b32.xlu0 %v712, 32
  %v2765 = vpop.permute.xlu0 %2764
  %2766 = vrot.lane.b32.xlu0 %v713, 32
  %v2767 = vpop.permute.xlu0 %2766
  %2768 = vrot.lane.b32.xlu0 %v714, 32
  %v2769 = vpop.permute.xlu0 %2768
  %2770 = vrot.lane.b32.xlu0 %v715, 32
  %v2771 = vpop.permute.xlu0 %2770
  %2772 = vrot.lane.b32.xlu0 %v716, 32
  %v2773 = vpop.permute.xlu0 %2772
  %2774 = vrot.lane.b32.xlu0 %v717, 32
  %v2775 = vpop.permute.xlu0 %2774
  %2776 = vrot.lane.b32.xlu0 %v718, 32
  %v2777 = vpop.permute.xlu0 %2776
  %2778 = vrot.lane.b32.xlu0 %v719, 32
  %v2779 = vpop.permute.xlu0 %2778
  %2780 = vrot.lane.b32.xlu0 %v720, 32
  %v2781 = vpop.permute.xlu0 %2780
  %2782 = vrot.lane.b32.xlu0 %v721, 32
  %v2783 = vpop.permute.xlu0 %2782
  %2784 = vrot.lane.b32.xlu0 %v722, 32
  %v2785 = vpop.permute.xlu0 %2784
  %2786 = vrot.lane.b32.xlu0 %v723, 32
  %v2787 = vpop.permute.xlu0 %2786
  %2788 = vrot.lane.b32.xlu0 %v724, 32
  %v2789 = vpop.permute.xlu0 %2788
  %2790 = vrot.lane.b32.xlu0 %v725, 32
  %v2791 = vpop.permute.xlu0 %2790
  %2792 = vrot.lane.b32.xlu0 %v726, 32
  %v2793 = vpop.permute.xlu0 %2792
  %2794 = vrot.lane.b32.xlu0 %v727, 32
  %v2795 = vpop.permute.xlu0 %2794
  %2796 = vrot.lane.b32.xlu0 %v728, 32
  %v2797 = vpop.permute.xlu0 %2796
  %2798 = vrot.lane.b32.xlu0 %v729, 32
  %v2799 = vpop.permute.xlu0 %2798
  %2800 = vrot.lane.b32.xlu0 %v730, 32
  %v2801 = vpop.permute.xlu0 %2800
  %2802 = vrot.lane.b32.xlu0 %v731, 32
  %v2803 = vpop.permute.xlu0 %2802
  %2804 = vrot.lane.b32.xlu0 %v732, 32
  %v2805 = vpop.permute.xlu0 %2804
  %2806 = vrot.lane.b32.xlu0 %v733, 32
  %v2807 = vpop.permute.xlu0 %2806
  %2808 = vrot.lane.b32.xlu0 %v734, 32
  %v2809 = vpop.permute.xlu0 %2808
  %2810 = vrot.lane.b32.xlu0 %v735, 32
  %v2811 = vpop.permute.xlu0 %2810
  %2812 = vrot.lane.b32.xlu0 %v736, 32
  %v2813 = vpop.permute.xlu0 %2812
  %2814 = vrot.lane.b32.xlu0 %v737, 32
  %v2815 = vpop.permute.xlu0 %2814
  %2816 = vrot.lane.b32.xlu0 %v738, 32
  %v2817 = vpop.permute.xlu0 %2816
  %2818 = vrot.lane.b32.xlu0 %v739, 32
  %v2819 = vpop.permute.xlu0 %2818
  %2820 = vrot.lane.b32.xlu0 %v740, 32
  %v2821 = vpop.permute.xlu0 %2820
  %2822 = vrot.lane.b32.xlu0 %v741, 32
  %v2823 = vpop.permute.xlu0 %2822
  %2824 = vrot.lane.b32.xlu0 %v742, 32
  %v2825 = vpop.permute.xlu0 %2824
  %2826 = vrot.lane.b32.xlu0 %v743, 32
  %v2827 = vpop.permute.xlu0 %2826
  %2828 = vrot.lane.b32.xlu0 %v744, 32
  %v2829 = vpop.permute.xlu0 %2828
  %2830 = vrot.lane.b32.xlu0 %v745, 32
  %v2831 = vpop.permute.xlu0 %2830
  %2832 = vrot.lane.b32.xlu0 %v746, 32
  %v2833 = vpop.permute.xlu0 %2832
  %2834 = vrot.lane.b32.xlu0 %v747, 32
  %v2835 = vpop.permute.xlu0 %2834
  %2836 = vrot.lane.b32.xlu0 %v748, 32
  %v2837 = vpop.permute.xlu0 %2836
  %2838 = vrot.lane.b32.xlu0 %v749, 32
  %v2839 = vpop.permute.xlu0 %2838
  %2840 = vrot.lane.b32.xlu0 %v750, 32
  %v2841 = vpop.permute.xlu0 %2840
  %2842 = vrot.lane.b32.xlu0 %v751, 32
  %v2843 = vpop.permute.xlu0 %2842
  %2844 = vrot.lane.b32.xlu0 %v752, 32
  %v2845 = vpop.permute.xlu0 %2844
  %2846 = vrot.lane.b32.xlu0 %v753, 32
  %v2847 = vpop.permute.xlu0 %2846
  %2848 = vrot.lane.b32.xlu0 %v754, 32
  %v2849 = vpop.permute.xlu0 %2848
  %2850 = vrot.lane.b32.xlu0 %v755, 32
  %v2851 = vpop.permute.xlu0 %2850
  %2852 = vrot.lane.b32.xlu0 %v756, 32
  %v2853 = vpop.permute.xlu0 %2852
  %2854 = vrot.lane.b32.xlu0 %v757, 32
  %v2855 = vpop.permute.xlu0 %2854
  %2856 = vrot.lane.b32.xlu0 %v758, 32
  %v2857 = vpop.permute.xlu0 %2856
  %2858 = vrot.lane.b32.xlu0 %v759, 32
  %v2859 = vpop.permute.xlu0 %2858
  %2860 = vrot.lane.b32.xlu0 %v760, 32
  %v2861 = vpop.permute.xlu0 %2860
  %2862 = vrot.lane.b32.xlu0 %v761, 32
  %v2863 = vpop.permute.xlu0 %2862
  %2864 = vrot.lane.b32.xlu0 %v762, 32
  %v2865 = vpop.permute.xlu0 %2864
  %2866 = vrot.lane.b32.xlu0 %v763, 32
  %v2867 = vpop.permute.xlu0 %2866
  %2868 = vrot.lane.b32.xlu0 %v764, 32
  %v2869 = vpop.permute.xlu0 %2868
  %2870 = vrot.lane.b32.xlu0 %v765, 32
  %v2871 = vpop.permute.xlu0 %2870
  %2872 = vrot.lane.b32.xlu0 %v766, 32
  %v2873 = vpop.permute.xlu0 %2872
  %2874 = vrot.lane.b32.xlu0 %v767, 32
  %v2875 = vpop.permute.xlu0 %2874
  %2876 = vrot.lane.b32.xlu0 %v768, 32
  %v2877 = vpop.permute.xlu0 %2876
  %2878 = vrot.lane.b32.xlu0 %v769, 32
  %v2879 = vpop.permute.xlu0 %2878
  %2880 = vrot.lane.b32.xlu0 %v770, 32
  %v2881 = vpop.permute.xlu0 %2880
  %2882 = vrot.lane.b32.xlu0 %v771, 32
  %v2883 = vpop.permute.xlu0 %2882
  %2884 = vrot.lane.b32.xlu0 %v772, 32
  %v2885 = vpop.permute.xlu0 %2884
  %2886 = vrot.lane.b32.xlu0 %v773, 32
  %v2887 = vpop.permute.xlu0 %2886
  %2888 = vrot.lane.b32.xlu0 %v774, 32
  %v2889 = vpop.permute.xlu0 %2888
  %2890 = vrot.lane.b32.xlu0 %v775, 32
  %v2891 = vpop.permute.xlu0 %2890
  %3020 = vrot.lane.b32.xlu0 %v777, 64
  %v3021 = vpop.permute.xlu0 %3020
  %3022 = vrot.lane.b32.xlu0 %v778, 64
  %v3023 = vpop.permute.xlu0 %3022
  %3024 = vrot.lane.b32.xlu0 %v779, 64
  %v3025 = vpop.permute.xlu0 %3024
  %3026 = vrot.lane.b32.xlu0 %v780, 64
  %v3027 = vpop.permute.xlu0 %3026
  %3028 = vrot.lane.b32.xlu0 %v781, 64
  %v3029 = vpop.permute.xlu0 %3028
  %3030 = vrot.lane.b32.xlu0 %v782, 64
  %v3031 = vpop.permute.xlu0 %3030
  %3032 = vrot.lane.b32.xlu0 %v783, 64
  %v3033 = vpop.permute.xlu0 %3032
  %3034 = vrot.lane.b32.xlu0 %v784, 64
  %v3035 = vpop.permute.xlu0 %3034
  %3036 = vrot.lane.b32.xlu0 %v785, 64
  %v3037 = vpop.permute.xlu0 %3036
  %3038 = vrot.lane.b32.xlu0 %v786, 64
  %v3039 = vpop.permute.xlu0 %3038
  %3040 = vrot.lane.b32.xlu0 %v787, 64
  %v3041 = vpop.permute.xlu0 %3040
  %3042 = vrot.lane.b32.xlu0 %v788, 64
  %v3043 = vpop.permute.xlu0 %3042
  %3044 = vrot.lane.b32.xlu0 %v789, 64
  %v3045 = vpop.permute.xlu0 %3044
  %3046 = vrot.lane.b32.xlu0 %v790, 64
  %v3047 = vpop.permute.xlu0 %3046
  %3048 = vrot.lane.b32.xlu0 %v791, 64
  %v3049 = vpop.permute.xlu0 %3048
  %3050 = vrot.lane.b32.xlu0 %v792, 64
  %v3051 = vpop.permute.xlu0 %3050
  %3052 = vrot.lane.b32.xlu0 %v793, 64
  %v3053 = vpop.permute.xlu0 %3052
  %3054 = vrot.lane.b32.xlu0 %v794, 64
  %v3055 = vpop.permute.xlu0 %3054
  %3056 = vrot.lane.b32.xlu0 %v795, 64
  %v3057 = vpop.permute.xlu0 %3056
  %3058 = vrot.lane.b32.xlu0 %v796, 64
  %v3059 = vpop.permute.xlu0 %3058
  %3060 = vrot.lane.b32.xlu0 %v797, 64
  %v3061 = vpop.permute.xlu0 %3060
  %3062 = vrot.lane.b32.xlu0 %v798, 64
  %v3063 = vpop.permute.xlu0 %3062
  %3064 = vrot.lane.b32.xlu0 %v799, 64
  %v3065 = vpop.permute.xlu0 %3064
  %3066 = vrot.lane.b32.xlu0 %v800, 64
  %v3067 = vpop.permute.xlu0 %3066
  %3068 = vrot.lane.b32.xlu0 %v801, 64
  %v3069 = vpop.permute.xlu0 %3068
  %3070 = vrot.lane.b32.xlu0 %v802, 64
  %v3071 = vpop.permute.xlu0 %3070
  %3072 = vrot.lane.b32.xlu0 %v803, 64
  %v3073 = vpop.permute.xlu0 %3072
  %3074 = vrot.lane.b32.xlu0 %v804, 64
  %v3075 = vpop.permute.xlu0 %3074
  %3076 = vrot.lane.b32.xlu0 %v805, 64
  %v3077 = vpop.permute.xlu0 %3076
  %3078 = vrot.lane.b32.xlu0 %v806, 64
  %v3079 = vpop.permute.xlu0 %3078
  %3080 = vrot.lane.b32.xlu0 %v807, 64
  %v3081 = vpop.permute.xlu0 %3080
  %3082 = vrot.lane.b32.xlu0 %v808, 64
  %v3083 = vpop.permute.xlu0 %3082
  %3084 = vrot.lane.b32.xlu0 %v809, 64
  %v3085 = vpop.permute.xlu0 %3084
  %3086 = vrot.lane.b32.xlu0 %v810, 64
  %v3087 = vpop.permute.xlu0 %3086
  %3088 = vrot.lane.b32.xlu0 %v811, 64
  %v3089 = vpop.permute.xlu0 %3088
  %3090 = vrot.lane.b32.xlu0 %v812, 64
  %v3091 = vpop.permute.xlu0 %3090
  %3092 = vrot.lane.b32.xlu0 %v813, 64
  %v3093 = vpop.permute.xlu0 %3092
  %3094 = vrot.lane.b32.xlu0 %v814, 64
  %v3095 = vpop.permute.xlu0 %3094
  %3096 = vrot.lane.b32.xlu0 %v815, 64
  %v3097 = vpop.permute.xlu0 %3096
  %3098 = vrot.lane.b32.xlu0 %v816, 64
  %v3099 = vpop.permute.xlu0 %3098
  %3100 = vrot.lane.b32.xlu0 %v817, 64
  %v3101 = vpop.permute.xlu0 %3100
  %3102 = vrot.lane.b32.xlu0 %v818, 64
  %v3103 = vpop.permute.xlu0 %3102
  %3104 = vrot.lane.b32.xlu0 %v819, 64
  %v3105 = vpop.permute.xlu0 %3104
  %3106 = vrot.lane.b32.xlu0 %v820, 64
  %v3107 = vpop.permute.xlu0 %3106
  %3108 = vrot.lane.b32.xlu0 %v821, 64
  %v3109 = vpop.permute.xlu0 %3108
  %3110 = vrot.lane.b32.xlu0 %v822, 64
  %v3111 = vpop.permute.xlu0 %3110
  %3112 = vrot.lane.b32.xlu0 %v823, 64
  %v3113 = vpop.permute.xlu0 %3112
  %3114 = vrot.lane.b32.xlu0 %v824, 64
  %v3115 = vpop.permute.xlu0 %3114
  %3116 = vrot.lane.b32.xlu0 %v825, 64
  %v3117 = vpop.permute.xlu0 %3116
  %3118 = vrot.lane.b32.xlu0 %v826, 64
  %v3119 = vpop.permute.xlu0 %3118
  %3120 = vrot.lane.b32.xlu0 %v827, 64
  %v3121 = vpop.permute.xlu0 %3120
  %3122 = vrot.lane.b32.xlu0 %v828, 64
  %v3123 = vpop.permute.xlu0 %3122
  %3124 = vrot.lane.b32.xlu0 %v829, 64
  %v3125 = vpop.permute.xlu0 %3124
  %3126 = vrot.lane.b32.xlu0 %v830, 64
  %v3127 = vpop.permute.xlu0 %3126
  %3128 = vrot.lane.b32.xlu0 %v831, 64
  %v3129 = vpop.permute.xlu0 %3128
  %3130 = vrot.lane.b32.xlu0 %v832, 64
  %v3131 = vpop.permute.xlu0 %3130
  %3132 = vrot.lane.b32.xlu0 %v833, 64
  %v3133 = vpop.permute.xlu0 %3132
  %3134 = vrot.lane.b32.xlu0 %v834, 64
  %v3135 = vpop.permute.xlu0 %3134
  %3136 = vrot.lane.b32.xlu0 %v835, 64
  %v3137 = vpop.permute.xlu0 %3136
  %3138 = vrot.lane.b32.xlu0 %v836, 64
  %v3139 = vpop.permute.xlu0 %3138
  %3140 = vrot.lane.b32.xlu0 %v837, 64
  %v3141 = vpop.permute.xlu0 %3140
  %3142 = vrot.lane.b32.xlu0 %v838, 64
  %v3143 = vpop.permute.xlu0 %3142
  %3144 = vrot.lane.b32.xlu0 %v839, 64
  %v3145 = vpop.permute.xlu0 %3144
  %3146 = vrot.lane.b32.xlu0 %v840, 64
  %v3147 = vpop.permute.xlu0 %3146
  %3276 = vrot.lane.b32.xlu0 %v841, 96
  %v3277 = vpop.permute.xlu0 %3276
  %3278 = vrot.lane.b32.xlu0 %v842, 96
  %v3279 = vpop.permute.xlu0 %3278
  %3280 = vrot.lane.b32.xlu0 %v843, 96
  %v3281 = vpop.permute.xlu0 %3280
  %3282 = vrot.lane.b32.xlu0 %v844, 96
  %v3283 = vpop.permute.xlu0 %3282
  %3284 = vrot.lane.b32.xlu0 %v845, 96
  %v3285 = vpop.permute.xlu0 %3284
  %3286 = vrot.lane.b32.xlu0 %v846, 96
  %v3287 = vpop.permute.xlu0 %3286
  %3288 = vrot.lane.b32.xlu0 %v847, 96
  %v3289 = vpop.permute.xlu0 %3288
  %3290 = vrot.lane.b32.xlu0 %v848, 96
  %v3291 = vpop.permute.xlu0 %3290
  %3292 = vrot.lane.b32.xlu0 %v849, 96
  %v3293 = vpop.permute.xlu0 %3292
  %3294 = vrot.lane.b32.xlu0 %v850, 96
  %v3295 = vpop.permute.xlu0 %3294
  %3296 = vrot.lane.b32.xlu0 %v851, 96
  %v3297 = vpop.permute.xlu0 %3296
  %3298 = vrot.lane.b32.xlu0 %v852, 96
  %v3299 = vpop.permute.xlu0 %3298
  %3300 = vrot.lane.b32.xlu0 %v853, 96
  %v3301 = vpop.permute.xlu0 %3300
  %3302 = vrot.lane.b32.xlu0 %v854, 96
  %v3303 = vpop.permute.xlu0 %3302
  %3304 = vrot.lane.b32.xlu0 %v855, 96
  %v3305 = vpop.permute.xlu0 %3304
  %3306 = vrot.lane.b32.xlu0 %v856, 96
  %v3307 = vpop.permute.xlu0 %3306
  %3308 = vrot.lane.b32.xlu0 %v857, 96
  %v3309 = vpop.permute.xlu0 %3308
  %3310 = vrot.lane.b32.xlu0 %v858, 96
  %v3311 = vpop.permute.xlu0 %3310
  %3312 = vrot.lane.b32.xlu0 %v859, 96
  %v3313 = vpop.permute.xlu0 %3312
  %3314 = vrot.lane.b32.xlu0 %v860, 96
  %v3315 = vpop.permute.xlu0 %3314
  %3316 = vrot.lane.b32.xlu0 %v861, 96
  %v3317 = vpop.permute.xlu0 %3316
  %3318 = vrot.lane.b32.xlu0 %v862, 96
  %v3319 = vpop.permute.xlu0 %3318
  %3320 = vrot.lane.b32.xlu0 %v863, 96
  %v3321 = vpop.permute.xlu0 %3320
  %3322 = vrot.lane.b32.xlu0 %v864, 96
  %v3323 = vpop.permute.xlu0 %3322
  %3324 = vrot.lane.b32.xlu0 %v865, 96
  %v3325 = vpop.permute.xlu0 %3324
  %3326 = vrot.lane.b32.xlu0 %v866, 96
  %v3327 = vpop.permute.xlu0 %3326
  %3328 = vrot.lane.b32.xlu0 %v867, 96
  %v3329 = vpop.permute.xlu0 %3328
  %3330 = vrot.lane.b32.xlu0 %v868, 96
  %v3331 = vpop.permute.xlu0 %3330
  %3332 = vrot.lane.b32.xlu0 %v869, 96
  %v3333 = vpop.permute.xlu0 %3332
  %3334 = vrot.lane.b32.xlu0 %v870, 96
  %v3335 = vpop.permute.xlu0 %3334
  %3336 = vrot.lane.b32.xlu0 %v871, 96
  %v3337 = vpop.permute.xlu0 %3336
  %3338 = vrot.lane.b32.xlu0 %v872, 96
  %v3339 = vpop.permute.xlu0 %3338
  %3340 = vrot.lane.b32.xlu0 %v873, 96
  %v3341 = vpop.permute.xlu0 %3340
  %3342 = vrot.lane.b32.xlu0 %v874, 96
  %v3343 = vpop.permute.xlu0 %3342
  %3344 = vrot.lane.b32.xlu0 %v875, 96
  %v3345 = vpop.permute.xlu0 %3344
  %3346 = vrot.lane.b32.xlu0 %v876, 96
  %v3347 = vpop.permute.xlu0 %3346
  %3348 = vrot.lane.b32.xlu0 %v877, 96
  %v3349 = vpop.permute.xlu0 %3348
  %3350 = vrot.lane.b32.xlu0 %v878, 96
  %v3351 = vpop.permute.xlu0 %3350
  %3352 = vrot.lane.b32.xlu0 %v879, 96
  %v3353 = vpop.permute.xlu0 %3352
  %3354 = vrot.lane.b32.xlu0 %v880, 96
  %v3355 = vpop.permute.xlu0 %3354
  %3356 = vrot.lane.b32.xlu0 %v881, 96
  %v3357 = vpop.permute.xlu0 %3356
  %3358 = vrot.lane.b32.xlu0 %v882, 96
  %v3359 = vpop.permute.xlu0 %3358
  %3360 = vrot.lane.b32.xlu0 %v883, 96
  %v3361 = vpop.permute.xlu0 %3360
  %3362 = vrot.lane.b32.xlu0 %v884, 96
  %v3363 = vpop.permute.xlu0 %3362
  %3364 = vrot.lane.b32.xlu0 %v885, 96
  %v3365 = vpop.permute.xlu0 %3364
  %3366 = vrot.lane.b32.xlu0 %v886, 96
  %v3367 = vpop.permute.xlu0 %3366
  %3368 = vrot.lane.b32.xlu0 %v887, 96
  %v3369 = vpop.permute.xlu0 %3368
  %3370 = vrot.lane.b32.xlu0 %v888, 96
  %v3371 = vpop.permute.xlu0 %3370
  %3372 = vrot.lane.b32.xlu0 %v889, 96
  %v3373 = vpop.permute.xlu0 %3372
  %3374 = vrot.lane.b32.xlu0 %v890, 96
  %v3375 = vpop.permute.xlu0 %3374
  %3376 = vrot.lane.b32.xlu0 %v891, 96
  %v3377 = vpop.permute.xlu0 %3376
  %3378 = vrot.lane.b32.xlu0 %v892, 96
  %v3379 = vpop.permute.xlu0 %3378
  %3380 = vrot.lane.b32.xlu0 %v893, 96
  %v3381 = vpop.permute.xlu0 %3380
  %3382 = vrot.lane.b32.xlu0 %v894, 96
  %v3383 = vpop.permute.xlu0 %3382
  %3384 = vrot.lane.b32.xlu0 %v895, 96
  %v3385 = vpop.permute.xlu0 %3384
  %3386 = vrot.lane.b32.xlu0 %v896, 96
  %v3387 = vpop.permute.xlu0 %3386
  %3388 = vrot.lane.b32.xlu0 %v897, 96
  %v3389 = vpop.permute.xlu0 %3388
  %3390 = vrot.lane.b32.xlu0 %v898, 96
  %v3391 = vpop.permute.xlu0 %3390
  %3392 = vrot.lane.b32.xlu0 %v899, 96
  %v3393 = vpop.permute.xlu0 %3392
  %3394 = vrot.lane.b32.xlu0 %v900, 96
  %v3395 = vpop.permute.xlu0 %3394
  %3396 = vrot.lane.b32.xlu0 %v901, 96
  %v3397 = vpop.permute.xlu0 %3396
  %3398 = vrot.lane.b32.xlu0 %v902, 96
  %v3399 = vpop.permute.xlu0 %3398
  %3400 = vrot.lane.b32.xlu0 %v903, 96
  %v3401 = vpop.permute.xlu0 %3400
  %3402 = vrot.lane.b32.xlu0 %v904, 96
  %v3403 = vpop.permute.xlu0 %3402
  %3532 = vrot.lane.b32.xlu0 %v970, 32
  %v3533 = vpop.permute.xlu0 %3532
  %3534 = vrot.lane.b32.xlu0 %v971, 32
  %v3535 = vpop.permute.xlu0 %3534
  %3536 = vrot.lane.b32.xlu0 %v972, 32
  %v3537 = vpop.permute.xlu0 %3536
  %3538 = vrot.lane.b32.xlu0 %v973, 32
  %v3539 = vpop.permute.xlu0 %3538
  %3540 = vrot.lane.b32.xlu0 %v974, 32
  %v3541 = vpop.permute.xlu0 %3540
  %3542 = vrot.lane.b32.xlu0 %v975, 32
  %v3543 = vpop.permute.xlu0 %3542
  %3544 = vrot.lane.b32.xlu0 %v976, 32
  %v3545 = vpop.permute.xlu0 %3544
  %3546 = vrot.lane.b32.xlu0 %v977, 32
  %v3547 = vpop.permute.xlu0 %3546
  %3548 = vrot.lane.b32.xlu0 %v978, 32
  %v3549 = vpop.permute.xlu0 %3548
  %3550 = vrot.lane.b32.xlu0 %v979, 32
  %v3551 = vpop.permute.xlu0 %3550
  %3552 = vrot.lane.b32.xlu0 %v980, 32
  %v3553 = vpop.permute.xlu0 %3552
  %3554 = vrot.lane.b32.xlu0 %v981, 32
  %v3555 = vpop.permute.xlu0 %3554
  %3556 = vrot.lane.b32.xlu0 %v982, 32
  %v3557 = vpop.permute.xlu0 %3556
  %3558 = vrot.lane.b32.xlu0 %v983, 32
  %v3559 = vpop.permute.xlu0 %3558
  %3560 = vrot.lane.b32.xlu0 %v984, 32
  %v3561 = vpop.permute.xlu0 %3560
  %3562 = vrot.lane.b32.xlu0 %v985, 32
  %v3563 = vpop.permute.xlu0 %3562
  %3564 = vrot.lane.b32.xlu0 %v986, 32
  %v3565 = vpop.permute.xlu0 %3564
  %3566 = vrot.lane.b32.xlu0 %v987, 32
  %v3567 = vpop.permute.xlu0 %3566
  %3568 = vrot.lane.b32.xlu0 %v988, 32
  %v3569 = vpop.permute.xlu0 %3568
  %3570 = vrot.lane.b32.xlu0 %v989, 32
  %v3571 = vpop.permute.xlu0 %3570
  %3572 = vrot.lane.b32.xlu0 %v990, 32
  %v3573 = vpop.permute.xlu0 %3572
  %3574 = vrot.lane.b32.xlu0 %v991, 32
  %v3575 = vpop.permute.xlu0 %3574
  %3576 = vrot.lane.b32.xlu0 %v992, 32
  %v3577 = vpop.permute.xlu0 %3576
  %3578 = vrot.lane.b32.xlu0 %v993, 32
  %v3579 = vpop.permute.xlu0 %3578
  %3580 = vrot.lane.b32.xlu0 %v994, 32
  %v3581 = vpop.permute.xlu0 %3580
  %3582 = vrot.lane.b32.xlu0 %v995, 32
  %v3583 = vpop.permute.xlu0 %3582
  %3584 = vrot.lane.b32.xlu0 %v996, 32
  %v3585 = vpop.permute.xlu0 %3584
  %3586 = vrot.lane.b32.xlu0 %v997, 32
  %v3587 = vpop.permute.xlu0 %3586
  %3588 = vrot.lane.b32.xlu0 %v998, 32
  %v3589 = vpop.permute.xlu0 %3588
  %3590 = vrot.lane.b32.xlu0 %v999, 32
  %v3591 = vpop.permute.xlu0 %3590
  %3592 = vrot.lane.b32.xlu0 %v1000, 32
  %v3593 = vpop.permute.xlu0 %3592
  %3594 = vrot.lane.b32.xlu0 %v1001, 32
  %v3595 = vpop.permute.xlu0 %3594
  %3596 = vrot.lane.b32.xlu0 %v1002, 32
  %v3597 = vpop.permute.xlu0 %3596
  %3598 = vrot.lane.b32.xlu0 %v1003, 32
  %v3599 = vpop.permute.xlu0 %3598
  %3600 = vrot.lane.b32.xlu0 %v1004, 32
  %v3601 = vpop.permute.xlu0 %3600
  %3602 = vrot.lane.b32.xlu0 %v1005, 32
  %v3603 = vpop.permute.xlu0 %3602
  %3604 = vrot.lane.b32.xlu0 %v1006, 32
  %v3605 = vpop.permute.xlu0 %3604
  %3606 = vrot.lane.b32.xlu0 %v1007, 32
  %v3607 = vpop.permute.xlu0 %3606
  %3608 = vrot.lane.b32.xlu0 %v1008, 32
  %v3609 = vpop.permute.xlu0 %3608
  %3610 = vrot.lane.b32.xlu0 %v1009, 32
  %v3611 = vpop.permute.xlu0 %3610
  %3612 = vrot.lane.b32.xlu0 %v1010, 32
  %v3613 = vpop.permute.xlu0 %3612
  %3614 = vrot.lane.b32.xlu0 %v1011, 32
  %v3615 = vpop.permute.xlu0 %3614
  %3616 = vrot.lane.b32.xlu0 %v1012, 32
  %v3617 = vpop.permute.xlu0 %3616
  %3618 = vrot.lane.b32.xlu0 %v1013, 32
  %v3619 = vpop.permute.xlu0 %3618
  %3620 = vrot.lane.b32.xlu0 %v1014, 32
  %v3621 = vpop.permute.xlu0 %3620
  %3622 = vrot.lane.b32.xlu0 %v1015, 32
  %v3623 = vpop.permute.xlu0 %3622
  %3624 = vrot.lane.b32.xlu0 %v1016, 32
  %v3625 = vpop.permute.xlu0 %3624
  %3626 = vrot.lane.b32.xlu0 %v1017, 32
  %v3627 = vpop.permute.xlu0 %3626
  %3628 = vrot.lane.b32.xlu0 %v1018, 32
  %v3629 = vpop.permute.xlu0 %3628
  %3630 = vrot.lane.b32.xlu0 %v1019, 32
  %v3631 = vpop.permute.xlu0 %3630
  %3632 = vrot.lane.b32.xlu0 %v1020, 32
  %v3633 = vpop.permute.xlu0 %3632
  %3634 = vrot.lane.b32.xlu0 %v1021, 32
  %v3635 = vpop.permute.xlu0 %3634
  %3636 = vrot.lane.b32.xlu0 %v1022, 32
  %v3637 = vpop.permute.xlu0 %3636
  %3638 = vrot.lane.b32.xlu0 %v1023, 32
  %v3639 = vpop.permute.xlu0 %3638
  %3640 = vrot.lane.b32.xlu0 %v1024, 32
  %v3641 = vpop.permute.xlu0 %3640
  %3642 = vrot.lane.b32.xlu0 %v1025, 32
  %v3643 = vpop.permute.xlu0 %3642
  %3644 = vrot.lane.b32.xlu0 %v1026, 32
  %v3645 = vpop.permute.xlu0 %3644
  %3646 = vrot.lane.b32.xlu0 %v1027, 32
  %v3647 = vpop.permute.xlu0 %3646
  %3648 = vrot.lane.b32.xlu0 %v1028, 32
  %v3649 = vpop.permute.xlu0 %3648
  %3650 = vrot.lane.b32.xlu0 %v1029, 32
  %v3651 = vpop.permute.xlu0 %3650
  %3652 = vrot.lane.b32.xlu0 %v1030, 32
  %v3653 = vpop.permute.xlu0 %3652
  %3654 = vrot.lane.b32.xlu0 %v1031, 32
  %v3655 = vpop.permute.xlu0 %3654
  %3656 = vrot.lane.b32.xlu0 %v1032, 32
  %v3657 = vpop.permute.xlu0 %3656
  %3658 = vrot.lane.b32.xlu0 %v1033, 32
  %v3659 = vpop.permute.xlu0 %3658
  %3788 = vrot.lane.b32.xlu0 %v1034, 64
  %v3789 = vpop.permute.xlu0 %3788
  %3790 = vrot.lane.b32.xlu0 %v1035, 64
  %v3791 = vpop.permute.xlu0 %3790
  %3792 = vrot.lane.b32.xlu0 %v1036, 64
  %v3793 = vpop.permute.xlu0 %3792
  %3794 = vrot.lane.b32.xlu0 %v1037, 64
  %v3795 = vpop.permute.xlu0 %3794
  %3796 = vrot.lane.b32.xlu0 %v1038, 64
  %v3797 = vpop.permute.xlu0 %3796
  %3798 = vrot.lane.b32.xlu0 %v1039, 64
  %v3799 = vpop.permute.xlu0 %3798
  %3800 = vrot.lane.b32.xlu0 %v1040, 64
  %v3801 = vpop.permute.xlu0 %3800
  %3802 = vrot.lane.b32.xlu0 %v1041, 64
  %v3803 = vpop.permute.xlu0 %3802
  %3804 = vrot.lane.b32.xlu0 %v1042, 64
  %v3805 = vpop.permute.xlu0 %3804
  %3806 = vrot.lane.b32.xlu0 %v1043, 64
  %v3807 = vpop.permute.xlu0 %3806
  %3808 = vrot.lane.b32.xlu0 %v1044, 64
  %v3809 = vpop.permute.xlu0 %3808
  %3810 = vrot.lane.b32.xlu0 %v1045, 64
  %v3811 = vpop.permute.xlu0 %3810
  %3812 = vrot.lane.b32.xlu0 %v1046, 64
  %v3813 = vpop.permute.xlu0 %3812
  %3814 = vrot.lane.b32.xlu0 %v1047, 64
  %v3815 = vpop.permute.xlu0 %3814
  %3816 = vrot.lane.b32.xlu0 %v1048, 64
  %v3817 = vpop.permute.xlu0 %3816
  %3818 = vrot.lane.b32.xlu0 %v1049, 64
  %v3819 = vpop.permute.xlu0 %3818
  %3820 = vrot.lane.b32.xlu0 %v1050, 64
  %v3821 = vpop.permute.xlu0 %3820
  %3822 = vrot.lane.b32.xlu0 %v1051, 64
  %v3823 = vpop.permute.xlu0 %3822
  %3824 = vrot.lane.b32.xlu0 %v1052, 64
  %v3825 = vpop.permute.xlu0 %3824
  %3826 = vrot.lane.b32.xlu0 %v1053, 64
  %v3827 = vpop.permute.xlu0 %3826
  %3828 = vrot.lane.b32.xlu0 %v1054, 64
  %v3829 = vpop.permute.xlu0 %3828
  %3830 = vrot.lane.b32.xlu0 %v1055, 64
  %v3831 = vpop.permute.xlu0 %3830
  %3832 = vrot.lane.b32.xlu0 %v1056, 64
  %v3833 = vpop.permute.xlu0 %3832
  %3834 = vrot.lane.b32.xlu0 %v1057, 64
  %v3835 = vpop.permute.xlu0 %3834
  %3836 = vrot.lane.b32.xlu0 %v1058, 64
  %v3837 = vpop.permute.xlu0 %3836
  %3838 = vrot.lane.b32.xlu0 %v1059, 64
  %v3839 = vpop.permute.xlu0 %3838
  %3840 = vrot.lane.b32.xlu0 %v1060, 64
  %v3841 = vpop.permute.xlu0 %3840
  %3842 = vrot.lane.b32.xlu0 %v1061, 64
  %v3843 = vpop.permute.xlu0 %3842
  %3844 = vrot.lane.b32.xlu0 %v1062, 64
  %v3845 = vpop.permute.xlu0 %3844
  %3846 = vrot.lane.b32.xlu0 %v1063, 64
  %v3847 = vpop.permute.xlu0 %3846
  %3848 = vrot.lane.b32.xlu0 %v1064, 64
  %v3849 = vpop.permute.xlu0 %3848
  %3850 = vrot.lane.b32.xlu0 %v1065, 64
  %v3851 = vpop.permute.xlu0 %3850
  %3852 = vrot.lane.b32.xlu0 %v1066, 64
  %v3853 = vpop.permute.xlu0 %3852
  %3854 = vrot.lane.b32.xlu0 %v1067, 64
  %v3855 = vpop.permute.xlu0 %3854
  %3856 = vrot.lane.b32.xlu0 %v1068, 64
  %v3857 = vpop.permute.xlu0 %3856
  %3858 = vrot.lane.b32.xlu0 %v1069, 64
  %v3859 = vpop.permute.xlu0 %3858
  %3860 = vrot.lane.b32.xlu0 %v1070, 64
  %v3861 = vpop.permute.xlu0 %3860
  %3862 = vrot.lane.b32.xlu0 %v1071, 64
  %v3863 = vpop.permute.xlu0 %3862
  %3864 = vrot.lane.b32.xlu0 %v1072, 64
  %v3865 = vpop.permute.xlu0 %3864
  %3866 = vrot.lane.b32.xlu0 %v1073, 64
  %v3867 = vpop.permute.xlu0 %3866
  %3868 = vrot.lane.b32.xlu0 %v1074, 64
  %v3869 = vpop.permute.xlu0 %3868
  %3870 = vrot.lane.b32.xlu0 %v1075, 64
  %v3871 = vpop.permute.xlu0 %3870
  %3872 = vrot.lane.b32.xlu0 %v1076, 64
  %v3873 = vpop.permute.xlu0 %3872
  %3874 = vrot.lane.b32.xlu0 %v1077, 64
  %v3875 = vpop.permute.xlu0 %3874
  %3876 = vrot.lane.b32.xlu0 %v1078, 64
  %v3877 = vpop.permute.xlu0 %3876
  %3878 = vrot.lane.b32.xlu0 %v1079, 64
  %v3879 = vpop.permute.xlu0 %3878
  %3880 = vrot.lane.b32.xlu0 %v1080, 64
  %v3881 = vpop.permute.xlu0 %3880
  %3882 = vrot.lane.b32.xlu0 %v1081, 64
  %v3883 = vpop.permute.xlu0 %3882
  %3884 = vrot.lane.b32.xlu0 %v1082, 64
  %v3885 = vpop.permute.xlu0 %3884
  %3886 = vrot.lane.b32.xlu0 %v1083, 64
  %v3887 = vpop.permute.xlu0 %3886
  %3888 = vrot.lane.b32.xlu0 %v1084, 64
  %v3889 = vpop.permute.xlu0 %3888
  %3890 = vrot.lane.b32.xlu0 %v1085, 64
  %v3891 = vpop.permute.xlu0 %3890
  %3892 = vrot.lane.b32.xlu0 %v1086, 64
  %v3893 = vpop.permute.xlu0 %3892
  %3894 = vrot.lane.b32.xlu0 %v1087, 64
  %v3895 = vpop.permute.xlu0 %3894
  %3896 = vrot.lane.b32.xlu0 %v1088, 64
  %v3897 = vpop.permute.xlu0 %3896
  %3898 = vrot.lane.b32.xlu0 %v1089, 64
  %v3899 = vpop.permute.xlu0 %3898
  %3900 = vrot.lane.b32.xlu0 %v1090, 64
  %v3901 = vpop.permute.xlu0 %3900
  %3902 = vrot.lane.b32.xlu0 %v1091, 64
  %v3903 = vpop.permute.xlu0 %3902
  %3904 = vrot.lane.b32.xlu0 %v1092, 64
  %v3905 = vpop.permute.xlu0 %3904
  %3906 = vrot.lane.b32.xlu0 %v1093, 64
  %v3907 = vpop.permute.xlu0 %3906
  %3908 = vrot.lane.b32.xlu0 %v1094, 64
  %v3909 = vpop.permute.xlu0 %3908
  %3910 = vrot.lane.b32.xlu0 %v1095, 64
  %v3911 = vpop.permute.xlu0 %3910
  %3912 = vrot.lane.b32.xlu0 %v1096, 64
  %v3913 = vpop.permute.xlu0 %3912
  %3914 = vrot.lane.b32.xlu0 %v1097, 64
  %v3915 = vpop.permute.xlu0 %3914
  %4044 = vrot.lane.b32.xlu0 %v1098, 96
  %v4045 = vpop.permute.xlu0 %4044
  %4046 = vrot.lane.b32.xlu0 %v1099, 96
  %v4047 = vpop.permute.xlu0 %4046
  %4048 = vrot.lane.b32.xlu0 %v1100, 96
  %v4049 = vpop.permute.xlu0 %4048
  %4050 = vrot.lane.b32.xlu0 %v1101, 96
  %v4051 = vpop.permute.xlu0 %4050
  %4052 = vrot.lane.b32.xlu0 %v1102, 96
  %v4053 = vpop.permute.xlu0 %4052
  %4054 = vrot.lane.b32.xlu0 %v1103, 96
  %v4055 = vpop.permute.xlu0 %4054
  %4056 = vrot.lane.b32.xlu0 %v1104, 96
  %v4057 = vpop.permute.xlu0 %4056
  %4058 = vrot.lane.b32.xlu0 %v1105, 96
  %v4059 = vpop.permute.xlu0 %4058
  %4060 = vrot.lane.b32.xlu0 %v1106, 96
  %v4061 = vpop.permute.xlu0 %4060
  %4062 = vrot.lane.b32.xlu0 %v1107, 96
  %v4063 = vpop.permute.xlu0 %4062
  %4064 = vrot.lane.b32.xlu0 %v1108, 96
  %v4065 = vpop.permute.xlu0 %4064
  %4066 = vrot.lane.b32.xlu0 %v1109, 96
  %v4067 = vpop.permute.xlu0 %4066
  %4068 = vrot.lane.b32.xlu0 %v1110, 96
  %v4069 = vpop.permute.xlu0 %4068
  %4070 = vrot.lane.b32.xlu0 %v1111, 96
  %v4071 = vpop.permute.xlu0 %4070
  %4072 = vrot.lane.b32.xlu0 %v1112, 96
  %v4073 = vpop.permute.xlu0 %4072
  %4074 = vrot.lane.b32.xlu0 %v1113, 96
  %v4075 = vpop.permute.xlu0 %4074
  %4076 = vrot.lane.b32.xlu0 %v1114, 96
  %v4077 = vpop.permute.xlu0 %4076
  %4078 = vrot.lane.b32.xlu0 %v1115, 96
  %v4079 = vpop.permute.xlu0 %4078
  %4080 = vrot.lane.b32.xlu0 %v1116, 96
  %v4081 = vpop.permute.xlu0 %4080
  %4082 = vrot.lane.b32.xlu0 %v1117, 96
  %v4083 = vpop.permute.xlu0 %4082
  %4084 = vrot.lane.b32.xlu0 %v1118, 96
  %v4085 = vpop.permute.xlu0 %4084
  %4086 = vrot.lane.b32.xlu0 %v1119, 96
  %v4087 = vpop.permute.xlu0 %4086
  %4088 = vrot.lane.b32.xlu0 %v1120, 96
  %v4089 = vpop.permute.xlu0 %4088
  %4090 = vrot.lane.b32.xlu0 %v1121, 96
  %v4091 = vpop.permute.xlu0 %4090
  %4092 = vrot.lane.b32.xlu0 %v1122, 96
  %v4093 = vpop.permute.xlu0 %4092
  %4094 = vrot.lane.b32.xlu0 %v1123, 96
  %v4095 = vpop.permute.xlu0 %4094
  %4096 = vrot.lane.b32.xlu0 %v1124, 96
  %v4097 = vpop.permute.xlu0 %4096
  %4098 = vrot.lane.b32.xlu0 %v1125, 96
  %v4099 = vpop.permute.xlu0 %4098
  %4100 = vrot.lane.b32.xlu0 %v1126, 96
  %v4101 = vpop.permute.xlu0 %4100
  %4102 = vrot.lane.b32.xlu0 %v1127, 96
  %v4103 = vpop.permute.xlu0 %4102
  %4104 = vrot.lane.b32.xlu0 %v1128, 96
  %v4105 = vpop.permute.xlu0 %4104
  %4106 = vrot.lane.b32.xlu0 %v1129, 96
  %v4107 = vpop.permute.xlu0 %4106
  %4108 = vrot.lane.b32.xlu0 %v1130, 96
  %v4109 = vpop.permute.xlu0 %4108
  %4110 = vrot.lane.b32.xlu0 %v1131, 96
  %v4111 = vpop.permute.xlu0 %4110
  %4112 = vrot.lane.b32.xlu0 %v1132, 96
  %v4113 = vpop.permute.xlu0 %4112
  %4114 = vrot.lane.b32.xlu0 %v1133, 96
  %v4115 = vpop.permute.xlu0 %4114
  %4116 = vrot.lane.b32.xlu0 %v1134, 96
  %v4117 = vpop.permute.xlu0 %4116
  %4118 = vrot.lane.b32.xlu0 %v1135, 96
  %v4119 = vpop.permute.xlu0 %4118
  %4120 = vrot.lane.b32.xlu0 %v1136, 96
  %v4121 = vpop.permute.xlu0 %4120
  %4122 = vrot.lane.b32.xlu0 %v1137, 96
  %v4123 = vpop.permute.xlu0 %4122
  %4124 = vrot.lane.b32.xlu0 %v1138, 96
  %v4125 = vpop.permute.xlu0 %4124
  %4126 = vrot.lane.b32.xlu0 %v1139, 96
  %v4127 = vpop.permute.xlu0 %4126
  %4128 = vrot.lane.b32.xlu0 %v1140, 96
  %v4129 = vpop.permute.xlu0 %4128
  %4130 = vrot.lane.b32.xlu0 %v1141, 96
  %v4131 = vpop.permute.xlu0 %4130
  %4132 = vrot.lane.b32.xlu0 %v1142, 96
  %v4133 = vpop.permute.xlu0 %4132
  %4134 = vrot.lane.b32.xlu0 %v1143, 96
  %v4135 = vpop.permute.xlu0 %4134
  %4136 = vrot.lane.b32.xlu0 %v1144, 96
  %v4137 = vpop.permute.xlu0 %4136
  %4138 = vrot.lane.b32.xlu0 %v1145, 96
  %v4139 = vpop.permute.xlu0 %4138
  %4140 = vrot.lane.b32.xlu0 %v1146, 96
  %v4141 = vpop.permute.xlu0 %4140
  %4142 = vrot.lane.b32.xlu0 %v1147, 96
  %v4143 = vpop.permute.xlu0 %4142
  %4144 = vrot.lane.b32.xlu0 %v1148, 96
  %v4145 = vpop.permute.xlu0 %4144
  %4146 = vrot.lane.b32.xlu0 %v1149, 96
  %v4147 = vpop.permute.xlu0 %4146
  %4148 = vrot.lane.b32.xlu0 %v1150, 96
  %v4149 = vpop.permute.xlu0 %4148
  %4150 = vrot.lane.b32.xlu0 %v1151, 96
  %v4151 = vpop.permute.xlu0 %4150
  %4152 = vrot.lane.b32.xlu0 %v1152, 96
  %v4153 = vpop.permute.xlu0 %4152
  %4154 = vrot.lane.b32.xlu0 %v1153, 96
  %v4155 = vpop.permute.xlu0 %4154
  %4156 = vrot.lane.b32.xlu0 %v1154, 96
  %v4157 = vpop.permute.xlu0 %4156
  %4158 = vrot.lane.b32.xlu0 %v1155, 96
  %v4159 = vpop.permute.xlu0 %4158
  %4160 = vrot.lane.b32.xlu0 %v1156, 96
  %v4161 = vpop.permute.xlu0 %4160
  %4162 = vrot.lane.b32.xlu0 %v1157, 96
  %v4163 = vpop.permute.xlu0 %4162
  %4164 = vrot.lane.b32.xlu0 %v1158, 96
  %v4165 = vpop.permute.xlu0 %4164
  %4166 = vrot.lane.b32.xlu0 %v1159, 96
  %v4167 = vpop.permute.xlu0 %4166
  %4168 = vrot.lane.b32.xlu0 %v1160, 96
  %v4169 = vpop.permute.xlu0 %4168
  %4170 = vrot.lane.b32.xlu0 %v1161, 96
  %v4171 = vpop.permute.xlu0 %4170
  %4300 = vrot.lane.b32.xlu0 %v649, 32
  %v4301 = vpop.permute.xlu0 %4300
  %4302 = vrot.lane.b32.xlu0 %v1194, 32
  %v4303 = vpop.permute.xlu0 %4302
  %4304 = vrot.lane.b32.xlu0 %v651, 32
  %v4305 = vpop.permute.xlu0 %4304
  %4306 = vrot.lane.b32.xlu0 %v1195, 32
  %v4307 = vpop.permute.xlu0 %4306
  %4308 = vrot.lane.b32.xlu0 %v653, 32
  %v4309 = vpop.permute.xlu0 %4308
  %4310 = vrot.lane.b32.xlu0 %v1196, 32
  %v4311 = vpop.permute.xlu0 %4310
  %4312 = vrot.lane.b32.xlu0 %v655, 32
  %v4313 = vpop.permute.xlu0 %4312
  %4314 = vrot.lane.b32.xlu0 %v1197, 32
  %v4315 = vpop.permute.xlu0 %4314
  %4316 = vrot.lane.b32.xlu0 %v657, 32
  %v4317 = vpop.permute.xlu0 %4316
  %4318 = vrot.lane.b32.xlu0 %v1198, 32
  %v4319 = vpop.permute.xlu0 %4318
  %4320 = vrot.lane.b32.xlu0 %v659, 32
  %v4321 = vpop.permute.xlu0 %4320
  %4322 = vrot.lane.b32.xlu0 %v1199, 32
  %v4323 = vpop.permute.xlu0 %4322
  %4324 = vrot.lane.b32.xlu0 %v661, 32
  %v4325 = vpop.permute.xlu0 %4324
  %4326 = vrot.lane.b32.xlu0 %v1200, 32
  %v4327 = vpop.permute.xlu0 %4326
  %4328 = vrot.lane.b32.xlu0 %v663, 32
  %v4329 = vpop.permute.xlu0 %4328
  %4330 = vrot.lane.b32.xlu0 %v1201, 32
  %v4331 = vpop.permute.xlu0 %4330
  %4332 = vrot.lane.b32.xlu0 %v665, 32
  %v4333 = vpop.permute.xlu0 %4332
  %4334 = vrot.lane.b32.xlu0 %v1202, 32
  %v4335 = vpop.permute.xlu0 %4334
  %4336 = vrot.lane.b32.xlu0 %v667, 32
  %v4337 = vpop.permute.xlu0 %4336
  %4338 = vrot.lane.b32.xlu0 %v1203, 32
  %v4339 = vpop.permute.xlu0 %4338
  %4340 = vrot.lane.b32.xlu0 %v669, 32
  %v4341 = vpop.permute.xlu0 %4340
  %4342 = vrot.lane.b32.xlu0 %v1204, 32
  %v4343 = vpop.permute.xlu0 %4342
  %4344 = vrot.lane.b32.xlu0 %v671, 32
  %v4345 = vpop.permute.xlu0 %4344
  %4346 = vrot.lane.b32.xlu0 %v1205, 32
  %v4347 = vpop.permute.xlu0 %4346
  %4348 = vrot.lane.b32.xlu0 %v673, 32
  %v4349 = vpop.permute.xlu0 %4348
  %4350 = vrot.lane.b32.xlu0 %v1206, 32
  %v4351 = vpop.permute.xlu0 %4350
  %4352 = vrot.lane.b32.xlu0 %v675, 32
  %v4353 = vpop.permute.xlu0 %4352
  %4354 = vrot.lane.b32.xlu0 %v1207, 32
  %v4355 = vpop.permute.xlu0 %4354
  %4356 = vrot.lane.b32.xlu0 %v677, 32
  %v4357 = vpop.permute.xlu0 %4356
  %4358 = vrot.lane.b32.xlu0 %v1208, 32
  %v4359 = vpop.permute.xlu0 %4358
  %4360 = vrot.lane.b32.xlu0 %v679, 32
  %v4361 = vpop.permute.xlu0 %4360
  %4362 = vrot.lane.b32.xlu0 %v1209, 32
  %v4363 = vpop.permute.xlu0 %4362
  %4364 = vrot.lane.b32.xlu0 %v681, 32
  %v4365 = vpop.permute.xlu0 %4364
  %4366 = vrot.lane.b32.xlu0 %v1210, 32
  %v4367 = vpop.permute.xlu0 %4366
  %4368 = vrot.lane.b32.xlu0 %v683, 32
  %v4369 = vpop.permute.xlu0 %4368
  %4370 = vrot.lane.b32.xlu0 %v1211, 32
  %v4371 = vpop.permute.xlu0 %4370
  %4372 = vrot.lane.b32.xlu0 %v685, 32
  %v4373 = vpop.permute.xlu0 %4372
  %4374 = vrot.lane.b32.xlu0 %v1212, 32
  %v4375 = vpop.permute.xlu0 %4374
  %4376 = vrot.lane.b32.xlu0 %v687, 32
  %v4377 = vpop.permute.xlu0 %4376
  %4378 = vrot.lane.b32.xlu0 %v1213, 32
  %v4379 = vpop.permute.xlu0 %4378
  %4380 = vrot.lane.b32.xlu0 %v689, 32
  %v4381 = vpop.permute.xlu0 %4380
  %4382 = vrot.lane.b32.xlu0 %v1214, 32
  %v4383 = vpop.permute.xlu0 %4382
  %4384 = vrot.lane.b32.xlu0 %v691, 32
  %v4385 = vpop.permute.xlu0 %4384
  %4386 = vrot.lane.b32.xlu0 %v1215, 32
  %v4387 = vpop.permute.xlu0 %4386
  %4388 = vrot.lane.b32.xlu0 %v693, 32
  %v4389 = vpop.permute.xlu0 %4388
  %4390 = vrot.lane.b32.xlu0 %v1216, 32
  %v4391 = vpop.permute.xlu0 %4390
  %4392 = vrot.lane.b32.xlu0 %v695, 32
  %v4393 = vpop.permute.xlu0 %4392
  %4394 = vrot.lane.b32.xlu0 %v1217, 32
  %v4395 = vpop.permute.xlu0 %4394
  %4396 = vrot.lane.b32.xlu0 %v697, 32
  %v4397 = vpop.permute.xlu0 %4396
  %4398 = vrot.lane.b32.xlu0 %v1218, 32
  %v4399 = vpop.permute.xlu0 %4398
  %4400 = vrot.lane.b32.xlu0 %v699, 32
  %v4401 = vpop.permute.xlu0 %4400
  %4402 = vrot.lane.b32.xlu0 %v1219, 32
  %v4403 = vpop.permute.xlu0 %4402
  %4404 = vrot.lane.b32.xlu0 %v701, 32
  %v4405 = vpop.permute.xlu0 %4404
  %4406 = vrot.lane.b32.xlu0 %v1220, 32
  %v4407 = vpop.permute.xlu0 %4406
  %4408 = vrot.lane.b32.xlu0 %v703, 32
  %v4409 = vpop.permute.xlu0 %4408
  %4410 = vrot.lane.b32.xlu0 %v1221, 32
  %v4411 = vpop.permute.xlu0 %4410
  %4412 = vrot.lane.b32.xlu0 %v705, 32
  %v4413 = vpop.permute.xlu0 %4412
  %4414 = vrot.lane.b32.xlu0 %v1222, 32
  %v4415 = vpop.permute.xlu0 %4414
  %4416 = vrot.lane.b32.xlu0 %v707, 32
  %v4417 = vpop.permute.xlu0 %4416
  %4418 = vrot.lane.b32.xlu0 %v1223, 32
  %v4419 = vpop.permute.xlu0 %4418
  %4420 = vrot.lane.b32.xlu0 %v709, 32
  %v4421 = vpop.permute.xlu0 %4420
  %4422 = vrot.lane.b32.xlu0 %v1224, 32
  %v4423 = vpop.permute.xlu0 %4422
  %4424 = vrot.lane.b32.xlu0 %v711, 32
  %v4425 = vpop.permute.xlu0 %4424
  %4426 = vrot.lane.b32.xlu0 %v1225, 32
  %v4427 = vpop.permute.xlu0 %4426
  %4556 = vrot.lane.b32.xlu0 %v1227, 64
  %v4557 = vpop.permute.xlu0 %4556
  %4558 = vrot.lane.b32.xlu0 %v1228, 64
  %v4559 = vpop.permute.xlu0 %4558
  %4560 = vrot.lane.b32.xlu0 %v1229, 64
  %v4561 = vpop.permute.xlu0 %4560
  %4562 = vrot.lane.b32.xlu0 %v1230, 64
  %v4563 = vpop.permute.xlu0 %4562
  %4564 = vrot.lane.b32.xlu0 %v1231, 64
  %v4565 = vpop.permute.xlu0 %4564
  %4566 = vrot.lane.b32.xlu0 %v1232, 64
  %v4567 = vpop.permute.xlu0 %4566
  %4568 = vrot.lane.b32.xlu0 %v1233, 64
  %v4569 = vpop.permute.xlu0 %4568
  %4570 = vrot.lane.b32.xlu0 %v1234, 64
  %v4571 = vpop.permute.xlu0 %4570
  %4572 = vrot.lane.b32.xlu0 %v1235, 64
  %v4573 = vpop.permute.xlu0 %4572
  %4574 = vrot.lane.b32.xlu0 %v1236, 64
  %v4575 = vpop.permute.xlu0 %4574
  %4576 = vrot.lane.b32.xlu0 %v1237, 64
  %v4577 = vpop.permute.xlu0 %4576
  %4578 = vrot.lane.b32.xlu0 %v1238, 64
  %v4579 = vpop.permute.xlu0 %4578
  %4580 = vrot.lane.b32.xlu0 %v1239, 64
  %v4581 = vpop.permute.xlu0 %4580
  %4582 = vrot.lane.b32.xlu0 %v1240, 64
  %v4583 = vpop.permute.xlu0 %4582
  %4584 = vrot.lane.b32.xlu0 %v1241, 64
  %v4585 = vpop.permute.xlu0 %4584
  %4586 = vrot.lane.b32.xlu0 %v1242, 64
  %v4587 = vpop.permute.xlu0 %4586
  %4588 = vrot.lane.b32.xlu0 %v1243, 64
  %v4589 = vpop.permute.xlu0 %4588
  %4590 = vrot.lane.b32.xlu0 %v1244, 64
  %v4591 = vpop.permute.xlu0 %4590
  %4592 = vrot.lane.b32.xlu0 %v1245, 64
  %v4593 = vpop.permute.xlu0 %4592
  %4594 = vrot.lane.b32.xlu0 %v1246, 64
  %v4595 = vpop.permute.xlu0 %4594
  %4596 = vrot.lane.b32.xlu0 %v1247, 64
  %v4597 = vpop.permute.xlu0 %4596
  %4598 = vrot.lane.b32.xlu0 %v1248, 64
  %v4599 = vpop.permute.xlu0 %4598
  %4600 = vrot.lane.b32.xlu0 %v1249, 64
  %v4601 = vpop.permute.xlu0 %4600
  %4602 = vrot.lane.b32.xlu0 %v1250, 64
  %v4603 = vpop.permute.xlu0 %4602
  %4604 = vrot.lane.b32.xlu0 %v1251, 64
  %v4605 = vpop.permute.xlu0 %4604
  %4606 = vrot.lane.b32.xlu0 %v1252, 64
  %v4607 = vpop.permute.xlu0 %4606
  %4608 = vrot.lane.b32.xlu0 %v1253, 64
  %v4609 = vpop.permute.xlu0 %4608
  %4610 = vrot.lane.b32.xlu0 %v1254, 64
  %v4611 = vpop.permute.xlu0 %4610
  %4612 = vrot.lane.b32.xlu0 %v1255, 64
  %v4613 = vpop.permute.xlu0 %4612
  %4614 = vrot.lane.b32.xlu0 %v1256, 64
  %v4615 = vpop.permute.xlu0 %4614
  %4616 = vrot.lane.b32.xlu0 %v1257, 64
  %v4617 = vpop.permute.xlu0 %4616
  %4618 = vrot.lane.b32.xlu0 %v1258, 64
  %v4619 = vpop.permute.xlu0 %4618
  %4620 = vrot.lane.b32.xlu0 %v1259, 64
  %v4621 = vpop.permute.xlu0 %4620
  %4622 = vrot.lane.b32.xlu0 %v1260, 64
  %v4623 = vpop.permute.xlu0 %4622
  %4624 = vrot.lane.b32.xlu0 %v1261, 64
  %v4625 = vpop.permute.xlu0 %4624
  %4626 = vrot.lane.b32.xlu0 %v1262, 64
  %v4627 = vpop.permute.xlu0 %4626
  %4628 = vrot.lane.b32.xlu0 %v1263, 64
  %v4629 = vpop.permute.xlu0 %4628
  %4630 = vrot.lane.b32.xlu0 %v1264, 64
  %v4631 = vpop.permute.xlu0 %4630
  %4632 = vrot.lane.b32.xlu0 %v1265, 64
  %v4633 = vpop.permute.xlu0 %4632
  %4634 = vrot.lane.b32.xlu0 %v1266, 64
  %v4635 = vpop.permute.xlu0 %4634
  %4636 = vrot.lane.b32.xlu0 %v1267, 64
  %v4637 = vpop.permute.xlu0 %4636
  %4638 = vrot.lane.b32.xlu0 %v1268, 64
  %v4639 = vpop.permute.xlu0 %4638
  %4640 = vrot.lane.b32.xlu0 %v1269, 64
  %v4641 = vpop.permute.xlu0 %4640
  %4642 = vrot.lane.b32.xlu0 %v1270, 64
  %v4643 = vpop.permute.xlu0 %4642
  %4644 = vrot.lane.b32.xlu0 %v1271, 64
  %v4645 = vpop.permute.xlu0 %4644
  %4646 = vrot.lane.b32.xlu0 %v1272, 64
  %v4647 = vpop.permute.xlu0 %4646
  %4648 = vrot.lane.b32.xlu0 %v1273, 64
  %v4649 = vpop.permute.xlu0 %4648
  %4650 = vrot.lane.b32.xlu0 %v1274, 64
  %v4651 = vpop.permute.xlu0 %4650
  %4652 = vrot.lane.b32.xlu0 %v1275, 64
  %v4653 = vpop.permute.xlu0 %4652
  %4654 = vrot.lane.b32.xlu0 %v1276, 64
  %v4655 = vpop.permute.xlu0 %4654
  %4656 = vrot.lane.b32.xlu0 %v1277, 64
  %v4657 = vpop.permute.xlu0 %4656
  %4658 = vrot.lane.b32.xlu0 %v1278, 64
  %v4659 = vpop.permute.xlu0 %4658
  %4660 = vrot.lane.b32.xlu0 %v1279, 64
  %v4661 = vpop.permute.xlu0 %4660
  %4662 = vrot.lane.b32.xlu0 %v1280, 64
  %v4663 = vpop.permute.xlu0 %4662
  %4664 = vrot.lane.b32.xlu0 %v1281, 64
  %v4665 = vpop.permute.xlu0 %4664
  %4666 = vrot.lane.b32.xlu0 %v1282, 64
  %v4667 = vpop.permute.xlu0 %4666
  %4668 = vrot.lane.b32.xlu0 %v1283, 64
  %v4669 = vpop.permute.xlu0 %4668
  %4670 = vrot.lane.b32.xlu0 %v1284, 64
  %v4671 = vpop.permute.xlu0 %4670
  %4672 = vrot.lane.b32.xlu0 %v1285, 64
  %v4673 = vpop.permute.xlu0 %4672
  %4674 = vrot.lane.b32.xlu0 %v1286, 64
  %v4675 = vpop.permute.xlu0 %4674
  %4676 = vrot.lane.b32.xlu0 %v1287, 64
  %v4677 = vpop.permute.xlu0 %4676
  %4678 = vrot.lane.b32.xlu0 %v1288, 64
  %v4679 = vpop.permute.xlu0 %4678
  %4680 = vrot.lane.b32.xlu0 %v1289, 64
  %v4681 = vpop.permute.xlu0 %4680
  %4682 = vrot.lane.b32.xlu0 %v1290, 64
  %v4683 = vpop.permute.xlu0 %4682
  %4812 = vrot.lane.b32.xlu0 %v1291, 96
  %v4813 = vpop.permute.xlu0 %4812
  %4814 = vrot.lane.b32.xlu0 %v1292, 96
  %v4815 = vpop.permute.xlu0 %4814
  %4816 = vrot.lane.b32.xlu0 %v1293, 96
  %v4817 = vpop.permute.xlu0 %4816
  %4818 = vrot.lane.b32.xlu0 %v1294, 96
  %v4819 = vpop.permute.xlu0 %4818
  %4820 = vrot.lane.b32.xlu0 %v1295, 96
  %v4821 = vpop.permute.xlu0 %4820
  %4822 = vrot.lane.b32.xlu0 %v1296, 96
  %v4823 = vpop.permute.xlu0 %4822
  %4824 = vrot.lane.b32.xlu0 %v1297, 96
  %v4825 = vpop.permute.xlu0 %4824
  %4826 = vrot.lane.b32.xlu0 %v1298, 96
  %v4827 = vpop.permute.xlu0 %4826
  %4828 = vrot.lane.b32.xlu0 %v1299, 96
  %v4829 = vpop.permute.xlu0 %4828
  %4830 = vrot.lane.b32.xlu0 %v1300, 96
  %v4831 = vpop.permute.xlu0 %4830
  %4832 = vrot.lane.b32.xlu0 %v1301, 96
  %v4833 = vpop.permute.xlu0 %4832
  %4834 = vrot.lane.b32.xlu0 %v1302, 96
  %v4835 = vpop.permute.xlu0 %4834
  %4836 = vrot.lane.b32.xlu0 %v1303, 96
  %v4837 = vpop.permute.xlu0 %4836
  %4838 = vrot.lane.b32.xlu0 %v1304, 96
  %v4839 = vpop.permute.xlu0 %4838
  %4840 = vrot.lane.b32.xlu0 %v1305, 96
  %v4841 = vpop.permute.xlu0 %4840
  %4842 = vrot.lane.b32.xlu0 %v1306, 96
  %v4843 = vpop.permute.xlu0 %4842
  %4844 = vrot.lane.b32.xlu0 %v1307, 96
  %v4845 = vpop.permute.xlu0 %4844
  %4846 = vrot.lane.b32.xlu0 %v1308, 96
  %v4847 = vpop.permute.xlu0 %4846
  %4848 = vrot.lane.b32.xlu0 %v1309, 96
  %v4849 = vpop.permute.xlu0 %4848
  %4850 = vrot.lane.b32.xlu0 %v1310, 96
  %v4851 = vpop.permute.xlu0 %4850
  %4852 = vrot.lane.b32.xlu0 %v1311, 96
  %v4853 = vpop.permute.xlu0 %4852
  %4854 = vrot.lane.b32.xlu0 %v1312, 96
  %v4855 = vpop.permute.xlu0 %4854
  %4856 = vrot.lane.b32.xlu0 %v1313, 96
  %v4857 = vpop.permute.xlu0 %4856
  %4858 = vrot.lane.b32.xlu0 %v1314, 96
  %v4859 = vpop.permute.xlu0 %4858
  %4860 = vrot.lane.b32.xlu0 %v1315, 96
  %v4861 = vpop.permute.xlu0 %4860
  %4862 = vrot.lane.b32.xlu0 %v1316, 96
  %v4863 = vpop.permute.xlu0 %4862
  %4864 = vrot.lane.b32.xlu0 %v1317, 96
  %v4865 = vpop.permute.xlu0 %4864
  %4866 = vrot.lane.b32.xlu0 %v1318, 96
  %v4867 = vpop.permute.xlu0 %4866
  %4868 = vrot.lane.b32.xlu0 %v1319, 96
  %v4869 = vpop.permute.xlu0 %4868
  %4870 = vrot.lane.b32.xlu0 %v1320, 96
  %v4871 = vpop.permute.xlu0 %4870
  %4872 = vrot.lane.b32.xlu0 %v1321, 96
  %v4873 = vpop.permute.xlu0 %4872
  %4874 = vrot.lane.b32.xlu0 %v1322, 96
  %v4875 = vpop.permute.xlu0 %4874
  %4876 = vrot.lane.b32.xlu0 %v1323, 96
  %v4877 = vpop.permute.xlu0 %4876
  %4878 = vrot.lane.b32.xlu0 %v1324, 96
  %v4879 = vpop.permute.xlu0 %4878
  %4880 = vrot.lane.b32.xlu0 %v1325, 96
  %v4881 = vpop.permute.xlu0 %4880
  %4882 = vrot.lane.b32.xlu0 %v1326, 96
  %v4883 = vpop.permute.xlu0 %4882
  %4884 = vrot.lane.b32.xlu0 %v1327, 96
  %v4885 = vpop.permute.xlu0 %4884
  %4886 = vrot.lane.b32.xlu0 %v1328, 96
  %v4887 = vpop.permute.xlu0 %4886
  %4888 = vrot.lane.b32.xlu0 %v1329, 96
  %v4889 = vpop.permute.xlu0 %4888
  %4890 = vrot.lane.b32.xlu0 %v1330, 96
  %v4891 = vpop.permute.xlu0 %4890
  %4892 = vrot.lane.b32.xlu0 %v1331, 96
  %v4893 = vpop.permute.xlu0 %4892
  %4894 = vrot.lane.b32.xlu0 %v1332, 96
  %v4895 = vpop.permute.xlu0 %4894
  %4896 = vrot.lane.b32.xlu0 %v1333, 96
  %v4897 = vpop.permute.xlu0 %4896
  %4898 = vrot.lane.b32.xlu0 %v1334, 96
  %v4899 = vpop.permute.xlu0 %4898
  %4900 = vrot.lane.b32.xlu0 %v1335, 96
  %v4901 = vpop.permute.xlu0 %4900
  %4902 = vrot.lane.b32.xlu0 %v1336, 96
  %v4903 = vpop.permute.xlu0 %4902
  %4904 = vrot.lane.b32.xlu0 %v1337, 96
  %v4905 = vpop.permute.xlu0 %4904
  %4906 = vrot.lane.b32.xlu0 %v1338, 96
  %v4907 = vpop.permute.xlu0 %4906
  %4908 = vrot.lane.b32.xlu0 %v1339, 96
  %v4909 = vpop.permute.xlu0 %4908
  %4910 = vrot.lane.b32.xlu0 %v1340, 96
  %v4911 = vpop.permute.xlu0 %4910
  %4912 = vrot.lane.b32.xlu0 %v1341, 96
  %v4913 = vpop.permute.xlu0 %4912
  %4914 = vrot.lane.b32.xlu0 %v1342, 96
  %v4915 = vpop.permute.xlu0 %4914
  %4916 = vrot.lane.b32.xlu0 %v1343, 96
  %v4917 = vpop.permute.xlu0 %4916
  %4918 = vrot.lane.b32.xlu0 %v1344, 96
  %v4919 = vpop.permute.xlu0 %4918
  %4920 = vrot.lane.b32.xlu0 %v1345, 96
  %v4921 = vpop.permute.xlu0 %4920
  %4922 = vrot.lane.b32.xlu0 %v1346, 96
  %v4923 = vpop.permute.xlu0 %4922
  %4924 = vrot.lane.b32.xlu0 %v1347, 96
  %v4925 = vpop.permute.xlu0 %4924
  %4926 = vrot.lane.b32.xlu0 %v1348, 96
  %v4927 = vpop.permute.xlu0 %4926
  %4928 = vrot.lane.b32.xlu0 %v1349, 96
  %v4929 = vpop.permute.xlu0 %4928
  %4930 = vrot.lane.b32.xlu0 %v1350, 96
  %v4931 = vpop.permute.xlu0 %4930
  %4932 = vrot.lane.b32.xlu0 %v1351, 96
  %v4933 = vpop.permute.xlu0 %4932
  %4934 = vrot.lane.b32.xlu0 %v1352, 96
  %v4935 = vpop.permute.xlu0 %4934
  %4936 = vrot.lane.b32.xlu0 %v1353, 96
  %v4937 = vpop.permute.xlu0 %4936
  %4938 = vrot.lane.b32.xlu0 %v1354, 96
  %v4939 = vpop.permute.xlu0 %4938
  %v5004 = vsel %vm20, %v391, %v1997
  %v5005 = vsel %vm20, %v392, %v1999
  %v5006 = vsel %vm20, %v393, %v2001
  %v5007 = vsel %vm20, %v394, %v2003
  %v5008 = vsel %vm20, %v395, %v2005
  %v5009 = vsel %vm20, %v396, %v2007
  %v5010 = vsel %vm20, %v397, %v2009
  %v5011 = vsel %vm20, %v398, %v2011
  %v5012 = vsel %vm20, %v399, %v2013
  %v5013 = vsel %vm20, %v400, %v2015
  %v5014 = vsel %vm20, %v401, %v2017
  %v5015 = vsel %vm20, %v402, %v2019
  %v5016 = vsel %vm20, %v403, %v2021
  %v5017 = vsel %vm20, %v404, %v2023
  %v5018 = vsel %vm20, %v405, %v2025
  %v5019 = vsel %vm20, %v406, %v2027
  %v5020 = vsel %vm20, %v407, %v2029
  %v5021 = vsel %vm20, %v408, %v2031
  %v5022 = vsel %vm20, %v409, %v2033
  %v5023 = vsel %vm20, %v410, %v2035
  %v5024 = vsel %vm20, %v411, %v2037
  %v5025 = vsel %vm20, %v412, %v2039
  %v5026 = vsel %vm20, %v413, %v2041
  %v5027 = vsel %vm20, %v414, %v2043
  %v5028 = vsel %vm20, %v415, %v2045
  %v5029 = vsel %vm20, %v416, %v2047
  %v5030 = vsel %vm20, %v417, %v2049
  %v5031 = vsel %vm20, %v418, %v2051
  %v5032 = vsel %vm20, %v419, %v2053
  %v5033 = vsel %vm20, %v420, %v2055
  %v5034 = vsel %vm20, %v421, %v2057
  %v5035 = vsel %vm20, %v422, %v2059
  %v5036 = vsel %vm20, %v423, %v2061
  %v5037 = vsel %vm20, %v424, %v2063
  %v5038 = vsel %vm20, %v425, %v2065
  %v5039 = vsel %vm20, %v426, %v2067
  %v5040 = vsel %vm20, %v427, %v2069
  %v5041 = vsel %vm20, %v428, %v2071
  %v5042 = vsel %vm20, %v429, %v2073
  %v5043 = vsel %vm20, %v430, %v2075
  %v5044 = vsel %vm20, %v431, %v2077
  %v5045 = vsel %vm20, %v432, %v2079
  %v5046 = vsel %vm20, %v433, %v2081
  %v5047 = vsel %vm20, %v434, %v2083
  %v5048 = vsel %vm20, %v435, %v2085
  %v5049 = vsel %vm20, %v436, %v2087
  %v5050 = vsel %vm20, %v437, %v2089
  %v5051 = vsel %vm20, %v438, %v2091
  %v5052 = vsel %vm20, %v439, %v2093
  %v5053 = vsel %vm20, %v440, %v2095
  %v5054 = vsel %vm20, %v441, %v2097
  %v5055 = vsel %vm20, %v442, %v2099
  %v5056 = vsel %vm20, %v443, %v2101
  %v5057 = vsel %vm20, %v444, %v2103
  %v5058 = vsel %vm20, %v445, %v2105
  %v5059 = vsel %vm20, %v446, %v2107
  %v5060 = vsel %vm20, %v447, %v2109
  %v5061 = vsel %vm20, %v448, %v2111
  %v5062 = vsel %vm20, %v449, %v2113
  %v5063 = vsel %vm20, %v450, %v2115
  %v5064 = vsel %vm20, %v451, %v2117
  %v5065 = vsel %vm20, %v452, %v2119
  %v5066 = vsel %vm20, %v453, %v2121
  %v5067 = vsel %vm20, %v454, %v2123
  %vm5068 = vcmask 523264
  %v5069 = vsel %vm5068, %v5004, %v2253
  %v5070 = vsel %vm5068, %v5005, %v2255
  %v5071 = vsel %vm5068, %v5006, %v2257
  %v5072 = vsel %vm5068, %v5007, %v2259
  %v5073 = vsel %vm5068, %v5008, %v2261
  %v5074 = vsel %vm5068, %v5009, %v2263
  %v5075 = vsel %vm5068, %v5010, %v2265
  %v5076 = vsel %vm5068, %v5011, %v2267
  %v5077 = vsel %vm5068, %v5012, %v2269
  %v5078 = vsel %vm5068, %v5013, %v2271
  %v5079 = vsel %vm5068, %v5014, %v2273
  %v5080 = vsel %vm5068, %v5015, %v2275
  %v5081 = vsel %vm5068, %v5016, %v2277
  %v5082 = vsel %vm5068, %v5017, %v2279
  %v5083 = vsel %vm5068, %v5018, %v2281
  %v5084 = vsel %vm5068, %v5019, %v2283
  %v5085 = vsel %vm5068, %v5020, %v2285
  %v5086 = vsel %vm5068, %v5021, %v2287
  %v5087 = vsel %vm5068, %v5022, %v2289
  %v5088 = vsel %vm5068, %v5023, %v2291
  %v5089 = vsel %vm5068, %v5024, %v2293
  %v5090 = vsel %vm5068, %v5025, %v2295
  %v5091 = vsel %vm5068, %v5026, %v2297
  %v5092 = vsel %vm5068, %v5027, %v2299
  %v5093 = vsel %vm5068, %v5028, %v2301
  %v5094 = vsel %vm5068, %v5029, %v2303
  %v5095 = vsel %vm5068, %v5030, %v2305
  %v5096 = vsel %vm5068, %v5031, %v2307
  %v5097 = vsel %vm5068, %v5032, %v2309
  %v5098 = vsel %vm5068, %v5033, %v2311
  %v5099 = vsel %vm5068, %v5034, %v2313
  %v5100 = vsel %vm5068, %v5035, %v2315
  %v5101 = vsel %vm5068, %v5036, %v2317
  %v5102 = vsel %vm5068, %v5037, %v2319
  %v5103 = vsel %vm5068, %v5038, %v2321
  %v5104 = vsel %vm5068, %v5039, %v2323
  %v5105 = vsel %vm5068, %v5040, %v2325
  %v5106 = vsel %vm5068, %v5041, %v2327
  %v5107 = vsel %vm5068, %v5042, %v2329
  %v5108 = vsel %vm5068, %v5043, %v2331
  %v5109 = vsel %vm5068, %v5044, %v2333
  %v5110 = vsel %vm5068, %v5045, %v2335
  %v5111 = vsel %vm5068, %v5046, %v2337
  %v5112 = vsel %vm5068, %v5047, %v2339
  %v5113 = vsel %vm5068, %v5048, %v2341
  %v5114 = vsel %vm5068, %v5049, %v2343
  %v5115 = vsel %vm5068, %v5050, %v2345
  %v5116 = vsel %vm5068, %v5051, %v2347
  %v5117 = vsel %vm5068, %v5052, %v2349
  %v5118 = vsel %vm5068, %v5053, %v2351
  %v5119 = vsel %vm5068, %v5054, %v2353
  %v5120 = vsel %vm5068, %v5055, %v2355
  %v5121 = vsel %vm5068, %v5056, %v2357
  %v5122 = vsel %vm5068, %v5057, %v2359
  %v5123 = vsel %vm5068, %v5058, %v2361
  %v5124 = vsel %vm5068, %v5059, %v2363
  %v5125 = vsel %vm5068, %v5060, %v2365
  %v5126 = vsel %vm5068, %v5061, %v2367
  %v5127 = vsel %vm5068, %v5062, %v2369
  %v5128 = vsel %vm5068, %v5063, %v2371
  %v5129 = vsel %vm5068, %v5064, %v2373
  %v5130 = vsel %vm5068, %v5065, %v2375
  %v5131 = vsel %vm5068, %v5066, %v2377
  %v5132 = vsel %vm5068, %v5067, %v2379
  %vm5133 = vcmask 785408
  %v5134 = vsel %vm5133, %v5069, %v2509
  %v5135 = vsel %vm5133, %v5070, %v2511
  %v5136 = vsel %vm5133, %v5071, %v2513
  %v5137 = vsel %vm5133, %v5072, %v2515
  %v5138 = vsel %vm5133, %v5073, %v2517
  %v5139 = vsel %vm5133, %v5074, %v2519
  %v5140 = vsel %vm5133, %v5075, %v2521
  %v5141 = vsel %vm5133, %v5076, %v2523
  %v5142 = vsel %vm5133, %v5077, %v2525
  %v5143 = vsel %vm5133, %v5078, %v2527
  %v5144 = vsel %vm5133, %v5079, %v2529
  %v5145 = vsel %vm5133, %v5080, %v2531
  %v5146 = vsel %vm5133, %v5081, %v2533
  %v5147 = vsel %vm5133, %v5082, %v2535
  %v5148 = vsel %vm5133, %v5083, %v2537
  %v5149 = vsel %vm5133, %v5084, %v2539
  %v5150 = vsel %vm5133, %v5085, %v2541
  %v5151 = vsel %vm5133, %v5086, %v2543
  %v5152 = vsel %vm5133, %v5087, %v2545
  %v5153 = vsel %vm5133, %v5088, %v2547
  %v5154 = vsel %vm5133, %v5089, %v2549
  %v5155 = vsel %vm5133, %v5090, %v2551
  %v5156 = vsel %vm5133, %v5091, %v2553
  %v5157 = vsel %vm5133, %v5092, %v2555
  %v5158 = vsel %vm5133, %v5093, %v2557
  %v5159 = vsel %vm5133, %v5094, %v2559
  %v5160 = vsel %vm5133, %v5095, %v2561
  %v5161 = vsel %vm5133, %v5096, %v2563
  %v5162 = vsel %vm5133, %v5097, %v2565
  %v5163 = vsel %vm5133, %v5098, %v2567
  %v5164 = vsel %vm5133, %v5099, %v2569
  %v5165 = vsel %vm5133, %v5100, %v2571
  %v5166 = vsel %vm5133, %v5101, %v2573
  %v5167 = vsel %vm5133, %v5102, %v2575
  %v5168 = vsel %vm5133, %v5103, %v2577
  %v5169 = vsel %vm5133, %v5104, %v2579
  %v5170 = vsel %vm5133, %v5105, %v2581
  %v5171 = vsel %vm5133, %v5106, %v2583
  %v5172 = vsel %vm5133, %v5107, %v2585
  %v5173 = vsel %vm5133, %v5108, %v2587
  %v5174 = vsel %vm5133, %v5109, %v2589
  %v5175 = vsel %vm5133, %v5110, %v2591
  %v5176 = vsel %vm5133, %v5111, %v2593
  %v5177 = vsel %vm5133, %v5112, %v2595
  %v5178 = vsel %vm5133, %v5113, %v2597
  %v5179 = vsel %vm5133, %v5114, %v2599
  %v5180 = vsel %vm5133, %v5115, %v2601
  %v5181 = vsel %vm5133, %v5116, %v2603
  %v5182 = vsel %vm5133, %v5117, %v2605
  %v5183 = vsel %vm5133, %v5118, %v2607
  %v5184 = vsel %vm5133, %v5119, %v2609
  %v5185 = vsel %vm5133, %v5120, %v2611
  %v5186 = vsel %vm5133, %v5121, %v2613
  %v5187 = vsel %vm5133, %v5122, %v2615
  %v5188 = vsel %vm5133, %v5123, %v2617
  %v5189 = vsel %vm5133, %v5124, %v2619
  %v5190 = vsel %vm5133, %v5125, %v2621
  %v5191 = vsel %vm5133, %v5126, %v2623
  %v5192 = vsel %vm5133, %v5127, %v2625
  %v5193 = vsel %vm5133, %v5128, %v2627
  %v5194 = vsel %vm5133, %v5129, %v2629
  %v5195 = vsel %vm5133, %v5130, %v2631
  %v5196 = vsel %vm5133, %v5131, %v2633
  %v5197 = vsel %vm5133, %v5132, %v2635
  %v5198 = vsel %vm20, %v648, %v2765
  %v5199 = vsel %vm20, %v649, %v2767
  %v5200 = vsel %vm20, %v650, %v2769
  %v5201 = vsel %vm20, %v651, %v2771
  %v5202 = vsel %vm20, %v652, %v2773
  %v5203 = vsel %vm20, %v653, %v2775
  %v5204 = vsel %vm20, %v654, %v2777
  %v5205 = vsel %vm20, %v655, %v2779
  %v5206 = vsel %vm20, %v656, %v2781
  %v5207 = vsel %vm20, %v657, %v2783
  %v5208 = vsel %vm20, %v658, %v2785
  %v5209 = vsel %vm20, %v659, %v2787
  %v5210 = vsel %vm20, %v660, %v2789
  %v5211 = vsel %vm20, %v661, %v2791
  %v5212 = vsel %vm20, %v662, %v2793
  %v5213 = vsel %vm20, %v663, %v2795
  %v5214 = vsel %vm20, %v664, %v2797
  %v5215 = vsel %vm20, %v665, %v2799
  %v5216 = vsel %vm20, %v666, %v2801
  %v5217 = vsel %vm20, %v667, %v2803
  %v5218 = vsel %vm20, %v668, %v2805
  %v5219 = vsel %vm20, %v669, %v2807
  %v5220 = vsel %vm20, %v670, %v2809
  %v5221 = vsel %vm20, %v671, %v2811
  %v5222 = vsel %vm20, %v672, %v2813
  %v5223 = vsel %vm20, %v673, %v2815
  %v5224 = vsel %vm20, %v674, %v2817
  %v5225 = vsel %vm20, %v675, %v2819
  %v5226 = vsel %vm20, %v676, %v2821
  %v5227 = vsel %vm20, %v677, %v2823
  %v5228 = vsel %vm20, %v678, %v2825
  %v5229 = vsel %vm20, %v679, %v2827
  %v5230 = vsel %vm20, %v680, %v2829
  %v5231 = vsel %vm20, %v681, %v2831
  %v5232 = vsel %vm20, %v682, %v2833
  %v5233 = vsel %vm20, %v683, %v2835
  %v5234 = vsel %vm20, %v684, %v2837
  %v5235 = vsel %vm20, %v685, %v2839
  %v5236 = vsel %vm20, %v686, %v2841
  %v5237 = vsel %vm20, %v687, %v2843
  %v5238 = vsel %vm20, %v688, %v2845
  %v5239 = vsel %vm20, %v689, %v2847
  %v5240 = vsel %vm20, %v690, %v2849
  %v5241 = vsel %vm20, %v691, %v2851
  %v5242 = vsel %vm20, %v692, %v2853
  %v5243 = vsel %vm20, %v693, %v2855
  %v5244 = vsel %vm20, %v694, %v2857
  %v5245 = vsel %vm20, %v695, %v2859
  %v5246 = vsel %vm20, %v696, %v2861
  %v5247 = vsel %vm20, %v697, %v2863
  %v5248 = vsel %vm20, %v698, %v2865
  %v5249 = vsel %vm20, %v699, %v2867
  %v5250 = vsel %vm20, %v700, %v2869
  %v5251 = vsel %vm20, %v701, %v2871
  %v5252 = vsel %vm20, %v702, %v2873
  %v5253 = vsel %vm20, %v703, %v2875
  %v5254 = vsel %vm20, %v704, %v2877
  %v5255 = vsel %vm20, %v705, %v2879
  %v5256 = vsel %vm20, %v706, %v2881
  %v5257 = vsel %vm20, %v707, %v2883
  %v5258 = vsel %vm20, %v708, %v2885
  %v5259 = vsel %vm20, %v709, %v2887
  %v5260 = vsel %vm20, %v710, %v2889
  %v5261 = vsel %vm20, %v711, %v2891
  %v5262 = vsel %vm5068, %v5198, %v3021
  %v5263 = vsel %vm5068, %v5199, %v3023
  %v5264 = vsel %vm5068, %v5200, %v3025
  %v5265 = vsel %vm5068, %v5201, %v3027
  %v5266 = vsel %vm5068, %v5202, %v3029
  %v5267 = vsel %vm5068, %v5203, %v3031
  %v5268 = vsel %vm5068, %v5204, %v3033
  %v5269 = vsel %vm5068, %v5205, %v3035
  %v5270 = vsel %vm5068, %v5206, %v3037
  %v5271 = vsel %vm5068, %v5207, %v3039
  %v5272 = vsel %vm5068, %v5208, %v3041
  %v5273 = vsel %vm5068, %v5209, %v3043
  %v5274 = vsel %vm5068, %v5210, %v3045
  %v5275 = vsel %vm5068, %v5211, %v3047
  %v5276 = vsel %vm5068, %v5212, %v3049
  %v5277 = vsel %vm5068, %v5213, %v3051
  %v5278 = vsel %vm5068, %v5214, %v3053
  %v5279 = vsel %vm5068, %v5215, %v3055
  %v5280 = vsel %vm5068, %v5216, %v3057
  %v5281 = vsel %vm5068, %v5217, %v3059
  %v5282 = vsel %vm5068, %v5218, %v3061
  %v5283 = vsel %vm5068, %v5219, %v3063
  %v5284 = vsel %vm5068, %v5220, %v3065
  %v5285 = vsel %vm5068, %v5221, %v3067
  %v5286 = vsel %vm5068, %v5222, %v3069
  %v5287 = vsel %vm5068, %v5223, %v3071
  %v5288 = vsel %vm5068, %v5224, %v3073
  %v5289 = vsel %vm5068, %v5225, %v3075
  %v5290 = vsel %vm5068, %v5226, %v3077
  %v5291 = vsel %vm5068, %v5227, %v3079
  %v5292 = vsel %vm5068, %v5228, %v3081
  %v5293 = vsel %vm5068, %v5229, %v3083
  %v5294 = vsel %vm5068, %v5230, %v3085
  %v5295 = vsel %vm5068, %v5231, %v3087
  %v5296 = vsel %vm5068, %v5232, %v3089
  %v5297 = vsel %vm5068, %v5233, %v3091
  %v5298 = vsel %vm5068, %v5234, %v3093
  %v5299 = vsel %vm5068, %v5235, %v3095
  %v5300 = vsel %vm5068, %v5236, %v3097
  %v5301 = vsel %vm5068, %v5237, %v3099
  %v5302 = vsel %vm5068, %v5238, %v3101
  %v5303 = vsel %vm5068, %v5239, %v3103
  %v5304 = vsel %vm5068, %v5240, %v3105
  %v5305 = vsel %vm5068, %v5241, %v3107
  %v5306 = vsel %vm5068, %v5242, %v3109
  %v5307 = vsel %vm5068, %v5243, %v3111
  %v5308 = vsel %vm5068, %v5244, %v3113
  %v5309 = vsel %vm5068, %v5245, %v3115
  %v5310 = vsel %vm5068, %v5246, %v3117
  %v5311 = vsel %vm5068, %v5247, %v3119
  %v5312 = vsel %vm5068, %v5248, %v3121
  %v5313 = vsel %vm5068, %v5249, %v3123
  %v5314 = vsel %vm5068, %v5250, %v3125
  %v5315 = vsel %vm5068, %v5251, %v3127
  %v5316 = vsel %vm5068, %v5252, %v3129
  %v5317 = vsel %vm5068, %v5253, %v3131
  %v5318 = vsel %vm5068, %v5254, %v3133
  %v5319 = vsel %vm5068, %v5255, %v3135
  %v5320 = vsel %vm5068, %v5256, %v3137
  %v5321 = vsel %vm5068, %v5257, %v3139
  %v5322 = vsel %vm5068, %v5258, %v3141
  %v5323 = vsel %vm5068, %v5259, %v3143
  %v5324 = vsel %vm5068, %v5260, %v3145
  %v5325 = vsel %vm5068, %v5261, %v3147
  %v5326 = vsel %vm5133, %v5262, %v3277
  %v5327 = vsel %vm5133, %v5263, %v3279
  %v5328 = vsel %vm5133, %v5264, %v3281
  %v5329 = vsel %vm5133, %v5265, %v3283
  %v5330 = vsel %vm5133, %v5266, %v3285
  %v5331 = vsel %vm5133, %v5267, %v3287
  %v5332 = vsel %vm5133, %v5268, %v3289
  %v5333 = vsel %vm5133, %v5269, %v3291
  %v5334 = vsel %vm5133, %v5270, %v3293
  %v5335 = vsel %vm5133, %v5271, %v3295
  %v5336 = vsel %vm5133, %v5272, %v3297
  %v5337 = vsel %vm5133, %v5273, %v3299
  %v5338 = vsel %vm5133, %v5274, %v3301
  %v5339 = vsel %vm5133, %v5275, %v3303
  %v5340 = vsel %vm5133, %v5276, %v3305
  %v5341 = vsel %vm5133, %v5277, %v3307
  %v5342 = vsel %vm5133, %v5278, %v3309
  %v5343 = vsel %vm5133, %v5279, %v3311
  %v5344 = vsel %vm5133, %v5280, %v3313
  %v5345 = vsel %vm5133, %v5281, %v3315
  %v5346 = vsel %vm5133, %v5282, %v3317
  %v5347 = vsel %vm5133, %v5283, %v3319
  %v5348 = vsel %vm5133, %v5284, %v3321
  %v5349 = vsel %vm5133, %v5285, %v3323
  %v5350 = vsel %vm5133, %v5286, %v3325
  %v5351 = vsel %vm5133, %v5287, %v3327
  %v5352 = vsel %vm5133, %v5288, %v3329
  %v5353 = vsel %vm5133, %v5289, %v3331
  %v5354 = vsel %vm5133, %v5290, %v3333
  %v5355 = vsel %vm5133, %v5291, %v3335
  %v5356 = vsel %vm5133, %v5292, %v3337
  %v5357 = vsel %vm5133, %v5293, %v3339
  %v5358 = vsel %vm5133, %v5294, %v3341
  %v5359 = vsel %vm5133, %v5295, %v3343
  %v5360 = vsel %vm5133, %v5296, %v3345
  %v5361 = vsel %vm5133, %v5297, %v3347
  %v5362 = vsel %vm5133, %v5298, %v3349
  %v5363 = vsel %vm5133, %v5299, %v3351
  %v5364 = vsel %vm5133, %v5300, %v3353
  %v5365 = vsel %vm5133, %v5301, %v3355
  %v5366 = vsel %vm5133, %v5302, %v3357
  %v5367 = vsel %vm5133, %v5303, %v3359
  %v5368 = vsel %vm5133, %v5304, %v3361
  %v5369 = vsel %vm5133, %v5305, %v3363
  %v5370 = vsel %vm5133, %v5306, %v3365
  %v5371 = vsel %vm5133, %v5307, %v3367
  %v5372 = vsel %vm5133, %v5308, %v3369
  %v5373 = vsel %vm5133, %v5309, %v3371
  %v5374 = vsel %vm5133, %v5310, %v3373
  %v5375 = vsel %vm5133, %v5311, %v3375
  %v5376 = vsel %vm5133, %v5312, %v3377
  %v5377 = vsel %vm5133, %v5313, %v3379
  %v5378 = vsel %vm5133, %v5314, %v3381
  %v5379 = vsel %vm5133, %v5315, %v3383
  %v5380 = vsel %vm5133, %v5316, %v3385
  %v5381 = vsel %vm5133, %v5317, %v3387
  %v5382 = vsel %vm5133, %v5318, %v3389
  %v5383 = vsel %vm5133, %v5319, %v3391
  %v5384 = vsel %vm5133, %v5320, %v3393
  %v5385 = vsel %vm5133, %v5321, %v3395
  %v5386 = vsel %vm5133, %v5322, %v3397
  %v5387 = vsel %vm5133, %v5323, %v3399
  %v5388 = vsel %vm5133, %v5324, %v3401
  %v5389 = vsel %vm5133, %v5325, %v3403
  %v5390 = vsel %vm20, %v905, %v3533
  %v5391 = vsel %vm20, %v906, %v3535
  %v5392 = vsel %vm20, %v907, %v3537
  %v5393 = vsel %vm20, %v908, %v3539
  %v5394 = vsel %vm20, %v909, %v3541
  %v5395 = vsel %vm20, %v910, %v3543
  %v5396 = vsel %vm20, %v911, %v3545
  %v5397 = vsel %vm20, %v912, %v3547
  %v5398 = vsel %vm20, %v913, %v3549
  %v5399 = vsel %vm20, %v914, %v3551
  %v5400 = vsel %vm20, %v915, %v3553
  %v5401 = vsel %vm20, %v916, %v3555
  %v5402 = vsel %vm20, %v917, %v3557
  %v5403 = vsel %vm20, %v918, %v3559
  %v5404 = vsel %vm20, %v919, %v3561
  %v5405 = vsel %vm20, %v920, %v3563
  %v5406 = vsel %vm20, %v921, %v3565
  %v5407 = vsel %vm20, %v922, %v3567
  %v5408 = vsel %vm20, %v923, %v3569
  %v5409 = vsel %vm20, %v924, %v3571
  %v5410 = vsel %vm20, %v925, %v3573
  %v5411 = vsel %vm20, %v926, %v3575
  %v5412 = vsel %vm20, %v927, %v3577
  %v5413 = vsel %vm20, %v928, %v3579
  %v5414 = vsel %vm20, %v929, %v3581
  %v5415 = vsel %vm20, %v930, %v3583
  %v5416 = vsel %vm20, %v931, %v3585
  %v5417 = vsel %vm20, %v932, %v3587
  %v5418 = vsel %vm20, %v933, %v3589
  %v5419 = vsel %vm20, %v934, %v3591
  %v5420 = vsel %vm20, %v935, %v3593
  %v5421 = vsel %vm20, %v936, %v3595
  %v5422 = vsel %vm20, %v937, %v3597
  %v5423 = vsel %vm20, %v938, %v3599
  %v5424 = vsel %vm20, %v939, %v3601
  %v5425 = vsel %vm20, %v940, %v3603
  %v5426 = vsel %vm20, %v941, %v3605
  %v5427 = vsel %vm20, %v942, %v3607
  %v5428 = vsel %vm20, %v943, %v3609
  %v5429 = vsel %vm20, %v944, %v3611
  %v5430 = vsel %vm20, %v945, %v3613
  %v5431 = vsel %vm20, %v946, %v3615
  %v5432 = vsel %vm20, %v947, %v3617
  %v5433 = vsel %vm20, %v948, %v3619
  %v5434 = vsel %vm20, %v949, %v3621
  %v5435 = vsel %vm20, %v950, %v3623
  %v5436 = vsel %vm20, %v951, %v3625
  %v5437 = vsel %vm20, %v952, %v3627
  %v5438 = vsel %vm20, %v953, %v3629
  %v5439 = vsel %vm20, %v954, %v3631
  %v5440 = vsel %vm20, %v955, %v3633
  %v5441 = vsel %vm20, %v956, %v3635
  %v5442 = vsel %vm20, %v957, %v3637
  %v5443 = vsel %vm20, %v958, %v3639
  %v5444 = vsel %vm20, %v959, %v3641
  %v5445 = vsel %vm20, %v960, %v3643
  %v5446 = vsel %vm20, %v961, %v3645
  %v5447 = vsel %vm20, %v962, %v3647
  %v5448 = vsel %vm20, %v963, %v3649
  %v5449 = vsel %vm20, %v964, %v3651
  %v5450 = vsel %vm20, %v965, %v3653
  %v5451 = vsel %vm20, %v966, %v3655
  %v5452 = vsel %vm20, %v967, %v3657
  %v5453 = vsel %vm20, %v968, %v3659
  %v5454 = vsel %vm5068, %v5390, %v3789
  %v5455 = vsel %vm5068, %v5391, %v3791
  %v5456 = vsel %vm5068, %v5392, %v3793
  %v5457 = vsel %vm5068, %v5393, %v3795
  %v5458 = vsel %vm5068, %v5394, %v3797
  %v5459 = vsel %vm5068, %v5395, %v3799
  %v5460 = vsel %vm5068, %v5396, %v3801
  %v5461 = vsel %vm5068, %v5397, %v3803
  %v5462 = vsel %vm5068, %v5398, %v3805
  %v5463 = vsel %vm5068, %v5399, %v3807
  %v5464 = vsel %vm5068, %v5400, %v3809
  %v5465 = vsel %vm5068, %v5401, %v3811
  %v5466 = vsel %vm5068, %v5402, %v3813
  %v5467 = vsel %vm5068, %v5403, %v3815
  %v5468 = vsel %vm5068, %v5404, %v3817
  %v5469 = vsel %vm5068, %v5405, %v3819
  %v5470 = vsel %vm5068, %v5406, %v3821
  %v5471 = vsel %vm5068, %v5407, %v3823
  %v5472 = vsel %vm5068, %v5408, %v3825
  %v5473 = vsel %vm5068, %v5409, %v3827
  %v5474 = vsel %vm5068, %v5410, %v3829
  %v5475 = vsel %vm5068, %v5411, %v3831
  %v5476 = vsel %vm5068, %v5412, %v3833
  %v5477 = vsel %vm5068, %v5413, %v3835
  %v5478 = vsel %vm5068, %v5414, %v3837
  %v5479 = vsel %vm5068, %v5415, %v3839
  %v5480 = vsel %vm5068, %v5416, %v3841
  %v5481 = vsel %vm5068, %v5417, %v3843
  %v5482 = vsel %vm5068, %v5418, %v3845
  %v5483 = vsel %vm5068, %v5419, %v3847
  %v5484 = vsel %vm5068, %v5420, %v3849
  %v5485 = vsel %vm5068, %v5421, %v3851
  %v5486 = vsel %vm5068, %v5422, %v3853
  %v5487 = vsel %vm5068, %v5423, %v3855
  %v5488 = vsel %vm5068, %v5424, %v3857
  %v5489 = vsel %vm5068, %v5425, %v3859
  %v5490 = vsel %vm5068, %v5426, %v3861
  %v5491 = vsel %vm5068, %v5427, %v3863
  %v5492 = vsel %vm5068, %v5428, %v3865
  %v5493 = vsel %vm5068, %v5429, %v3867
  %v5494 = vsel %vm5068, %v5430, %v3869
  %v5495 = vsel %vm5068, %v5431, %v3871
  %v5496 = vsel %vm5068, %v5432, %v3873
  %v5497 = vsel %vm5068, %v5433, %v3875
  %v5498 = vsel %vm5068, %v5434, %v3877
  %v5499 = vsel %vm5068, %v5435, %v3879
  %v5500 = vsel %vm5068, %v5436, %v3881
  %v5501 = vsel %vm5068, %v5437, %v3883
  %v5502 = vsel %vm5068, %v5438, %v3885
  %v5503 = vsel %vm5068, %v5439, %v3887
  %v5504 = vsel %vm5068, %v5440, %v3889
  %v5505 = vsel %vm5068, %v5441, %v3891
  %v5506 = vsel %vm5068, %v5442, %v3893
  %v5507 = vsel %vm5068, %v5443, %v3895
  %v5508 = vsel %vm5068, %v5444, %v3897
  %v5509 = vsel %vm5068, %v5445, %v3899
  %v5510 = vsel %vm5068, %v5446, %v3901
  %v5511 = vsel %vm5068, %v5447, %v3903
  %v5512 = vsel %vm5068, %v5448, %v3905
  %v5513 = vsel %vm5068, %v5449, %v3907
  %v5514 = vsel %vm5068, %v5450, %v3909
  %v5515 = vsel %vm5068, %v5451, %v3911
  %v5516 = vsel %vm5068, %v5452, %v3913
  %v5517 = vsel %vm5068, %v5453, %v3915
  %v5518 = vsel %vm5133, %v5454, %v4045
  %v5519 = vsel %vm5133, %v5455, %v4047
  %v5520 = vsel %vm5133, %v5456, %v4049
  %v5521 = vsel %vm5133, %v5457, %v4051
  %v5522 = vsel %vm5133, %v5458, %v4053
  %v5523 = vsel %vm5133, %v5459, %v4055
  %v5524 = vsel %vm5133, %v5460, %v4057
  %v5525 = vsel %vm5133, %v5461, %v4059
  %v5526 = vsel %vm5133, %v5462, %v4061
  %v5527 = vsel %vm5133, %v5463, %v4063
  %v5528 = vsel %vm5133, %v5464, %v4065
  %v5529 = vsel %vm5133, %v5465, %v4067
  %v5530 = vsel %vm5133, %v5466, %v4069
  %v5531 = vsel %vm5133, %v5467, %v4071
  %v5532 = vsel %vm5133, %v5468, %v4073
  %v5533 = vsel %vm5133, %v5469, %v4075
  %v5534 = vsel %vm5133, %v5470, %v4077
  %v5535 = vsel %vm5133, %v5471, %v4079
  %v5536 = vsel %vm5133, %v5472, %v4081
  %v5537 = vsel %vm5133, %v5473, %v4083
  %v5538 = vsel %vm5133, %v5474, %v4085
  %v5539 = vsel %vm5133, %v5475, %v4087
  %v5540 = vsel %vm5133, %v5476, %v4089
  %v5541 = vsel %vm5133, %v5477, %v4091
  %v5542 = vsel %vm5133, %v5478, %v4093
  %v5543 = vsel %vm5133, %v5479, %v4095
  %v5544 = vsel %vm5133, %v5480, %v4097
  %v5545 = vsel %vm5133, %v5481, %v4099
  %v5546 = vsel %vm5133, %v5482, %v4101
  %v5547 = vsel %vm5133, %v5483, %v4103
  %v5548 = vsel %vm5133, %v5484, %v4105
  %v5549 = vsel %vm5133, %v5485, %v4107
  %v5550 = vsel %vm5133, %v5486, %v4109
  %v5551 = vsel %vm5133, %v5487, %v4111
  %v5552 = vsel %vm5133, %v5488, %v4113
  %v5553 = vsel %vm5133, %v5489, %v4115
  %v5554 = vsel %vm5133, %v5490, %v4117
  %v5555 = vsel %vm5133, %v5491, %v4119
  %v5556 = vsel %vm5133, %v5492, %v4121
  %v5557 = vsel %vm5133, %v5493, %v4123
  %v5558 = vsel %vm5133, %v5494, %v4125
  %v5559 = vsel %vm5133, %v5495, %v4127
  %v5560 = vsel %vm5133, %v5496, %v4129
  %v5561 = vsel %vm5133, %v5497, %v4131
  %v5562 = vsel %vm5133, %v5498, %v4133
  %v5563 = vsel %vm5133, %v5499, %v4135
  %v5564 = vsel %vm5133, %v5500, %v4137
  %v5565 = vsel %vm5133, %v5501, %v4139
  %v5566 = vsel %vm5133, %v5502, %v4141
  %v5567 = vsel %vm5133, %v5503, %v4143
  %v5568 = vsel %vm5133, %v5504, %v4145
  %v5569 = vsel %vm5133, %v5505, %v4147
  %v5570 = vsel %vm5133, %v5506, %v4149
  %v5571 = vsel %vm5133, %v5507, %v4151
  %v5572 = vsel %vm5133, %v5508, %v4153
  %v5573 = vsel %vm5133, %v5509, %v4155
  %v5574 = vsel %vm5133, %v5510, %v4157
  %v5575 = vsel %vm5133, %v5511, %v4159
  %v5576 = vsel %vm5133, %v5512, %v4161
  %v5577 = vsel %vm5133, %v5513, %v4163
  %v5578 = vsel %vm5133, %v5514, %v4165
  %v5579 = vsel %vm5133, %v5515, %v4167
  %v5580 = vsel %vm5133, %v5516, %v4169
  %v5581 = vsel %vm5133, %v5517, %v4171
  %v5582 = vsel %vm20, %v1162, %v4301
  %v5583 = vsel %vm20, %v712, %v4303
  %v5584 = vsel %vm20, %v1163, %v4305
  %v5585 = vsel %vm20, %v714, %v4307
  %v5586 = vsel %vm20, %v1164, %v4309
  %v5587 = vsel %vm20, %v716, %v4311
  %v5588 = vsel %vm20, %v1165, %v4313
  %v5589 = vsel %vm20, %v718, %v4315
  %v5590 = vsel %vm20, %v1166, %v4317
  %v5591 = vsel %vm20, %v720, %v4319
  %v5592 = vsel %vm20, %v1167, %v4321
  %v5593 = vsel %vm20, %v722, %v4323
  %v5594 = vsel %vm20, %v1168, %v4325
  %v5595 = vsel %vm20, %v724, %v4327
  %v5596 = vsel %vm20, %v1169, %v4329
  %v5597 = vsel %vm20, %v726, %v4331
  %v5598 = vsel %vm20, %v1170, %v4333
  %v5599 = vsel %vm20, %v728, %v4335
  %v5600 = vsel %vm20, %v1171, %v4337
  %v5601 = vsel %vm20, %v730, %v4339
  %v5602 = vsel %vm20, %v1172, %v4341
  %v5603 = vsel %vm20, %v732, %v4343
  %v5604 = vsel %vm20, %v1173, %v4345
  %v5605 = vsel %vm20, %v734, %v4347
  %v5606 = vsel %vm20, %v1174, %v4349
  %v5607 = vsel %vm20, %v736, %v4351
  %v5608 = vsel %vm20, %v1175, %v4353
  %v5609 = vsel %vm20, %v738, %v4355
  %v5610 = vsel %vm20, %v1176, %v4357
  %v5611 = vsel %vm20, %v740, %v4359
  %v5612 = vsel %vm20, %v1177, %v4361
  %v5613 = vsel %vm20, %v742, %v4363
  %v5614 = vsel %vm20, %v1178, %v4365
  %v5615 = vsel %vm20, %v744, %v4367
  %v5616 = vsel %vm20, %v1179, %v4369
  %v5617 = vsel %vm20, %v746, %v4371
  %v5618 = vsel %vm20, %v1180, %v4373
  %v5619 = vsel %vm20, %v748, %v4375
  %v5620 = vsel %vm20, %v1181, %v4377
  %v5621 = vsel %vm20, %v750, %v4379
  %v5622 = vsel %vm20, %v1182, %v4381
  %v5623 = vsel %vm20, %v752, %v4383
  %v5624 = vsel %vm20, %v1183, %v4385
  %v5625 = vsel %vm20, %v754, %v4387
  %v5626 = vsel %vm20, %v1184, %v4389
  %v5627 = vsel %vm20, %v756, %v4391
  %v5628 = vsel %vm20, %v1185, %v4393
  %v5629 = vsel %vm20, %v758, %v4395
  %v5630 = vsel %vm20, %v1186, %v4397
  %v5631 = vsel %vm20, %v760, %v4399
  %v5632 = vsel %vm20, %v1187, %v4401
  %v5633 = vsel %vm20, %v762, %v4403
  %v5634 = vsel %vm20, %v1188, %v4405
  %v5635 = vsel %vm20, %v764, %v4407
  %v5636 = vsel %vm20, %v1189, %v4409
  %v5637 = vsel %vm20, %v766, %v4411
  %v5638 = vsel %vm20, %v1190, %v4413
  %v5639 = vsel %vm20, %v768, %v4415
  %v5640 = vsel %vm20, %v1191, %v4417
  %v5641 = vsel %vm20, %v770, %v4419
  %v5642 = vsel %vm20, %v1192, %v4421
  %v5643 = vsel %vm20, %v772, %v4423
  %v5644 = vsel %vm20, %v1193, %v4425
  %v5645 = vsel %vm20, %v774, %v4427
  %v5646 = vsel %vm5068, %v5582, %v4557
  %v5647 = vsel %vm5068, %v5583, %v4559
  %v5648 = vsel %vm5068, %v5584, %v4561
  %v5649 = vsel %vm5068, %v5585, %v4563
  %v5650 = vsel %vm5068, %v5586, %v4565
  %v5651 = vsel %vm5068, %v5587, %v4567
  %v5652 = vsel %vm5068, %v5588, %v4569
  %v5653 = vsel %vm5068, %v5589, %v4571
  %v5654 = vsel %vm5068, %v5590, %v4573
  %v5655 = vsel %vm5068, %v5591, %v4575
  %v5656 = vsel %vm5068, %v5592, %v4577
  %v5657 = vsel %vm5068, %v5593, %v4579
  %v5658 = vsel %vm5068, %v5594, %v4581
  %v5659 = vsel %vm5068, %v5595, %v4583
  %v5660 = vsel %vm5068, %v5596, %v4585
  %v5661 = vsel %vm5068, %v5597, %v4587
  %v5662 = vsel %vm5068, %v5598, %v4589
  %v5663 = vsel %vm5068, %v5599, %v4591
  %v5664 = vsel %vm5068, %v5600, %v4593
  %v5665 = vsel %vm5068, %v5601, %v4595
  %v5666 = vsel %vm5068, %v5602, %v4597
  %v5667 = vsel %vm5068, %v5603, %v4599
  %v5668 = vsel %vm5068, %v5604, %v4601
  %v5669 = vsel %vm5068, %v5605, %v4603
  %v5670 = vsel %vm5068, %v5606, %v4605
  %v5671 = vsel %vm5068, %v5607, %v4607
  %v5672 = vsel %vm5068, %v5608, %v4609
  %v5673 = vsel %vm5068, %v5609, %v4611
  %v5674 = vsel %vm5068, %v5610, %v4613
  %v5675 = vsel %vm5068, %v5611, %v4615
  %v5676 = vsel %vm5068, %v5612, %v4617
  %v5677 = vsel %vm5068, %v5613, %v4619
  %v5678 = vsel %vm5068, %v5614, %v4621
  %v5679 = vsel %vm5068, %v5615, %v4623
  %v5680 = vsel %vm5068, %v5616, %v4625
  %v5681 = vsel %vm5068, %v5617, %v4627
  %v5682 = vsel %vm5068, %v5618, %v4629
  %v5683 = vsel %vm5068, %v5619, %v4631
  %v5684 = vsel %vm5068, %v5620, %v4633
  %v5685 = vsel %vm5068, %v5621, %v4635
  %v5686 = vsel %vm5068, %v5622, %v4637
  %v5687 = vsel %vm5068, %v5623, %v4639
  %v5688 = vsel %vm5068, %v5624, %v4641
  %v5689 = vsel %vm5068, %v5625, %v4643
  %v5690 = vsel %vm5068, %v5626, %v4645
  %v5691 = vsel %vm5068, %v5627, %v4647
  %v5692 = vsel %vm5068, %v5628, %v4649
  %v5693 = vsel %vm5068, %v5629, %v4651
  %v5694 = vsel %vm5068, %v5630, %v4653
  %v5695 = vsel %vm5068, %v5631, %v4655
  %v5696 = vsel %vm5068, %v5632, %v4657
  %v5697 = vsel %vm5068, %v5633, %v4659
  %v5698 = vsel %vm5068, %v5634, %v4661
  %v5699 = vsel %vm5068, %v5635, %v4663
  %v5700 = vsel %vm5068, %v5636, %v4665
  %v5701 = vsel %vm5068, %v5637, %v4667
  %v5702 = vsel %vm5068, %v5638, %v4669
  %v5703 = vsel %vm5068, %v5639, %v4671
  %v5704 = vsel %vm5068, %v5640, %v4673
  %v5705 = vsel %vm5068, %v5641, %v4675
  %v5706 = vsel %vm5068, %v5642, %v4677
  %v5707 = vsel %vm5068, %v5643, %v4679
  %v5708 = vsel %vm5068, %v5644, %v4681
  %v5709 = vsel %vm5068, %v5645, %v4683
  %v5710 = vsel %vm5133, %v5646, %v4813
  %v5711 = vsel %vm5133, %v5647, %v4815
  %v5712 = vsel %vm5133, %v5648, %v4817
  %v5713 = vsel %vm5133, %v5649, %v4819
  %v5714 = vsel %vm5133, %v5650, %v4821
  %v5715 = vsel %vm5133, %v5651, %v4823
  %v5716 = vsel %vm5133, %v5652, %v4825
  %v5717 = vsel %vm5133, %v5653, %v4827
  %v5718 = vsel %vm5133, %v5654, %v4829
  %v5719 = vsel %vm5133, %v5655, %v4831
  %v5720 = vsel %vm5133, %v5656, %v4833
  %v5721 = vsel %vm5133, %v5657, %v4835
  %v5722 = vsel %vm5133, %v5658, %v4837
  %v5723 = vsel %vm5133, %v5659, %v4839
  %v5724 = vsel %vm5133, %v5660, %v4841
  %v5725 = vsel %vm5133, %v5661, %v4843
  %v5726 = vsel %vm5133, %v5662, %v4845
  %v5727 = vsel %vm5133, %v5663, %v4847
  %v5728 = vsel %vm5133, %v5664, %v4849
  %v5729 = vsel %vm5133, %v5665, %v4851
  %v5730 = vsel %vm5133, %v5666, %v4853
  %v5731 = vsel %vm5133, %v5667, %v4855
  %v5732 = vsel %vm5133, %v5668, %v4857
  %v5733 = vsel %vm5133, %v5669, %v4859
  %v5734 = vsel %vm5133, %v5670, %v4861
  %v5735 = vsel %vm5133, %v5671, %v4863
  %v5736 = vsel %vm5133, %v5672, %v4865
  %v5737 = vsel %vm5133, %v5673, %v4867
  %v5738 = vsel %vm5133, %v5674, %v4869
  %v5739 = vsel %vm5133, %v5675, %v4871
  %v5740 = vsel %vm5133, %v5676, %v4873
  %v5741 = vsel %vm5133, %v5677, %v4875
  %v5742 = vsel %vm5133, %v5678, %v4877
  %v5743 = vsel %vm5133, %v5679, %v4879
  %v5744 = vsel %vm5133, %v5680, %v4881
  %v5745 = vsel %vm5133, %v5681, %v4883
  %v5746 = vsel %vm5133, %v5682, %v4885
  %v5747 = vsel %vm5133, %v5683, %v4887
  %v5748 = vsel %vm5133, %v5684, %v4889
  %v5749 = vsel %vm5133, %v5685, %v4891
  %v5750 = vsel %vm5133, %v5686, %v4893
  %v5751 = vsel %vm5133, %v5687, %v4895
  %v5752 = vsel %vm5133, %v5688, %v4897
  %v5753 = vsel %vm5133, %v5689, %v4899
  %v5754 = vsel %vm5133, %v5690, %v4901
  %v5755 = vsel %vm5133, %v5691, %v4903
  %v5756 = vsel %vm5133, %v5692, %v4905
  %v5757 = vsel %vm5133, %v5693, %v4907
  %v5758 = vsel %vm5133, %v5694, %v4909
  %v5759 = vsel %vm5133, %v5695, %v4911
  %v5760 = vsel %vm5133, %v5696, %v4913
  %v5761 = vsel %vm5133, %v5697, %v4915
  %v5762 = vsel %vm5133, %v5698, %v4917
  %v5763 = vsel %vm5133, %v5699, %v4919
  %v5764 = vsel %vm5133, %v5700, %v4921
  %v5765 = vsel %vm5133, %v5701, %v4923
  %v5766 = vsel %vm5133, %v5702, %v4925
  %v5767 = vsel %vm5133, %v5703, %v4927
  %v5768 = vsel %vm5133, %v5704, %v4929
  %v5769 = vsel %vm5133, %v5705, %v4931
  %v5770 = vsel %vm5133, %v5706, %v4933
  %v5771 = vsel %vm5133, %v5707, %v4935
  %v5772 = vsel %vm5133, %v5708, %v4937
  %v5773 = vsel %vm5133, %v5709, %v4939
  %5838 = vrot.lane.b32.xlu0 %v1419, 32
  %v5839 = vpop.permute.xlu0 %5838
  %5840 = vrot.lane.b32.xlu0 %v1420, 32
  %v5841 = vpop.permute.xlu0 %5840
  %5842 = vrot.lane.b32.xlu0 %v1421, 32
  %v5843 = vpop.permute.xlu0 %5842
  %5844 = vrot.lane.b32.xlu0 %v1422, 32
  %v5845 = vpop.permute.xlu0 %5844
  %5846 = vrot.lane.b32.xlu0 %v1423, 32
  %v5847 = vpop.permute.xlu0 %5846
  %5848 = vrot.lane.b32.xlu0 %v1424, 32
  %v5849 = vpop.permute.xlu0 %5848
  %5850 = vrot.lane.b32.xlu0 %v1425, 32
  %v5851 = vpop.permute.xlu0 %5850
  %5852 = vrot.lane.b32.xlu0 %v1426, 32
  %v5853 = vpop.permute.xlu0 %5852
  %5854 = vrot.lane.b32.xlu0 %v1427, 32
  %v5855 = vpop.permute.xlu0 %5854
  %5856 = vrot.lane.b32.xlu0 %v1428, 32
  %v5857 = vpop.permute.xlu0 %5856
  %5858 = vrot.lane.b32.xlu0 %v1429, 32
  %v5859 = vpop.permute.xlu0 %5858
  %5860 = vrot.lane.b32.xlu0 %v1430, 32
  %v5861 = vpop.permute.xlu0 %5860
  %5862 = vrot.lane.b32.xlu0 %v1431, 32
  %v5863 = vpop.permute.xlu0 %5862
  %5864 = vrot.lane.b32.xlu0 %v1432, 32
  %v5865 = vpop.permute.xlu0 %5864
  %5866 = vrot.lane.b32.xlu0 %v1433, 32
  %v5867 = vpop.permute.xlu0 %5866
  %5868 = vrot.lane.b32.xlu0 %v1434, 32
  %v5869 = vpop.permute.xlu0 %5868
  %5870 = vrot.lane.b32.xlu0 %v1435, 32
  %v5871 = vpop.permute.xlu0 %5870
  %5872 = vrot.lane.b32.xlu0 %v1436, 32
  %v5873 = vpop.permute.xlu0 %5872
  %5874 = vrot.lane.b32.xlu0 %v1437, 32
  %v5875 = vpop.permute.xlu0 %5874
  %5876 = vrot.lane.b32.xlu0 %v1438, 32
  %v5877 = vpop.permute.xlu0 %5876
  %5878 = vrot.lane.b32.xlu0 %v1439, 32
  %v5879 = vpop.permute.xlu0 %5878
  %5880 = vrot.lane.b32.xlu0 %v1440, 32
  %v5881 = vpop.permute.xlu0 %5880
  %5882 = vrot.lane.b32.xlu0 %v1441, 32
  %v5883 = vpop.permute.xlu0 %5882
  %5884 = vrot.lane.b32.xlu0 %v1442, 32
  %v5885 = vpop.permute.xlu0 %5884
  %5886 = vrot.lane.b32.xlu0 %v1443, 32
  %v5887 = vpop.permute.xlu0 %5886
  %5888 = vrot.lane.b32.xlu0 %v1444, 32
  %v5889 = vpop.permute.xlu0 %5888
  %5890 = vrot.lane.b32.xlu0 %v1445, 32
  %v5891 = vpop.permute.xlu0 %5890
  %5892 = vrot.lane.b32.xlu0 %v1446, 32
  %v5893 = vpop.permute.xlu0 %5892
  %5894 = vrot.lane.b32.xlu0 %v1447, 32
  %v5895 = vpop.permute.xlu0 %5894
  %5896 = vrot.lane.b32.xlu0 %v1448, 32
  %v5897 = vpop.permute.xlu0 %5896
  %5898 = vrot.lane.b32.xlu0 %v1449, 32
  %v5899 = vpop.permute.xlu0 %5898
  %5900 = vrot.lane.b32.xlu0 %v1450, 32
  %v5901 = vpop.permute.xlu0 %5900
  %5902 = vrot.lane.b32.xlu0 %v1451, 32
  %v5903 = vpop.permute.xlu0 %5902
  %5904 = vrot.lane.b32.xlu0 %v1452, 32
  %v5905 = vpop.permute.xlu0 %5904
  %5906 = vrot.lane.b32.xlu0 %v1453, 32
  %v5907 = vpop.permute.xlu0 %5906
  %5908 = vrot.lane.b32.xlu0 %v1454, 32
  %v5909 = vpop.permute.xlu0 %5908
  %5910 = vrot.lane.b32.xlu0 %v1455, 32
  %v5911 = vpop.permute.xlu0 %5910
  %5912 = vrot.lane.b32.xlu0 %v1456, 32
  %v5913 = vpop.permute.xlu0 %5912
  %5914 = vrot.lane.b32.xlu0 %v1457, 32
  %v5915 = vpop.permute.xlu0 %5914
  %5916 = vrot.lane.b32.xlu0 %v1458, 32
  %v5917 = vpop.permute.xlu0 %5916
  %5918 = vrot.lane.b32.xlu0 %v1459, 32
  %v5919 = vpop.permute.xlu0 %5918
  %5920 = vrot.lane.b32.xlu0 %v1460, 32
  %v5921 = vpop.permute.xlu0 %5920
  %5922 = vrot.lane.b32.xlu0 %v1461, 32
  %v5923 = vpop.permute.xlu0 %5922
  %5924 = vrot.lane.b32.xlu0 %v1462, 32
  %v5925 = vpop.permute.xlu0 %5924
  %5926 = vrot.lane.b32.xlu0 %v1463, 32
  %v5927 = vpop.permute.xlu0 %5926
  %5928 = vrot.lane.b32.xlu0 %v1464, 32
  %v5929 = vpop.permute.xlu0 %5928
  %5930 = vrot.lane.b32.xlu0 %v1465, 32
  %v5931 = vpop.permute.xlu0 %5930
  %5932 = vrot.lane.b32.xlu0 %v1466, 32
  %v5933 = vpop.permute.xlu0 %5932
  %5934 = vrot.lane.b32.xlu0 %v1467, 32
  %v5935 = vpop.permute.xlu0 %5934
  %5936 = vrot.lane.b32.xlu0 %v1468, 32
  %v5937 = vpop.permute.xlu0 %5936
  %5938 = vrot.lane.b32.xlu0 %v1469, 32
  %v5939 = vpop.permute.xlu0 %5938
  %5940 = vrot.lane.b32.xlu0 %v1470, 32
  %v5941 = vpop.permute.xlu0 %5940
  %5942 = vrot.lane.b32.xlu0 %v1471, 32
  %v5943 = vpop.permute.xlu0 %5942
  %5944 = vrot.lane.b32.xlu0 %v1472, 32
  %v5945 = vpop.permute.xlu0 %5944
  %5946 = vrot.lane.b32.xlu0 %v1473, 32
  %v5947 = vpop.permute.xlu0 %5946
  %5948 = vrot.lane.b32.xlu0 %v1474, 32
  %v5949 = vpop.permute.xlu0 %5948
  %5950 = vrot.lane.b32.xlu0 %v1475, 32
  %v5951 = vpop.permute.xlu0 %5950
  %5952 = vrot.lane.b32.xlu0 %v1476, 32
  %v5953 = vpop.permute.xlu0 %5952
  %5954 = vrot.lane.b32.xlu0 %v1477, 32
  %v5955 = vpop.permute.xlu0 %5954
  %5956 = vrot.lane.b32.xlu0 %v1478, 32
  %v5957 = vpop.permute.xlu0 %5956
  %5958 = vrot.lane.b32.xlu0 %v1479, 32
  %v5959 = vpop.permute.xlu0 %5958
  %5960 = vrot.lane.b32.xlu0 %v1480, 32
  %v5961 = vpop.permute.xlu0 %5960
  %5962 = vrot.lane.b32.xlu0 %v1481, 32
  %v5963 = vpop.permute.xlu0 %5962
  %5964 = vrot.lane.b32.xlu0 %v1482, 32
  %v5965 = vpop.permute.xlu0 %5964
  %6094 = vrot.lane.b32.xlu0 %v1483, 64
  %v6095 = vpop.permute.xlu0 %6094
  %6096 = vrot.lane.b32.xlu0 %v1484, 64
  %v6097 = vpop.permute.xlu0 %6096
  %6098 = vrot.lane.b32.xlu0 %v1485, 64
  %v6099 = vpop.permute.xlu0 %6098
  %6100 = vrot.lane.b32.xlu0 %v1486, 64
  %v6101 = vpop.permute.xlu0 %6100
  %6102 = vrot.lane.b32.xlu0 %v1487, 64
  %v6103 = vpop.permute.xlu0 %6102
  %6104 = vrot.lane.b32.xlu0 %v1488, 64
  %v6105 = vpop.permute.xlu0 %6104
  %6106 = vrot.lane.b32.xlu0 %v1489, 64
  %v6107 = vpop.permute.xlu0 %6106
  %6108 = vrot.lane.b32.xlu0 %v1490, 64
  %v6109 = vpop.permute.xlu0 %6108
  %6110 = vrot.lane.b32.xlu0 %v1491, 64
  %v6111 = vpop.permute.xlu0 %6110
  %6112 = vrot.lane.b32.xlu0 %v1492, 64
  %v6113 = vpop.permute.xlu0 %6112
  %6114 = vrot.lane.b32.xlu0 %v1493, 64
  %v6115 = vpop.permute.xlu0 %6114
  %6116 = vrot.lane.b32.xlu0 %v1494, 64
  %v6117 = vpop.permute.xlu0 %6116
  %6118 = vrot.lane.b32.xlu0 %v1495, 64
  %v6119 = vpop.permute.xlu0 %6118
  %6120 = vrot.lane.b32.xlu0 %v1496, 64
  %v6121 = vpop.permute.xlu0 %6120
  %6122 = vrot.lane.b32.xlu0 %v1497, 64
  %v6123 = vpop.permute.xlu0 %6122
  %6124 = vrot.lane.b32.xlu0 %v1498, 64
  %v6125 = vpop.permute.xlu0 %6124
  %6126 = vrot.lane.b32.xlu0 %v1499, 64
  %v6127 = vpop.permute.xlu0 %6126
  %6128 = vrot.lane.b32.xlu0 %v1500, 64
  %v6129 = vpop.permute.xlu0 %6128
  %6130 = vrot.lane.b32.xlu0 %v1501, 64
  %v6131 = vpop.permute.xlu0 %6130
  %6132 = vrot.lane.b32.xlu0 %v1502, 64
  %v6133 = vpop.permute.xlu0 %6132
  %6134 = vrot.lane.b32.xlu0 %v1503, 64
  %v6135 = vpop.permute.xlu0 %6134
  %6136 = vrot.lane.b32.xlu0 %v1504, 64
  %v6137 = vpop.permute.xlu0 %6136
  %6138 = vrot.lane.b32.xlu0 %v1505, 64
  %v6139 = vpop.permute.xlu0 %6138
  %6140 = vrot.lane.b32.xlu0 %v1506, 64
  %v6141 = vpop.permute.xlu0 %6140
  %6142 = vrot.lane.b32.xlu0 %v1507, 64
  %v6143 = vpop.permute.xlu0 %6142
  %6144 = vrot.lane.b32.xlu0 %v1508, 64
  %v6145 = vpop.permute.xlu0 %6144
  %6146 = vrot.lane.b32.xlu0 %v1509, 64
  %v6147 = vpop.permute.xlu0 %6146
  %6148 = vrot.lane.b32.xlu0 %v1510, 64
  %v6149 = vpop.permute.xlu0 %6148
  %6150 = vrot.lane.b32.xlu0 %v1511, 64
  %v6151 = vpop.permute.xlu0 %6150
  %6152 = vrot.lane.b32.xlu0 %v1512, 64
  %v6153 = vpop.permute.xlu0 %6152
  %6154 = vrot.lane.b32.xlu0 %v1513, 64
  %v6155 = vpop.permute.xlu0 %6154
  %6156 = vrot.lane.b32.xlu0 %v1514, 64
  %v6157 = vpop.permute.xlu0 %6156
  %6158 = vrot.lane.b32.xlu0 %v1515, 64
  %v6159 = vpop.permute.xlu0 %6158
  %6160 = vrot.lane.b32.xlu0 %v1516, 64
  %v6161 = vpop.permute.xlu0 %6160
  %6162 = vrot.lane.b32.xlu0 %v1517, 64
  %v6163 = vpop.permute.xlu0 %6162
  %6164 = vrot.lane.b32.xlu0 %v1518, 64
  %v6165 = vpop.permute.xlu0 %6164
  %6166 = vrot.lane.b32.xlu0 %v1519, 64
  %v6167 = vpop.permute.xlu0 %6166
  %6168 = vrot.lane.b32.xlu0 %v1520, 64
  %v6169 = vpop.permute.xlu0 %6168
  %6170 = vrot.lane.b32.xlu0 %v1521, 64
  %v6171 = vpop.permute.xlu0 %6170
  %6172 = vrot.lane.b32.xlu0 %v1522, 64
  %v6173 = vpop.permute.xlu0 %6172
  %6174 = vrot.lane.b32.xlu0 %v1523, 64
  %v6175 = vpop.permute.xlu0 %6174
  %6176 = vrot.lane.b32.xlu0 %v1524, 64
  %v6177 = vpop.permute.xlu0 %6176
  %6178 = vrot.lane.b32.xlu0 %v1525, 64
  %v6179 = vpop.permute.xlu0 %6178
  %6180 = vrot.lane.b32.xlu0 %v1526, 64
  %v6181 = vpop.permute.xlu0 %6180
  %6182 = vrot.lane.b32.xlu0 %v1527, 64
  %v6183 = vpop.permute.xlu0 %6182
  %6184 = vrot.lane.b32.xlu0 %v1528, 64
  %v6185 = vpop.permute.xlu0 %6184
  %6186 = vrot.lane.b32.xlu0 %v1529, 64
  %v6187 = vpop.permute.xlu0 %6186
  %6188 = vrot.lane.b32.xlu0 %v1530, 64
  %v6189 = vpop.permute.xlu0 %6188
  %6190 = vrot.lane.b32.xlu0 %v1531, 64
  %v6191 = vpop.permute.xlu0 %6190
  %6192 = vrot.lane.b32.xlu0 %v1532, 64
  %v6193 = vpop.permute.xlu0 %6192
  %6194 = vrot.lane.b32.xlu0 %v1533, 64
  %v6195 = vpop.permute.xlu0 %6194
  %6196 = vrot.lane.b32.xlu0 %v1534, 64
  %v6197 = vpop.permute.xlu0 %6196
  %6198 = vrot.lane.b32.xlu0 %v1535, 64
  %v6199 = vpop.permute.xlu0 %6198
  %6200 = vrot.lane.b32.xlu0 %v1536, 64
  %v6201 = vpop.permute.xlu0 %6200
  %6202 = vrot.lane.b32.xlu0 %v1537, 64
  %v6203 = vpop.permute.xlu0 %6202
  %6204 = vrot.lane.b32.xlu0 %v1538, 64
  %v6205 = vpop.permute.xlu0 %6204
  %6206 = vrot.lane.b32.xlu0 %v1539, 64
  %v6207 = vpop.permute.xlu0 %6206
  %6208 = vrot.lane.b32.xlu0 %v1540, 64
  %v6209 = vpop.permute.xlu0 %6208
  %6210 = vrot.lane.b32.xlu0 %v1541, 64
  %v6211 = vpop.permute.xlu0 %6210
  %6212 = vrot.lane.b32.xlu0 %v1542, 64
  %v6213 = vpop.permute.xlu0 %6212
  %6214 = vrot.lane.b32.xlu0 %v1543, 64
  %v6215 = vpop.permute.xlu0 %6214
  %6216 = vrot.lane.b32.xlu0 %v1544, 64
  %v6217 = vpop.permute.xlu0 %6216
  %6218 = vrot.lane.b32.xlu0 %v1545, 64
  %v6219 = vpop.permute.xlu0 %6218
  %6220 = vrot.lane.b32.xlu0 %v1546, 64
  %v6221 = vpop.permute.xlu0 %6220
  %6350 = vrot.lane.b32.xlu0 %v1547, 96
  %v6351 = vpop.permute.xlu0 %6350
  %6352 = vrot.lane.b32.xlu0 %v1548, 96
  %v6353 = vpop.permute.xlu0 %6352
  %6354 = vrot.lane.b32.xlu0 %v1549, 96
  %v6355 = vpop.permute.xlu0 %6354
  %6356 = vrot.lane.b32.xlu0 %v1550, 96
  %v6357 = vpop.permute.xlu0 %6356
  %6358 = vrot.lane.b32.xlu0 %v1551, 96
  %v6359 = vpop.permute.xlu0 %6358
  %6360 = vrot.lane.b32.xlu0 %v1552, 96
  %v6361 = vpop.permute.xlu0 %6360
  %6362 = vrot.lane.b32.xlu0 %v1553, 96
  %v6363 = vpop.permute.xlu0 %6362
  %6364 = vrot.lane.b32.xlu0 %v1554, 96
  %v6365 = vpop.permute.xlu0 %6364
  %6366 = vrot.lane.b32.xlu0 %v1555, 96
  %v6367 = vpop.permute.xlu0 %6366
  %6368 = vrot.lane.b32.xlu0 %v1556, 96
  %v6369 = vpop.permute.xlu0 %6368
  %6370 = vrot.lane.b32.xlu0 %v1557, 96
  %v6371 = vpop.permute.xlu0 %6370
  %6372 = vrot.lane.b32.xlu0 %v1558, 96
  %v6373 = vpop.permute.xlu0 %6372
  %6374 = vrot.lane.b32.xlu0 %v1559, 96
  %v6375 = vpop.permute.xlu0 %6374
  %6376 = vrot.lane.b32.xlu0 %v1560, 96
  %v6377 = vpop.permute.xlu0 %6376
  %6378 = vrot.lane.b32.xlu0 %v1561, 96
  %v6379 = vpop.permute.xlu0 %6378
  %6380 = vrot.lane.b32.xlu0 %v1562, 96
  %v6381 = vpop.permute.xlu0 %6380
  %6382 = vrot.lane.b32.xlu0 %v1563, 96
  %v6383 = vpop.permute.xlu0 %6382
  %6384 = vrot.lane.b32.xlu0 %v1564, 96
  %v6385 = vpop.permute.xlu0 %6384
  %6386 = vrot.lane.b32.xlu0 %v1565, 96
  %v6387 = vpop.permute.xlu0 %6386
  %6388 = vrot.lane.b32.xlu0 %v1566, 96
  %v6389 = vpop.permute.xlu0 %6388
  %6390 = vrot.lane.b32.xlu0 %v1567, 96
  %v6391 = vpop.permute.xlu0 %6390
  %6392 = vrot.lane.b32.xlu0 %v1568, 96
  %v6393 = vpop.permute.xlu0 %6392
  %6394 = vrot.lane.b32.xlu0 %v1569, 96
  %v6395 = vpop.permute.xlu0 %6394
  %6396 = vrot.lane.b32.xlu0 %v1570, 96
  %v6397 = vpop.permute.xlu0 %6396
  %6398 = vrot.lane.b32.xlu0 %v1571, 96
  %v6399 = vpop.permute.xlu0 %6398
  %6400 = vrot.lane.b32.xlu0 %v1572, 96
  %v6401 = vpop.permute.xlu0 %6400
  %6402 = vrot.lane.b32.xlu0 %v1573, 96
  %v6403 = vpop.permute.xlu0 %6402
  %6404 = vrot.lane.b32.xlu0 %v1574, 96
  %v6405 = vpop.permute.xlu0 %6404
  %6406 = vrot.lane.b32.xlu0 %v1575, 96
  %v6407 = vpop.permute.xlu0 %6406
  %6408 = vrot.lane.b32.xlu0 %v1576, 96
  %v6409 = vpop.permute.xlu0 %6408
  %6410 = vrot.lane.b32.xlu0 %v1577, 96
  %v6411 = vpop.permute.xlu0 %6410
  %6412 = vrot.lane.b32.xlu0 %v1578, 96
  %v6413 = vpop.permute.xlu0 %6412
  %6414 = vrot.lane.b32.xlu0 %v1579, 96
  %v6415 = vpop.permute.xlu0 %6414
  %6416 = vrot.lane.b32.xlu0 %v1580, 96
  %v6417 = vpop.permute.xlu0 %6416
  %6418 = vrot.lane.b32.xlu0 %v1581, 96
  %v6419 = vpop.permute.xlu0 %6418
  %6420 = vrot.lane.b32.xlu0 %v1582, 96
  %v6421 = vpop.permute.xlu0 %6420
  %6422 = vrot.lane.b32.xlu0 %v1583, 96
  %v6423 = vpop.permute.xlu0 %6422
  %6424 = vrot.lane.b32.xlu0 %v1584, 96
  %v6425 = vpop.permute.xlu0 %6424
  %6426 = vrot.lane.b32.xlu0 %v1585, 96
  %v6427 = vpop.permute.xlu0 %6426
  %6428 = vrot.lane.b32.xlu0 %v1586, 96
  %v6429 = vpop.permute.xlu0 %6428
  %6430 = vrot.lane.b32.xlu0 %v1587, 96
  %v6431 = vpop.permute.xlu0 %6430
  %6432 = vrot.lane.b32.xlu0 %v1588, 96
  %v6433 = vpop.permute.xlu0 %6432
  %6434 = vrot.lane.b32.xlu0 %v1589, 96
  %v6435 = vpop.permute.xlu0 %6434
  %6436 = vrot.lane.b32.xlu0 %v1590, 96
  %v6437 = vpop.permute.xlu0 %6436
  %6438 = vrot.lane.b32.xlu0 %v1591, 96
  %v6439 = vpop.permute.xlu0 %6438
  %6440 = vrot.lane.b32.xlu0 %v1592, 96
  %v6441 = vpop.permute.xlu0 %6440
  %6442 = vrot.lane.b32.xlu0 %v1593, 96
  %v6443 = vpop.permute.xlu0 %6442
  %6444 = vrot.lane.b32.xlu0 %v1594, 96
  %v6445 = vpop.permute.xlu0 %6444
  %6446 = vrot.lane.b32.xlu0 %v1595, 96
  %v6447 = vpop.permute.xlu0 %6446
  %6448 = vrot.lane.b32.xlu0 %v1596, 96
  %v6449 = vpop.permute.xlu0 %6448
  %6450 = vrot.lane.b32.xlu0 %v1597, 96
  %v6451 = vpop.permute.xlu0 %6450
  %6452 = vrot.lane.b32.xlu0 %v1598, 96
  %v6453 = vpop.permute.xlu0 %6452
  %6454 = vrot.lane.b32.xlu0 %v1599, 96
  %v6455 = vpop.permute.xlu0 %6454
  %6456 = vrot.lane.b32.xlu0 %v1600, 96
  %v6457 = vpop.permute.xlu0 %6456
  %6458 = vrot.lane.b32.xlu0 %v1601, 96
  %v6459 = vpop.permute.xlu0 %6458
  %6460 = vrot.lane.b32.xlu0 %v1602, 96
  %v6461 = vpop.permute.xlu0 %6460
  %6462 = vrot.lane.b32.xlu0 %v1603, 96
  %v6463 = vpop.permute.xlu0 %6462
  %6464 = vrot.lane.b32.xlu0 %v1604, 96
  %v6465 = vpop.permute.xlu0 %6464
  %6466 = vrot.lane.b32.xlu0 %v1605, 96
  %v6467 = vpop.permute.xlu0 %6466
  %6468 = vrot.lane.b32.xlu0 %v1606, 96
  %v6469 = vpop.permute.xlu0 %6468
  %6470 = vrot.lane.b32.xlu0 %v1607, 96
  %v6471 = vpop.permute.xlu0 %6470
  %6472 = vrot.lane.b32.xlu0 %v1608, 96
  %v6473 = vpop.permute.xlu0 %6472
  %6474 = vrot.lane.b32.xlu0 %v1609, 96
  %v6475 = vpop.permute.xlu0 %6474
  %6476 = vrot.lane.b32.xlu0 %v1610, 96
  %v6477 = vpop.permute.xlu0 %6476
  %6606 = vrot.lane.b32.xlu0 %v1675, 32
  %v6607 = vpop.permute.xlu0 %6606
  %6608 = vrot.lane.b32.xlu0 %v1676, 32
  %v6609 = vpop.permute.xlu0 %6608
  %6610 = vrot.lane.b32.xlu0 %v1677, 32
  %v6611 = vpop.permute.xlu0 %6610
  %6612 = vrot.lane.b32.xlu0 %v1678, 32
  %v6613 = vpop.permute.xlu0 %6612
  %6614 = vrot.lane.b32.xlu0 %v1679, 32
  %v6615 = vpop.permute.xlu0 %6614
  %6616 = vrot.lane.b32.xlu0 %v1680, 32
  %v6617 = vpop.permute.xlu0 %6616
  %6618 = vrot.lane.b32.xlu0 %v1681, 32
  %v6619 = vpop.permute.xlu0 %6618
  %6620 = vrot.lane.b32.xlu0 %v1682, 32
  %v6621 = vpop.permute.xlu0 %6620
  %6622 = vrot.lane.b32.xlu0 %v1683, 32
  %v6623 = vpop.permute.xlu0 %6622
  %6624 = vrot.lane.b32.xlu0 %v1684, 32
  %v6625 = vpop.permute.xlu0 %6624
  %6626 = vrot.lane.b32.xlu0 %v1685, 32
  %v6627 = vpop.permute.xlu0 %6626
  %6628 = vrot.lane.b32.xlu0 %v1686, 32
  %v6629 = vpop.permute.xlu0 %6628
  %6630 = vrot.lane.b32.xlu0 %v1687, 32
  %v6631 = vpop.permute.xlu0 %6630
  %6632 = vrot.lane.b32.xlu0 %v1688, 32
  %v6633 = vpop.permute.xlu0 %6632
  %6634 = vrot.lane.b32.xlu0 %v1689, 32
  %v6635 = vpop.permute.xlu0 %6634
  %6636 = vrot.lane.b32.xlu0 %v1690, 32
  %v6637 = vpop.permute.xlu0 %6636
  %6638 = vrot.lane.b32.xlu0 %v1691, 32
  %v6639 = vpop.permute.xlu0 %6638
  %6640 = vrot.lane.b32.xlu0 %v1692, 32
  %v6641 = vpop.permute.xlu0 %6640
  %6642 = vrot.lane.b32.xlu0 %v1693, 32
  %v6643 = vpop.permute.xlu0 %6642
  %6644 = vrot.lane.b32.xlu0 %v1694, 32
  %v6645 = vpop.permute.xlu0 %6644
  %6646 = vrot.lane.b32.xlu0 %v1695, 32
  %v6647 = vpop.permute.xlu0 %6646
  %6648 = vrot.lane.b32.xlu0 %v1696, 32
  %v6649 = vpop.permute.xlu0 %6648
  %6650 = vrot.lane.b32.xlu0 %v1697, 32
  %v6651 = vpop.permute.xlu0 %6650
  %6652 = vrot.lane.b32.xlu0 %v1698, 32
  %v6653 = vpop.permute.xlu0 %6652
  %6654 = vrot.lane.b32.xlu0 %v1699, 32
  %v6655 = vpop.permute.xlu0 %6654
  %6656 = vrot.lane.b32.xlu0 %v1700, 32
  %v6657 = vpop.permute.xlu0 %6656
  %6658 = vrot.lane.b32.xlu0 %v1701, 32
  %v6659 = vpop.permute.xlu0 %6658
  %6660 = vrot.lane.b32.xlu0 %v1702, 32
  %v6661 = vpop.permute.xlu0 %6660
  %6662 = vrot.lane.b32.xlu0 %v1703, 32
  %v6663 = vpop.permute.xlu0 %6662
  %6664 = vrot.lane.b32.xlu0 %v1704, 32
  %v6665 = vpop.permute.xlu0 %6664
  %6666 = vrot.lane.b32.xlu0 %v1705, 32
  %v6667 = vpop.permute.xlu0 %6666
  %6668 = vrot.lane.b32.xlu0 %v1706, 32
  %v6669 = vpop.permute.xlu0 %6668
  %6670 = vrot.lane.b32.xlu0 %v1707, 32
  %v6671 = vpop.permute.xlu0 %6670
  %6672 = vrot.lane.b32.xlu0 %v1708, 32
  %v6673 = vpop.permute.xlu0 %6672
  %6674 = vrot.lane.b32.xlu0 %v1709, 32
  %v6675 = vpop.permute.xlu0 %6674
  %6676 = vrot.lane.b32.xlu0 %v1710, 32
  %v6677 = vpop.permute.xlu0 %6676
  %6678 = vrot.lane.b32.xlu0 %v1711, 32
  %v6679 = vpop.permute.xlu0 %6678
  %6680 = vrot.lane.b32.xlu0 %v1712, 32
  %v6681 = vpop.permute.xlu0 %6680
  %6682 = vrot.lane.b32.xlu0 %v1713, 32
  %v6683 = vpop.permute.xlu0 %6682
  %6684 = vrot.lane.b32.xlu0 %v1714, 32
  %v6685 = vpop.permute.xlu0 %6684
  %6686 = vrot.lane.b32.xlu0 %v1715, 32
  %v6687 = vpop.permute.xlu0 %6686
  %6688 = vrot.lane.b32.xlu0 %v1716, 32
  %v6689 = vpop.permute.xlu0 %6688
  %6690 = vrot.lane.b32.xlu0 %v1717, 32
  %v6691 = vpop.permute.xlu0 %6690
  %6692 = vrot.lane.b32.xlu0 %v1718, 32
  %v6693 = vpop.permute.xlu0 %6692
  %6694 = vrot.lane.b32.xlu0 %v1719, 32
  %v6695 = vpop.permute.xlu0 %6694
  %6696 = vrot.lane.b32.xlu0 %v1720, 32
  %v6697 = vpop.permute.xlu0 %6696
  %6698 = vrot.lane.b32.xlu0 %v1721, 32
  %v6699 = vpop.permute.xlu0 %6698
  %6700 = vrot.lane.b32.xlu0 %v1722, 32
  %v6701 = vpop.permute.xlu0 %6700
  %6702 = vrot.lane.b32.xlu0 %v1723, 32
  %v6703 = vpop.permute.xlu0 %6702
  %6704 = vrot.lane.b32.xlu0 %v1724, 32
  %v6705 = vpop.permute.xlu0 %6704
  %6706 = vrot.lane.b32.xlu0 %v1725, 32
  %v6707 = vpop.permute.xlu0 %6706
  %6708 = vrot.lane.b32.xlu0 %v1726, 32
  %v6709 = vpop.permute.xlu0 %6708
  %6710 = vrot.lane.b32.xlu0 %v1727, 32
  %v6711 = vpop.permute.xlu0 %6710
  %6712 = vrot.lane.b32.xlu0 %v1728, 32
  %v6713 = vpop.permute.xlu0 %6712
  %6714 = vrot.lane.b32.xlu0 %v1729, 32
  %v6715 = vpop.permute.xlu0 %6714
  %6716 = vrot.lane.b32.xlu0 %v1730, 32
  %v6717 = vpop.permute.xlu0 %6716
  %6718 = vrot.lane.b32.xlu0 %v1731, 32
  %v6719 = vpop.permute.xlu0 %6718
  %6720 = vrot.lane.b32.xlu0 %v1732, 32
  %v6721 = vpop.permute.xlu0 %6720
  %6722 = vrot.lane.b32.xlu0 %v1733, 32
  %v6723 = vpop.permute.xlu0 %6722
  %6724 = vrot.lane.b32.xlu0 %v1734, 32
  %v6725 = vpop.permute.xlu0 %6724
  %6726 = vrot.lane.b32.xlu0 %v1735, 32
  %v6727 = vpop.permute.xlu0 %6726
  %6728 = vrot.lane.b32.xlu0 %v1736, 32
  %v6729 = vpop.permute.xlu0 %6728
  %6730 = vrot.lane.b32.xlu0 %v1737, 32
  %v6731 = vpop.permute.xlu0 %6730
  %6732 = vrot.lane.b32.xlu0 %v1738, 32
  %v6733 = vpop.permute.xlu0 %6732
  %6862 = vrot.lane.b32.xlu0 %v1740, 64
  %v6863 = vpop.permute.xlu0 %6862
  %6864 = vrot.lane.b32.xlu0 %v1741, 64
  %v6865 = vpop.permute.xlu0 %6864
  %6866 = vrot.lane.b32.xlu0 %v1742, 64
  %v6867 = vpop.permute.xlu0 %6866
  %6868 = vrot.lane.b32.xlu0 %v1743, 64
  %v6869 = vpop.permute.xlu0 %6868
  %6870 = vrot.lane.b32.xlu0 %v1744, 64
  %v6871 = vpop.permute.xlu0 %6870
  %6872 = vrot.lane.b32.xlu0 %v1745, 64
  %v6873 = vpop.permute.xlu0 %6872
  %6874 = vrot.lane.b32.xlu0 %v1746, 64
  %v6875 = vpop.permute.xlu0 %6874
  %6876 = vrot.lane.b32.xlu0 %v1747, 64
  %v6877 = vpop.permute.xlu0 %6876
  %6878 = vrot.lane.b32.xlu0 %v1748, 64
  %v6879 = vpop.permute.xlu0 %6878
  %6880 = vrot.lane.b32.xlu0 %v1749, 64
  %v6881 = vpop.permute.xlu0 %6880
  %6882 = vrot.lane.b32.xlu0 %v1750, 64
  %v6883 = vpop.permute.xlu0 %6882
  %6884 = vrot.lane.b32.xlu0 %v1751, 64
  %v6885 = vpop.permute.xlu0 %6884
  %6886 = vrot.lane.b32.xlu0 %v1752, 64
  %v6887 = vpop.permute.xlu0 %6886
  %6888 = vrot.lane.b32.xlu0 %v1753, 64
  %v6889 = vpop.permute.xlu0 %6888
  %6890 = vrot.lane.b32.xlu0 %v1754, 64
  %v6891 = vpop.permute.xlu0 %6890
  %6892 = vrot.lane.b32.xlu0 %v1755, 64
  %v6893 = vpop.permute.xlu0 %6892
  %6894 = vrot.lane.b32.xlu0 %v1756, 64
  %v6895 = vpop.permute.xlu0 %6894
  %6896 = vrot.lane.b32.xlu0 %v1757, 64
  %v6897 = vpop.permute.xlu0 %6896
  %6898 = vrot.lane.b32.xlu0 %v1758, 64
  %v6899 = vpop.permute.xlu0 %6898
  %6900 = vrot.lane.b32.xlu0 %v1759, 64
  %v6901 = vpop.permute.xlu0 %6900
  %6902 = vrot.lane.b32.xlu0 %v1760, 64
  %v6903 = vpop.permute.xlu0 %6902
  %6904 = vrot.lane.b32.xlu0 %v1761, 64
  %v6905 = vpop.permute.xlu0 %6904
  %6906 = vrot.lane.b32.xlu0 %v1762, 64
  %v6907 = vpop.permute.xlu0 %6906
  %6908 = vrot.lane.b32.xlu0 %v1763, 64
  %v6909 = vpop.permute.xlu0 %6908
  %6910 = vrot.lane.b32.xlu0 %v1764, 64
  %v6911 = vpop.permute.xlu0 %6910
  %6912 = vrot.lane.b32.xlu0 %v1765, 64
  %v6913 = vpop.permute.xlu0 %6912
  %6914 = vrot.lane.b32.xlu0 %v1766, 64
  %v6915 = vpop.permute.xlu0 %6914
  %6916 = vrot.lane.b32.xlu0 %v1767, 64
  %v6917 = vpop.permute.xlu0 %6916
  %6918 = vrot.lane.b32.xlu0 %v1768, 64
  %v6919 = vpop.permute.xlu0 %6918
  %6920 = vrot.lane.b32.xlu0 %v1769, 64
  %v6921 = vpop.permute.xlu0 %6920
  %6922 = vrot.lane.b32.xlu0 %v1770, 64
  %v6923 = vpop.permute.xlu0 %6922
  %6924 = vrot.lane.b32.xlu0 %v1771, 64
  %v6925 = vpop.permute.xlu0 %6924
  %6926 = vrot.lane.b32.xlu0 %v1772, 64
  %v6927 = vpop.permute.xlu0 %6926
  %6928 = vrot.lane.b32.xlu0 %v1773, 64
  %v6929 = vpop.permute.xlu0 %6928
  %6930 = vrot.lane.b32.xlu0 %v1774, 64
  %v6931 = vpop.permute.xlu0 %6930
  %6932 = vrot.lane.b32.xlu0 %v1775, 64
  %v6933 = vpop.permute.xlu0 %6932
  %6934 = vrot.lane.b32.xlu0 %v1776, 64
  %v6935 = vpop.permute.xlu0 %6934
  %6936 = vrot.lane.b32.xlu0 %v1777, 64
  %v6937 = vpop.permute.xlu0 %6936
  %6938 = vrot.lane.b32.xlu0 %v1778, 64
  %v6939 = vpop.permute.xlu0 %6938
  %6940 = vrot.lane.b32.xlu0 %v1779, 64
  %v6941 = vpop.permute.xlu0 %6940
  %6942 = vrot.lane.b32.xlu0 %v1780, 64
  %v6943 = vpop.permute.xlu0 %6942
  %6944 = vrot.lane.b32.xlu0 %v1781, 64
  %v6945 = vpop.permute.xlu0 %6944
  %6946 = vrot.lane.b32.xlu0 %v1782, 64
  %v6947 = vpop.permute.xlu0 %6946
  %6948 = vrot.lane.b32.xlu0 %v1783, 64
  %v6949 = vpop.permute.xlu0 %6948
  %6950 = vrot.lane.b32.xlu0 %v1784, 64
  %v6951 = vpop.permute.xlu0 %6950
  %6952 = vrot.lane.b32.xlu0 %v1785, 64
  %v6953 = vpop.permute.xlu0 %6952
  %6954 = vrot.lane.b32.xlu0 %v1786, 64
  %v6955 = vpop.permute.xlu0 %6954
  %6956 = vrot.lane.b32.xlu0 %v1787, 64
  %v6957 = vpop.permute.xlu0 %6956
  %6958 = vrot.lane.b32.xlu0 %v1788, 64
  %v6959 = vpop.permute.xlu0 %6958
  %6960 = vrot.lane.b32.xlu0 %v1789, 64
  %v6961 = vpop.permute.xlu0 %6960
  %6962 = vrot.lane.b32.xlu0 %v1790, 64
  %v6963 = vpop.permute.xlu0 %6962
  %6964 = vrot.lane.b32.xlu0 %v1791, 64
  %v6965 = vpop.permute.xlu0 %6964
  %6966 = vrot.lane.b32.xlu0 %v1792, 64
  %v6967 = vpop.permute.xlu0 %6966
  %6968 = vrot.lane.b32.xlu0 %v1793, 64
  %v6969 = vpop.permute.xlu0 %6968
  %6970 = vrot.lane.b32.xlu0 %v1794, 64
  %v6971 = vpop.permute.xlu0 %6970
  %6972 = vrot.lane.b32.xlu0 %v1795, 64
  %v6973 = vpop.permute.xlu0 %6972
  %6974 = vrot.lane.b32.xlu0 %v1796, 64
  %v6975 = vpop.permute.xlu0 %6974
  %6976 = vrot.lane.b32.xlu0 %v1797, 64
  %v6977 = vpop.permute.xlu0 %6976
  %6978 = vrot.lane.b32.xlu0 %v1798, 64
  %v6979 = vpop.permute.xlu0 %6978
  %6980 = vrot.lane.b32.xlu0 %v1799, 64
  %v6981 = vpop.permute.xlu0 %6980
  %6982 = vrot.lane.b32.xlu0 %v1800, 64
  %v6983 = vpop.permute.xlu0 %6982
  %6984 = vrot.lane.b32.xlu0 %v1801, 64
  %v6985 = vpop.permute.xlu0 %6984
  %6986 = vrot.lane.b32.xlu0 %v1802, 64
  %v6987 = vpop.permute.xlu0 %6986
  %6988 = vrot.lane.b32.xlu0 %v1803, 64
  %v6989 = vpop.permute.xlu0 %6988
  %7118 = vrot.lane.b32.xlu0 %v1804, 96
  %v7119 = vpop.permute.xlu0 %7118
  %7120 = vrot.lane.b32.xlu0 %v1805, 96
  %v7121 = vpop.permute.xlu0 %7120
  %7122 = vrot.lane.b32.xlu0 %v1806, 96
  %v7123 = vpop.permute.xlu0 %7122
  %7124 = vrot.lane.b32.xlu0 %v1807, 96
  %v7125 = vpop.permute.xlu0 %7124
  %7126 = vrot.lane.b32.xlu0 %v1808, 96
  %v7127 = vpop.permute.xlu0 %7126
  %7128 = vrot.lane.b32.xlu0 %v1809, 96
  %v7129 = vpop.permute.xlu0 %7128
  %7130 = vrot.lane.b32.xlu0 %v1810, 96
  %v7131 = vpop.permute.xlu0 %7130
  %7132 = vrot.lane.b32.xlu0 %v1811, 96
  %v7133 = vpop.permute.xlu0 %7132
  %7134 = vrot.lane.b32.xlu0 %v1812, 96
  %v7135 = vpop.permute.xlu0 %7134
  %7136 = vrot.lane.b32.xlu0 %v1813, 96
  %v7137 = vpop.permute.xlu0 %7136
  %7138 = vrot.lane.b32.xlu0 %v1814, 96
  %v7139 = vpop.permute.xlu0 %7138
  %7140 = vrot.lane.b32.xlu0 %v1815, 96
  %v7141 = vpop.permute.xlu0 %7140
  %7142 = vrot.lane.b32.xlu0 %v1816, 96
  %v7143 = vpop.permute.xlu0 %7142
  %7144 = vrot.lane.b32.xlu0 %v1817, 96
  %v7145 = vpop.permute.xlu0 %7144
  %7146 = vrot.lane.b32.xlu0 %v1818, 96
  %v7147 = vpop.permute.xlu0 %7146
  %7148 = vrot.lane.b32.xlu0 %v1819, 96
  %v7149 = vpop.permute.xlu0 %7148
  %7150 = vrot.lane.b32.xlu0 %v1820, 96
  %v7151 = vpop.permute.xlu0 %7150
  %7152 = vrot.lane.b32.xlu0 %v1821, 96
  %v7153 = vpop.permute.xlu0 %7152
  %7154 = vrot.lane.b32.xlu0 %v1822, 96
  %v7155 = vpop.permute.xlu0 %7154
  %7156 = vrot.lane.b32.xlu0 %v1823, 96
  %v7157 = vpop.permute.xlu0 %7156
  %7158 = vrot.lane.b32.xlu0 %v1824, 96
  %v7159 = vpop.permute.xlu0 %7158
  %7160 = vrot.lane.b32.xlu0 %v1825, 96
  %v7161 = vpop.permute.xlu0 %7160
  %7162 = vrot.lane.b32.xlu0 %v1826, 96
  %v7163 = vpop.permute.xlu0 %7162
  %7164 = vrot.lane.b32.xlu0 %v1827, 96
  %v7165 = vpop.permute.xlu0 %7164
  %7166 = vrot.lane.b32.xlu0 %v1828, 96
  %v7167 = vpop.permute.xlu0 %7166
  %7168 = vrot.lane.b32.xlu0 %v1829, 96
  %v7169 = vpop.permute.xlu0 %7168
  %7170 = vrot.lane.b32.xlu0 %v1830, 96
  %v7171 = vpop.permute.xlu0 %7170
  %7172 = vrot.lane.b32.xlu0 %v1831, 96
  %v7173 = vpop.permute.xlu0 %7172
  %7174 = vrot.lane.b32.xlu0 %v1832, 96
  %v7175 = vpop.permute.xlu0 %7174
  %7176 = vrot.lane.b32.xlu0 %v1833, 96
  %v7177 = vpop.permute.xlu0 %7176
  %7178 = vrot.lane.b32.xlu0 %v1834, 96
  %v7179 = vpop.permute.xlu0 %7178
  %7180 = vrot.lane.b32.xlu0 %v1835, 96
  %v7181 = vpop.permute.xlu0 %7180
  %7182 = vrot.lane.b32.xlu0 %v1836, 96
  %v7183 = vpop.permute.xlu0 %7182
  %7184 = vrot.lane.b32.xlu0 %v1837, 96
  %v7185 = vpop.permute.xlu0 %7184
  %7186 = vrot.lane.b32.xlu0 %v1838, 96
  %v7187 = vpop.permute.xlu0 %7186
  %7188 = vrot.lane.b32.xlu0 %v1839, 96
  %v7189 = vpop.permute.xlu0 %7188
  %7190 = vrot.lane.b32.xlu0 %v1840, 96
  %v7191 = vpop.permute.xlu0 %7190
  %7192 = vrot.lane.b32.xlu0 %v1841, 96
  %v7193 = vpop.permute.xlu0 %7192
  %7194 = vrot.lane.b32.xlu0 %v1842, 96
  %v7195 = vpop.permute.xlu0 %7194
  %7196 = vrot.lane.b32.xlu0 %v1843, 96
  %v7197 = vpop.permute.xlu0 %7196
  %7198 = vrot.lane.b32.xlu0 %v1844, 96
  %v7199 = vpop.permute.xlu0 %7198
  %7200 = vrot.lane.b32.xlu0 %v1845, 96
  %v7201 = vpop.permute.xlu0 %7200
  %7202 = vrot.lane.b32.xlu0 %v1846, 96
  %v7203 = vpop.permute.xlu0 %7202
  %7204 = vrot.lane.b32.xlu0 %v1847, 96
  %v7205 = vpop.permute.xlu0 %7204
  %7206 = vrot.lane.b32.xlu0 %v1848, 96
  %v7207 = vpop.permute.xlu0 %7206
  %7208 = vrot.lane.b32.xlu0 %v1849, 96
  %v7209 = vpop.permute.xlu0 %7208
  %7210 = vrot.lane.b32.xlu0 %v1850, 96
  %v7211 = vpop.permute.xlu0 %7210
  %7212 = vrot.lane.b32.xlu0 %v1851, 96
  %v7213 = vpop.permute.xlu0 %7212
  %7214 = vrot.lane.b32.xlu0 %v1852, 96
  %v7215 = vpop.permute.xlu0 %7214
  %7216 = vrot.lane.b32.xlu0 %v1853, 96
  %v7217 = vpop.permute.xlu0 %7216
  %7218 = vrot.lane.b32.xlu0 %v1854, 96
  %v7219 = vpop.permute.xlu0 %7218
  %7220 = vrot.lane.b32.xlu0 %v1855, 96
  %v7221 = vpop.permute.xlu0 %7220
  %7222 = vrot.lane.b32.xlu0 %v1856, 96
  %v7223 = vpop.permute.xlu0 %7222
  %7224 = vrot.lane.b32.xlu0 %v1857, 96
  %v7225 = vpop.permute.xlu0 %7224
  %7226 = vrot.lane.b32.xlu0 %v1858, 96
  %v7227 = vpop.permute.xlu0 %7226
  %7228 = vrot.lane.b32.xlu0 %v1859, 96
  %v7229 = vpop.permute.xlu0 %7228
  %7230 = vrot.lane.b32.xlu0 %v1860, 96
  %v7231 = vpop.permute.xlu0 %7230
  %7232 = vrot.lane.b32.xlu0 %v1861, 96
  %v7233 = vpop.permute.xlu0 %7232
  %7234 = vrot.lane.b32.xlu0 %v1862, 96
  %v7235 = vpop.permute.xlu0 %7234
  %7236 = vrot.lane.b32.xlu0 %v1863, 96
  %v7237 = vpop.permute.xlu0 %7236
  %7238 = vrot.lane.b32.xlu0 %v1864, 96
  %v7239 = vpop.permute.xlu0 %7238
  %7240 = vrot.lane.b32.xlu0 %v1865, 96
  %v7241 = vpop.permute.xlu0 %7240
  %7242 = vrot.lane.b32.xlu0 %v1866, 96
  %v7243 = vpop.permute.xlu0 %7242
  %7244 = vrot.lane.b32.xlu0 %v1867, 96
  %v7245 = vpop.permute.xlu0 %7244
  %v7310 = vsel %vm20, %v1355, %v5839
  %v7311 = vsel %vm20, %v1356, %v5841
  %v7312 = vsel %vm20, %v1357, %v5843
  %v7313 = vsel %vm20, %v1358, %v5845
  %v7314 = vsel %vm20, %v1359, %v5847
  %v7315 = vsel %vm20, %v1360, %v5849
  %v7316 = vsel %vm20, %v1361, %v5851
  %v7317 = vsel %vm20, %v1362, %v5853
  %v7318 = vsel %vm20, %v1363, %v5855
  %v7319 = vsel %vm20, %v1364, %v5857
  %v7320 = vsel %vm20, %v1365, %v5859
  %v7321 = vsel %vm20, %v1366, %v5861
  %v7322 = vsel %vm20, %v1367, %v5863
  %v7323 = vsel %vm20, %v1368, %v5865
  %v7324 = vsel %vm20, %v1369, %v5867
  %v7325 = vsel %vm20, %v1370, %v5869
  %v7326 = vsel %vm20, %v1371, %v5871
  %v7327 = vsel %vm20, %v1372, %v5873
  %v7328 = vsel %vm20, %v1373, %v5875
  %v7329 = vsel %vm20, %v1374, %v5877
  %v7330 = vsel %vm20, %v1375, %v5879
  %v7331 = vsel %vm20, %v1376, %v5881
  %v7332 = vsel %vm20, %v1377, %v5883
  %v7333 = vsel %vm20, %v1378, %v5885
  %v7334 = vsel %vm20, %v1379, %v5887
  %v7335 = vsel %vm20, %v1380, %v5889
  %v7336 = vsel %vm20, %v1381, %v5891
  %v7337 = vsel %vm20, %v1382, %v5893
  %v7338 = vsel %vm20, %v1383, %v5895
  %v7339 = vsel %vm20, %v1384, %v5897
  %v7340 = vsel %vm20, %v1385, %v5899
  %v7341 = vsel %vm20, %v1386, %v5901
  %v7342 = vsel %vm20, %v1387, %v5903
  %v7343 = vsel %vm20, %v1388, %v5905
  %v7344 = vsel %vm20, %v1389, %v5907
  %v7345 = vsel %vm20, %v1390, %v5909
  %v7346 = vsel %vm20, %v1391, %v5911
  %v7347 = vsel %vm20, %v1392, %v5913
  %v7348 = vsel %vm20, %v1393, %v5915
  %v7349 = vsel %vm20, %v1394, %v5917
  %v7350 = vsel %vm20, %v1395, %v5919
  %v7351 = vsel %vm20, %v1396, %v5921
  %v7352 = vsel %vm20, %v1397, %v5923
  %v7353 = vsel %vm20, %v1398, %v5925
  %v7354 = vsel %vm20, %v1399, %v5927
  %v7355 = vsel %vm20, %v1400, %v5929
  %v7356 = vsel %vm20, %v1401, %v5931
  %v7357 = vsel %vm20, %v1402, %v5933
  %v7358 = vsel %vm20, %v1403, %v5935
  %v7359 = vsel %vm20, %v1404, %v5937
  %v7360 = vsel %vm20, %v1405, %v5939
  %v7361 = vsel %vm20, %v1406, %v5941
  %v7362 = vsel %vm20, %v1407, %v5943
  %v7363 = vsel %vm20, %v1408, %v5945
  %v7364 = vsel %vm20, %v1409, %v5947
  %v7365 = vsel %vm20, %v1410, %v5949
  %v7366 = vsel %vm20, %v1411, %v5951
  %v7367 = vsel %vm20, %v1412, %v5953
  %v7368 = vsel %vm20, %v1413, %v5955
  %v7369 = vsel %vm20, %v1414, %v5957
  %v7370 = vsel %vm20, %v1415, %v5959
  %v7371 = vsel %vm20, %v1416, %v5961
  %v7372 = vsel %vm20, %v1417, %v5963
  %v7373 = vsel %vm20, %v1418, %v5965
  %v7374 = vsel %vm5068, %v7310, %v6095
  %v7375 = vsel %vm5068, %v7311, %v6097
  %v7376 = vsel %vm5068, %v7312, %v6099
  %v7377 = vsel %vm5068, %v7313, %v6101
  %v7378 = vsel %vm5068, %v7314, %v6103
  %v7379 = vsel %vm5068, %v7315, %v6105
  %v7380 = vsel %vm5068, %v7316, %v6107
  %v7381 = vsel %vm5068, %v7317, %v6109
  %v7382 = vsel %vm5068, %v7318, %v6111
  %v7383 = vsel %vm5068, %v7319, %v6113
  %v7384 = vsel %vm5068, %v7320, %v6115
  %v7385 = vsel %vm5068, %v7321, %v6117
  %v7386 = vsel %vm5068, %v7322, %v6119
  %v7387 = vsel %vm5068, %v7323, %v6121
  %v7388 = vsel %vm5068, %v7324, %v6123
  %v7389 = vsel %vm5068, %v7325, %v6125
  %v7390 = vsel %vm5068, %v7326, %v6127
  %v7391 = vsel %vm5068, %v7327, %v6129
  %v7392 = vsel %vm5068, %v7328, %v6131
  %v7393 = vsel %vm5068, %v7329, %v6133
  %v7394 = vsel %vm5068, %v7330, %v6135
  %v7395 = vsel %vm5068, %v7331, %v6137
  %v7396 = vsel %vm5068, %v7332, %v6139
  %v7397 = vsel %vm5068, %v7333, %v6141
  %v7398 = vsel %vm5068, %v7334, %v6143
  %v7399 = vsel %vm5068, %v7335, %v6145
  %v7400 = vsel %vm5068, %v7336, %v6147
  %v7401 = vsel %vm5068, %v7337, %v6149
  %v7402 = vsel %vm5068, %v7338, %v6151
  %v7403 = vsel %vm5068, %v7339, %v6153
  %v7404 = vsel %vm5068, %v7340, %v6155
  %v7405 = vsel %vm5068, %v7341, %v6157
  %v7406 = vsel %vm5068, %v7342, %v6159
  %v7407 = vsel %vm5068, %v7343, %v6161
  %v7408 = vsel %vm5068, %v7344, %v6163
  %v7409 = vsel %vm5068, %v7345, %v6165
  %v7410 = vsel %vm5068, %v7346, %v6167
  %v7411 = vsel %vm5068, %v7347, %v6169
  %v7412 = vsel %vm5068, %v7348, %v6171
  %v7413 = vsel %vm5068, %v7349, %v6173
  %v7414 = vsel %vm5068, %v7350, %v6175
  %v7415 = vsel %vm5068, %v7351, %v6177
  %v7416 = vsel %vm5068, %v7352, %v6179
  %v7417 = vsel %vm5068, %v7353, %v6181
  %v7418 = vsel %vm5068, %v7354, %v6183
  %v7419 = vsel %vm5068, %v7355, %v6185
  %v7420 = vsel %vm5068, %v7356, %v6187
  %v7421 = vsel %vm5068, %v7357, %v6189
  %v7422 = vsel %vm5068, %v7358, %v6191
  %v7423 = vsel %vm5068, %v7359, %v6193
  %v7424 = vsel %vm5068, %v7360, %v6195
  %v7425 = vsel %vm5068, %v7361, %v6197
  %v7426 = vsel %vm5068, %v7362, %v6199
  %v7427 = vsel %vm5068, %v7363, %v6201
  %v7428 = vsel %vm5068, %v7364, %v6203
  %v7429 = vsel %vm5068, %v7365, %v6205
  %v7430 = vsel %vm5068, %v7366, %v6207
  %v7431 = vsel %vm5068, %v7367, %v6209
  %v7432 = vsel %vm5068, %v7368, %v6211
  %v7433 = vsel %vm5068, %v7369, %v6213
  %v7434 = vsel %vm5068, %v7370, %v6215
  %v7435 = vsel %vm5068, %v7371, %v6217
  %v7436 = vsel %vm5068, %v7372, %v6219
  %v7437 = vsel %vm5068, %v7373, %v6221
  %v7438 = vsel %vm5133, %v7374, %v6351
  %v7439 = vsel %vm5133, %v7375, %v6353
  %v7440 = vsel %vm5133, %v7376, %v6355
  %v7441 = vsel %vm5133, %v7377, %v6357
  %v7442 = vsel %vm5133, %v7378, %v6359
  %v7443 = vsel %vm5133, %v7379, %v6361
  %v7444 = vsel %vm5133, %v7380, %v6363
  %v7445 = vsel %vm5133, %v7381, %v6365
  %v7446 = vsel %vm5133, %v7382, %v6367
  %v7447 = vsel %vm5133, %v7383, %v6369
  %v7448 = vsel %vm5133, %v7384, %v6371
  %v7449 = vsel %vm5133, %v7385, %v6373
  %v7450 = vsel %vm5133, %v7386, %v6375
  %v7451 = vsel %vm5133, %v7387, %v6377
  %v7452 = vsel %vm5133, %v7388, %v6379
  %v7453 = vsel %vm5133, %v7389, %v6381
  %v7454 = vsel %vm5133, %v7390, %v6383
  %v7455 = vsel %vm5133, %v7391, %v6385
  %v7456 = vsel %vm5133, %v7392, %v6387
  %v7457 = vsel %vm5133, %v7393, %v6389
  %v7458 = vsel %vm5133, %v7394, %v6391
  %v7459 = vsel %vm5133, %v7395, %v6393
  %v7460 = vsel %vm5133, %v7396, %v6395
  %v7461 = vsel %vm5133, %v7397, %v6397
  %v7462 = vsel %vm5133, %v7398, %v6399
  %v7463 = vsel %vm5133, %v7399, %v6401
  %v7464 = vsel %vm5133, %v7400, %v6403
  %v7465 = vsel %vm5133, %v7401, %v6405
  %v7466 = vsel %vm5133, %v7402, %v6407
  %v7467 = vsel %vm5133, %v7403, %v6409
  %v7468 = vsel %vm5133, %v7404, %v6411
  %v7469 = vsel %vm5133, %v7405, %v6413
  %v7470 = vsel %vm5133, %v7406, %v6415
  %v7471 = vsel %vm5133, %v7407, %v6417
  %v7472 = vsel %vm5133, %v7408, %v6419
  %v7473 = vsel %vm5133, %v7409, %v6421
  %v7474 = vsel %vm5133, %v7410, %v6423
  %v7475 = vsel %vm5133, %v7411, %v6425
  %v7476 = vsel %vm5133, %v7412, %v6427
  %v7477 = vsel %vm5133, %v7413, %v6429
  %v7478 = vsel %vm5133, %v7414, %v6431
  %v7479 = vsel %vm5133, %v7415, %v6433
  %v7480 = vsel %vm5133, %v7416, %v6435
  %v7481 = vsel %vm5133, %v7417, %v6437
  %v7482 = vsel %vm5133, %v7418, %v6439
  %v7483 = vsel %vm5133, %v7419, %v6441
  %v7484 = vsel %vm5133, %v7420, %v6443
  %v7485 = vsel %vm5133, %v7421, %v6445
  %v7486 = vsel %vm5133, %v7422, %v6447
  %v7487 = vsel %vm5133, %v7423, %v6449
  %v7488 = vsel %vm5133, %v7424, %v6451
  %v7489 = vsel %vm5133, %v7425, %v6453
  %v7490 = vsel %vm5133, %v7426, %v6455
  %v7491 = vsel %vm5133, %v7427, %v6457
  %v7492 = vsel %vm5133, %v7428, %v6459
  %v7493 = vsel %vm5133, %v7429, %v6461
  %v7494 = vsel %vm5133, %v7430, %v6463
  %v7495 = vsel %vm5133, %v7431, %v6465
  %v7496 = vsel %vm5133, %v7432, %v6467
  %v7497 = vsel %vm5133, %v7433, %v6469
  %v7498 = vsel %vm5133, %v7434, %v6471
  %v7499 = vsel %vm5133, %v7435, %v6473
  %v7500 = vsel %vm5133, %v7436, %v6475
  %v7501 = vsel %vm5133, %v7437, %v6477
  %v7502 = vsel %vm20, %v1611, %v6607
  %v7503 = vsel %vm20, %v1612, %v6609
  %v7504 = vsel %vm20, %v1613, %v6611
  %v7505 = vsel %vm20, %v1614, %v6613
  %v7506 = vsel %vm20, %v1615, %v6615
  %v7507 = vsel %vm20, %v1616, %v6617
  %v7508 = vsel %vm20, %v1617, %v6619
  %v7509 = vsel %vm20, %v1618, %v6621
  %v7510 = vsel %vm20, %v1619, %v6623
  %v7511 = vsel %vm20, %v1620, %v6625
  %v7512 = vsel %vm20, %v1621, %v6627
  %v7513 = vsel %vm20, %v1622, %v6629
  %v7514 = vsel %vm20, %v1623, %v6631
  %v7515 = vsel %vm20, %v1624, %v6633
  %v7516 = vsel %vm20, %v1625, %v6635
  %v7517 = vsel %vm20, %v1626, %v6637
  %v7518 = vsel %vm20, %v1627, %v6639
  %v7519 = vsel %vm20, %v1628, %v6641
  %v7520 = vsel %vm20, %v1629, %v6643
  %v7521 = vsel %vm20, %v1630, %v6645
  %v7522 = vsel %vm20, %v1631, %v6647
  %v7523 = vsel %vm20, %v1632, %v6649
  %v7524 = vsel %vm20, %v1633, %v6651
  %v7525 = vsel %vm20, %v1634, %v6653
  %v7526 = vsel %vm20, %v1635, %v6655
  %v7527 = vsel %vm20, %v1636, %v6657
  %v7528 = vsel %vm20, %v1637, %v6659
  %v7529 = vsel %vm20, %v1638, %v6661
  %v7530 = vsel %vm20, %v1639, %v6663
  %v7531 = vsel %vm20, %v1640, %v6665
  %v7532 = vsel %vm20, %v1641, %v6667
  %v7533 = vsel %vm20, %v1642, %v6669
  %v7534 = vsel %vm20, %v1643, %v6671
  %v7535 = vsel %vm20, %v1644, %v6673
  %v7536 = vsel %vm20, %v1645, %v6675
  %v7537 = vsel %vm20, %v1646, %v6677
  %v7538 = vsel %vm20, %v1647, %v6679
  %v7539 = vsel %vm20, %v1648, %v6681
  %v7540 = vsel %vm20, %v1649, %v6683
  %v7541 = vsel %vm20, %v1650, %v6685
  %v7542 = vsel %vm20, %v1651, %v6687
  %v7543 = vsel %vm20, %v1652, %v6689
  %v7544 = vsel %vm20, %v1653, %v6691
  %v7545 = vsel %vm20, %v1654, %v6693
  %v7546 = vsel %vm20, %v1655, %v6695
  %v7547 = vsel %vm20, %v1656, %v6697
  %v7548 = vsel %vm20, %v1657, %v6699
  %v7549 = vsel %vm20, %v1658, %v6701
  %v7550 = vsel %vm20, %v1659, %v6703
  %v7551 = vsel %vm20, %v1660, %v6705
  %v7552 = vsel %vm20, %v1661, %v6707
  %v7553 = vsel %vm20, %v1662, %v6709
  %v7554 = vsel %vm20, %v1663, %v6711
  %v7555 = vsel %vm20, %v1664, %v6713
  %v7556 = vsel %vm20, %v1665, %v6715
  %v7557 = vsel %vm20, %v1666, %v6717
  %v7558 = vsel %vm20, %v1667, %v6719
  %v7559 = vsel %vm20, %v1668, %v6721
  %v7560 = vsel %vm20, %v1669, %v6723
  %v7561 = vsel %vm20, %v1670, %v6725
  %v7562 = vsel %vm20, %v1671, %v6727
  %v7563 = vsel %vm20, %v1672, %v6729
  %v7564 = vsel %vm20, %v1673, %v6731
  %v7565 = vsel %vm20, %v1674, %v6733
  %v7566 = vsel %vm5068, %v7502, %v6863
  %v7567 = vsel %vm5068, %v7503, %v6865
  %v7568 = vsel %vm5068, %v7504, %v6867
  %v7569 = vsel %vm5068, %v7505, %v6869
  %v7570 = vsel %vm5068, %v7506, %v6871
  %v7571 = vsel %vm5068, %v7507, %v6873
  %v7572 = vsel %vm5068, %v7508, %v6875
  %v7573 = vsel %vm5068, %v7509, %v6877
  %v7574 = vsel %vm5068, %v7510, %v6879
  %v7575 = vsel %vm5068, %v7511, %v6881
  %v7576 = vsel %vm5068, %v7512, %v6883
  %v7577 = vsel %vm5068, %v7513, %v6885
  %v7578 = vsel %vm5068, %v7514, %v6887
  %v7579 = vsel %vm5068, %v7515, %v6889
  %v7580 = vsel %vm5068, %v7516, %v6891
  %v7581 = vsel %vm5068, %v7517, %v6893
  %v7582 = vsel %vm5068, %v7518, %v6895
  %v7583 = vsel %vm5068, %v7519, %v6897
  %v7584 = vsel %vm5068, %v7520, %v6899
  %v7585 = vsel %vm5068, %v7521, %v6901
  %v7586 = vsel %vm5068, %v7522, %v6903
  %v7587 = vsel %vm5068, %v7523, %v6905
  %v7588 = vsel %vm5068, %v7524, %v6907
  %v7589 = vsel %vm5068, %v7525, %v6909
  %v7590 = vsel %vm5068, %v7526, %v6911
  %v7591 = vsel %vm5068, %v7527, %v6913
  %v7592 = vsel %vm5068, %v7528, %v6915
  %v7593 = vsel %vm5068, %v7529, %v6917
  %v7594 = vsel %vm5068, %v7530, %v6919
  %v7595 = vsel %vm5068, %v7531, %v6921
  %v7596 = vsel %vm5068, %v7532, %v6923
  %v7597 = vsel %vm5068, %v7533, %v6925
  %v7598 = vsel %vm5068, %v7534, %v6927
  %v7599 = vsel %vm5068, %v7535, %v6929
  %v7600 = vsel %vm5068, %v7536, %v6931
  %v7601 = vsel %vm5068, %v7537, %v6933
  %v7602 = vsel %vm5068, %v7538, %v6935
  %v7603 = vsel %vm5068, %v7539, %v6937
  %v7604 = vsel %vm5068, %v7540, %v6939
  %v7605 = vsel %vm5068, %v7541, %v6941
  %v7606 = vsel %vm5068, %v7542, %v6943
  %v7607 = vsel %vm5068, %v7543, %v6945
  %v7608 = vsel %vm5068, %v7544, %v6947
  %v7609 = vsel %vm5068, %v7545, %v6949
  %v7610 = vsel %vm5068, %v7546, %v6951
  %v7611 = vsel %vm5068, %v7547, %v6953
  %v7612 = vsel %vm5068, %v7548, %v6955
  %v7613 = vsel %vm5068, %v7549, %v6957
  %v7614 = vsel %vm5068, %v7550, %v6959
  %v7615 = vsel %vm5068, %v7551, %v6961
  %v7616 = vsel %vm5068, %v7552, %v6963
  %v7617 = vsel %vm5068, %v7553, %v6965
  %v7618 = vsel %vm5068, %v7554, %v6967
  %v7619 = vsel %vm5068, %v7555, %v6969
  %v7620 = vsel %vm5068, %v7556, %v6971
  %v7621 = vsel %vm5068, %v7557, %v6973
  %v7622 = vsel %vm5068, %v7558, %v6975
  %v7623 = vsel %vm5068, %v7559, %v6977
  %v7624 = vsel %vm5068, %v7560, %v6979
  %v7625 = vsel %vm5068, %v7561, %v6981
  %v7626 = vsel %vm5068, %v7562, %v6983
  %v7627 = vsel %vm5068, %v7563, %v6985
  %v7628 = vsel %vm5068, %v7564, %v6987
  %v7629 = vsel %vm5068, %v7565, %v6989
  %v7630 = vsel %vm5133, %v7566, %v7119
  %v7631 = vsel %vm5133, %v7567, %v7121
  %v7632 = vsel %vm5133, %v7568, %v7123
  %v7633 = vsel %vm5133, %v7569, %v7125
  %v7634 = vsel %vm5133, %v7570, %v7127
  %v7635 = vsel %vm5133, %v7571, %v7129
  %v7636 = vsel %vm5133, %v7572, %v7131
  %v7637 = vsel %vm5133, %v7573, %v7133
  %v7638 = vsel %vm5133, %v7574, %v7135
  %v7639 = vsel %vm5133, %v7575, %v7137
  %v7640 = vsel %vm5133, %v7576, %v7139
  %v7641 = vsel %vm5133, %v7577, %v7141
  %v7642 = vsel %vm5133, %v7578, %v7143
  %v7643 = vsel %vm5133, %v7579, %v7145
  %v7644 = vsel %vm5133, %v7580, %v7147
  %v7645 = vsel %vm5133, %v7581, %v7149
  %v7646 = vsel %vm5133, %v7582, %v7151
  %v7647 = vsel %vm5133, %v7583, %v7153
  %v7648 = vsel %vm5133, %v7584, %v7155
  %v7649 = vsel %vm5133, %v7585, %v7157
  %v7650 = vsel %vm5133, %v7586, %v7159
  %v7651 = vsel %vm5133, %v7587, %v7161
  %v7652 = vsel %vm5133, %v7588, %v7163
  %v7653 = vsel %vm5133, %v7589, %v7165
  %v7654 = vsel %vm5133, %v7590, %v7167
  %v7655 = vsel %vm5133, %v7591, %v7169
  %v7656 = vsel %vm5133, %v7592, %v7171
  %v7657 = vsel %vm5133, %v7593, %v7173
  %v7658 = vsel %vm5133, %v7594, %v7175
  %v7659 = vsel %vm5133, %v7595, %v7177
  %v7660 = vsel %vm5133, %v7596, %v7179
  %v7661 = vsel %vm5133, %v7597, %v7181
  %v7662 = vsel %vm5133, %v7598, %v7183
  %v7663 = vsel %vm5133, %v7599, %v7185
  %v7664 = vsel %vm5133, %v7600, %v7187
  %v7665 = vsel %vm5133, %v7601, %v7189
  %v7666 = vsel %vm5133, %v7602, %v7191
  %v7667 = vsel %vm5133, %v7603, %v7193
  %v7668 = vsel %vm5133, %v7604, %v7195
  %v7669 = vsel %vm5133, %v7605, %v7197
  %v7670 = vsel %vm5133, %v7606, %v7199
  %v7671 = vsel %vm5133, %v7607, %v7201
  %v7672 = vsel %vm5133, %v7608, %v7203
  %v7673 = vsel %vm5133, %v7609, %v7205
  %v7674 = vsel %vm5133, %v7610, %v7207
  %v7675 = vsel %vm5133, %v7611, %v7209
  %v7676 = vsel %vm5133, %v7612, %v7211
  %v7677 = vsel %vm5133, %v7613, %v7213
  %v7678 = vsel %vm5133, %v7614, %v7215
  %v7679 = vsel %vm5133, %v7615, %v7217
  %v7680 = vsel %vm5133, %v7616, %v7219
  %v7681 = vsel %vm5133, %v7617, %v7221
  %v7682 = vsel %vm5133, %v7618, %v7223
  %v7683 = vsel %vm5133, %v7619, %v7225
  %v7684 = vsel %vm5133, %v7620, %v7227
  %v7685 = vsel %vm5133, %v7621, %v7229
  %v7686 = vsel %vm5133, %v7622, %v7231
  %v7687 = vsel %vm5133, %v7623, %v7233
  %v7688 = vsel %vm5133, %v7624, %v7235
  %v7689 = vsel %vm5133, %v7625, %v7237
  %v7690 = vsel %vm5133, %v7626, %v7239
  %v7691 = vsel %vm5133, %v7627, %v7241
  %v7692 = vsel %vm5133, %v7628, %v7243
  %v7693 = vsel %vm5133, %v7629, %v7245
  %v7694 = vld [vmem:[%s1] sm:$0xff]
  %v7695 = vld [vmem:[%s1 + $0x8] sm:$0xff]
  %v7696 = vld [vmem:[%s1 + $0x10] sm:$0xff]
  %v7697 = vld [vmem:[%s1 + $0x18] sm:$0xff]
  %v7698 = vld [vmem:[%s1 + $0x20] sm:$0xff]
  %v7699 = vld [vmem:[%s1 + $0x28] sm:$0xff]
  %v7700 = vld [vmem:[%s1 + $0x30] sm:$0xff]
  %v7701 = vld [vmem:[%s1 + $0x38] sm:$0xff]
  %v7702 = vld [vmem:[%s1 + $0x40] sm:$0xff]
  %v7703 = vld [vmem:[%s1 + $0x48] sm:$0xff]
  %v7704 = vld [vmem:[%s1 + $0x50] sm:$0xff]
  %v7705 = vld [vmem:[%s1 + $0x58] sm:$0xff]
  %v7706 = vld [vmem:[%s1 + $0x60] sm:$0xff]
  %v7707 = vld [vmem:[%s1 + $0x68] sm:$0xff]
  %v7708 = vld [vmem:[%s1 + $0x70] sm:$0xff]
  %v7709 = vld [vmem:[%s1 + $0x78] sm:$0xff]
  %v7710 = vld [vmem:[%s1 + $0x80] sm:$0xff]
  %v7711 = vld [vmem:[%s1 + $0x88] sm:$0xff]
  %v7712 = vld [vmem:[%s1 + $0x90] sm:$0xff]
  %v7713 = vld [vmem:[%s1 + $0x98] sm:$0xff]
  %v7714 = vld [vmem:[%s1 + $0xa0] sm:$0xff]
  %v7715 = vld [vmem:[%s1 + $0xa8] sm:$0xff]
  %v7716 = vld [vmem:[%s1 + $0xb0] sm:$0xff]
  %v7717 = vld [vmem:[%s1 + $0xb8] sm:$0xff]
  %v7718 = vld [vmem:[%s1 + $0xc0] sm:$0xff]
  %v7719 = vld [vmem:[%s1 + $0xc8] sm:$0xff]
  %v7720 = vld [vmem:[%s1 + $0xd0] sm:$0xff]
  %v7721 = vld [vmem:[%s1 + $0xd8] sm:$0xff]
  %v7722 = vld [vmem:[%s1 + $0xe0] sm:$0xff]
  %v7723 = vld [vmem:[%s1 + $0xe8] sm:$0xff]
  %v7724 = vld [vmem:[%s1 + $0xf0] sm:$0xff]
  %v7725 = vld [vmem:[%s1 + $0xf8] sm:$0xff]
  %v7726 = vld [vmem:[%s1 + $0x100] sm:$0xff]
  %v7727 = vld [vmem:[%s1 + $0x108] sm:$0xff]
  %v7728 = vld [vmem:[%s1 + $0x110] sm:$0xff]
  %v7729 = vld [vmem:[%s1 + $0x118] sm:$0xff]
  %v7730 = vld [vmem:[%s1 + $0x120] sm:$0xff]
  %v7731 = vld [vmem:[%s1 + $0x128] sm:$0xff]
  %v7732 = vld [vmem:[%s1 + $0x130] sm:$0xff]
  %v7733 = vld [vmem:[%s1 + $0x138] sm:$0xff]
  %v7734 = vld [vmem:[%s1 + $0x140] sm:$0xff]
  %v7735 = vld [vmem:[%s1 + $0x148] sm:$0xff]
  %v7736 = vld [vmem:[%s1 + $0x150] sm:$0xff]
  %v7737 = vld [vmem:[%s1 + $0x158] sm:$0xff]
  %v7738 = vld [vmem:[%s1 + $0x160] sm:$0xff]
  %v7739 = vld [vmem:[%s1 + $0x168] sm:$0xff]
  %v7740 = vld [vmem:[%s1 + $0x170] sm:$0xff]
  %v7741 = vld [vmem:[%s1 + $0x178] sm:$0xff]
  %v7742 = vld [vmem:[%s1 + $0x180] sm:$0xff]
  %v7743 = vld [vmem:[%s1 + $0x188] sm:$0xff]
  %v7744 = vld [vmem:[%s1 + $0x190] sm:$0xff]
  %v7745 = vld [vmem:[%s1 + $0x198] sm:$0xff]
  %v7746 = vld [vmem:[%s1 + $0x1a0] sm:$0xff]
  %v7747 = vld [vmem:[%s1 + $0x1a8] sm:$0xff]
  %v7748 = vld [vmem:[%s1 + $0x1b0] sm:$0xff]
  %v7749 = vld [vmem:[%s1 + $0x1b8] sm:$0xff]
  %v7750 = vld [vmem:[%s1 + $0x1c0] sm:$0xff]
  %v7751 = vld [vmem:[%s1 + $0x1c8] sm:$0xff]
  %v7752 = vld [vmem:[%s1 + $0x1d0] sm:$0xff]
  %v7753 = vld [vmem:[%s1 + $0x1d8] sm:$0xff]
  %v7754 = vld [vmem:[%s1 + $0x1e0] sm:$0xff]
  %v7755 = vld [vmem:[%s1 + $0x1e8] sm:$0xff]
  %v7756 = vld [vmem:[%s1 + $0x1f0] sm:$0xff]
  %v7757 = vld [vmem:[%s1 + $0x1f8] sm:$0xff]
  %v7758 = vld [vmem:[%s1 + $0x200] sm:$0xff]
  %v7759 = vld [vmem:[%s1 + $0x208] sm:$0xff]
  %v7760 = vld [vmem:[%s1 + $0x210] sm:$0xff]
  %v7761 = vld [vmem:[%s1 + $0x218] sm:$0xff]
  %v7762 = vld [vmem:[%s1 + $0x220] sm:$0xff]
  %v7763 = vld [vmem:[%s1 + $0x228] sm:$0xff]
  %v7764 = vld [vmem:[%s1 + $0x230] sm:$0xff]
  %v7765 = vld [vmem:[%s1 + $0x238] sm:$0xff]
  %v7766 = vld [vmem:[%s1 + $0x240] sm:$0xff]
  %v7767 = vld [vmem:[%s1 + $0x248] sm:$0xff]
  %v7768 = vld [vmem:[%s1 + $0x250] sm:$0xff]
  %v7769 = vld [vmem:[%s1 + $0x258] sm:$0xff]
  %v7770 = vld [vmem:[%s1 + $0x260] sm:$0xff]
  %v7771 = vld [vmem:[%s1 + $0x268] sm:$0xff]
  %v7772 = vld [vmem:[%s1 + $0x270] sm:$0xff]
  %v7773 = vld [vmem:[%s1 + $0x278] sm:$0xff]
  %v7774 = vld [vmem:[%s1 + $0x280] sm:$0xff]
  %v7775 = vld [vmem:[%s1 + $0x288] sm:$0xff]
  %v7776 = vld [vmem:[%s1 + $0x290] sm:$0xff]
  %v7777 = vld [vmem:[%s1 + $0x298] sm:$0xff]
  %v7778 = vld [vmem:[%s1 + $0x2a0] sm:$0xff]
  %v7779 = vld [vmem:[%s1 + $0x2a8] sm:$0xff]
  %v7780 = vld [vmem:[%s1 + $0x2b0] sm:$0xff]
  %v7781 = vld [vmem:[%s1 + $0x2b8] sm:$0xff]
  %v7782 = vld [vmem:[%s1 + $0x2c0] sm:$0xff]
  %v7783 = vld [vmem:[%s1 + $0x2c8] sm:$0xff]
  %v7784 = vld [vmem:[%s1 + $0x2d0] sm:$0xff]
  %v7785 = vld [vmem:[%s1 + $0x2d8] sm:$0xff]
  %v7786 = vld [vmem:[%s1 + $0x2e0] sm:$0xff]
  %v7787 = vld [vmem:[%s1 + $0x2e8] sm:$0xff]
  %v7788 = vld [vmem:[%s1 + $0x2f0] sm:$0xff]
  %v7789 = vld [vmem:[%s1 + $0x2f8] sm:$0xff]
  %v7790 = vld [vmem:[%s1 + $0x300] sm:$0xff]
  %v7791 = vld [vmem:[%s1 + $0x308] sm:$0xff]
  %v7792 = vld [vmem:[%s1 + $0x310] sm:$0xff]
  %v7793 = vld [vmem:[%s1 + $0x318] sm:$0xff]
  %v7795 = vsel %vm20, %v1868, 0
  %v7798 = vsel %vm20, %v1869, 0
  %v7801 = vsel %vm20, %v1870, 0
  %v7804 = vsel %vm20, %v1871, 0
  %v7807 = vsel %vm20, %v1872, 0
  %v7810 = vsel %vm20, %v1873, 0
  %v7813 = vsel %vm20, %v1874, 0
  %v7816 = vsel %vm20, %v1875, 0
  %v7819 = vsel %vm20, %v1876, 0
  %v7822 = vsel %vm20, %v1877, 0
  %v7825 = vsel %vm20, %v1878, 0
  %v7828 = vsel %vm20, %v1879, 0
  %v7831 = vsel %vm20, %v1880, 0
  %v7834 = vsel %vm20, %v1881, 0
  %v7837 = vsel %vm20, %v1882, 0
  %v7840 = vsel %vm20, %v1883, 0
  %v7843 = vsel %vm20, %v1884, 0
  %v7846 = vsel %vm20, %v1885, 0
  %v7849 = vsel %vm20, %v1886, 0
  %v7852 = vsel %vm20, %v1887, 0
  %v7855 = vsel %vm20, %v1888, 0
  %v7858 = vsel %vm20, %v1889, 0
  %v7861 = vsel %vm20, %v1890, 0
  %v7864 = vsel %vm20, %v1891, 0
  %v7867 = vsel %vm20, %v1892, 0
  %v7870 = vsel %vm20, %v1893, 0
  %v7873 = vsel %vm20, %v1894, 0
  %v7876 = vsel %vm20, %v1895, 0
  %v7879 = vsel %vm20, %v1896, 0
  %v7882 = vsel %vm20, %v1897, 0
  %v7885 = vsel %vm20, %v1898, 0
  %v7888 = vsel %vm20, %v1899, 0
  %v7891 = vsel %vm20, %v1900, 0
  %v7894 = vsel %vm20, %v1901, 0
  %v7897 = vsel %vm20, %v1902, 0
  %v7900 = vsel %vm20, %v1903, 0
  %v7903 = vsel %vm20, %v1904, 0
  %v7906 = vsel %vm20, %v1905, 0
  %v7909 = vsel %vm20, %v1906, 0
  %v7912 = vsel %vm20, %v1907, 0
  %v7915 = vsel %vm20, %v1908, 0
  %v7918 = vsel %vm20, %v1909, 0
  %v7921 = vsel %vm20, %v1910, 0
  %v7924 = vsel %vm20, %v1911, 0
  %v7927 = vsel %vm20, %v1912, 0
  %v7930 = vsel %vm20, %v1913, 0
  %v7933 = vsel %vm20, %v1914, 0
  %v7936 = vsel %vm20, %v1915, 0
  %v7939 = vsel %vm20, %v1916, 0
  %v7942 = vsel %vm20, %v1917, 0
  %v7945 = vsel %vm20, %v1918, 0
  %v7948 = vsel %vm20, %v1919, 0
  %v7951 = vsel %vm20, %v1920, 0
  %v7954 = vsel %vm20, %v1921, 0
  %v7957 = vsel %vm20, %v1922, 0
  %v7960 = vsel %vm20, %v1923, 0
  %v7963 = vsel %vm20, %v1924, 0
  %v7966 = vsel %vm20, %v1925, 0
  %v7969 = vsel %vm20, %v1926, 0
  %v7972 = vsel %vm20, %v1927, 0
  %v7975 = vsel %vm20, %v1928, 0
  %v7978 = vsel %vm20, %v1929, 0
  %v7981 = vsel %vm20, %v1930, 0
  %v7984 = vsel %vm20, %v1931, 0
  %7986 = vmatprep.subr.mxu0 0.0
  %7987 = vmatpush1.msra.mxu0 %v7694
  %7988 = vmatprep.subr.mxu0 0.0
  %7989 = vmatpush1.msra.mxu0 %v7695
  %7990 = vmatprep.subr.mxu0 0.0
  %7991 = vmatpush1.msra.mxu0 %v7696
  %7992 = vmatprep.subr.mxu0 0.0
  %7993 = vmatpush1.msra.mxu0 %v7697
  %7994 = vmatprep.subr.mxu0 0.0
  %7995 = vmatpush1.msra.mxu0 %v7698
  %7996 = vmatprep.subr.mxu0 0.0
  %7997 = vmatpush1.msra.mxu0 %v7699
  %7998 = vmatprep.subr.mxu0 0.0
  %7999 = vmatpush1.msra.mxu0 %v7700
  %8000 = vmatprep.subr.mxu0 0.0
  %8001 = vmatpush1.msra.mxu0 %v7701
  %8002 = vmatprep.subr.mxu0 0.0
  %8003 = vmatpush1.msra.mxu0 %v7702
  %8004 = vmatprep.subr.mxu0 0.0
  %8005 = vmatpush1.msra.mxu0 %v7703
  %8006 = vmatprep.subr.mxu0 0.0
  %8007 = vmatpush1.msra.mxu0 %v7704
  %8008 = vmatprep.subr.mxu0 0.0
  %8009 = vmatpush1.msra.mxu0 %v7705
  %8010 = vmatprep.subr.mxu0 0.0
  %8011 = vmatpush1.msra.mxu0 %v7706
  %8012 = vmatprep.subr.mxu0 0.0
  %8013 = vmatpush1.msra.mxu0 %v7707
  %8014 = vmatprep.subr.mxu0 0.0
  %8015 = vmatpush1.msra.mxu0 %v7708
  %8016 = vmatprep.subr.mxu0 0.0
  %8017 = vmatpush1.msra.mxu0 %v7709
  %8018 = vmatprep.subr.mxu0 0.0
  %8019 = vmatpush1.msra.mxu0 %v7710
  %8020 = vmatprep.subr.mxu0 0.0
  %8021 = vmatpush1.msra.mxu0 %v7711
  %8022 = vmatprep.subr.mxu0 0.0
  %8023 = vmatpush1.msra.mxu0 %v7712
  %8024 = vmatprep.subr.mxu0 0.0
  %8025 = vmatpush1.msra.mxu0 %v7713
  %8026 = vmatprep.subr.mxu0 0.0
  %8027 = vmatpush1.msra.mxu0 %v7714
  %8028 = vmatprep.subr.mxu0 0.0
  %8029 = vmatpush1.msra.mxu0 %v7715
  %8030 = vmatprep.subr.mxu0 0.0
  %8031 = vmatpush1.msra.mxu0 %v7716
  %8032 = vmatprep.subr.mxu0 0.0
  %8033 = vmatpush1.msra.mxu0 %v7717
  %8034 = vmatprep.subr.mxu0 0.0
  %8035 = vmatpush1.msra.mxu0 %v7718
  %8036 = vmatprep.subr.mxu0 0.0
  %8037 = vmatpush1.msra.mxu0 %v7719
  %8038 = vmatprep.subr.mxu0 0.0
  %8039 = vmatpush1.msra.mxu0 %v7720
  %8040 = vmatprep.subr.mxu0 0.0
  %8041 = vmatpush1.msra.mxu0 %v7721
  %8042 = vmatprep.subr.mxu0 0.0
  %8043 = vmatpush1.msra.mxu0 %v7722
  %8044 = vmatprep.subr.mxu0 0.0
  %8045 = vmatpush1.msra.mxu0 %v7723
  %8046 = vmatprep.subr.mxu0 0.0
  %8047 = vmatpush1.msra.mxu0 %v7724
  %8048 = vmatprep.subr.mxu0 0.0
  %8049 = vmatpush1.msra.mxu0 %v7725
  %8050 = vmatprep.mubr.f32.mxu0 %v5326
  %8051 = vmatmul.mubr.f32.gmra.mrb[0].mxu0 %v5134
  %v8052 = vpop.f32.mrb[0].mxu0
  %v8053 = vadd.f32 0.0, %v8052
  %v8054 = vpop.f32.mrb[0].mxu0
  %8055 = vmatprep.mubr.f32.mxu0 %v5327
  %8056 = vmatmul.mubr.f32.gmra.mrb[0].mxu0 %v5135
  %v8057 = vpop.f32.mrb[0].mxu0
  %v8058 = vadd.f32 0.0, %v8057
  %v8059 = vpop.f32.mrb[0].mxu0
  %8060 = vmatprep.mubr.f32.mxu0 %v5328
  %8061 = vmatmul.mubr.f32.gmra.mrb[0].mxu0 %v5136
  %v8062 = vpop.f32.mrb[0].mxu0
  %v8063 = vadd.f32 0.0, %v8062
  %v8064 = vpop.f32.mrb[0].mxu0
  %8065 = vmatprep.mubr.f32.mxu0 %v5329
  %8066 = vmatmul.mubr.f32.gmra.mrb[0].mxu0 %v5137
  %v8067 = vpop.f32.mrb[0].mxu0
  %v8068 = vadd.f32 0.0, %v8067
  %v8069 = vpop.f32.mrb[0].mxu0
  %8070 = vmatprep.mubr.f32.mxu0 %v5330
  %8071 = vmatmul.mubr.f32.gmra.mrb[0].mxu0 %v5138
  %v8072 = vpop.f32.mrb[0].mxu0
  %v8073 = vadd.f32 0.0, %v8072
  %v8074 = vpop.f32.mrb[0].mxu0
  %8075 = vmatprep.mubr.f32.mxu0 %v5331
  %8076 = vmatmul.mubr.f32.gmra.mrb[0].mxu0 %v5139
  %v8077 = vpop.f32.mrb[0].mxu0
  %v8078 = vadd.f32 0.0, %v8077
  %v8079 = vpop.f32.mrb[0].mxu0
  %8080 = vmatprep.mubr.f32.mxu0 %v5332
  %8081 = vmatmul.mubr.f32.gmra.mrb[0].mxu0 %v5140
  %v8082 = vpop.f32.mrb[0].mxu0
  %v8083 = vadd.f32 0.0, %v8082
  %v8084 = vpop.f32.mrb[0].mxu0
  %8085 = vmatprep.mubr.f32.mxu0 %v5333
  %8086 = vmatmul.mubr.f32.gmra.mrb[0].mxu0 %v5141
  %v8087 = vpop.f32.mrb[0].mxu0
  %v8088 = vadd.f32 0.0, %v8087
  %v8089 = vpop.f32.mrb[0].mxu0
  %8090 = vmatprep.mubr.f32.mxu0 %v5334
  %8091 = vmatmul.mubr.f32.gmra.mrb[0].mxu0 %v5142
  %v8092 = vpop.f32.mrb[0].mxu0
  %v8093 = vadd.f32 0.0, %v8092
  %v8094 = vpop.f32.mrb[0].mxu0
  %8095 = vmatprep.mubr.f32.mxu0 %v5335
  %8096 = vmatmul.mubr.f32.gmra.mrb[0].mxu0 %v5143
  %v8097 = vpop.f32.mrb[0].mxu0
  %v8098 = vadd.f32 0.0, %v8097
  %v8099 = vpop.f32.mrb[0].mxu0
  %8100 = vmatprep.mubr.f32.mxu0 %v5336
  %8101 = vmatmul.mubr.f32.gmra.mrb[0].mxu0 %v5144
  %v8102 = vpop.f32.mrb[0].mxu0
  %v8103 = vadd.f32 0.0, %v8102
  %v8104 = vpop.f32.mrb[0].mxu0
  %8105 = vmatprep.mubr.f32.mxu0 %v5337
  %8106 = vmatmul.mubr.f32.gmra.mrb[0].mxu0 %v5145
  %v8107 = vpop.f32.mrb[0].mxu0
  %v8108 = vadd.f32 0.0, %v8107
  %v8109 = vpop.f32.mrb[0].mxu0
  %8110 = vmatprep.mubr.f32.mxu0 %v5338
  %8111 = vmatmul.mubr.f32.gmra.mrb[0].mxu0 %v5146
  %v8112 = vpop.f32.mrb[0].mxu0
  %v8113 = vadd.f32 0.0, %v8112
  %v8114 = vpop.f32.mrb[0].mxu0
  %8115 = vmatprep.mubr.f32.mxu0 %v5339
  %8116 = vmatmul.mubr.f32.gmra.mrb[0].mxu0 %v5147
  %v8117 = vpop.f32.mrb[0].mxu0
  %v8118 = vadd.f32 0.0, %v8117
  %v8119 = vpop.f32.mrb[0].mxu0
  %8120 = vmatprep.mubr.f32.mxu0 %v5340
  %8121 = vmatmul.mubr.f32.gmra.mrb[0].mxu0 %v5148
  %v8122 = vpop.f32.mrb[0].mxu0
  %v8123 = vadd.f32 0.0, %v8122
  %v8124 = vpop.f32.mrb[0].mxu0
  %8125 = vmatprep.mubr.f32.mxu0 %v5341
  %8126 = vmatmul.mubr.f32.gmra.mrb[0].mxu0 %v5149
  %v8127 = vpop.f32.mrb[0].mxu0
  %v8128 = vadd.f32 0.0, %v8127
  %v8129 = vpop.f32.mrb[0].mxu0
  %8130 = vmatprep.mubr.f32.mxu0 %v5342
  %8131 = vmatmul.mubr.f32.gmra.mrb[0].mxu0 %v5150
  %v8132 = vpop.f32.mrb[0].mxu0
  %v8133 = vadd.f32 0.0, %v8132
  %v8134 = vpop.f32.mrb[0].mxu0
  %8135 = vmatprep.mubr.f32.mxu0 %v5343
  %8136 = vmatmul.mubr.f32.gmra.mrb[0].mxu0 %v5151
  %v8137 = vpop.f32.mrb[0].mxu0
  %v8138 = vadd.f32 0.0, %v8137
  %v8139 = vpop.f32.mrb[0].mxu0
  %8140 = vmatprep.mubr.f32.mxu0 %v5344
  %8141 = vmatmul.mubr.f32.gmra.mrb[0].mxu0 %v5152
  %v8142 = vpop.f32.mrb[0].mxu0
  %v8143 = vadd.f32 0.0, %v8142
  %v8144 = vpop.f32.mrb[0].mxu0
  %8145 = vmatprep.mubr.f32.mxu0 %v5345
  %8146 = vmatmul.mubr.f32.gmra.mrb[0].mxu0 %v5153
  %v8147 = vpop.f32.mrb[0].mxu0
  %v8148 = vadd.f32 0.0, %v8147
  %v8149 = vpop.f32.mrb[0].mxu0
  %8150 = vmatprep.mubr.f32.mxu0 %v5346
  %8151 = vmatmul.mubr.f32.gmra.mrb[0].mxu0 %v5154
  %v8152 = vpop.f32.mrb[0].mxu0
  %v8153 = vadd.f32 0.0, %v8152
  %v8154 = vpop.f32.mrb[0].mxu0
  %8155 = vmatprep.mubr.f32.mxu0 %v5347
  %8156 = vmatmul.mubr.f32.gmra.mrb[0].mxu0 %v5155
  %v8157 = vpop.f32.mrb[0].mxu0
  %v8158 = vadd.f32 0.0, %v8157
  %v8159 = vpop.f32.mrb[0].mxu0
  %8160 = vmatprep.mubr.f32.mxu0 %v5348
  %8161 = vmatmul.mubr.f32.gmra.mrb[0].mxu0 %v5156
  %v8162 = vpop.f32.mrb[0].mxu0
  %v8163 = vadd.f32 0.0, %v8162
  %v8164 = vpop.f32.mrb[0].mxu0
  %8165 = vmatprep.mubr.f32.mxu0 %v5349
  %8166 = vmatmul.mubr.f32.gmra.mrb[0].mxu0 %v5157
  %v8167 = vpop.f32.mrb[0].mxu0
  %v8168 = vadd.f32 0.0, %v8167
  %v8169 = vpop.f32.mrb[0].mxu0
  %8170 = vmatprep.mubr.f32.mxu0 %v5350
  %8171 = vmatmul.mubr.f32.gmra.mrb[0].mxu0 %v5158
  %v8172 = vpop.f32.mrb[0].mxu0
  %v8173 = vadd.f32 0.0, %v8172
  %v8174 = vpop.f32.mrb[0].mxu0
  %8175 = vmatprep.mubr.f32.mxu0 %v5351
  %8176 = vmatmul.mubr.f32.gmra.mrb[0].mxu0 %v5159
  %v8177 = vpop.f32.mrb[0].mxu0
  %v8178 = vadd.f32 0.0, %v8177
  %v8179 = vpop.f32.mrb[0].mxu0
  %8180 = vmatprep.mubr.f32.mxu0 %v5352
  %8181 = vmatmul.mubr.f32.gmra.mrb[0].mxu0 %v5160
  %v8182 = vpop.f32.mrb[0].mxu0
  %v8183 = vadd.f32 0.0, %v8182
  %v8184 = vpop.f32.mrb[0].mxu0
  %8185 = vmatprep.mubr.f32.mxu0 %v5353
  %8186 = vmatmul.mubr.f32.gmra.mrb[0].mxu0 %v5161
  %v8187 = vpop.f32.mrb[0].mxu0
  %v8188 = vadd.f32 0.0, %v8187
  %v8189 = vpop.f32.mrb[0].mxu0
  %8190 = vmatprep.mubr.f32.mxu0 %v5354
  %8191 = vmatmul.mubr.f32.gmra.mrb[0].mxu0 %v5162
  %v8192 = vpop.f32.mrb[0].mxu0
  %v8193 = vadd.f32 0.0, %v8192
  %v8194 = vpop.f32.mrb[0].mxu0
  %8195 = vmatprep.mubr.f32.mxu0 %v5355
  %8196 = vmatmul.mubr.f32.gmra.mrb[0].mxu0 %v5163
  %v8197 = vpop.f32.mrb[0].mxu0
  %v8198 = vadd.f32 0.0, %v8197
  %v8199 = vpop.f32.mrb[0].mxu0
  %8200 = vmatprep.mubr.f32.mxu0 %v5356
  %8201 = vmatmul.mubr.f32.gmra.mrb[0].mxu0 %v5164
  %v8202 = vpop.f32.mrb[0].mxu0
  %v8203 = vadd.f32 0.0, %v8202
  %v8204 = vpop.f32.mrb[0].mxu0
  %8205 = vmatprep.mubr.f32.mxu0 %v5357
  %8206 = vmatmul.mubr.f32.gmra.mrb[0].mxu0 %v5165
  %v8207 = vpop.f32.mrb[0].mxu0
  %v8208 = vadd.f32 0.0, %v8207
  %v8209 = vpop.f32.mrb[0].mxu0
  %8210 = vmatprep.mubr.f32.mxu0 %v5358
  %8211 = vmatmul.mubr.f32.gmra.mrb[0].mxu0 %v5166
  %v8212 = vpop.f32.mrb[0].mxu0
  %v8213 = vadd.f32 0.0, %v8212
  %v8214 = vpop.f32.mrb[0].mxu0
  %8215 = vmatprep.mubr.f32.mxu0 %v5359
  %8216 = vmatmul.mubr.f32.gmra.mrb[0].mxu0 %v5167
  %v8217 = vpop.f32.mrb[0].mxu0
  %v8218 = vadd.f32 0.0, %v8217
  %v8219 = vpop.f32.mrb[0].mxu0
  %8220 = vmatprep.mubr.f32.mxu0 %v5360
  %8221 = vmatmul.mubr.f32.gmra.mrb[0].mxu0 %v5168
  %v8222 = vpop.f32.mrb[0].mxu0
  %v8223 = vadd.f32 0.0, %v8222
  %v8224 = vpop.f32.mrb[0].mxu0
  %8225 = vmatprep.mubr.f32.mxu0 %v5361
  %8226 = vmatmul.mubr.f32.gmra.mrb[0].mxu0 %v5169
  %v8227 = vpop.f32.mrb[0].mxu0
  %v8228 = vadd.f32 0.0, %v8227
  %v8229 = vpop.f32.mrb[0].mxu0
  %8230 = vmatprep.mubr.f32.mxu0 %v5362
  %8231 = vmatmul.mubr.f32.gmra.mrb[0].mxu0 %v5170
  %v8232 = vpop.f32.mrb[0].mxu0
  %v8233 = vadd.f32 0.0, %v8232
  %v8234 = vpop.f32.mrb[0].mxu0
  %8235 = vmatprep.mubr.f32.mxu0 %v5363
  %8236 = vmatmul.mubr.f32.gmra.mrb[0].mxu0 %v5171
  %v8237 = vpop.f32.mrb[0].mxu0
  %v8238 = vadd.f32 0.0, %v8237
  %v8239 = vpop.f32.mrb[0].mxu0
  %8240 = vmatprep.mubr.f32.mxu0 %v5364
  %8241 = vmatmul.mubr.f32.gmra.mrb[0].mxu0 %v5172
  %v8242 = vpop.f32.mrb[0].mxu0
  %v8243 = vadd.f32 0.0, %v8242
  %v8244 = vpop.f32.mrb[0].mxu0
  %8245 = vmatprep.mubr.f32.mxu0 %v5365
  %8246 = vmatmul.mubr.f32.gmra.mrb[0].mxu0 %v5173
  %v8247 = vpop.f32.mrb[0].mxu0
  %v8248 = vadd.f32 0.0, %v8247
  %v8249 = vpop.f32.mrb[0].mxu0
  %8250 = vmatprep.mubr.f32.mxu0 %v5366
  %8251 = vmatmul.mubr.f32.gmra.mrb[0].mxu0 %v5174
  %v8252 = vpop.f32.mrb[0].mxu0
  %v8253 = vadd.f32 0.0, %v8252
  %v8254 = vpop.f32.mrb[0].mxu0
  %8255 = vmatprep.mubr.f32.mxu0 %v5367
  %8256 = vmatmul.mubr.f32.gmra.mrb[0].mxu0 %v5175
  %v8257 = vpop.f32.mrb[0].mxu0
  %v8258 = vadd.f32 0.0, %v8257
  %v8259 = vpop.f32.mrb[0].mxu0
  %8260 = vmatprep.mubr.f32.mxu0 %v5368
  %8261 = vmatmul.mubr.f32.gmra.mrb[0].mxu0 %v5176
  %v8262 = vpop.f32.mrb[0].mxu0
  %v8263 = vadd.f32 0.0, %v8262
  %v8264 = vpop.f32.mrb[0].mxu0
  %8265 = vmatprep.mubr.f32.mxu0 %v5369
  %8266 = vmatmul.mubr.f32.gmra.mrb[0].mxu0 %v5177
  %v8267 = vpop.f32.mrb[0].mxu0
  %v8268 = vadd.f32 0.0, %v8267
  %v8269 = vpop.f32.mrb[0].mxu0
  %8270 = vmatprep.mubr.f32.mxu0 %v5370
  %8271 = vmatmul.mubr.f32.gmra.mrb[0].mxu0 %v5178
  %v8272 = vpop.f32.mrb[0].mxu0
  %v8273 = vadd.f32 0.0, %v8272
  %v8274 = vpop.f32.mrb[0].mxu0
  %8275 = vmatprep.mubr.f32.mxu0 %v5371
  %8276 = vmatmul.mubr.f32.gmra.mrb[0].mxu0 %v5179
  %v8277 = vpop.f32.mrb[0].mxu0
  %v8278 = vadd.f32 0.0, %v8277
  %v8279 = vpop.f32.mrb[0].mxu0
  %8280 = vmatprep.mubr.f32.mxu0 %v5372
  %8281 = vmatmul.mubr.f32.gmra.mrb[0].mxu0 %v5180
  %v8282 = vpop.f32.mrb[0].mxu0
  %v8283 = vadd.f32 0.0, %v8282
  %v8284 = vpop.f32.mrb[0].mxu0
  %8285 = vmatprep.mubr.f32.mxu0 %v5373
  %8286 = vmatmul.mubr.f32.gmra.mrb[0].mxu0 %v5181
  %v8287 = vpop.f32.mrb[0].mxu0
  %v8288 = vadd.f32 0.0, %v8287
  %v8289 = vpop.f32.mrb[0].mxu0
  %8290 = vmatprep.mubr.f32.mxu0 %v5374
  %8291 = vmatmul.mubr.f32.gmra.mrb[0].mxu0 %v5182
  %v8292 = vpop.f32.mrb[0].mxu0
  %v8293 = vadd.f32 0.0, %v8292
  %v8294 = vpop.f32.mrb[0].mxu0
  %8295 = vmatprep.mubr.f32.mxu0 %v5375
  %8296 = vmatmul.mubr.f32.gmra.mrb[0].mxu0 %v5183
  %v8297 = vpop.f32.mrb[0].mxu0
  %v8298 = vadd.f32 0.0, %v8297
  %v8299 = vpop.f32.mrb[0].mxu0
  %8300 = vmatprep.mubr.f32.mxu0 %v5376
  %8301 = vmatmul.mubr.f32.gmra.mrb[0].mxu0 %v5184
  %v8302 = vpop.f32.mrb[0].mxu0
  %v8303 = vadd.f32 0.0, %v8302
  %v8304 = vpop.f32.mrb[0].mxu0
  %8305 = vmatprep.mubr.f32.mxu0 %v5377
  %8306 = vmatmul.mubr.f32.gmra.mrb[0].mxu0 %v5185
  %v8307 = vpop.f32.mrb[0].mxu0
  %v8308 = vadd.f32 0.0, %v8307
  %v8309 = vpop.f32.mrb[0].mxu0
  %8310 = vmatprep.mubr.f32.mxu0 %v5378
  %8311 = vmatmul.mubr.f32.gmra.mrb[0].mxu0 %v5186
  %v8312 = vpop.f32.mrb[0].mxu0
  %v8313 = vadd.f32 0.0, %v8312
  %v8314 = vpop.f32.mrb[0].mxu0
  %8315 = vmatprep.mubr.f32.mxu0 %v5379
  %8316 = vmatmul.mubr.f32.gmra.mrb[0].mxu0 %v5187
  %v8317 = vpop.f32.mrb[0].mxu0
  %v8318 = vadd.f32 0.0, %v8317
  %v8319 = vpop.f32.mrb[0].mxu0
  %8320 = vmatprep.mubr.f32.mxu0 %v5380
  %8321 = vmatmul.mubr.f32.gmra.mrb[0].mxu0 %v5188
  %v8322 = vpop.f32.mrb[0].mxu0
  %v8323 = vadd.f32 0.0, %v8322
  %v8324 = vpop.f32.mrb[0].mxu0
  %8325 = vmatprep.mubr.f32.mxu0 %v5381
  %8326 = vmatmul.mubr.f32.gmra.mrb[0].mxu0 %v5189
  %v8327 = vpop.f32.mrb[0].mxu0
  %v8328 = vadd.f32 0.0, %v8327
  %v8329 = vpop.f32.mrb[0].mxu0
  %8330 = vmatprep.mubr.f32.mxu0 %v5382
  %8331 = vmatmul.mubr.f32.gmra.mrb[0].mxu0 %v5190
  %v8332 = vpop.f32.mrb[0].mxu0
  %v8333 = vadd.f32 0.0, %v8332
  %v8334 = vpop.f32.mrb[0].mxu0
  %8335 = vmatprep.mubr.f32.mxu0 %v5383
  %8336 = vmatmul.mubr.f32.gmra.mrb[0].mxu0 %v5191
  %v8337 = vpop.f32.mrb[0].mxu0
  %v8338 = vadd.f32 0.0, %v8337
  %v8339 = vpop.f32.mrb[0].mxu0
  %8340 = vmatprep.mubr.f32.mxu0 %v5384
  %8341 = vmatmul.mubr.f32.gmra.mrb[0].mxu0 %v5192
  %v8342 = vpop.f32.mrb[0].mxu0
  %v8343 = vadd.f32 0.0, %v8342
  %v8344 = vpop.f32.mrb[0].mxu0
  %8345 = vmatprep.mubr.f32.mxu0 %v5385
  %8346 = vmatmul.mubr.f32.gmra.mrb[0].mxu0 %v5193
  %v8347 = vpop.f32.mrb[0].mxu0
  %v8348 = vadd.f32 0.0, %v8347
  %v8349 = vpop.f32.mrb[0].mxu0
  %8350 = vmatprep.mubr.f32.mxu0 %v5386
  %8351 = vmatmul.mubr.f32.gmra.mrb[0].mxu0 %v5194
  %v8352 = vpop.f32.mrb[0].mxu0
  %v8353 = vadd.f32 0.0, %v8352
  %v8354 = vpop.f32.mrb[0].mxu0
  %8355 = vmatprep.mubr.f32.mxu0 %v5387
  %8356 = vmatmul.mubr.f32.gmra.mrb[0].mxu0 %v5195
  %v8357 = vpop.f32.mrb[0].mxu0
  %v8358 = vadd.f32 0.0, %v8357
  %v8359 = vpop.f32.mrb[0].mxu0
  %8360 = vmatprep.mubr.f32.mxu0 %v5388
  %8361 = vmatmul.mubr.f32.gmra.mrb[0].mxu0 %v5196
  %v8362 = vpop.f32.mrb[0].mxu0
  %v8363 = vadd.f32 0.0, %v8362
  %v8364 = vpop.f32.mrb[0].mxu0
  %8365 = vmatprep.mubr.f32.mxu0 %v5389
  %8366 = vmatmul.mubr.f32.gmra.mrb[0].mxu0 %v5197
  %v8367 = vpop.f32.mrb[0].mxu0
  %v8368 = vadd.f32 0.0, %v8367
  %v8369 = vpop.f32.mrb[0].mxu0
  %8370 = vdwg.mxu0
  %8371 = vmatprep.subr.mxu0 0.0
  %8372 = vmatpush1.msra.mxu0 %v7726
  %8373 = vmatprep.subr.mxu0 0.0
  %8374 = vmatpush1.msra.mxu0 %v7727
  %8375 = vmatprep.subr.mxu0 0.0
  %8376 = vmatpush1.msra.mxu0 %v7728
  %8377 = vmatprep.subr.mxu0 0.0
  %8378 = vmatpush1.msra.mxu0 %v7729
  %8379 = vmatprep.subr.mxu0 0.0
  %8380 = vmatpush1.msra.mxu0 %v7730
  %8381 = vmatprep.subr.mxu0 0.0
  %8382 = vmatpush1.msra.mxu0 %v7731
  %8383 = vmatprep.subr.mxu0 0.0
  %8384 = vmatpush1.msra.mxu0 %v7732
  %8385 = vmatprep.subr.mxu0 0.0
  %8386 = vmatpush1.msra.mxu0 %v7733
  %8387 = vmatprep.subr.mxu0 0.0
  %8388 = vmatpush1.msra.mxu0 %v7734
  %8389 = vmatprep.subr.mxu0 0.0
  %8390 = vmatpush1.msra.mxu0 %v7735
  %8391 = vmatprep.subr.mxu0 0.0
  %8392 = vmatpush1.msra.mxu0 %v7736
  %8393 = vmatprep.subr.mxu0 0.0
  %8394 = vmatpush1.msra.mxu0 %v7737
  %8395 = vmatprep.subr.mxu0 0.0
  %8396 = vmatpush1.msra.mxu0 %v7738
  %8397 = vmatprep.subr.mxu0 0.0
  %8398 = vmatpush1.msra.mxu0 %v7739
  %8399 = vmatprep.subr.mxu0 0.0
  %8400 = vmatpush1.msra.mxu0 %v7740
  %8401 = vmatprep.subr.mxu0 0.0
  %8402 = vmatpush1.msra.mxu0 %v7741
  %8403 = vmatprep.subr.mxu0 0.0
  %8404 = vmatpush1.msra.mxu0 %v7742
  %8405 = vmatprep.subr.mxu0 0.0
  %8406 = vmatpush1.msra.mxu0 %v7743
  %8407 = vmatprep.subr.mxu0 0.0
  %8408 = vmatpush1.msra.mxu0 %v7744
  %8409 = vmatprep.subr.mxu0 0.0
  %8410 = vmatpush1.msra.mxu0 %v7745
  %8411 = vmatprep.subr.mxu0 0.0
  %8412 = vmatpush1.msra.mxu0 %v7746
  %8413 = vmatprep.subr.mxu0 0.0
  %8414 = vmatpush1.msra.mxu0 %v7747
  %8415 = vmatprep.subr.mxu0 0.0
  %8416 = vmatpush1.msra.mxu0 %v7748
  %8417 = vmatprep.subr.mxu0 0.0
  %8418 = vmatpush1.msra.mxu0 %v7749
  %8419 = vmatprep.subr.mxu0 0.0
  %8420 = vmatpush1.msra.mxu0 %v7750
  %8421 = vmatprep.subr.mxu0 0.0
  %8422 = vmatpush1.msra.mxu0 %v7751
  %8423 = vmatprep.subr.mxu0 0.0
  %8424 = vmatpush1.msra.mxu0 %v7752
  %8425 = vmatprep.subr.mxu0 0.0
  %8426 = vmatpush1.msra.mxu0 %v7753
  %8427 = vmatprep.subr.mxu0 0.0
  %8428 = vmatpush1.msra.mxu0 %v7754
  %8429 = vmatprep.subr.mxu0 0.0
  %8430 = vmatpush1.msra.mxu0 %v7755
  %8431 = vmatprep.subr.mxu0 0.0
  %8432 = vmatpush1.msra.mxu0 %v7756
  %8433 = vmatprep.subr.mxu0 0.0
  %8434 = vmatpush1.msra.mxu0 %v7757
  %8435 = vmatprep.mubr.f32.mxu0 %v5710
  %8436 = vmatmul.mubr.f32.gmra.mrb[0].mxu0 %v5518
  %v8437 = vpop.f32.mrb[0].mxu0
  %v8438 = vadd.f32 %v8053, %v8437
  %v8439 = vpop.f32.mrb[0].mxu0
  %8440 = vmatprep.mubr.f32.mxu0 %v5711
  %8441 = vmatmul.mubr.f32.gmra.mrb[0].mxu0 %v5519
  %v8442 = vpop.f32.mrb[0].mxu0
  %v8443 = vadd.f32 %v8058, %v8442
  %v8444 = vpop.f32.mrb[0].mxu0
  %8445 = vmatprep.mubr.f32.mxu0 %v5712
  %8446 = vmatmul.mubr.f32.gmra.mrb[0].mxu0 %v5520
  %v8447 = vpop.f32.mrb[0].mxu0
  %v8448 = vadd.f32 %v8063, %v8447
  %v8449 = vpop.f32.mrb[0].mxu0
  %8450 = vmatprep.mubr.f32.mxu0 %v5713
  %8451 = vmatmul.mubr.f32.gmra.mrb[0].mxu0 %v5521
  %v8452 = vpop.f32.mrb[0].mxu0
  %v8453 = vadd.f32 %v8068, %v8452
  %v8454 = vpop.f32.mrb[0].mxu0
  %8455 = vmatprep.mubr.f32.mxu0 %v5714
  %8456 = vmatmul.mubr.f32.gmra.mrb[0].mxu0 %v5522
  %v8457 = vpop.f32.mrb[0].mxu0
  %v8458 = vadd.f32 %v8073, %v8457
  %v8459 = vpop.f32.mrb[0].mxu0
  %8460 = vmatprep.mubr.f32.mxu0 %v5715
  %8461 = vmatmul.mubr.f32.gmra.mrb[0].mxu0 %v5523
  %v8462 = vpop.f32.mrb[0].mxu0
  %v8463 = vadd.f32 %v8078, %v8462
  %v8464 = vpop.f32.mrb[0].mxu0
  %8465 = vmatprep.mubr.f32.mxu0 %v5716
  %8466 = vmatmul.mubr.f32.gmra.mrb[0].mxu0 %v5524
  %v8467 = vpop.f32.mrb[0].mxu0
  %v8468 = vadd.f32 %v8083, %v8467
  %v8469 = vpop.f32.mrb[0].mxu0
  %8470 = vmatprep.mubr.f32.mxu0 %v5717
  %8471 = vmatmul.mubr.f32.gmra.mrb[0].mxu0 %v5525
  %v8472 = vpop.f32.mrb[0].mxu0
  %v8473 = vadd.f32 %v8088, %v8472
  %v8474 = vpop.f32.mrb[0].mxu0
  %8475 = vmatprep.mubr.f32.mxu0 %v5718
  %8476 = vmatmul.mubr.f32.gmra.mrb[0].mxu0 %v5526
  %v8477 = vpop.f32.mrb[0].mxu0
  %v8478 = vadd.f32 %v8093, %v8477
  %v8479 = vpop.f32.mrb[0].mxu0
  %8480 = vmatprep.mubr.f32.mxu0 %v5719
  %8481 = vmatmul.mubr.f32.gmra.mrb[0].mxu0 %v5527
  %v8482 = vpop.f32.mrb[0].mxu0
  %v8483 = vadd.f32 %v8098, %v8482
  %v8484 = vpop.f32.mrb[0].mxu0
  %8485 = vmatprep.mubr.f32.mxu0 %v5720
  %8486 = vmatmul.mubr.f32.gmra.mrb[0].mxu0 %v5528
  %v8487 = vpop.f32.mrb[0].mxu0
  %v8488 = vadd.f32 %v8103, %v8487
  %v8489 = vpop.f32.mrb[0].mxu0
  %8490 = vmatprep.mubr.f32.mxu0 %v5721
  %8491 = vmatmul.mubr.f32.gmra.mrb[0].mxu0 %v5529
  %v8492 = vpop.f32.mrb[0].mxu0
  %v8493 = vadd.f32 %v8108, %v8492
  %v8494 = vpop.f32.mrb[0].mxu0
  %8495 = vmatprep.mubr.f32.mxu0 %v5722
  %8496 = vmatmul.mubr.f32.gmra.mrb[0].mxu0 %v5530
  %v8497 = vpop.f32.mrb[0].mxu0
  %v8498 = vadd.f32 %v8113, %v8497
  %v8499 = vpop.f32.mrb[0].mxu0
  %8500 = vmatprep.mubr.f32.mxu0 %v5723
  %8501 = vmatmul.mubr.f32.gmra.mrb[0].mxu0 %v5531
  %v8502 = vpop.f32.mrb[0].mxu0
  %v8503 = vadd.f32 %v8118, %v8502
  %v8504 = vpop.f32.mrb[0].mxu0
  %8505 = vmatprep.mubr.f32.mxu0 %v5724
  %8506 = vmatmul.mubr.f32.gmra.mrb[0].mxu0 %v5532
  %v8507 = vpop.f32.mrb[0].mxu0
  %v8508 = vadd.f32 %v8123, %v8507
  %v8509 = vpop.f32.mrb[0].mxu0
  %8510 = vmatprep.mubr.f32.mxu0 %v5725
  %8511 = vmatmul.mubr.f32.gmra.mrb[0].mxu0 %v5533
  %v8512 = vpop.f32.mrb[0].mxu0
  %v8513 = vadd.f32 %v8128, %v8512
  %v8514 = vpop.f32.mrb[0].mxu0
  %8515 = vmatprep.mubr.f32.mxu0 %v5726
  %8516 = vmatmul.mubr.f32.gmra.mrb[0].mxu0 %v5534
  %v8517 = vpop.f32.mrb[0].mxu0
  %v8518 = vadd.f32 %v8133, %v8517
  %v8519 = vpop.f32.mrb[0].mxu0
  %8520 = vmatprep.mubr.f32.mxu0 %v5727
  %8521 = vmatmul.mubr.f32.gmra.mrb[0].mxu0 %v5535
  %v8522 = vpop.f32.mrb[0].mxu0
  %v8523 = vadd.f32 %v8138, %v8522
  %v8524 = vpop.f32.mrb[0].mxu0
  %8525 = vmatprep.mubr.f32.mxu0 %v5728
  %8526 = vmatmul.mubr.f32.gmra.mrb[0].mxu0 %v5536
  %v8527 = vpop.f32.mrb[0].mxu0
  %v8528 = vadd.f32 %v8143, %v8527
  %v8529 = vpop.f32.mrb[0].mxu0
  %8530 = vmatprep.mubr.f32.mxu0 %v5729
  %8531 = vmatmul.mubr.f32.gmra.mrb[0].mxu0 %v5537
  %v8532 = vpop.f32.mrb[0].mxu0
  %v8533 = vadd.f32 %v8148, %v8532
  %v8534 = vpop.f32.mrb[0].mxu0
  %8535 = vmatprep.mubr.f32.mxu0 %v5730
  %8536 = vmatmul.mubr.f32.gmra.mrb[0].mxu0 %v5538
  %v8537 = vpop.f32.mrb[0].mxu0
  %v8538 = vadd.f32 %v8153, %v8537
  %v8539 = vpop.f32.mrb[0].mxu0
  %8540 = vmatprep.mubr.f32.mxu0 %v5731
  %8541 = vmatmul.mubr.f32.gmra.mrb[0].mxu0 %v5539
  %v8542 = vpop.f32.mrb[0].mxu0
  %v8543 = vadd.f32 %v8158, %v8542
  %v8544 = vpop.f32.mrb[0].mxu0
  %8545 = vmatprep.mubr.f32.mxu0 %v5732
  %8546 = vmatmul.mubr.f32.gmra.mrb[0].mxu0 %v5540
  %v8547 = vpop.f32.mrb[0].mxu0
  %v8548 = vadd.f32 %v8163, %v8547
  %v8549 = vpop.f32.mrb[0].mxu0
  %8550 = vmatprep.mubr.f32.mxu0 %v5733
  %8551 = vmatmul.mubr.f32.gmra.mrb[0].mxu0 %v5541
  %v8552 = vpop.f32.mrb[0].mxu0
  %v8553 = vadd.f32 %v8168, %v8552
  %v8554 = vpop.f32.mrb[0].mxu0
  %8555 = vmatprep.mubr.f32.mxu0 %v5734
  %8556 = vmatmul.mubr.f32.gmra.mrb[0].mxu0 %v5542
  %v8557 = vpop.f32.mrb[0].mxu0
  %v8558 = vadd.f32 %v8173, %v8557
  %v8559 = vpop.f32.mrb[0].mxu0
  %8560 = vmatprep.mubr.f32.mxu0 %v5735
  %8561 = vmatmul.mubr.f32.gmra.mrb[0].mxu0 %v5543
  %v8562 = vpop.f32.mrb[0].mxu0
  %v8563 = vadd.f32 %v8178, %v8562
  %v8564 = vpop.f32.mrb[0].mxu0
  %8565 = vmatprep.mubr.f32.mxu0 %v5736
  %8566 = vmatmul.mubr.f32.gmra.mrb[0].mxu0 %v5544
  %v8567 = vpop.f32.mrb[0].mxu0
  %v8568 = vadd.f32 %v8183, %v8567
  %v8569 = vpop.f32.mrb[0].mxu0
  %8570 = vmatprep.mubr.f32.mxu0 %v5737
  %8571 = vmatmul.mubr.f32.gmra.mrb[0].mxu0 %v5545
  %v8572 = vpop.f32.mrb[0].mxu0
  %v8573 = vadd.f32 %v8188, %v8572
  %v8574 = vpop.f32.mrb[0].mxu0
  %8575 = vmatprep.mubr.f32.mxu0 %v5738
  %8576 = vmatmul.mubr.f32.gmra.mrb[0].mxu0 %v5546
  %v8577 = vpop.f32.mrb[0].mxu0
  %v8578 = vadd.f32 %v8193, %v8577
  %v8579 = vpop.f32.mrb[0].mxu0
  %8580 = vmatprep.mubr.f32.mxu0 %v5739
  %8581 = vmatmul.mubr.f32.gmra.mrb[0].mxu0 %v5547
  %v8582 = vpop.f32.mrb[0].mxu0
  %v8583 = vadd.f32 %v8198, %v8582
  %v8584 = vpop.f32.mrb[0].mxu0
  %8585 = vmatprep.mubr.f32.mxu0 %v5740
  %8586 = vmatmul.mubr.f32.gmra.mrb[0].mxu0 %v5548
  %v8587 = vpop.f32.mrb[0].mxu0
  %v8588 = vadd.f32 %v8203, %v8587
  %v8589 = vpop.f32.mrb[0].mxu0
  %8590 = vmatprep.mubr.f32.mxu0 %v5741
  %8591 = vmatmul.mubr.f32.gmra.mrb[0].mxu0 %v5549
  %v8592 = vpop.f32.mrb[0].mxu0
  %v8593 = vadd.f32 %v8208, %v8592
  %v8594 = vpop.f32.mrb[0].mxu0
  %8595 = vmatprep.mubr.f32.mxu0 %v5742
  %8596 = vmatmul.mubr.f32.gmra.mrb[0].mxu0 %v5550
  %v8597 = vpop.f32.mrb[0].mxu0
  %v8598 = vadd.f32 %v8213, %v8597
  %v8599 = vpop.f32.mrb[0].mxu0
  %8600 = vmatprep.mubr.f32.mxu0 %v5743
  %8601 = vmatmul.mubr.f32.gmra.mrb[0].mxu0 %v5551
  %v8602 = vpop.f32.mrb[0].mxu0
  %v8603 = vadd.f32 %v8218, %v8602
  %v8604 = vpop.f32.mrb[0].mxu0
  %8605 = vmatprep.mubr.f32.mxu0 %v5744
  %8606 = vmatmul.mubr.f32.gmra.mrb[0].mxu0 %v5552
  %v8607 = vpop.f32.mrb[0].mxu0
  %v8608 = vadd.f32 %v8223, %v8607
  %v8609 = vpop.f32.mrb[0].mxu0
  %8610 = vmatprep.mubr.f32.mxu0 %v5745
  %8611 = vmatmul.mubr.f32.gmra.mrb[0].mxu0 %v5553
  %v8612 = vpop.f32.mrb[0].mxu0
  %v8613 = vadd.f32 %v8228, %v8612
  %v8614 = vpop.f32.mrb[0].mxu0
  %8615 = vmatprep.mubr.f32.mxu0 %v5746
  %8616 = vmatmul.mubr.f32.gmra.mrb[0].mxu0 %v5554
  %v8617 = vpop.f32.mrb[0].mxu0
  %v8618 = vadd.f32 %v8233, %v8617
  %v8619 = vpop.f32.mrb[0].mxu0
  %8620 = vmatprep.mubr.f32.mxu0 %v5747
  %8621 = vmatmul.mubr.f32.gmra.mrb[0].mxu0 %v5555
  %v8622 = vpop.f32.mrb[0].mxu0
  %v8623 = vadd.f32 %v8238, %v8622
  %v8624 = vpop.f32.mrb[0].mxu0
  %8625 = vmatprep.mubr.f32.mxu0 %v5748
  %8626 = vmatmul.mubr.f32.gmra.mrb[0].mxu0 %v5556
  %v8627 = vpop.f32.mrb[0].mxu0
  %v8628 = vadd.f32 %v8243, %v8627
  %v8629 = vpop.f32.mrb[0].mxu0
  %8630 = vmatprep.mubr.f32.mxu0 %v5749
  %8631 = vmatmul.mubr.f32.gmra.mrb[0].mxu0 %v5557
  %v8632 = vpop.f32.mrb[0].mxu0
  %v8633 = vadd.f32 %v8248, %v8632
  %v8634 = vpop.f32.mrb[0].mxu0
  %8635 = vmatprep.mubr.f32.mxu0 %v5750
  %8636 = vmatmul.mubr.f32.gmra.mrb[0].mxu0 %v5558
  %v8637 = vpop.f32.mrb[0].mxu0
  %v8638 = vadd.f32 %v8253, %v8637
  %v8639 = vpop.f32.mrb[0].mxu0
  %8640 = vmatprep.mubr.f32.mxu0 %v5751
  %8641 = vmatmul.mubr.f32.gmra.mrb[0].mxu0 %v5559
  %v8642 = vpop.f32.mrb[0].mxu0
  %v8643 = vadd.f32 %v8258, %v8642
  %v8644 = vpop.f32.mrb[0].mxu0
  %8645 = vmatprep.mubr.f32.mxu0 %v5752
  %8646 = vmatmul.mubr.f32.gmra.mrb[0].mxu0 %v5560
  %v8647 = vpop.f32.mrb[0].mxu0
  %v8648 = vadd.f32 %v8263, %v8647
  %v8649 = vpop.f32.mrb[0].mxu0
  %8650 = vmatprep.mubr.f32.mxu0 %v5753
  %8651 = vmatmul.mubr.f32.gmra.mrb[0].mxu0 %v5561
  %v8652 = vpop.f32.mrb[0].mxu0
  %v8653 = vadd.f32 %v8268, %v8652
  %v8654 = vpop.f32.mrb[0].mxu0
  %8655 = vmatprep.mubr.f32.mxu0 %v5754
  %8656 = vmatmul.mubr.f32.gmra.mrb[0].mxu0 %v5562
  %v8657 = vpop.f32.mrb[0].mxu0
  %v8658 = vadd.f32 %v8273, %v8657
  %v8659 = vpop.f32.mrb[0].mxu0
  %8660 = vmatprep.mubr.f32.mxu0 %v5755
  %8661 = vmatmul.mubr.f32.gmra.mrb[0].mxu0 %v5563
  %v8662 = vpop.f32.mrb[0].mxu0
  %v8663 = vadd.f32 %v8278, %v8662
  %v8664 = vpop.f32.mrb[0].mxu0
  %8665 = vmatprep.mubr.f32.mxu0 %v5756
  %8666 = vmatmul.mubr.f32.gmra.mrb[0].mxu0 %v5564
  %v8667 = vpop.f32.mrb[0].mxu0
  %v8668 = vadd.f32 %v8283, %v8667
  %v8669 = vpop.f32.mrb[0].mxu0
  %8670 = vmatprep.mubr.f32.mxu0 %v5757
  %8671 = vmatmul.mubr.f32.gmra.mrb[0].mxu0 %v5565
  %v8672 = vpop.f32.mrb[0].mxu0
  %v8673 = vadd.f32 %v8288, %v8672
  %v8674 = vpop.f32.mrb[0].mxu0
  %8675 = vmatprep.mubr.f32.mxu0 %v5758
  %8676 = vmatmul.mubr.f32.gmra.mrb[0].mxu0 %v5566
  %v8677 = vpop.f32.mrb[0].mxu0
  %v8678 = vadd.f32 %v8293, %v8677
  %v8679 = vpop.f32.mrb[0].mxu0
  %8680 = vmatprep.mubr.f32.mxu0 %v5759
  %8681 = vmatmul.mubr.f32.gmra.mrb[0].mxu0 %v5567
  %v8682 = vpop.f32.mrb[0].mxu0
  %v8683 = vadd.f32 %v8298, %v8682
  %v8684 = vpop.f32.mrb[0].mxu0
  %8685 = vmatprep.mubr.f32.mxu0 %v5760
  %8686 = vmatmul.mubr.f32.gmra.mrb[0].mxu0 %v5568
  %v8687 = vpop.f32.mrb[0].mxu0
  %v8688 = vadd.f32 %v8303, %v8687
  %v8689 = vpop.f32.mrb[0].mxu0
  %8690 = vmatprep.mubr.f32.mxu0 %v5761
  %8691 = vmatmul.mubr.f32.gmra.mrb[0].mxu0 %v5569
  %v8692 = vpop.f32.mrb[0].mxu0
  %v8693 = vadd.f32 %v8308, %v8692
  %v8694 = vpop.f32.mrb[0].mxu0
  %8695 = vmatprep.mubr.f32.mxu0 %v5762
  %8696 = vmatmul.mubr.f32.gmra.mrb[0].mxu0 %v5570
  %v8697 = vpop.f32.mrb[0].mxu0
  %v8698 = vadd.f32 %v8313, %v8697
  %v8699 = vpop.f32.mrb[0].mxu0
  %8700 = vmatprep.mubr.f32.mxu0 %v5763
  %8701 = vmatmul.mubr.f32.gmra.mrb[0].mxu0 %v5571
  %v8702 = vpop.f32.mrb[0].mxu0
  %v8703 = vadd.f32 %v8318, %v8702
  %v8704 = vpop.f32.mrb[0].mxu0
  %8705 = vmatprep.mubr.f32.mxu0 %v5764
  %8706 = vmatmul.mubr.f32.gmra.mrb[0].mxu0 %v5572
  %v8707 = vpop.f32.mrb[0].mxu0
  %v8708 = vadd.f32 %v8323, %v8707
  %v8709 = vpop.f32.mrb[0].mxu0
  %8710 = vmatprep.mubr.f32.mxu0 %v5765
  %8711 = vmatmul.mubr.f32.gmra.mrb[0].mxu0 %v5573
  %v8712 = vpop.f32.mrb[0].mxu0
  %v8713 = vadd.f32 %v8328, %v8712
  %v8714 = vpop.f32.mrb[0].mxu0
  %8715 = vmatprep.mubr.f32.mxu0 %v5766
  %8716 = vmatmul.mubr.f32.gmra.mrb[0].mxu0 %v5574
  %v8717 = vpop.f32.mrb[0].mxu0
  %v8718 = vadd.f32 %v8333, %v8717
  %v8719 = vpop.f32.mrb[0].mxu0
  %8720 = vmatprep.mubr.f32.mxu0 %v5767
  %8721 = vmatmul.mubr.f32.gmra.mrb[0].mxu0 %v5575
  %v8722 = vpop.f32.mrb[0].mxu0
  %v8723 = vadd.f32 %v8338, %v8722
  %v8724 = vpop.f32.mrb[0].mxu0
  %8725 = vmatprep.mubr.f32.mxu0 %v5768
  %8726 = vmatmul.mubr.f32.gmra.mrb[0].mxu0 %v5576
  %v8727 = vpop.f32.mrb[0].mxu0
  %v8728 = vadd.f32 %v8343, %v8727
  %v8729 = vpop.f32.mrb[0].mxu0
  %8730 = vmatprep.mubr.f32.mxu0 %v5769
  %8731 = vmatmul.mubr.f32.gmra.mrb[0].mxu0 %v5577
  %v8732 = vpop.f32.mrb[0].mxu0
  %v8733 = vadd.f32 %v8348, %v8732
  %v8734 = vpop.f32.mrb[0].mxu0
  %8735 = vmatprep.mubr.f32.mxu0 %v5770
  %8736 = vmatmul.mubr.f32.gmra.mrb[0].mxu0 %v5578
  %v8737 = vpop.f32.mrb[0].mxu0
  %v8738 = vadd.f32 %v8353, %v8737
  %v8739 = vpop.f32.mrb[0].mxu0
  %8740 = vmatprep.mubr.f32.mxu0 %v5771
  %8741 = vmatmul.mubr.f32.gmra.mrb[0].mxu0 %v5579
  %v8742 = vpop.f32.mrb[0].mxu0
  %v8743 = vadd.f32 %v8358, %v8742
  %v8744 = vpop.f32.mrb[0].mxu0
  %8745 = vmatprep.mubr.f32.mxu0 %v5772
  %8746 = vmatmul.mubr.f32.gmra.mrb[0].mxu0 %v5580
  %v8747 = vpop.f32.mrb[0].mxu0
  %v8748 = vadd.f32 %v8363, %v8747
  %v8749 = vpop.f32.mrb[0].mxu0
  %8750 = vmatprep.mubr.f32.mxu0 %v5773
  %8751 = vmatmul.mubr.f32.gmra.mrb[0].mxu0 %v5581
  %v8752 = vpop.f32.mrb[0].mxu0
  %v8753 = vadd.f32 %v8368, %v8752
  %v8754 = vpop.f32.mrb[0].mxu0
  %8755 = vdwg.mxu0
  %8756 = vmatprep.subr.mxu0 0.0
  %8757 = vmatpush1.msra.mxu0 %v7758
  %8758 = vmatprep.subr.mxu0 0.0
  %8759 = vmatpush1.msra.mxu0 %v7759
  %8760 = vmatprep.subr.mxu0 0.0
  %8761 = vmatpush1.msra.mxu0 %v7760
  %8762 = vmatprep.subr.mxu0 0.0
  %8763 = vmatpush1.msra.mxu0 %v7761
  %8764 = vmatprep.subr.mxu0 0.0
  %8765 = vmatpush1.msra.mxu0 %v7762
  %8766 = vmatprep.subr.mxu0 0.0
  %8767 = vmatpush1.msra.mxu0 %v7763
  %8768 = vmatprep.subr.mxu0 0.0
  %8769 = vmatpush1.msra.mxu0 %v7764
  %8770 = vmatprep.subr.mxu0 0.0
  %8771 = vmatpush1.msra.mxu0 %v7765
  %8772 = vmatprep.subr.mxu0 0.0
  %8773 = vmatpush1.msra.mxu0 %v7766
  %8774 = vmatprep.subr.mxu0 0.0
  %8775 = vmatpush1.msra.mxu0 %v7767
  %8776 = vmatprep.subr.mxu0 0.0
  %8777 = vmatpush1.msra.mxu0 %v7768
  %8778 = vmatprep.subr.mxu0 0.0
  %8779 = vmatpush1.msra.mxu0 %v7769
  %8780 = vmatprep.subr.mxu0 0.0
  %8781 = vmatpush1.msra.mxu0 %v7770
  %8782 = vmatprep.subr.mxu0 0.0
  %8783 = vmatpush1.msra.mxu0 %v7771
  %8784 = vmatprep.subr.mxu0 0.0
  %8785 = vmatpush1.msra.mxu0 %v7772
  %8786 = vmatprep.subr.mxu0 0.0
  %8787 = vmatpush1.msra.mxu0 %v7773
  %8788 = vmatprep.subr.mxu0 0.0
  %8789 = vmatpush1.msra.mxu0 %v7774
  %8790 = vmatprep.subr.mxu0 0.0
  %8791 = vmatpush1.msra.mxu0 %v7775
  %8792 = vmatprep.subr.mxu0 0.0
  %8793 = vmatpush1.msra.mxu0 %v7776
  %8794 = vmatprep.subr.mxu0 0.0
  %8795 = vmatpush1.msra.mxu0 %v7777
  %8796 = vmatprep.subr.mxu0 0.0
  %8797 = vmatpush1.msra.mxu0 %v7778
  %8798 = vmatprep.subr.mxu0 0.0
  %8799 = vmatpush1.msra.mxu0 %v7779
  %8800 = vmatprep.subr.mxu0 0.0
  %8801 = vmatpush1.msra.mxu0 %v7780
  %8802 = vmatprep.subr.mxu0 0.0
  %8803 = vmatpush1.msra.mxu0 %v7781
  %8804 = vmatprep.subr.mxu0 0.0
  %8805 = vmatpush1.msra.mxu0 %v7782
  %8806 = vmatprep.subr.mxu0 0.0
  %8807 = vmatpush1.msra.mxu0 %v7783
  %8808 = vmatprep.subr.mxu0 0.0
  %8809 = vmatpush1.msra.mxu0 %v7784
  %8810 = vmatprep.subr.mxu0 0.0
  %8811 = vmatpush1.msra.mxu0 %v7785
  %8812 = vmatprep.subr.mxu0 0.0
  %8813 = vmatpush1.msra.mxu0 %v7786
  %8814 = vmatprep.subr.mxu0 0.0
  %8815 = vmatpush1.msra.mxu0 %v7787
  %8816 = vmatprep.subr.mxu0 0.0
  %8817 = vmatpush1.msra.mxu0 %v7788
  %8818 = vmatprep.subr.mxu0 0.0
  %8819 = vmatpush1.msra.mxu0 %v7789
  %8820 = vmatprep.mubr.f32.mxu0 %v7630
  %8821 = vmatmul.mubr.f32.gmra.mrb[0].mxu0 %v7438
  %v8822 = vpop.f32.mrb[0].mxu0
  %v8823 = vadd.f32 %v8438, %v8822
  %v8824 = vpop.f32.mrb[0].mxu0
  %8825 = vmatprep.mubr.f32.mxu0 %v7631
  %8826 = vmatmul.mubr.f32.gmra.mrb[0].mxu0 %v7439
  %v8827 = vpop.f32.mrb[0].mxu0
  %v8828 = vadd.f32 %v8443, %v8827
  %v8829 = vpop.f32.mrb[0].mxu0
  %8830 = vmatprep.mubr.f32.mxu0 %v7632
  %8831 = vmatmul.mubr.f32.gmra.mrb[0].mxu0 %v7440
  %v8832 = vpop.f32.mrb[0].mxu0
  %v8833 = vadd.f32 %v8448, %v8832
  %v8834 = vpop.f32.mrb[0].mxu0
  %8835 = vmatprep.mubr.f32.mxu0 %v7633
  %8836 = vmatmul.mubr.f32.gmra.mrb[0].mxu0 %v7441
  %v8837 = vpop.f32.mrb[0].mxu0
  %v8838 = vadd.f32 %v8453, %v8837
  %v8839 = vpop.f32.mrb[0].mxu0
  %8840 = vmatprep.mubr.f32.mxu0 %v7634
  %8841 = vmatmul.mubr.f32.gmra.mrb[0].mxu0 %v7442
  %v8842 = vpop.f32.mrb[0].mxu0
  %v8843 = vadd.f32 %v8458, %v8842
  %v8844 = vpop.f32.mrb[0].mxu0
  %8845 = vmatprep.mubr.f32.mxu0 %v7635
  %8846 = vmatmul.mubr.f32.gmra.mrb[0].mxu0 %v7443
  %v8847 = vpop.f32.mrb[0].mxu0
  %v8848 = vadd.f32 %v8463, %v8847
  %v8849 = vpop.f32.mrb[0].mxu0
  %8850 = vmatprep.mubr.f32.mxu0 %v7636
  %8851 = vmatmul.mubr.f32.gmra.mrb[0].mxu0 %v7444
  %v8852 = vpop.f32.mrb[0].mxu0
  %v8853 = vadd.f32 %v8468, %v8852
  %v8854 = vpop.f32.mrb[0].mxu0
  %8855 = vmatprep.mubr.f32.mxu0 %v7637
  %8856 = vmatmul.mubr.f32.gmra.mrb[0].mxu0 %v7445
  %v8857 = vpop.f32.mrb[0].mxu0
  %v8858 = vadd.f32 %v8473, %v8857
  %v8859 = vpop.f32.mrb[0].mxu0
  %8860 = vmatprep.mubr.f32.mxu0 %v7638
  %8861 = vmatmul.mubr.f32.gmra.mrb[0].mxu0 %v7446
  %v8862 = vpop.f32.mrb[0].mxu0
  %v8863 = vadd.f32 %v8478, %v8862
  %v8864 = vpop.f32.mrb[0].mxu0
  %8865 = vmatprep.mubr.f32.mxu0 %v7639
  %8866 = vmatmul.mubr.f32.gmra.mrb[0].mxu0 %v7447
  %v8867 = vpop.f32.mrb[0].mxu0
  %v8868 = vadd.f32 %v8483, %v8867
  %v8869 = vpop.f32.mrb[0].mxu0
  %8870 = vmatprep.mubr.f32.mxu0 %v7640
  %8871 = vmatmul.mubr.f32.gmra.mrb[0].mxu0 %v7448
  %v8872 = vpop.f32.mrb[0].mxu0
  %v8873 = vadd.f32 %v8488, %v8872
  %v8874 = vpop.f32.mrb[0].mxu0
  %8875 = vmatprep.mubr.f32.mxu0 %v7641
  %8876 = vmatmul.mubr.f32.gmra.mrb[0].mxu0 %v7449
  %v8877 = vpop.f32.mrb[0].mxu0
  %v8878 = vadd.f32 %v8493, %v8877
  %v8879 = vpop.f32.mrb[0].mxu0
  %8880 = vmatprep.mubr.f32.mxu0 %v7642
  %8881 = vmatmul.mubr.f32.gmra.mrb[0].mxu0 %v7450
  %v8882 = vpop.f32.mrb[0].mxu0
  %v8883 = vadd.f32 %v8498, %v8882
  %v8884 = vpop.f32.mrb[0].mxu0
  %8885 = vmatprep.mubr.f32.mxu0 %v7643
  %8886 = vmatmul.mubr.f32.gmra.mrb[0].mxu0 %v7451
  %v8887 = vpop.f32.mrb[0].mxu0
  %v8888 = vadd.f32 %v8503, %v8887
  %v8889 = vpop.f32.mrb[0].mxu0
  %8890 = vmatprep.mubr.f32.mxu0 %v7644
  %8891 = vmatmul.mubr.f32.gmra.mrb[0].mxu0 %v7452
  %v8892 = vpop.f32.mrb[0].mxu0
  %v8893 = vadd.f32 %v8508, %v8892
  %v8894 = vpop.f32.mrb[0].mxu0
  %8895 = vmatprep.mubr.f32.mxu0 %v7645
  %8896 = vmatmul.mubr.f32.gmra.mrb[0].mxu0 %v7453
  %v8897 = vpop.f32.mrb[0].mxu0
  %v8898 = vadd.f32 %v8513, %v8897
  %v8899 = vpop.f32.mrb[0].mxu0
  %8900 = vmatprep.mubr.f32.mxu0 %v7646
  %8901 = vmatmul.mubr.f32.gmra.mrb[0].mxu0 %v7454
  %v8902 = vpop.f32.mrb[0].mxu0
  %v8903 = vadd.f32 %v8518, %v8902
  %v8904 = vpop.f32.mrb[0].mxu0
  %8905 = vmatprep.mubr.f32.mxu0 %v7647
  %8906 = vmatmul.mubr.f32.gmra.mrb[0].mxu0 %v7455
  %v8907 = vpop.f32.mrb[0].mxu0
  %v8908 = vadd.f32 %v8523, %v8907
  %v8909 = vpop.f32.mrb[0].mxu0
  %8910 = vmatprep.mubr.f32.mxu0 %v7648
  %8911 = vmatmul.mubr.f32.gmra.mrb[0].mxu0 %v7456
  %v8912 = vpop.f32.mrb[0].mxu0
  %v8913 = vadd.f32 %v8528, %v8912
  %v8914 = vpop.f32.mrb[0].mxu0
  %8915 = vmatprep.mubr.f32.mxu0 %v7649
  %8916 = vmatmul.mubr.f32.gmra.mrb[0].mxu0 %v7457
  %v8917 = vpop.f32.mrb[0].mxu0
  %v8918 = vadd.f32 %v8533, %v8917
  %v8919 = vpop.f32.mrb[0].mxu0
  %8920 = vmatprep.mubr.f32.mxu0 %v7650
  %8921 = vmatmul.mubr.f32.gmra.mrb[0].mxu0 %v7458
  %v8922 = vpop.f32.mrb[0].mxu0
  %v8923 = vadd.f32 %v8538, %v8922
  %v8924 = vpop.f32.mrb[0].mxu0
  %8925 = vmatprep.mubr.f32.mxu0 %v7651
  %8926 = vmatmul.mubr.f32.gmra.mrb[0].mxu0 %v7459
  %v8927 = vpop.f32.mrb[0].mxu0
  %v8928 = vadd.f32 %v8543, %v8927
  %v8929 = vpop.f32.mrb[0].mxu0
  %8930 = vmatprep.mubr.f32.mxu0 %v7652
  %8931 = vmatmul.mubr.f32.gmra.mrb[0].mxu0 %v7460
  %v8932 = vpop.f32.mrb[0].mxu0
  %v8933 = vadd.f32 %v8548, %v8932
  %v8934 = vpop.f32.mrb[0].mxu0
  %8935 = vmatprep.mubr.f32.mxu0 %v7653
  %8936 = vmatmul.mubr.f32.gmra.mrb[0].mxu0 %v7461
  %v8937 = vpop.f32.mrb[0].mxu0
  %v8938 = vadd.f32 %v8553, %v8937
  %v8939 = vpop.f32.mrb[0].mxu0
  %8940 = vmatprep.mubr.f32.mxu0 %v7654
  %8941 = vmatmul.mubr.f32.gmra.mrb[0].mxu0 %v7462
  %v8942 = vpop.f32.mrb[0].mxu0
  %v8943 = vadd.f32 %v8558, %v8942
  %v8944 = vpop.f32.mrb[0].mxu0
  %8945 = vmatprep.mubr.f32.mxu0 %v7655
  %8946 = vmatmul.mubr.f32.gmra.mrb[0].mxu0 %v7463
  %v8947 = vpop.f32.mrb[0].mxu0
  %v8948 = vadd.f32 %v8563, %v8947
  %v8949 = vpop.f32.mrb[0].mxu0
  %8950 = vmatprep.mubr.f32.mxu0 %v7656
  %8951 = vmatmul.mubr.f32.gmra.mrb[0].mxu0 %v7464
  %v8952 = vpop.f32.mrb[0].mxu0
  %v8953 = vadd.f32 %v8568, %v8952
  %v8954 = vpop.f32.mrb[0].mxu0
  %8955 = vmatprep.mubr.f32.mxu0 %v7657
  %8956 = vmatmul.mubr.f32.gmra.mrb[0].mxu0 %v7465
  %v8957 = vpop.f32.mrb[0].mxu0
  %v8958 = vadd.f32 %v8573, %v8957
  %v8959 = vpop.f32.mrb[0].mxu0
  %8960 = vmatprep.mubr.f32.mxu0 %v7658
  %8961 = vmatmul.mubr.f32.gmra.mrb[0].mxu0 %v7466
  %v8962 = vpop.f32.mrb[0].mxu0
  %v8963 = vadd.f32 %v8578, %v8962
  %v8964 = vpop.f32.mrb[0].mxu0
  %8965 = vmatprep.mubr.f32.mxu0 %v7659
  %8966 = vmatmul.mubr.f32.gmra.mrb[0].mxu0 %v7467
  %v8967 = vpop.f32.mrb[0].mxu0
  %v8968 = vadd.f32 %v8583, %v8967
  %v8969 = vpop.f32.mrb[0].mxu0
  %8970 = vmatprep.mubr.f32.mxu0 %v7660
  %8971 = vmatmul.mubr.f32.gmra.mrb[0].mxu0 %v7468
  %v8972 = vpop.f32.mrb[0].mxu0
  %v8973 = vadd.f32 %v8588, %v8972
  %v8974 = vpop.f32.mrb[0].mxu0
  %8975 = vmatprep.mubr.f32.mxu0 %v7661
  %8976 = vmatmul.mubr.f32.gmra.mrb[0].mxu0 %v7469
  %v8977 = vpop.f32.mrb[0].mxu0
  %v8978 = vadd.f32 %v8593, %v8977
  %v8979 = vpop.f32.mrb[0].mxu0
  %8980 = vmatprep.mubr.f32.mxu0 %v7662
  %8981 = vmatmul.mubr.f32.gmra.mrb[0].mxu0 %v7470
  %v8982 = vpop.f32.mrb[0].mxu0
  %v8983 = vadd.f32 %v8598, %v8982
  %v8984 = vpop.f32.mrb[0].mxu0
  %8985 = vmatprep.mubr.f32.mxu0 %v7663
  %8986 = vmatmul.mubr.f32.gmra.mrb[0].mxu0 %v7471
  %v8987 = vpop.f32.mrb[0].mxu0
  %v8988 = vadd.f32 %v8603, %v8987
  %v8989 = vpop.f32.mrb[0].mxu0
  %8990 = vmatprep.mubr.f32.mxu0 %v7664
  %8991 = vmatmul.mubr.f32.gmra.mrb[0].mxu0 %v7472
  %v8992 = vpop.f32.mrb[0].mxu0
  %v8993 = vadd.f32 %v8608, %v8992
  %v8994 = vpop.f32.mrb[0].mxu0
  %8995 = vmatprep.mubr.f32.mxu0 %v7665
  %8996 = vmatmul.mubr.f32.gmra.mrb[0].mxu0 %v7473
  %v8997 = vpop.f32.mrb[0].mxu0
  %v8998 = vadd.f32 %v8613, %v8997
  %v8999 = vpop.f32.mrb[0].mxu0
  %9000 = vmatprep.mubr.f32.mxu0 %v7666
  %9001 = vmatmul.mubr.f32.gmra.mrb[0].mxu0 %v7474
  %v9002 = vpop.f32.mrb[0].mxu0
  %v9003 = vadd.f32 %v8618, %v9002
  %v9004 = vpop.f32.mrb[0].mxu0
  %9005 = vmatprep.mubr.f32.mxu0 %v7667
  %9006 = vmatmul.mubr.f32.gmra.mrb[0].mxu0 %v7475
  %v9007 = vpop.f32.mrb[0].mxu0
  %v9008 = vadd.f32 %v8623, %v9007
  %v9009 = vpop.f32.mrb[0].mxu0
  %9010 = vmatprep.mubr.f32.mxu0 %v7668
  %9011 = vmatmul.mubr.f32.gmra.mrb[0].mxu0 %v7476
  %v9012 = vpop.f32.mrb[0].mxu0
  %v9013 = vadd.f32 %v8628, %v9012
  %v9014 = vpop.f32.mrb[0].mxu0
  %9015 = vmatprep.mubr.f32.mxu0 %v7669
  %9016 = vmatmul.mubr.f32.gmra.mrb[0].mxu0 %v7477
  %v9017 = vpop.f32.mrb[0].mxu0
  %v9018 = vadd.f32 %v8633, %v9017
  %v9019 = vpop.f32.mrb[0].mxu0
  %9020 = vmatprep.mubr.f32.mxu0 %v7670
  %9021 = vmatmul.mubr.f32.gmra.mrb[0].mxu0 %v7478
  %v9022 = vpop.f32.mrb[0].mxu0
  %v9023 = vadd.f32 %v8638, %v9022
  %v9024 = vpop.f32.mrb[0].mxu0
  %9025 = vmatprep.mubr.f32.mxu0 %v7671
  %9026 = vmatmul.mubr.f32.gmra.mrb[0].mxu0 %v7479
  %v9027 = vpop.f32.mrb[0].mxu0
  %v9028 = vadd.f32 %v8643, %v9027
  %v9029 = vpop.f32.mrb[0].mxu0
  %9030 = vmatprep.mubr.f32.mxu0 %v7672
  %9031 = vmatmul.mubr.f32.gmra.mrb[0].mxu0 %v7480
  %v9032 = vpop.f32.mrb[0].mxu0
  %v9033 = vadd.f32 %v8648, %v9032
  %v9034 = vpop.f32.mrb[0].mxu0
  %9035 = vmatprep.mubr.f32.mxu0 %v7673
  %9036 = vmatmul.mubr.f32.gmra.mrb[0].mxu0 %v7481
  %v9037 = vpop.f32.mrb[0].mxu0
  %v9038 = vadd.f32 %v8653, %v9037
  %v9039 = vpop.f32.mrb[0].mxu0
  %9040 = vmatprep.mubr.f32.mxu0 %v7674
  %9041 = vmatmul.mubr.f32.gmra.mrb[0].mxu0 %v7482
  %v9042 = vpop.f32.mrb[0].mxu0
  %v9043 = vadd.f32 %v8658, %v9042
  %v9044 = vpop.f32.mrb[0].mxu0
  %9045 = vmatprep.mubr.f32.mxu0 %v7675
  %9046 = vmatmul.mubr.f32.gmra.mrb[0].mxu0 %v7483
  %v9047 = vpop.f32.mrb[0].mxu0
  %v9048 = vadd.f32 %v8663, %v9047
  %v9049 = vpop.f32.mrb[0].mxu0
  %9050 = vmatprep.mubr.f32.mxu0 %v7676
  %9051 = vmatmul.mubr.f32.gmra.mrb[0].mxu0 %v7484
  %v9052 = vpop.f32.mrb[0].mxu0
  %v9053 = vadd.f32 %v8668, %v9052
  %v9054 = vpop.f32.mrb[0].mxu0
  %9055 = vmatprep.mubr.f32.mxu0 %v7677
  %9056 = vmatmul.mubr.f32.gmra.mrb[0].mxu0 %v7485
  %v9057 = vpop.f32.mrb[0].mxu0
  %v9058 = vadd.f32 %v8673, %v9057
  %v9059 = vpop.f32.mrb[0].mxu0
  %9060 = vmatprep.mubr.f32.mxu0 %v7678
  %9061 = vmatmul.mubr.f32.gmra.mrb[0].mxu0 %v7486
  %v9062 = vpop.f32.mrb[0].mxu0
  %v9063 = vadd.f32 %v8678, %v9062
  %v9064 = vpop.f32.mrb[0].mxu0
  %9065 = vmatprep.mubr.f32.mxu0 %v7679
  %9066 = vmatmul.mubr.f32.gmra.mrb[0].mxu0 %v7487
  %v9067 = vpop.f32.mrb[0].mxu0
  %v9068 = vadd.f32 %v8683, %v9067
  %v9069 = vpop.f32.mrb[0].mxu0
  %9070 = vmatprep.mubr.f32.mxu0 %v7680
  %9071 = vmatmul.mubr.f32.gmra.mrb[0].mxu0 %v7488
  %v9072 = vpop.f32.mrb[0].mxu0
  %v9073 = vadd.f32 %v8688, %v9072
  %v9074 = vpop.f32.mrb[0].mxu0
  %9075 = vmatprep.mubr.f32.mxu0 %v7681
  %9076 = vmatmul.mubr.f32.gmra.mrb[0].mxu0 %v7489
  %v9077 = vpop.f32.mrb[0].mxu0
  %v9078 = vadd.f32 %v8693, %v9077
  %v9079 = vpop.f32.mrb[0].mxu0
  %9080 = vmatprep.mubr.f32.mxu0 %v7682
  %9081 = vmatmul.mubr.f32.gmra.mrb[0].mxu0 %v7490
  %v9082 = vpop.f32.mrb[0].mxu0
  %v9083 = vadd.f32 %v8698, %v9082
  %v9084 = vpop.f32.mrb[0].mxu0
  %9085 = vmatprep.mubr.f32.mxu0 %v7683
  %9086 = vmatmul.mubr.f32.gmra.mrb[0].mxu0 %v7491
  %v9087 = vpop.f32.mrb[0].mxu0
  %v9088 = vadd.f32 %v8703, %v9087
  %v9089 = vpop.f32.mrb[0].mxu0
  %9090 = vmatprep.mubr.f32.mxu0 %v7684
  %9091 = vmatmul.mubr.f32.gmra.mrb[0].mxu0 %v7492
  %v9092 = vpop.f32.mrb[0].mxu0
  %v9093 = vadd.f32 %v8708, %v9092
  %v9094 = vpop.f32.mrb[0].mxu0
  %9095 = vmatprep.mubr.f32.mxu0 %v7685
  %9096 = vmatmul.mubr.f32.gmra.mrb[0].mxu0 %v7493
  %v9097 = vpop.f32.mrb[0].mxu0
  %v9098 = vadd.f32 %v8713, %v9097
  %v9099 = vpop.f32.mrb[0].mxu0
  %9100 = vmatprep.mubr.f32.mxu0 %v7686
  %9101 = vmatmul.mubr.f32.gmra.mrb[0].mxu0 %v7494
  %v9102 = vpop.f32.mrb[0].mxu0
  %v9103 = vadd.f32 %v8718, %v9102
  %v9104 = vpop.f32.mrb[0].mxu0
  %9105 = vmatprep.mubr.f32.mxu0 %v7687
  %9106 = vmatmul.mubr.f32.gmra.mrb[0].mxu0 %v7495
  %v9107 = vpop.f32.mrb[0].mxu0
  %v9108 = vadd.f32 %v8723, %v9107
  %v9109 = vpop.f32.mrb[0].mxu0
  %9110 = vmatprep.mubr.f32.mxu0 %v7688
  %9111 = vmatmul.mubr.f32.gmra.mrb[0].mxu0 %v7496
  %v9112 = vpop.f32.mrb[0].mxu0
  %v9113 = vadd.f32 %v8728, %v9112
  %v9114 = vpop.f32.mrb[0].mxu0
  %9115 = vmatprep.mubr.f32.mxu0 %v7689
  %9116 = vmatmul.mubr.f32.gmra.mrb[0].mxu0 %v7497
  %v9117 = vpop.f32.mrb[0].mxu0
  %v9118 = vadd.f32 %v8733, %v9117
  %v9119 = vpop.f32.mrb[0].mxu0
  %9120 = vmatprep.mubr.f32.mxu0 %v7690
  %9121 = vmatmul.mubr.f32.gmra.mrb[0].mxu0 %v7498
  %v9122 = vpop.f32.mrb[0].mxu0
  %v9123 = vadd.f32 %v8738, %v9122
  %v9124 = vpop.f32.mrb[0].mxu0
  %9125 = vmatprep.mubr.f32.mxu0 %v7691
  %9126 = vmatmul.mubr.f32.gmra.mrb[0].mxu0 %v7499
  %v9127 = vpop.f32.mrb[0].mxu0
  %v9128 = vadd.f32 %v8743, %v9127
  %v9129 = vpop.f32.mrb[0].mxu0
  %9130 = vmatprep.mubr.f32.mxu0 %v7692
  %9131 = vmatmul.mubr.f32.gmra.mrb[0].mxu0 %v7500
  %v9132 = vpop.f32.mrb[0].mxu0
  %v9133 = vadd.f32 %v8748, %v9132
  %v9134 = vpop.f32.mrb[0].mxu0
  %9135 = vmatprep.mubr.f32.mxu0 %v7693
  %9136 = vmatmul.mubr.f32.gmra.mrb[0].mxu0 %v7501
  %v9137 = vpop.f32.mrb[0].mxu0
  %v9138 = vadd.f32 %v8753, %v9137
  %v9139 = vpop.f32.mrb[0].mxu0
  %9140 = vdwg.mxu0
  %9141 = vmatprep.subr.mxu0 0.0
  %9142 = vmatpush1.msra.mxu0 %v7790
  %9143 = vmatprep.subr.mxu0 0.0
  %9144 = vmatpush1.msra.mxu0 %v7791
  %9145 = vmatprep.subr.mxu0 0.0
  %9146 = vmatpush1.msra.mxu0 %v7792
  %9147 = vmatprep.subr.mxu0 0.0
  %9148 = vmatpush1.msra.mxu0 %v7793
  %9149 = vmatprep.subr.mxu0 0.0
  %9150 = vmatpush1.msra.mxu0 0.0
  %9151 = vmatprep.subr.mxu0 0.0
  %9152 = vmatpush1.msra.mxu0 0.0
  %9153 = vmatprep.subr.mxu0 0.0
  %9154 = vmatpush1.msra.mxu0 0.0
  %9155 = vmatprep.subr.mxu0 0.0
  %9156 = vmatpush1.msra.mxu0 0.0
  %9157 = vmatprep.subr.mxu0 0.0
  %9158 = vmatpush1.msra.mxu0 0.0
  %9159 = vmatprep.subr.mxu0 0.0
  %9160 = vmatpush1.msra.mxu0 0.0
  %9161 = vmatprep.subr.mxu0 0.0
  %9162 = vmatpush1.msra.mxu0 0.0
  %9163 = vmatprep.subr.mxu0 0.0
  %9164 = vmatpush1.msra.mxu0 0.0
  %9165 = vmatprep.subr.mxu0 0.0
  %9166 = vmatpush1.msra.mxu0 0.0
  %9167 = vmatprep.subr.mxu0 0.0
  %9168 = vmatpush1.msra.mxu0 0.0
  %9169 = vmatprep.subr.mxu0 0.0
  %9170 = vmatpush1.msra.mxu0 0.0
  %9171 = vmatprep.subr.mxu0 0.0
  %9172 = vmatpush1.msra.mxu0 0.0
  %9173 = vmatprep.subr.mxu0 0.0
  %9174 = vmatpush1.msra.mxu0 0.0
  %9175 = vmatprep.subr.mxu0 0.0
  %9176 = vmatpush1.msra.mxu0 0.0
  %9177 = vmatprep.subr.mxu0 0.0
  %9178 = vmatpush1.msra.mxu0 0.0
  %9179 = vmatprep.subr.mxu0 0.0
  %9180 = vmatpush1.msra.mxu0 0.0
  %9181 = vmatprep.subr.mxu0 0.0
  %9182 = vmatpush1.msra.mxu0 0.0
  %9183 = vmatprep.subr.mxu0 0.0
  %9184 = vmatpush1.msra.mxu0 0.0
  %9185 = vmatprep.subr.mxu0 0.0
  %9186 = vmatpush1.msra.mxu0 0.0
  %9187 = vmatprep.subr.mxu0 0.0
  %9188 = vmatpush1.msra.mxu0 0.0
  %9189 = vmatprep.subr.mxu0 0.0
  %9190 = vmatpush1.msra.mxu0 0.0
  %9191 = vmatprep.subr.mxu0 0.0
  %9192 = vmatpush1.msra.mxu0 0.0
  %9193 = vmatprep.subr.mxu0 0.0
  %9194 = vmatpush1.msra.mxu0 0.0
  %9195 = vmatprep.subr.mxu0 0.0
  %9196 = vmatpush1.msra.mxu0 0.0
  %9197 = vmatprep.subr.mxu0 0.0
  %9198 = vmatpush1.msra.mxu0 0.0
  %9199 = vmatprep.subr.mxu0 0.0
  %9200 = vmatpush1.msra.mxu0 0.0
  %9201 = vmatprep.subr.mxu0 0.0
  %9202 = vmatpush1.msra.mxu0 0.0
  %9203 = vmatprep.subr.mxu0 0.0
  %9204 = vmatpush1.msra.mxu0 0.0
  %9205 = vmatprep.mubr.f32.mxu0 0.0
  %9206 = vmatmul.mubr.f32.gmra.mrb[0].mxu0 %v7795
  %v9207 = vpop.f32.mrb[0].mxu0
  %v9208 = vadd.f32 %v8823, %v9207
  %v9209 = vpop.f32.mrb[0].mxu0
  %9210 = vmatprep.mubr.f32.mxu0 0.0
  %9211 = vmatmul.mubr.f32.gmra.mrb[0].mxu0 %v7798
  %v9212 = vpop.f32.mrb[0].mxu0
  %v9213 = vadd.f32 %v8828, %v9212
  %v9214 = vpop.f32.mrb[0].mxu0
  %9215 = vmatprep.mubr.f32.mxu0 0.0
  %9216 = vmatmul.mubr.f32.gmra.mrb[0].mxu0 %v7801
  %v9217 = vpop.f32.mrb[0].mxu0
  %v9218 = vadd.f32 %v8833, %v9217
  %v9219 = vpop.f32.mrb[0].mxu0
  %9220 = vmatprep.mubr.f32.mxu0 0.0
  %9221 = vmatmul.mubr.f32.gmra.mrb[0].mxu0 %v7804
  %v9222 = vpop.f32.mrb[0].mxu0
  %v9223 = vadd.f32 %v8838, %v9222
  %v9224 = vpop.f32.mrb[0].mxu0
  %9225 = vmatprep.mubr.f32.mxu0 0.0
  %9226 = vmatmul.mubr.f32.gmra.mrb[0].mxu0 %v7807
  %v9227 = vpop.f32.mrb[0].mxu0
  %v9228 = vadd.f32 %v8843, %v9227
  %v9229 = vpop.f32.mrb[0].mxu0
  %9230 = vmatprep.mubr.f32.mxu0 0.0
  %9231 = vmatmul.mubr.f32.gmra.mrb[0].mxu0 %v7810
  %v9232 = vpop.f32.mrb[0].mxu0
  %v9233 = vadd.f32 %v8848, %v9232
  %v9234 = vpop.f32.mrb[0].mxu0
  %9235 = vmatprep.mubr.f32.mxu0 0.0
  %9236 = vmatmul.mubr.f32.gmra.mrb[0].mxu0 %v7813
  %v9237 = vpop.f32.mrb[0].mxu0
  %v9238 = vadd.f32 %v8853, %v9237
  %v9239 = vpop.f32.mrb[0].mxu0
  %9240 = vmatprep.mubr.f32.mxu0 0.0
  %9241 = vmatmul.mubr.f32.gmra.mrb[0].mxu0 %v7816
  %v9242 = vpop.f32.mrb[0].mxu0
  %v9243 = vadd.f32 %v8858, %v9242
  %v9244 = vpop.f32.mrb[0].mxu0
  %9245 = vmatprep.mubr.f32.mxu0 0.0
  %9246 = vmatmul.mubr.f32.gmra.mrb[0].mxu0 %v7819
  %v9247 = vpop.f32.mrb[0].mxu0
  %v9248 = vadd.f32 %v8863, %v9247
  %v9249 = vpop.f32.mrb[0].mxu0
  %9250 = vmatprep.mubr.f32.mxu0 0.0
  %9251 = vmatmul.mubr.f32.gmra.mrb[0].mxu0 %v7822
  %v9252 = vpop.f32.mrb[0].mxu0
  %v9253 = vadd.f32 %v8868, %v9252
  %v9254 = vpop.f32.mrb[0].mxu0
  %9255 = vmatprep.mubr.f32.mxu0 0.0
  %9256 = vmatmul.mubr.f32.gmra.mrb[0].mxu0 %v7825
  %v9257 = vpop.f32.mrb[0].mxu0
  %v9258 = vadd.f32 %v8873, %v9257
  %v9259 = vpop.f32.mrb[0].mxu0
  %9260 = vmatprep.mubr.f32.mxu0 0.0
  %9261 = vmatmul.mubr.f32.gmra.mrb[0].mxu0 %v7828
  %v9262 = vpop.f32.mrb[0].mxu0
  %v9263 = vadd.f32 %v8878, %v9262
  %v9264 = vpop.f32.mrb[0].mxu0
  %9265 = vmatprep.mubr.f32.mxu0 0.0
  %9266 = vmatmul.mubr.f32.gmra.mrb[0].mxu0 %v7831
  %v9267 = vpop.f32.mrb[0].mxu0
  %v9268 = vadd.f32 %v8883, %v9267
  %v9269 = vpop.f32.mrb[0].mxu0
  %9270 = vmatprep.mubr.f32.mxu0 0.0
  %9271 = vmatmul.mubr.f32.gmra.mrb[0].mxu0 %v7834
  %v9272 = vpop.f32.mrb[0].mxu0
  %v9273 = vadd.f32 %v8888, %v9272
  %v9274 = vpop.f32.mrb[0].mxu0
  %9275 = vmatprep.mubr.f32.mxu0 0.0
  %9276 = vmatmul.mubr.f32.gmra.mrb[0].mxu0 %v7837
  %v9277 = vpop.f32.mrb[0].mxu0
  %v9278 = vadd.f32 %v8893, %v9277
  %v9279 = vpop.f32.mrb[0].mxu0
  %9280 = vmatprep.mubr.f32.mxu0 0.0
  %9281 = vmatmul.mubr.f32.gmra.mrb[0].mxu0 %v7840
  %v9282 = vpop.f32.mrb[0].mxu0
  %v9283 = vadd.f32 %v8898, %v9282
  %v9284 = vpop.f32.mrb[0].mxu0
  %9285 = vmatprep.mubr.f32.mxu0 0.0
  %9286 = vmatmul.mubr.f32.gmra.mrb[0].mxu0 %v7843
  %v9287 = vpop.f32.mrb[0].mxu0
  %v9288 = vadd.f32 %v8903, %v9287
  %v9289 = vpop.f32.mrb[0].mxu0
  %9290 = vmatprep.mubr.f32.mxu0 0.0
  %9291 = vmatmul.mubr.f32.gmra.mrb[0].mxu0 %v7846
  %v9292 = vpop.f32.mrb[0].mxu0
  %v9293 = vadd.f32 %v8908, %v9292
  %v9294 = vpop.f32.mrb[0].mxu0
  %9295 = vmatprep.mubr.f32.mxu0 0.0
  %9296 = vmatmul.mubr.f32.gmra.mrb[0].mxu0 %v7849
  %v9297 = vpop.f32.mrb[0].mxu0
  %v9298 = vadd.f32 %v8913, %v9297
  %v9299 = vpop.f32.mrb[0].mxu0
  %9300 = vmatprep.mubr.f32.mxu0 0.0
  %9301 = vmatmul.mubr.f32.gmra.mrb[0].mxu0 %v7852
  %v9302 = vpop.f32.mrb[0].mxu0
  %v9303 = vadd.f32 %v8918, %v9302
  %v9304 = vpop.f32.mrb[0].mxu0
  %9305 = vmatprep.mubr.f32.mxu0 0.0
  %9306 = vmatmul.mubr.f32.gmra.mrb[0].mxu0 %v7855
  %v9307 = vpop.f32.mrb[0].mxu0
  %v9308 = vadd.f32 %v8923, %v9307
  %v9309 = vpop.f32.mrb[0].mxu0
  %9310 = vmatprep.mubr.f32.mxu0 0.0
  %9311 = vmatmul.mubr.f32.gmra.mrb[0].mxu0 %v7858
  %v9312 = vpop.f32.mrb[0].mxu0
  %v9313 = vadd.f32 %v8928, %v9312
  %v9314 = vpop.f32.mrb[0].mxu0
  %9315 = vmatprep.mubr.f32.mxu0 0.0
  %9316 = vmatmul.mubr.f32.gmra.mrb[0].mxu0 %v7861
  %v9317 = vpop.f32.mrb[0].mxu0
  %v9318 = vadd.f32 %v8933, %v9317
  %v9319 = vpop.f32.mrb[0].mxu0
  %9320 = vmatprep.mubr.f32.mxu0 0.0
  %9321 = vmatmul.mubr.f32.gmra.mrb[0].mxu0 %v7864
  %v9322 = vpop.f32.mrb[0].mxu0
  %v9323 = vadd.f32 %v8938, %v9322
  %v9324 = vpop.f32.mrb[0].mxu0
  %9325 = vmatprep.mubr.f32.mxu0 0.0
  %9326 = vmatmul.mubr.f32.gmra.mrb[0].mxu0 %v7867
  %v9327 = vpop.f32.mrb[0].mxu0
  %v9328 = vadd.f32 %v8943, %v9327
  %v9329 = vpop.f32.mrb[0].mxu0
  %9330 = vmatprep.mubr.f32.mxu0 0.0
  %9331 = vmatmul.mubr.f32.gmra.mrb[0].mxu0 %v7870
  %v9332 = vpop.f32.mrb[0].mxu0
  %v9333 = vadd.f32 %v8948, %v9332
  %v9334 = vpop.f32.mrb[0].mxu0
  %9335 = vmatprep.mubr.f32.mxu0 0.0
  %9336 = vmatmul.mubr.f32.gmra.mrb[0].mxu0 %v7873
  %v9337 = vpop.f32.mrb[0].mxu0
  %v9338 = vadd.f32 %v8953, %v9337
  %v9339 = vpop.f32.mrb[0].mxu0
  %9340 = vmatprep.mubr.f32.mxu0 0.0
  %9341 = vmatmul.mubr.f32.gmra.mrb[0].mxu0 %v7876
  %v9342 = vpop.f32.mrb[0].mxu0
  %v9343 = vadd.f32 %v8958, %v9342
  %v9344 = vpop.f32.mrb[0].mxu0
  %9345 = vmatprep.mubr.f32.mxu0 0.0
  %9346 = vmatmul.mubr.f32.gmra.mrb[0].mxu0 %v7879
  %v9347 = vpop.f32.mrb[0].mxu0
  %v9348 = vadd.f32 %v8963, %v9347
  %v9349 = vpop.f32.mrb[0].mxu0
  %9350 = vmatprep.mubr.f32.mxu0 0.0
  %9351 = vmatmul.mubr.f32.gmra.mrb[0].mxu0 %v7882
  %v9352 = vpop.f32.mrb[0].mxu0
  %v9353 = vadd.f32 %v8968, %v9352
  %v9354 = vpop.f32.mrb[0].mxu0
  %9355 = vmatprep.mubr.f32.mxu0 0.0
  %9356 = vmatmul.mubr.f32.gmra.mrb[0].mxu0 %v7885
  %v9357 = vpop.f32.mrb[0].mxu0
  %v9358 = vadd.f32 %v8973, %v9357
  %v9359 = vpop.f32.mrb[0].mxu0
  %9360 = vmatprep.mubr.f32.mxu0 0.0
  %9361 = vmatmul.mubr.f32.gmra.mrb[0].mxu0 %v7888
  %v9362 = vpop.f32.mrb[0].mxu0
  %v9363 = vadd.f32 %v8978, %v9362
  %v9364 = vpop.f32.mrb[0].mxu0
  %9365 = vmatprep.mubr.f32.mxu0 0.0
  %9366 = vmatmul.mubr.f32.gmra.mrb[0].mxu0 %v7891
  %v9367 = vpop.f32.mrb[0].mxu0
  %v9368 = vadd.f32 %v8983, %v9367
  %v9369 = vpop.f32.mrb[0].mxu0
  %9370 = vmatprep.mubr.f32.mxu0 0.0
  %9371 = vmatmul.mubr.f32.gmra.mrb[0].mxu0 %v7894
  %v9372 = vpop.f32.mrb[0].mxu0
  %v9373 = vadd.f32 %v8988, %v9372
  %v9374 = vpop.f32.mrb[0].mxu0
  %9375 = vmatprep.mubr.f32.mxu0 0.0
  %9376 = vmatmul.mubr.f32.gmra.mrb[0].mxu0 %v7897
  %v9377 = vpop.f32.mrb[0].mxu0
  %v9378 = vadd.f32 %v8993, %v9377
  %v9379 = vpop.f32.mrb[0].mxu0
  %9380 = vmatprep.mubr.f32.mxu0 0.0
  %9381 = vmatmul.mubr.f32.gmra.mrb[0].mxu0 %v7900
  %v9382 = vpop.f32.mrb[0].mxu0
  %v9383 = vadd.f32 %v8998, %v9382
  %v9384 = vpop.f32.mrb[0].mxu0
  %9385 = vmatprep.mubr.f32.mxu0 0.0
  %9386 = vmatmul.mubr.f32.gmra.mrb[0].mxu0 %v7903
  %v9387 = vpop.f32.mrb[0].mxu0
  %v9388 = vadd.f32 %v9003, %v9387
  %v9389 = vpop.f32.mrb[0].mxu0
  %9390 = vmatprep.mubr.f32.mxu0 0.0
  %9391 = vmatmul.mubr.f32.gmra.mrb[0].mxu0 %v7906
  %v9392 = vpop.f32.mrb[0].mxu0
  %v9393 = vadd.f32 %v9008, %v9392
  %v9394 = vpop.f32.mrb[0].mxu0
  %9395 = vmatprep.mubr.f32.mxu0 0.0
  %9396 = vmatmul.mubr.f32.gmra.mrb[0].mxu0 %v7909
  %v9397 = vpop.f32.mrb[0].mxu0
  %v9398 = vadd.f32 %v9013, %v9397
  %v9399 = vpop.f32.mrb[0].mxu0
  %9400 = vmatprep.mubr.f32.mxu0 0.0
  %9401 = vmatmul.mubr.f32.gmra.mrb[0].mxu0 %v7912
  %v9402 = vpop.f32.mrb[0].mxu0
  %v9403 = vadd.f32 %v9018, %v9402
  %v9404 = vpop.f32.mrb[0].mxu0
  %9405 = vmatprep.mubr.f32.mxu0 0.0
  %9406 = vmatmul.mubr.f32.gmra.mrb[0].mxu0 %v7915
  %v9407 = vpop.f32.mrb[0].mxu0
  %v9408 = vadd.f32 %v9023, %v9407
  %v9409 = vpop.f32.mrb[0].mxu0
  %9410 = vmatprep.mubr.f32.mxu0 0.0
  %9411 = vmatmul.mubr.f32.gmra.mrb[0].mxu0 %v7918
  %v9412 = vpop.f32.mrb[0].mxu0
  %v9413 = vadd.f32 %v9028, %v9412
  %v9414 = vpop.f32.mrb[0].mxu0
  %9415 = vmatprep.mubr.f32.mxu0 0.0
  %9416 = vmatmul.mubr.f32.gmra.mrb[0].mxu0 %v7921
  %v9417 = vpop.f32.mrb[0].mxu0
  %v9418 = vadd.f32 %v9033, %v9417
  %v9419 = vpop.f32.mrb[0].mxu0
  %9420 = vmatprep.mubr.f32.mxu0 0.0
  %9421 = vmatmul.mubr.f32.gmra.mrb[0].mxu0 %v7924
  %v9422 = vpop.f32.mrb[0].mxu0
  %v9423 = vadd.f32 %v9038, %v9422
  %v9424 = vpop.f32.mrb[0].mxu0
  %9425 = vmatprep.mubr.f32.mxu0 0.0
  %9426 = vmatmul.mubr.f32.gmra.mrb[0].mxu0 %v7927
  %v9427 = vpop.f32.mrb[0].mxu0
  %v9428 = vadd.f32 %v9043, %v9427
  %v9429 = vpop.f32.mrb[0].mxu0
  %9430 = vmatprep.mubr.f32.mxu0 0.0
  %9431 = vmatmul.mubr.f32.gmra.mrb[0].mxu0 %v7930
  %v9432 = vpop.f32.mrb[0].mxu0
  %v9433 = vadd.f32 %v9048, %v9432
  %v9434 = vpop.f32.mrb[0].mxu0
  %9435 = vmatprep.mubr.f32.mxu0 0.0
  %9436 = vmatmul.mubr.f32.gmra.mrb[0].mxu0 %v7933
  %v9437 = vpop.f32.mrb[0].mxu0
  %v9438 = vadd.f32 %v9053, %v9437
  %v9439 = vpop.f32.mrb[0].mxu0
  %9440 = vmatprep.mubr.f32.mxu0 0.0
  %9441 = vmatmul.mubr.f32.gmra.mrb[0].mxu0 %v7936
  %v9442 = vpop.f32.mrb[0].mxu0
  %v9443 = vadd.f32 %v9058, %v9442
  %v9444 = vpop.f32.mrb[0].mxu0
  %9445 = vmatprep.mubr.f32.mxu0 0.0
  %9446 = vmatmul.mubr.f32.gmra.mrb[0].mxu0 %v7939
  %v9447 = vpop.f32.mrb[0].mxu0
  %v9448 = vadd.f32 %v9063, %v9447
  %v9449 = vpop.f32.mrb[0].mxu0
  %9450 = vmatprep.mubr.f32.mxu0 0.0
  %9451 = vmatmul.mubr.f32.gmra.mrb[0].mxu0 %v7942
  %v9452 = vpop.f32.mrb[0].mxu0
  %v9453 = vadd.f32 %v9068, %v9452
  %v9454 = vpop.f32.mrb[0].mxu0
  %9455 = vmatprep.mubr.f32.mxu0 0.0
  %9456 = vmatmul.mubr.f32.gmra.mrb[0].mxu0 %v7945
  %v9457 = vpop.f32.mrb[0].mxu0
  %v9458 = vadd.f32 %v9073, %v9457
  %v9459 = vpop.f32.mrb[0].mxu0
  %9460 = vmatprep.mubr.f32.mxu0 0.0
  %9461 = vmatmul.mubr.f32.gmra.mrb[0].mxu0 %v7948
  %v9462 = vpop.f32.mrb[0].mxu0
  %v9463 = vadd.f32 %v9078, %v9462
  %v9464 = vpop.f32.mrb[0].mxu0
  %9465 = vmatprep.mubr.f32.mxu0 0.0
  %9466 = vmatmul.mubr.f32.gmra.mrb[0].mxu0 %v7951
  %v9467 = vpop.f32.mrb[0].mxu0
  %v9468 = vadd.f32 %v9083, %v9467
  %v9469 = vpop.f32.mrb[0].mxu0
  %9470 = vmatprep.mubr.f32.mxu0 0.0
  %9471 = vmatmul.mubr.f32.gmra.mrb[0].mxu0 %v7954
  %v9472 = vpop.f32.mrb[0].mxu0
  %v9473 = vadd.f32 %v9088, %v9472
  %v9474 = vpop.f32.mrb[0].mxu0
  %9475 = vmatprep.mubr.f32.mxu0 0.0
  %9476 = vmatmul.mubr.f32.gmra.mrb[0].mxu0 %v7957
  %v9477 = vpop.f32.mrb[0].mxu0
  %v9478 = vadd.f32 %v9093, %v9477
  %v9479 = vpop.f32.mrb[0].mxu0
  %9480 = vmatprep.mubr.f32.mxu0 0.0
  %9481 = vmatmul.mubr.f32.gmra.mrb[0].mxu0 %v7960
  %v9482 = vpop.f32.mrb[0].mxu0
  %v9483 = vadd.f32 %v9098, %v9482
  %v9484 = vpop.f32.mrb[0].mxu0
  %9485 = vmatprep.mubr.f32.mxu0 0.0
  %9486 = vmatmul.mubr.f32.gmra.mrb[0].mxu0 %v7963
  %v9487 = vpop.f32.mrb[0].mxu0
  %v9488 = vadd.f32 %v9103, %v9487
  %v9489 = vpop.f32.mrb[0].mxu0
  %9490 = vmatprep.mubr.f32.mxu0 0.0
  %9491 = vmatmul.mubr.f32.gmra.mrb[0].mxu0 %v7966
  %v9492 = vpop.f32.mrb[0].mxu0
  %v9493 = vadd.f32 %v9108, %v9492
  %v9494 = vpop.f32.mrb[0].mxu0
  %9495 = vmatprep.mubr.f32.mxu0 0.0
  %9496 = vmatmul.mubr.f32.gmra.mrb[0].mxu0 %v7969
  %v9497 = vpop.f32.mrb[0].mxu0
  %v9498 = vadd.f32 %v9113, %v9497
  %v9499 = vpop.f32.mrb[0].mxu0
  %9500 = vmatprep.mubr.f32.mxu0 0.0
  %9501 = vmatmul.mubr.f32.gmra.mrb[0].mxu0 %v7972
  %v9502 = vpop.f32.mrb[0].mxu0
  %v9503 = vadd.f32 %v9118, %v9502
  %v9504 = vpop.f32.mrb[0].mxu0
  %9505 = vmatprep.mubr.f32.mxu0 0.0
  %9506 = vmatmul.mubr.f32.gmra.mrb[0].mxu0 %v7975
  %v9507 = vpop.f32.mrb[0].mxu0
  %v9508 = vadd.f32 %v9123, %v9507
  %v9509 = vpop.f32.mrb[0].mxu0
  %9510 = vmatprep.mubr.f32.mxu0 0.0
  %9511 = vmatmul.mubr.f32.gmra.mrb[0].mxu0 %v7978
  %v9512 = vpop.f32.mrb[0].mxu0
  %v9513 = vadd.f32 %v9128, %v9512
  %v9514 = vpop.f32.mrb[0].mxu0
  %9515 = vmatprep.mubr.f32.mxu0 0.0
  %9516 = vmatmul.mubr.f32.gmra.mrb[0].mxu0 %v7981
  %v9517 = vpop.f32.mrb[0].mxu0
  %v9518 = vadd.f32 %v9133, %v9517
  %v9519 = vpop.f32.mrb[0].mxu0
  %9520 = vmatprep.mubr.f32.mxu0 0.0
  %9521 = vmatmul.mubr.f32.gmra.mrb[0].mxu0 %v7984
  %v9522 = vpop.f32.mrb[0].mxu0
  %v9523 = vadd.f32 %v9138, %v9522
  %v9524 = vpop.f32.mrb[0].mxu0
  %9525 = vdwg.mxu0
  %9526 = vst.msk [vmem:[#allocation3] sm:$0xff] %vm20, 0.0
  %9527 = vst.msk [vmem:[#allocation3 + $0x8] sm:$0xff] %vm20, 0.0
  %9528 = vst.msk [vmem:[#allocation3 + $0x10] sm:$0xff] %vm20, 0.0
  %vm9529 = vcmask 253952
  %9530 = vst.msk [vmem:[#allocation3 + $0x18] sm:$0x1] %vm9529, 0.0
  %9531 = vst.msk [vmem:[#allocation3 + $0x20] sm:$0xff] %vm20, 0.0
  %9532 = vst.msk [vmem:[#allocation3 + $0x28] sm:$0xff] %vm20, 0.0
  %9533 = vst.msk [vmem:[#allocation3 + $0x30] sm:$0xff] %vm20, 0.0
  %9534 = vst.msk [vmem:[#allocation3 + $0x38] sm:$0x1] %vm9529, 0.0
  %9535 = vst.msk [vmem:[#allocation3 + $0x40] sm:$0xff] %vm20, 0.0
  %9536 = vst.msk [vmem:[#allocation3 + $0x48] sm:$0xff] %vm20, 0.0
  %9537 = vst.msk [vmem:[#allocation3 + $0x50] sm:$0xff] %vm20, 0.0
  %9538 = vst.msk [vmem:[#allocation3 + $0x58] sm:$0x1] %vm9529, 0.0
  %9539 = vst.msk [vmem:[#allocation3 + $0x60] sm:$0xff] %vm20, 0.0
  %9540 = vst.msk [vmem:[#allocation3 + $0x68] sm:$0xff] %vm20, 0.0
  %9541 = vst.msk [vmem:[#allocation3 + $0x70] sm:$0xff] %vm20, 0.0
  %9542 = vst.msk [vmem:[#allocation3 + $0x78] sm:$0x1] %vm9529, 0.0
  %9543 = vst.msk [vmem:[#allocation3 + $0x80] sm:$0xff] %vm20, 0.0
  %9544 = vst.msk [vmem:[#allocation3 + $0x88] sm:$0xff] %vm20, 0.0
  %9545 = vst.msk [vmem:[#allocation3 + $0x90] sm:$0xff] %vm20, 0.0
  %9546 = vst.msk [vmem:[#allocation3 + $0x98] sm:$0x1] %vm9529, 0.0
  %9547 = vst.msk [vmem:[#allocation3 + $0xa0] sm:$0xff] %vm20, 0.0
  %9548 = vst.msk [vmem:[#allocation3 + $0xa8] sm:$0xff] %vm20, 0.0
  %9549 = vst.msk [vmem:[#allocation3 + $0xb0] sm:$0xff] %vm20, 0.0
  %9550 = vst.msk [vmem:[#allocation3 + $0xb8] sm:$0x1] %vm9529, 0.0
  %9551 = vst.msk [vmem:[#allocation3 + $0xc0] sm:$0xff] %vm20, 0.0
  %9552 = vst.msk [vmem:[#allocation3 + $0xc8] sm:$0xff] %vm20, 0.0
  %9553 = vst.msk [vmem:[#allocation3 + $0xd0] sm:$0xff] %vm20, 0.0
  %9554 = vst.msk [vmem:[#allocation3 + $0xd8] sm:$0x1] %vm9529, 0.0
  %9555 = vst.msk [vmem:[#allocation3 + $0xe0] sm:$0xff] %vm20, 0.0
  %9556 = vst.msk [vmem:[#allocation3 + $0xe8] sm:$0xff] %vm20, 0.0
  %9557 = vst.msk [vmem:[#allocation3 + $0xf0] sm:$0xff] %vm20, 0.0
  %9558 = vst.msk [vmem:[#allocation3 + $0xf8] sm:$0x1] %vm9529, 0.0
  %9559 = vst.msk [vmem:[#allocation3 + $0x100] sm:$0xff] %vm20, 0.0
  %9560 = vst.msk [vmem:[#allocation3 + $0x108] sm:$0xff] %vm20, 0.0
  %9561 = vst.msk [vmem:[#allocation3 + $0x110] sm:$0xff] %vm20, 0.0
  %9562 = vst.msk [vmem:[#allocation3 + $0x118] sm:$0x1] %vm9529, 0.0
  %9563 = vst.msk [vmem:[#allocation3 + $0x120] sm:$0xff] %vm20, 0.0
  %9564 = vst.msk [vmem:[#allocation3 + $0x128] sm:$0xff] %vm20, 0.0
  %9565 = vst.msk [vmem:[#allocation3 + $0x130] sm:$0xff] %vm20, 0.0
  %9566 = vst.msk [vmem:[#allocation3 + $0x138] sm:$0x1] %vm9529, 0.0
  %9567 = vst.msk [vmem:[#allocation3 + $0x140] sm:$0xff] %vm20, 0.0
  %9568 = vst.msk [vmem:[#allocation3 + $0x148] sm:$0xff] %vm20, 0.0
  %9569 = vst.msk [vmem:[#allocation3 + $0x150] sm:$0xff] %vm20, 0.0
  %9570 = vst.msk [vmem:[#allocation3 + $0x158] sm:$0x1] %vm9529, 0.0
  %9571 = vst.msk [vmem:[#allocation3 + $0x160] sm:$0xff] %vm20, 0.0
  %9572 = vst.msk [vmem:[#allocation3 + $0x168] sm:$0xff] %vm20, 0.0
  %9573 = vst.msk [vmem:[#allocation3 + $0x170] sm:$0xff] %vm20, 0.0
  %9574 = vst.msk [vmem:[#allocation3 + $0x178] sm:$0x1] %vm9529, 0.0
  %9575 = vst.msk [vmem:[#allocation3 + $0x180] sm:$0xff] %vm20, 0.0
  %9576 = vst.msk [vmem:[#allocation3 + $0x188] sm:$0xff] %vm20, 0.0
  %9577 = vst.msk [vmem:[#allocation3 + $0x190] sm:$0xff] %vm20, 0.0
  %9578 = vst.msk [vmem:[#allocation3 + $0x198] sm:$0x1] %vm9529, 0.0
  %9579 = vst.msk [vmem:[#allocation3 + $0x1a0] sm:$0xff] %vm20, 0.0
  %9580 = vst.msk [vmem:[#allocation3 + $0x1a8] sm:$0xff] %vm20, 0.0
  %9581 = vst.msk [vmem:[#allocation3 + $0x1b0] sm:$0xff] %vm20, 0.0
  %9582 = vst.msk [vmem:[#allocation3 + $0x1b8] sm:$0x1] %vm9529, 0.0
  %9583 = vst.msk [vmem:[#allocation3 + $0x1c0] sm:$0xff] %vm20, 0.0
  %9584 = vst.msk [vmem:[#allocation3 + $0x1c8] sm:$0xff] %vm20, 0.0
  %9585 = vst.msk [vmem:[#allocation3 + $0x1d0] sm:$0xff] %vm20, 0.0
  %9586 = vst.msk [vmem:[#allocation3 + $0x1d8] sm:$0x1] %vm9529, 0.0
  %9587 = vst.msk [vmem:[#allocation3 + $0x1e0] sm:$0xff] %vm20, 0.0
  %9588 = vst.msk [vmem:[#allocation3 + $0x1e8] sm:$0xff] %vm20, 0.0
  %9589 = vst.msk [vmem:[#allocation3 + $0x1f0] sm:$0xff] %vm20, 0.0
  %9590 = vst.msk [vmem:[#allocation3 + $0x1f8] sm:$0x1] %vm9529, 0.0
  %9591 = vst.msk [vmem:[#allocation3 + $0x200] sm:$0xff] %vm20, 0.0
  %9592 = vst.msk [vmem:[#allocation3 + $0x208] sm:$0xff] %vm20, 0.0
  %9593 = vst.msk [vmem:[#allocation3 + $0x210] sm:$0xff] %vm20, 0.0
  %9594 = vst.msk [vmem:[#allocation3 + $0x218] sm:$0x1] %vm9529, 0.0
  %9595 = vst.msk [vmem:[#allocation3 + $0x220] sm:$0xff] %vm20, 0.0
  %9596 = vst.msk [vmem:[#allocation3 + $0x228] sm:$0xff] %vm20, 0.0
  %9597 = vst.msk [vmem:[#allocation3 + $0x230] sm:$0xff] %vm20, 0.0
  %9598 = vst.msk [vmem:[#allocation3 + $0x238] sm:$0x1] %vm9529, 0.0
  %9599 = vst.msk [vmem:[#allocation3 + $0x240] sm:$0xff] %vm20, 0.0
  %9600 = vst.msk [vmem:[#allocation3 + $0x248] sm:$0xff] %vm20, 0.0
  %9601 = vst.msk [vmem:[#allocation3 + $0x250] sm:$0xff] %vm20, 0.0
  %9602 = vst.msk [vmem:[#allocation3 + $0x258] sm:$0x1] %vm9529, 0.0
  %9603 = vst.msk [vmem:[#allocation3 + $0x260] sm:$0xff] %vm20, 0.0
  %9604 = vst.msk [vmem:[#allocation3 + $0x268] sm:$0xff] %vm20, 0.0
  %9605 = vst.msk [vmem:[#allocation3 + $0x270] sm:$0xff] %vm20, 0.0
  %9606 = vst.msk [vmem:[#allocation3 + $0x278] sm:$0x1] %vm9529, 0.0
  %9607 = vst.msk [vmem:[#allocation3 + $0x280] sm:$0xff] %vm20, 0.0
  %9608 = vst.msk [vmem:[#allocation3 + $0x288] sm:$0xff] %vm20, 0.0
  %9609 = vst.msk [vmem:[#allocation3 + $0x290] sm:$0xff] %vm20, 0.0
  %9610 = vst.msk [vmem:[#allocation3 + $0x298] sm:$0x1] %vm9529, 0.0
  %9611 = vst.msk [vmem:[#allocation3 + $0x2a0] sm:$0xff] %vm20, 0.0
  %9612 = vst.msk [vmem:[#allocation3 + $0x2a8] sm:$0xff] %vm20, 0.0
  %9613 = vst.msk [vmem:[#allocation3 + $0x2b0] sm:$0xff] %vm20, 0.0
  %9614 = vst.msk [vmem:[#allocation3 + $0x2b8] sm:$0x1] %vm9529, 0.0
  %9615 = vst.msk [vmem:[#allocation3 + $0x2c0] sm:$0xff] %vm20, 0.0
  %9616 = vst.msk [vmem:[#allocation3 + $0x2c8] sm:$0xff] %vm20, 0.0
  %9617 = vst.msk [vmem:[#allocation3 + $0x2d0] sm:$0xff] %vm20, 0.0
  %9618 = vst.msk [vmem:[#allocation3 + $0x2d8] sm:$0x1] %vm9529, 0.0
  %9619 = vst.msk [vmem:[#allocation3 + $0x2e0] sm:$0xff] %vm20, 0.0
  %9620 = vst.msk [vmem:[#allocation3 + $0x2e8] sm:$0xff] %vm20, 0.0
  %9621 = vst.msk [vmem:[#allocation3 + $0x2f0] sm:$0xff] %vm20, 0.0
  %9622 = vst.msk [vmem:[#allocation3 + $0x2f8] sm:$0x1] %vm9529, 0.0
  %9623 = vst.msk [vmem:[#allocation3 + $0x300] sm:$0xff] %vm20, 0.0
  %9624 = vst.msk [vmem:[#allocation3 + $0x308] sm:$0xff] %vm20, 0.0
  %9625 = vst.msk [vmem:[#allocation3 + $0x310] sm:$0xff] %vm20, 0.0
  %9626 = vst.msk [vmem:[#allocation3 + $0x318] sm:$0x1] %vm9529, 0.0
  %9627 = vst.msk [vmem:[#allocation3 + $0x320] sm:$0xff] %vm20, 0.0
  %9628 = vst.msk [vmem:[#allocation3 + $0x328] sm:$0xff] %vm20, 0.0
  %9629 = vst.msk [vmem:[#allocation3 + $0x330] sm:$0xff] %vm20, 0.0
  %9630 = vst.msk [vmem:[#allocation3 + $0x338] sm:$0x1] %vm9529, 0.0
  %9631 = vst.msk [vmem:[#allocation3 + $0x340] sm:$0xff] %vm20, 0.0
  %9632 = vst.msk [vmem:[#allocation3 + $0x348] sm:$0xff] %vm20, 0.0
  %9633 = vst.msk [vmem:[#allocation3 + $0x350] sm:$0xff] %vm20, 0.0
  %9634 = vst.msk [vmem:[#allocation3 + $0x358] sm:$0x1] %vm9529, 0.0
  %9635 = vst.msk [vmem:[#allocation3 + $0x360] sm:$0xff] %vm20, 0.0
  %9636 = vst.msk [vmem:[#allocation3 + $0x368] sm:$0xff] %vm20, 0.0
  %9637 = vst.msk [vmem:[#allocation3 + $0x370] sm:$0xff] %vm20, 0.0
  %9638 = vst.msk [vmem:[#allocation3 + $0x378] sm:$0x1] %vm9529, 0.0
  %9639 = vst.msk [vmem:[#allocation3 + $0x380] sm:$0xff] %vm20, 0.0
  %9640 = vst.msk [vmem:[#allocation3 + $0x388] sm:$0xff] %vm20, 0.0
  %9641 = vst.msk [vmem:[#allocation3 + $0x390] sm:$0xff] %vm20, 0.0
  %9642 = vst.msk [vmem:[#allocation3 + $0x398] sm:$0x1] %vm9529, 0.0
  %9643 = vst.msk [vmem:[#allocation3 + $0x3a0] sm:$0xff] %vm20, 0.0
  %9644 = vst.msk [vmem:[#allocation3 + $0x3a8] sm:$0xff] %vm20, 0.0
  %9645 = vst.msk [vmem:[#allocation3 + $0x3b0] sm:$0xff] %vm20, 0.0
  %9646 = vst.msk [vmem:[#allocation3 + $0x3b8] sm:$0x1] %vm9529, 0.0
  %9647 = vst.msk [vmem:[#allocation3 + $0x3c0] sm:$0xff] %vm20, 0.0
  %9648 = vst.msk [vmem:[#allocation3 + $0x3c8] sm:$0xff] %vm20, 0.0
  %9649 = vst.msk [vmem:[#allocation3 + $0x3d0] sm:$0xff] %vm20, 0.0
  %9650 = vst.msk [vmem:[#allocation3 + $0x3d8] sm:$0x1] %vm9529, 0.0
  %9651 = vst.msk [vmem:[#allocation3 + $0x3e0] sm:$0xff] %vm20, 0.0
  %9652 = vst.msk [vmem:[#allocation3 + $0x3e8] sm:$0xff] %vm20, 0.0
  %9653 = vst.msk [vmem:[#allocation3 + $0x3f0] sm:$0xff] %vm20, 0.0
  %9654 = vst.msk [vmem:[#allocation3 + $0x3f8] sm:$0x1] %vm9529, 0.0
  %9655 = vst.msk [vmem:[#allocation3 + $0x400] sm:$0xff] %vm20, 0.0
  %9656 = vst.msk [vmem:[#allocation3 + $0x408] sm:$0xff] %vm20, 0.0
  %9657 = vst.msk [vmem:[#allocation3 + $0x410] sm:$0xff] %vm20, 0.0
  %9658 = vst.msk [vmem:[#allocation3 + $0x418] sm:$0x1] %vm9529, 0.0
  %9659 = vst.msk [vmem:[#allocation3 + $0x420] sm:$0xff] %vm20, 0.0
  %9660 = vst.msk [vmem:[#allocation3 + $0x428] sm:$0xff] %vm20, 0.0
  %9661 = vst.msk [vmem:[#allocation3 + $0x430] sm:$0xff] %vm20, 0.0
  %9662 = vst.msk [vmem:[#allocation3 + $0x438] sm:$0x1] %vm9529, 0.0
  %9663 = vst.msk [vmem:[#allocation3 + $0x440] sm:$0xff] %vm20, 0.0
  %9664 = vst.msk [vmem:[#allocation3 + $0x448] sm:$0xff] %vm20, 0.0
  %9665 = vst.msk [vmem:[#allocation3 + $0x450] sm:$0xff] %vm20, 0.0
  %9666 = vst.msk [vmem:[#allocation3 + $0x458] sm:$0x1] %vm9529, 0.0
  %9667 = vst.msk [vmem:[#allocation3 + $0x460] sm:$0xff] %vm20, 0.0
  %9668 = vst.msk [vmem:[#allocation3 + $0x468] sm:$0xff] %vm20, 0.0
  %9669 = vst.msk [vmem:[#allocation3 + $0x470] sm:$0xff] %vm20, 0.0
  %9670 = vst.msk [vmem:[#allocation3 + $0x478] sm:$0x1] %vm9529, 0.0
  %s9671 = scalar_lea.vmem [#allocation3], 32
  %9672 = vst.msk [vmem:[%s9671 + $0x8] sm:$0xff] %vm20, %v9208
  %9673 = vst.msk [vmem:[%s9671 + $0x10] sm:$0xff] %vm20, %v9213
  %9674 = vst.msk [vmem:[%s9671 + $0x28] sm:$0xff] %vm20, %v9218
  %9675 = vst.msk [vmem:[%s9671 + $0x30] sm:$0xff] %vm20, %v9223
  %9676 = vst.msk [vmem:[%s9671 + $0x48] sm:$0xff] %vm20, %v9228
  %9677 = vst.msk [vmem:[%s9671 + $0x50] sm:$0xff] %vm20, %v9233
  %9678 = vst.msk [vmem:[%s9671 + $0x68] sm:$0xff] %vm20, %v9238
  %9679 = vst.msk [vmem:[%s9671 + $0x70] sm:$0xff] %vm20, %v9243
  %9680 = vst.msk [vmem:[%s9671 + $0x88] sm:$0xff] %vm20, %v9248
  %9681 = vst.msk [vmem:[%s9671 + $0x90] sm:$0xff] %vm20, %v9253
  %9682 = vst.msk [vmem:[%s9671 + $0xa8] sm:$0xff] %vm20, %v9258
  %9683 = vst.msk [vmem:[%s9671 + $0xb0] sm:$0xff] %vm20, %v9263
  %9684 = vst.msk [vmem:[%s9671 + $0xc8] sm:$0xff] %vm20, %v9268
  %9685 = vst.msk [vmem:[%s9671 + $0xd0] sm:$0xff] %vm20, %v9273
  %9686 = vst.msk [vmem:[%s9671 + $0xe8] sm:$0xff] %vm20, %v9278
  %9687 = vst.msk [vmem:[%s9671 + $0xf0] sm:$0xff] %vm20, %v9283
  %9688 = vst.msk [vmem:[%s9671 + $0x108] sm:$0xff] %vm20, %v9288
  %9689 = vst.msk [vmem:[%s9671 + $0x110] sm:$0xff] %vm20, %v9293
  %9690 = vst.msk [vmem:[%s9671 + $0x128] sm:$0xff] %vm20, %v9298
  %9691 = vst.msk [vmem:[%s9671 + $0x130] sm:$0xff] %vm20, %v9303
  %9692 = vst.msk [vmem:[%s9671 + $0x148] sm:$0xff] %vm20, %v9308
  %9693 = vst.msk [vmem:[%s9671 + $0x150] sm:$0xff] %vm20, %v9313
  %9694 = vst.msk [vmem:[%s9671 + $0x168] sm:$0xff] %vm20, %v9318
  %9695 = vst.msk [vmem:[%s9671 + $0x170] sm:$0xff] %vm20, %v9323
  %9696 = vst.msk [vmem:[%s9671 + $0x188] sm:$0xff] %vm20, %v9328
  %9697 = vst.msk [vmem:[%s9671 + $0x190] sm:$0xff] %vm20, %v9333
  %9698 = vst.msk [vmem:[%s9671 + $0x1a8] sm:$0xff] %vm20, %v9338
  %9699 = vst.msk [vmem:[%s9671 + $0x1b0] sm:$0xff] %vm20, %v9343
  %9700 = vst.msk [vmem:[%s9671 + $0x1c8] sm:$0xff] %vm20, %v9348
  %9701 = vst.msk [vmem:[%s9671 + $0x1d0] sm:$0xff] %vm20, %v9353
  %9702 = vst.msk [vmem:[%s9671 + $0x1e8] sm:$0xff] %vm20, %v9358
  %9703 = vst.msk [vmem:[%s9671 + $0x1f0] sm:$0xff] %vm20, %v9363
  %9704 = vst.msk [vmem:[%s9671 + $0x248] sm:$0xff] %vm20, %v9368
  %9705 = vst.msk [vmem:[%s9671 + $0x250] sm:$0xff] %vm20, %v9373
  %9706 = vst.msk [vmem:[%s9671 + $0x268] sm:$0xff] %vm20, %v9378
  %9707 = vst.msk [vmem:[%s9671 + $0x270] sm:$0xff] %vm20, %v9383
  %9708 = vst.msk [vmem:[%s9671 + $0x288] sm:$0xff] %vm20, %v9388
  %9709 = vst.msk [vmem:[%s9671 + $0x290] sm:$0xff] %vm20, %v9393
  %9710 = vst.msk [vmem:[%s9671 + $0x2a8] sm:$0xff] %vm20, %v9398
  %9711 = vst.msk [vmem:[%s9671 + $0x2b0] sm:$0xff] %vm20, %v9403
  %9712 = vst.msk [vmem:[%s9671 + $0x2c8] sm:$0xff] %vm20, %v9408
  %9713 = vst.msk [vmem:[%s9671 + $0x2d0] sm:$0xff] %vm20, %v9413
  %9714 = vst.msk [vmem:[%s9671 + $0x2e8] sm:$0xff] %vm20, %v9418
  %9715 = vst.msk [vmem:[%s9671 + $0x2f0] sm:$0xff] %vm20, %v9423
  %9716 = vst.msk [vmem:[%s9671 + $0x308] sm:$0xff] %vm20, %v9428
  %9717 = vst.msk [vmem:[%s9671 + $0x310] sm:$0xff] %vm20, %v9433
  %9718 = vst.msk [vmem:[%s9671 + $0x328] sm:$0xff] %vm20, %v9438
  %9719 = vst.msk [vmem:[%s9671 + $0x330] sm:$0xff] %vm20, %v9443
  %9720 = vst.msk [vmem:[%s9671 + $0x348] sm:$0xff] %vm20, %v9448
  %9721 = vst.msk [vmem:[%s9671 + $0x350] sm:$0xff] %vm20, %v9453
  %9722 = vst.msk [vmem:[%s9671 + $0x368] sm:$0xff] %vm20, %v9458
  %9723 = vst.msk [vmem:[%s9671 + $0x370] sm:$0xff] %vm20, %v9463
  %9724 = vst.msk [vmem:[%s9671 + $0x388] sm:$0xff] %vm20, %v9468
  %9725 = vst.msk [vmem:[%s9671 + $0x390] sm:$0xff] %vm20, %v9473
  %9726 = vst.msk [vmem:[%s9671 + $0x3a8] sm:$0xff] %vm20, %v9478
  %9727 = vst.msk [vmem:[%s9671 + $0x3b0] sm:$0xff] %vm20, %v9483
  %9728 = vst.msk [vmem:[%s9671 + $0x3c8] sm:$0xff] %vm20, %v9488
  %9729 = vst.msk [vmem:[%s9671 + $0x3d0] sm:$0xff] %vm20, %v9493
  %9730 = vst.msk [vmem:[%s9671 + $0x3e8] sm:$0xff] %vm20, %v9498
  %9731 = vst.msk [vmem:[%s9671 + $0x3f0] sm:$0xff] %vm20, %v9503
  %9732 = vst.msk [vmem:[%s9671 + $0x408] sm:$0xff] %vm20, %v9508
  %9733 = vst.msk [vmem:[%s9671 + $0x410] sm:$0xff] %vm20, %v9513
  %9734 = vst.msk [vmem:[%s9671 + $0x428] sm:$0xff] %vm20, %v9518
  %9735 = vst.msk [vmem:[%s9671 + $0x430] sm:$0xff] %vm20, %v9523
  %v9736 = vld [vmem:[#allocation3 + $0x7] sm:$0xff]
  %v9737 = vld [vmem:[#allocation3 + $0xf] sm:$0xff]
  %v9738 = vld [vmem:[#allocation3 + $0x27] sm:$0xff]
  %v9739 = vld [vmem:[#allocation3 + $0x2f] sm:$0xff]
  %v9740 = vld [vmem:[#allocation3 + $0x47] sm:$0xff]
  %v9741 = vld [vmem:[#allocation3 + $0x4f] sm:$0xff]
  %v9742 = vld [vmem:[#allocation3 + $0x67] sm:$0xff]
  %v9743 = vld [vmem:[#allocation3 + $0x6f] sm:$0xff]
  %v9744 = vld [vmem:[#allocation3 + $0x87] sm:$0xff]
  %v9745 = vld [vmem:[#allocation3 + $0x8f] sm:$0xff]
  %v9746 = vld [vmem:[#allocation3 + $0xa7] sm:$0xff]
  %v9747 = vld [vmem:[#allocation3 + $0xaf] sm:$0xff]
  %v9748 = vld [vmem:[#allocation3 + $0xc7] sm:$0xff]
  %v9749 = vld [vmem:[#allocation3 + $0xcf] sm:$0xff]
  %v9750 = vld [vmem:[#allocation3 + $0xe7] sm:$0xff]
  %v9751 = vld [vmem:[#allocation3 + $0xef] sm:$0xff]
  %v9752 = vld [vmem:[#allocation3 + $0x107] sm:$0xff]
  %v9753 = vld [vmem:[#allocation3 + $0x10f] sm:$0xff]
  %v9754 = vld [vmem:[#allocation3 + $0x127] sm:$0xff]
  %v9755 = vld [vmem:[#allocation3 + $0x12f] sm:$0xff]
  %v9756 = vld [vmem:[#allocation3 + $0x147] sm:$0xff]
  %v9757 = vld [vmem:[#allocation3 + $0x14f] sm:$0xff]
  %v9758 = vld [vmem:[#allocation3 + $0x167] sm:$0xff]
  %v9759 = vld [vmem:[#allocation3 + $0x16f] sm:$0xff]
  %v9760 = vld [vmem:[#allocation3 + $0x187] sm:$0xff]
  %v9761 = vld [vmem:[#allocation3 + $0x18f] sm:$0xff]
  %v9762 = vld [vmem:[#allocation3 + $0x1a7] sm:$0xff]
  %v9763 = vld [vmem:[#allocation3 + $0x1af] sm:$0xff]
  %v9764 = vld [vmem:[#allocation3 + $0x1c7] sm:$0xff]
  %v9765 = vld [vmem:[#allocation3 + $0x1cf] sm:$0xff]
  %v9766 = vld [vmem:[#allocation3 + $0x1e7] sm:$0xff]
  %v9767 = vld [vmem:[#allocation3 + $0x1ef] sm:$0xff]
  %v9768 = vld [vmem:[#allocation3 + $0x247] sm:$0xff]
  %v9769 = vld [vmem:[#allocation3 + $0x24f] sm:$0xff]
  %v9770 = vld [vmem:[#allocation3 + $0x267] sm:$0xff]
  %v9771 = vld [vmem:[#allocation3 + $0x26f] sm:$0xff]
  %v9772 = vld [vmem:[#allocation3 + $0x287] sm:$0xff]
  %v9773 = vld [vmem:[#allocation3 + $0x28f] sm:$0xff]
  %v9774 = vld [vmem:[#allocation3 + $0x2a7] sm:$0xff]
  %v9775 = vld [vmem:[#allocation3 + $0x2af] sm:$0xff]
  %v9776 = vld [vmem:[#allocation3 + $0x2c7] sm:$0xff]
  %v9777 = vld [vmem:[#allocation3 + $0x2cf] sm:$0xff]
  %v9778 = vld [vmem:[#allocation3 + $0x2e7] sm:$0xff]
  %v9779 = vld [vmem:[#allocation3 + $0x2ef] sm:$0xff]
  %v9780 = vld [vmem:[#allocation3 + $0x307] sm:$0xff]
  %v9781 = vld [vmem:[#allocation3 + $0x30f] sm:$0xff]
  %v9782 = vld [vmem:[#allocation3 + $0x327] sm:$0xff]
  %v9783 = vld [vmem:[#allocation3 + $0x32f] sm:$0xff]
  %v9784 = vld [vmem:[#allocation3 + $0x347] sm:$0xff]
  %v9785 = vld [vmem:[#allocation3 + $0x34f] sm:$0xff]
  %v9786 = vld [vmem:[#allocation3 + $0x367] sm:$0xff]
  %v9787 = vld [vmem:[#allocation3 + $0x36f] sm:$0xff]
  %v9788 = vld [vmem:[#allocation3 + $0x387] sm:$0xff]
  %v9789 = vld [vmem:[#allocation3 + $0x38f] sm:$0xff]
  %v9790 = vld [vmem:[#allocation3 + $0x3a7] sm:$0xff]
  %v9791 = vld [vmem:[#allocation3 + $0x3af] sm:$0xff]
  %v9792 = vld [vmem:[#allocation3 + $0x3c7] sm:$0xff]
  %v9793 = vld [vmem:[#allocation3 + $0x3cf] sm:$0xff]
  %v9794 = vld [vmem:[#allocation3 + $0x3e7] sm:$0xff]
  %v9795 = vld [vmem:[#allocation3 + $0x3ef] sm:$0xff]
  %v9796 = vld [vmem:[#allocation3 + $0x407] sm:$0xff]
  %v9797 = vld [vmem:[#allocation3 + $0x40f] sm:$0xff]
  %v9798 = vld [vmem:[#allocation3 + $0x427] sm:$0xff]
  %v9799 = vld [vmem:[#allocation3 + $0x42f] sm:$0xff]
  %v9800 = vld [vmem:[#allocation3 + $0x8] sm:$0xff]
  %v9801 = vld [vmem:[#allocation3 + $0x10] sm:$0xff]
  %v9802 = vld [vmem:[#allocation3 + $0x28] sm:$0xff]
  %v9803 = vld [vmem:[#allocation3 + $0x30] sm:$0xff]
  %v9804 = vld [vmem:[#allocation3 + $0x48] sm:$0xff]
  %v9805 = vld [vmem:[#allocation3 + $0x50] sm:$0xff]
  %v9806 = vld [vmem:[#allocation3 + $0x68] sm:$0xff]
  %v9807 = vld [vmem:[#allocation3 + $0x70] sm:$0xff]
  %v9808 = vld [vmem:[#allocation3 + $0x88] sm:$0xff]
  %v9809 = vld [vmem:[#allocation3 + $0x90] sm:$0xff]
  %v9810 = vld [vmem:[#allocation3 + $0xa8] sm:$0xff]
  %v9811 = vld [vmem:[#allocation3 + $0xb0] sm:$0xff]
  %v9812 = vld [vmem:[#allocation3 + $0xc8] sm:$0xff]
  %v9813 = vld [vmem:[#allocation3 + $0xd0] sm:$0xff]
  %v9814 = vld [vmem:[#allocation3 + $0xe8] sm:$0xff]
  %v9815 = vld [vmem:[#allocation3 + $0xf0] sm:$0xff]
  %v9816 = vld [vmem:[#allocation3 + $0x108] sm:$0xff]
  %v9817 = vld [vmem:[#allocation3 + $0x110] sm:$0xff]
  %v9818 = vld [vmem:[#allocation3 + $0x128] sm:$0xff]
  %v9819 = vld [vmem:[#allocation3 + $0x130] sm:$0xff]
  %v9820 = vld [vmem:[#allocation3 + $0x148] sm:$0xff]
  %v9821 = vld [vmem:[#allocation3 + $0x150] sm:$0xff]
  %v9822 = vld [vmem:[#allocation3 + $0x168] sm:$0xff]
  %v9823 = vld [vmem:[#allocation3 + $0x170] sm:$0xff]
  %v9824 = vld [vmem:[#allocation3 + $0x188] sm:$0xff]
  %v9825 = vld [vmem:[#allocation3 + $0x190] sm:$0xff]
  %v9826 = vld [vmem:[#allocation3 + $0x1a8] sm:$0xff]
  %v9827 = vld [vmem:[#allocation3 + $0x1b0] sm:$0xff]
  %v9828 = vld [vmem:[#allocation3 + $0x1c8] sm:$0xff]
  %v9829 = vld [vmem:[#allocation3 + $0x1d0] sm:$0xff]
  %v9830 = vld [vmem:[#allocation3 + $0x1e8] sm:$0xff]
  %v9831 = vld [vmem:[#allocation3 + $0x1f0] sm:$0xff]
  %v9832 = vld [vmem:[#allocation3 + $0x248] sm:$0xff]
  %v9833 = vld [vmem:[#allocation3 + $0x250] sm:$0xff]
  %v9834 = vld [vmem:[#allocation3 + $0x268] sm:$0xff]
  %v9835 = vld [vmem:[#allocation3 + $0x270] sm:$0xff]
  %v9836 = vld [vmem:[#allocation3 + $0x288] sm:$0xff]
  %v9837 = vld [vmem:[#allocation3 + $0x290] sm:$0xff]
  %v9838 = vld [vmem:[#allocation3 + $0x2a8] sm:$0xff]
  %v9839 = vld [vmem:[#allocation3 + $0x2b0] sm:$0xff]
  %v9840 = vld [vmem:[#allocation3 + $0x2c8] sm:$0xff]
  %v9841 = vld [vmem:[#allocation3 + $0x2d0] sm:$0xff]
  %v9842 = vld [vmem:[#allocation3 + $0x2e8] sm:$0xff]
  %v9843 = vld [vmem:[#allocation3 + $0x2f0] sm:$0xff]
  %v9844 = vld [vmem:[#allocation3 + $0x308] sm:$0xff]
  %v9845 = vld [vmem:[#allocation3 + $0x310] sm:$0xff]
  %v9846 = vld [vmem:[#allocation3 + $0x328] sm:$0xff]
  %v9847 = vld [vmem:[#allocation3 + $0x330] sm:$0xff]
  %v9848 = vld [vmem:[#allocation3 + $0x348] sm:$0xff]
  %v9849 = vld [vmem:[#allocation3 + $0x350] sm:$0xff]
  %v9850 = vld [vmem:[#allocation3 + $0x368] sm:$0xff]
  %v9851 = vld [vmem:[#allocation3 + $0x370] sm:$0xff]
  %v9852 = vld [vmem:[#allocation3 + $0x388] sm:$0xff]
  %v9853 = vld [vmem:[#allocation3 + $0x390] sm:$0xff]
  %v9854 = vld [vmem:[#allocation3 + $0x3a8] sm:$0xff]
  %v9855 = vld [vmem:[#allocation3 + $0x3b0] sm:$0xff]
  %v9856 = vld [vmem:[#allocation3 + $0x3c8] sm:$0xff]
  %v9857 = vld [vmem:[#allocation3 + $0x3d0] sm:$0xff]
  %v9858 = vld [vmem:[#allocation3 + $0x3e8] sm:$0xff]
  %v9859 = vld [vmem:[#allocation3 + $0x3f0] sm:$0xff]
  %v9860 = vld [vmem:[#allocation3 + $0x408] sm:$0xff]
  %v9861 = vld [vmem:[#allocation3 + $0x410] sm:$0xff]
  %v9862 = vld [vmem:[#allocation3 + $0x428] sm:$0xff]
  %v9863 = vld [vmem:[#allocation3 + $0x430] sm:$0xff]
  %v9864 = vld [vmem:[#allocation3 + $0x9] sm:$0xff]
  %v9865 = vld [vmem:[#allocation3 + $0x11] sm:$0xff]
  %v9866 = vld [vmem:[#allocation3 + $0x29] sm:$0xff]
  %v9867 = vld [vmem:[#allocation3 + $0x31] sm:$0xff]
  %v9868 = vld [vmem:[#allocation3 + $0x49] sm:$0xff]
  %v9869 = vld [vmem:[#allocation3 + $0x51] sm:$0xff]
  %v9870 = vld [vmem:[#allocation3 + $0x69] sm:$0xff]
  %v9871 = vld [vmem:[#allocation3 + $0x71] sm:$0xff]
  %v9872 = vld [vmem:[#allocation3 + $0x89] sm:$0xff]
  %v9873 = vld [vmem:[#allocation3 + $0x91] sm:$0xff]
  %v9874 = vld [vmem:[#allocation3 + $0xa9] sm:$0xff]
  %v9875 = vld [vmem:[#allocation3 + $0xb1] sm:$0xff]
  %v9876 = vld [vmem:[#allocation3 + $0xc9] sm:$0xff]
  %v9877 = vld [vmem:[#allocation3 + $0xd1] sm:$0xff]
  %v9878 = vld [vmem:[#allocation3 + $0xe9] sm:$0xff]
  %v9879 = vld [vmem:[#allocation3 + $0xf1] sm:$0xff]
  %v9880 = vld [vmem:[#allocation3 + $0x109] sm:$0xff]
  %v9881 = vld [vmem:[#allocation3 + $0x111] sm:$0xff]
  %v9882 = vld [vmem:[#allocation3 + $0x129] sm:$0xff]
  %v9883 = vld [vmem:[#allocation3 + $0x131] sm:$0xff]
  %v9884 = vld [vmem:[#allocation3 + $0x149] sm:$0xff]
  %v9885 = vld [vmem:[#allocation3 + $0x151] sm:$0xff]
  %v9886 = vld [vmem:[#allocation3 + $0x169] sm:$0xff]
  %v9887 = vld [vmem:[#allocation3 + $0x171] sm:$0xff]
  %v9888 = vld [vmem:[#allocation3 + $0x189] sm:$0xff]
  %v9889 = vld [vmem:[#allocation3 + $0x191] sm:$0xff]
  %v9890 = vld [vmem:[#allocation3 + $0x1a9] sm:$0xff]
  %v9891 = vld [vmem:[#allocation3 + $0x1b1] sm:$0xff]
  %v9892 = vld [vmem:[#allocation3 + $0x1c9] sm:$0xff]
  %v9893 = vld [vmem:[#allocation3 + $0x1d1] sm:$0xff]
  %v9894 = vld [vmem:[#allocation3 + $0x1e9] sm:$0xff]
  %v9895 = vld [vmem:[#allocation3 + $0x1f1] sm:$0xff]
  %v9896 = vld [vmem:[#allocation3 + $0x249] sm:$0xff]
  %v9897 = vld [vmem:[#allocation3 + $0x251] sm:$0xff]
  %v9898 = vld [vmem:[#allocation3 + $0x269] sm:$0xff]
  %v9899 = vld [vmem:[#allocation3 + $0x271] sm:$0xff]
  %v9900 = vld [vmem:[#allocation3 + $0x289] sm:$0xff]
  %v9901 = vld [vmem:[#allocation3 + $0x291] sm:$0xff]
  %v9902 = vld [vmem:[#allocation3 + $0x2a9] sm:$0xff]
  %v9903 = vld [vmem:[#allocation3 + $0x2b1] sm:$0xff]
  %v9904 = vld [vmem:[#allocation3 + $0x2c9] sm:$0xff]
  %v9905 = vld [vmem:[#allocation3 + $0x2d1] sm:$0xff]
  %v9906 = vld [vmem:[#allocation3 + $0x2e9] sm:$0xff]
  %v9907 = vld [vmem:[#allocation3 + $0x2f1] sm:$0xff]
  %v9908 = vld [vmem:[#allocation3 + $0x309] sm:$0xff]
  %v9909 = vld [vmem:[#allocation3 + $0x311] sm:$0xff]
  %v9910 = vld [vmem:[#allocation3 + $0x329] sm:$0xff]
  %v9911 = vld [vmem:[#allocation3 + $0x331] sm:$0xff]
  %v9912 = vld [vmem:[#allocation3 + $0x349] sm:$0xff]
  %v9913 = vld [vmem:[#allocation3 + $0x351] sm:$0xff]
  %v9914 = vld [vmem:[#allocation3 + $0x369] sm:$0xff]
  %v9915 = vld [vmem:[#allocation3 + $0x371] sm:$0xff]
  %v9916 = vld [vmem:[#allocation3 + $0x389] sm:$0xff]
  %v9917 = vld [vmem:[#allocation3 + $0x391] sm:$0xff]
  %v9918 = vld [vmem:[#allocation3 + $0x3a9] sm:$0xff]
  %v9919 = vld [vmem:[#allocation3 + $0x3b1] sm:$0xff]
  %v9920 = vld [vmem:[#allocation3 + $0x3c9] sm:$0xff]
  %v9921 = vld [vmem:[#allocation3 + $0x3d1] sm:$0xff]
  %v9922 = vld [vmem:[#allocation3 + $0x3e9] sm:$0xff]
  %v9923 = vld [vmem:[#allocation3 + $0x3f1] sm:$0xff]
  %v9924 = vld [vmem:[#allocation3 + $0x409] sm:$0xff]
  %v9925 = vld [vmem:[#allocation3 + $0x411] sm:$0xff]
  %v9926 = vld [vmem:[#allocation3 + $0x429] sm:$0xff]
  %v9927 = vld [vmem:[#allocation3 + $0x431] sm:$0xff]
  %v9928 = vld [vmem:[%s9671 + $0x7] sm:$0xff]
  %v9929 = vld [vmem:[%s9671 + $0xf] sm:$0xff]
  %v9930 = vld [vmem:[%s9671 + $0x27] sm:$0xff]
  %v9931 = vld [vmem:[%s9671 + $0x2f] sm:$0xff]
  %v9932 = vld [vmem:[%s9671 + $0x47] sm:$0xff]
  %v9933 = vld [vmem:[%s9671 + $0x4f] sm:$0xff]
  %v9934 = vld [vmem:[%s9671 + $0x67] sm:$0xff]
  %v9935 = vld [vmem:[%s9671 + $0x6f] sm:$0xff]
  %v9936 = vld [vmem:[%s9671 + $0x87] sm:$0xff]
  %v9937 = vld [vmem:[%s9671 + $0x8f] sm:$0xff]
  %v9938 = vld [vmem:[%s9671 + $0xa7] sm:$0xff]
  %v9939 = vld [vmem:[%s9671 + $0xaf] sm:$0xff]
  %v9940 = vld [vmem:[%s9671 + $0xc7] sm:$0xff]
  %v9941 = vld [vmem:[%s9671 + $0xcf] sm:$0xff]
  %v9942 = vld [vmem:[%s9671 + $0xe7] sm:$0xff]
  %v9943 = vld [vmem:[%s9671 + $0xef] sm:$0xff]
  %v9944 = vld [vmem:[%s9671 + $0x107] sm:$0xff]
  %v9945 = vld [vmem:[%s9671 + $0x10f] sm:$0xff]
  %v9946 = vld [vmem:[%s9671 + $0x127] sm:$0xff]
  %v9947 = vld [vmem:[%s9671 + $0x12f] sm:$0xff]
  %v9948 = vld [vmem:[%s9671 + $0x147] sm:$0xff]
  %v9949 = vld [vmem:[%s9671 + $0x14f] sm:$0xff]
  %v9950 = vld [vmem:[%s9671 + $0x167] sm:$0xff]
  %v9951 = vld [vmem:[%s9671 + $0x16f] sm:$0xff]
  %v9952 = vld [vmem:[%s9671 + $0x187] sm:$0xff]
  %v9953 = vld [vmem:[%s9671 + $0x18f] sm:$0xff]
  %v9954 = vld [vmem:[%s9671 + $0x1a7] sm:$0xff]
  %v9955 = vld [vmem:[%s9671 + $0x1af] sm:$0xff]
  %v9956 = vld [vmem:[%s9671 + $0x1c7] sm:$0xff]
  %v9957 = vld [vmem:[%s9671 + $0x1cf] sm:$0xff]
  %v9958 = vld [vmem:[%s9671 + $0x1e7] sm:$0xff]
  %v9959 = vld [vmem:[%s9671 + $0x1ef] sm:$0xff]
  %v9960 = vld [vmem:[%s9671 + $0x247] sm:$0xff]
  %v9961 = vld [vmem:[%s9671 + $0x24f] sm:$0xff]
  %v9962 = vld [vmem:[%s9671 + $0x267] sm:$0xff]
  %v9963 = vld [vmem:[%s9671 + $0x26f] sm:$0xff]
  %v9964 = vld [vmem:[%s9671 + $0x287] sm:$0xff]
  %v9965 = vld [vmem:[%s9671 + $0x28f] sm:$0xff]
  %v9966 = vld [vmem:[%s9671 + $0x2a7] sm:$0xff]
  %v9967 = vld [vmem:[%s9671 + $0x2af] sm:$0xff]
  %v9968 = vld [vmem:[%s9671 + $0x2c7] sm:$0xff]
  %v9969 = vld [vmem:[%s9671 + $0x2cf] sm:$0xff]
  %v9970 = vld [vmem:[%s9671 + $0x2e7] sm:$0xff]
  %v9971 = vld [vmem:[%s9671 + $0x2ef] sm:$0xff]
  %v9972 = vld [vmem:[%s9671 + $0x307] sm:$0xff]
  %v9973 = vld [vmem:[%s9671 + $0x30f] sm:$0xff]
  %v9974 = vld [vmem:[%s9671 + $0x327] sm:$0xff]
  %v9975 = vld [vmem:[%s9671 + $0x32f] sm:$0xff]
  %v9976 = vld [vmem:[%s9671 + $0x347] sm:$0xff]
  %v9977 = vld [vmem:[%s9671 + $0x34f] sm:$0xff]
  %v9978 = vld [vmem:[%s9671 + $0x367] sm:$0xff]
  %v9979 = vld [vmem:[%s9671 + $0x36f] sm:$0xff]
  %v9980 = vld [vmem:[%s9671 + $0x387] sm:$0xff]
  %v9981 = vld [vmem:[%s9671 + $0x38f] sm:$0xff]
  %v9982 = vld [vmem:[%s9671 + $0x3a7] sm:$0xff]
  %v9983 = vld [vmem:[%s9671 + $0x3af] sm:$0xff]
  %v9984 = vld [vmem:[%s9671 + $0x3c7] sm:$0xff]
  %v9985 = vld [vmem:[%s9671 + $0x3cf] sm:$0xff]
  %v9986 = vld [vmem:[%s9671 + $0x3e7] sm:$0xff]
  %v9987 = vld [vmem:[%s9671 + $0x3ef] sm:$0xff]
  %v9988 = vld [vmem:[%s9671 + $0x407] sm:$0xff]
  %v9989 = vld [vmem:[%s9671 + $0x40f] sm:$0xff]
  %v9990 = vld [vmem:[%s9671 + $0x427] sm:$0xff]
  %v9991 = vld [vmem:[%s9671 + $0x42f] sm:$0xff]
  %v9992 = vld [vmem:[%s9671 + $0x8] sm:$0xff]
  %v9993 = vld [vmem:[%s9671 + $0x10] sm:$0xff]
  %v9994 = vld [vmem:[%s9671 + $0x28] sm:$0xff]
  %v9995 = vld [vmem:[%s9671 + $0x30] sm:$0xff]
  %v9996 = vld [vmem:[%s9671 + $0x48] sm:$0xff]
  %v9997 = vld [vmem:[%s9671 + $0x50] sm:$0xff]
  %v9998 = vld [vmem:[%s9671 + $0x68] sm:$0xff]
  %v9999 = vld [vmem:[%s9671 + $0x70] sm:$0xff]
  %v10000 = vld [vmem:[%s9671 + $0x88] sm:$0xff]
  %v10001 = vld [vmem:[%s9671 + $0x90] sm:$0xff]
  %v10002 = vld [vmem:[%s9671 + $0xa8] sm:$0xff]
  %v10003 = vld [vmem:[%s9671 + $0xb0] sm:$0xff]
  %v10004 = vld [vmem:[%s9671 + $0xc8] sm:$0xff]
  %v10005 = vld [vmem:[%s9671 + $0xd0] sm:$0xff]
  %v10006 = vld [vmem:[%s9671 + $0xe8] sm:$0xff]
  %v10007 = vld [vmem:[%s9671 + $0xf0] sm:$0xff]
  %v10008 = vld [vmem:[%s9671 + $0x108] sm:$0xff]
  %v10009 = vld [vmem:[%s9671 + $0x110] sm:$0xff]
  %v10010 = vld [vmem:[%s9671 + $0x128] sm:$0xff]
  %v10011 = vld [vmem:[%s9671 + $0x130] sm:$0xff]
  %v10012 = vld [vmem:[%s9671 + $0x148] sm:$0xff]
  %v10013 = vld [vmem:[%s9671 + $0x150] sm:$0xff]
  %v10014 = vld [vmem:[%s9671 + $0x168] sm:$0xff]
  %v10015 = vld [vmem:[%s9671 + $0x170] sm:$0xff]
  %v10016 = vld [vmem:[%s9671 + $0x188] sm:$0xff]
  %v10017 = vld [vmem:[%s9671 + $0x190] sm:$0xff]
  %v10018 = vld [vmem:[%s9671 + $0x1a8] sm:$0xff]
  %v10019 = vld [vmem:[%s9671 + $0x1b0] sm:$0xff]
  %v10020 = vld [vmem:[%s9671 + $0x1c8] sm:$0xff]
  %v10021 = vld [vmem:[%s9671 + $0x1d0] sm:$0xff]
  %v10022 = vld [vmem:[%s9671 + $0x1e8] sm:$0xff]
  %v10023 = vld [vmem:[%s9671 + $0x1f0] sm:$0xff]
  %v10024 = vld [vmem:[%s9671 + $0x248] sm:$0xff]
  %v10025 = vld [vmem:[%s9671 + $0x250] sm:$0xff]
  %v10026 = vld [vmem:[%s9671 + $0x268] sm:$0xff]
  %v10027 = vld [vmem:[%s9671 + $0x270] sm:$0xff]
  %v10028 = vld [vmem:[%s9671 + $0x288] sm:$0xff]
  %v10029 = vld [vmem:[%s9671 + $0x290] sm:$0xff]
  %v10030 = vld [vmem:[%s9671 + $0x2a8] sm:$0xff]
  %v10031 = vld [vmem:[%s9671 + $0x2b0] sm:$0xff]
  %v10032 = vld [vmem:[%s9671 + $0x2c8] sm:$0xff]
  %v10033 = vld [vmem:[%s9671 + $0x2d0] sm:$0xff]
  %v10034 = vld [vmem:[%s9671 + $0x2e8] sm:$0xff]
  %v10035 = vld [vmem:[%s9671 + $0x2f0] sm:$0xff]
  %v10036 = vld [vmem:[%s9671 + $0x308] sm:$0xff]
  %v10037 = vld [vmem:[%s9671 + $0x310] sm:$0xff]
  %v10038 = vld [vmem:[%s9671 + $0x328] sm:$0xff]
  %v10039 = vld [vmem:[%s9671 + $0x330] sm:$0xff]
  %v10040 = vld [vmem:[%s9671 + $0x348] sm:$0xff]
  %v10041 = vld [vmem:[%s9671 + $0x350] sm:$0xff]
  %v10042 = vld [vmem:[%s9671 + $0x368] sm:$0xff]
  %v10043 = vld [vmem:[%s9671 + $0x370] sm:$0xff]
  %v10044 = vld [vmem:[%s9671 + $0x388] sm:$0xff]
  %v10045 = vld [vmem:[%s9671 + $0x390] sm:$0xff]
  %v10046 = vld [vmem:[%s9671 + $0x3a8] sm:$0xff]
  %v10047 = vld [vmem:[%s9671 + $0x3b0] sm:$0xff]
  %v10048 = vld [vmem:[%s9671 + $0x3c8] sm:$0xff]
  %v10049 = vld [vmem:[%s9671 + $0x3d0] sm:$0xff]
  %v10050 = vld [vmem:[%s9671 + $0x3e8] sm:$0xff]
  %v10051 = vld [vmem:[%s9671 + $0x3f0] sm:$0xff]
  %v10052 = vld [vmem:[%s9671 + $0x408] sm:$0xff]
  %v10053 = vld [vmem:[%s9671 + $0x410] sm:$0xff]
  %v10054 = vld [vmem:[%s9671 + $0x428] sm:$0xff]
  %v10055 = vld [vmem:[%s9671 + $0x430] sm:$0xff]
  %v10056 = vld [vmem:[%s9671 + $0x9] sm:$0xff]
  %v10057 = vld [vmem:[%s9671 + $0x11] sm:$0xff]
  %v10058 = vld [vmem:[%s9671 + $0x29] sm:$0xff]
  %v10059 = vld [vmem:[%s9671 + $0x31] sm:$0xff]
  %v10060 = vld [vmem:[%s9671 + $0x49] sm:$0xff]
  %v10061 = vld [vmem:[%s9671 + $0x51] sm:$0xff]
  %v10062 = vld [vmem:[%s9671 + $0x69] sm:$0xff]
  %v10063 = vld [vmem:[%s9671 + $0x71] sm:$0xff]
  %v10064 = vld [vmem:[%s9671 + $0x89] sm:$0xff]
  %v10065 = vld [vmem:[%s9671 + $0x91] sm:$0xff]
  %v10066 = vld [vmem:[%s9671 + $0xa9] sm:$0xff]
  %v10067 = vld [vmem:[%s9671 + $0xb1] sm:$0xff]
  %v10068 = vld [vmem:[%s9671 + $0xc9] sm:$0xff]
  %v10069 = vld [vmem:[%s9671 + $0xd1] sm:$0xff]
  %v10070 = vld [vmem:[%s9671 + $0xe9] sm:$0xff]
  %v10071 = vld [vmem:[%s9671 + $0xf1] sm:$0xff]
  %v10072 = vld [vmem:[%s9671 + $0x109] sm:$0xff]
  %v10073 = vld [vmem:[%s9671 + $0x111] sm:$0xff]
  %v10074 = vld [vmem:[%s9671 + $0x129] sm:$0xff]
  %v10075 = vld [vmem:[%s9671 + $0x131] sm:$0xff]
  %v10076 = vld [vmem:[%s9671 + $0x149] sm:$0xff]
  %v10077 = vld [vmem:[%s9671 + $0x151] sm:$0xff]
  %v10078 = vld [vmem:[%s9671 + $0x169] sm:$0xff]
  %v10079 = vld [vmem:[%s9671 + $0x171] sm:$0xff]
  %v10080 = vld [vmem:[%s9671 + $0x189] sm:$0xff]
  %v10081 = vld [vmem:[%s9671 + $0x191] sm:$0xff]
  %v10082 = vld [vmem:[%s9671 + $0x1a9] sm:$0xff]
  %v10083 = vld [vmem:[%s9671 + $0x1b1] sm:$0xff]
  %v10084 = vld [vmem:[%s9671 + $0x1c9] sm:$0xff]
  %v10085 = vld [vmem:[%s9671 + $0x1d1] sm:$0xff]
  %v10086 = vld [vmem:[%s9671 + $0x1e9] sm:$0xff]
  %v10087 = vld [vmem:[%s9671 + $0x1f1] sm:$0xff]
  %v10088 = vld [vmem:[%s9671 + $0x249] sm:$0xff]
  %v10089 = vld [vmem:[%s9671 + $0x251] sm:$0xff]
  %v10090 = vld [vmem:[%s9671 + $0x269] sm:$0xff]
  %v10091 = vld [vmem:[%s9671 + $0x271] sm:$0xff]
  %v10092 = vld [vmem:[%s9671 + $0x289] sm:$0xff]
  %v10093 = vld [vmem:[%s9671 + $0x291] sm:$0xff]
  %v10094 = vld [vmem:[%s9671 + $0x2a9] sm:$0xff]
  %v10095 = vld [vmem:[%s9671 + $0x2b1] sm:$0xff]
  %v10096 = vld [vmem:[%s9671 + $0x2c9] sm:$0xff]
  %v10097 = vld [vmem:[%s9671 + $0x2d1] sm:$0xff]
  %v10098 = vld [vmem:[%s9671 + $0x2e9] sm:$0xff]
  %v10099 = vld [vmem:[%s9671 + $0x2f1] sm:$0xff]
  %v10100 = vld [vmem:[%s9671 + $0x309] sm:$0xff]
  %v10101 = vld [vmem:[%s9671 + $0x311] sm:$0xff]
  %v10102 = vld [vmem:[%s9671 + $0x329] sm:$0xff]
  %v10103 = vld [vmem:[%s9671 + $0x331] sm:$0xff]
  %v10104 = vld [vmem:[%s9671 + $0x349] sm:$0xff]
  %v10105 = vld [vmem:[%s9671 + $0x351] sm:$0xff]
  %v10106 = vld [vmem:[%s9671 + $0x369] sm:$0xff]
  %v10107 = vld [vmem:[%s9671 + $0x371] sm:$0xff]
  %v10108 = vld [vmem:[%s9671 + $0x389] sm:$0xff]
  %v10109 = vld [vmem:[%s9671 + $0x391] sm:$0xff]
  %v10110 = vld [vmem:[%s9671 + $0x3a9] sm:$0xff]
  %v10111 = vld [vmem:[%s9671 + $0x3b1] sm:$0xff]
  %v10112 = vld [vmem:[%s9671 + $0x3c9] sm:$0xff]
  %v10113 = vld [vmem:[%s9671 + $0x3d1] sm:$0xff]
  %v10114 = vld [vmem:[%s9671 + $0x3e9] sm:$0xff]
  %v10115 = vld [vmem:[%s9671 + $0x3f1] sm:$0xff]
  %v10116 = vld [vmem:[%s9671 + $0x409] sm:$0xff]
  %v10117 = vld [vmem:[%s9671 + $0x411] sm:$0xff]
  %v10118 = vld [vmem:[%s9671 + $0x429] sm:$0xff]
  %v10119 = vld [vmem:[%s9671 + $0x431] sm:$0xff]
  %s10120 = scalar_lea.vmem [#allocation3], 64
  %v10121 = vld [vmem:[%s10120 + $0x7] sm:$0xff]
  %v10122 = vld [vmem:[%s10120 + $0xf] sm:$0xff]
  %v10123 = vld [vmem:[%s10120 + $0x27] sm:$0xff]
  %v10124 = vld [vmem:[%s10120 + $0x2f] sm:$0xff]
  %v10125 = vld [vmem:[%s10120 + $0x47] sm:$0xff]
  %v10126 = vld [vmem:[%s10120 + $0x4f] sm:$0xff]
  %v10127 = vld [vmem:[%s10120 + $0x67] sm:$0xff]
  %v10128 = vld [vmem:[%s10120 + $0x6f] sm:$0xff]
  %v10129 = vld [vmem:[%s10120 + $0x87] sm:$0xff]
  %v10130 = vld [vmem:[%s10120 + $0x8f] sm:$0xff]
  %v10131 = vld [vmem:[%s10120 + $0xa7] sm:$0xff]
  %v10132 = vld [vmem:[%s10120 + $0xaf] sm:$0xff]
  %v10133 = vld [vmem:[%s10120 + $0xc7] sm:$0xff]
  %v10134 = vld [vmem:[%s10120 + $0xcf] sm:$0xff]
  %v10135 = vld [vmem:[%s10120 + $0xe7] sm:$0xff]
  %v10136 = vld [vmem:[%s10120 + $0xef] sm:$0xff]
  %v10137 = vld [vmem:[%s10120 + $0x107] sm:$0xff]
  %v10138 = vld [vmem:[%s10120 + $0x10f] sm:$0xff]
  %v10139 = vld [vmem:[%s10120 + $0x127] sm:$0xff]
  %v10140 = vld [vmem:[%s10120 + $0x12f] sm:$0xff]
  %v10141 = vld [vmem:[%s10120 + $0x147] sm:$0xff]
  %v10142 = vld [vmem:[%s10120 + $0x14f] sm:$0xff]
  %v10143 = vld [vmem:[%s10120 + $0x167] sm:$0xff]
  %v10144 = vld [vmem:[%s10120 + $0x16f] sm:$0xff]
  %v10145 = vld [vmem:[%s10120 + $0x187] sm:$0xff]
  %v10146 = vld [vmem:[%s10120 + $0x18f] sm:$0xff]
  %v10147 = vld [vmem:[%s10120 + $0x1a7] sm:$0xff]
  %v10148 = vld [vmem:[%s10120 + $0x1af] sm:$0xff]
  %v10149 = vld [vmem:[%s10120 + $0x1c7] sm:$0xff]
  %v10150 = vld [vmem:[%s10120 + $0x1cf] sm:$0xff]
  %v10151 = vld [vmem:[%s10120 + $0x1e7] sm:$0xff]
  %v10152 = vld [vmem:[%s10120 + $0x1ef] sm:$0xff]
  %v10153 = vld [vmem:[%s10120 + $0x247] sm:$0xff]
  %v10154 = vld [vmem:[%s10120 + $0x24f] sm:$0xff]
  %v10155 = vld [vmem:[%s10120 + $0x267] sm:$0xff]
  %v10156 = vld [vmem:[%s10120 + $0x26f] sm:$0xff]
  %v10157 = vld [vmem:[%s10120 + $0x287] sm:$0xff]
  %v10158 = vld [vmem:[%s10120 + $0x28f] sm:$0xff]
  %v10159 = vld [vmem:[%s10120 + $0x2a7] sm:$0xff]
  %v10160 = vld [vmem:[%s10120 + $0x2af] sm:$0xff]
  %v10161 = vld [vmem:[%s10120 + $0x2c7] sm:$0xff]
  %v10162 = vld [vmem:[%s10120 + $0x2cf] sm:$0xff]
  %v10163 = vld [vmem:[%s10120 + $0x2e7] sm:$0xff]
  %v10164 = vld [vmem:[%s10120 + $0x2ef] sm:$0xff]
  %v10165 = vld [vmem:[%s10120 + $0x307] sm:$0xff]
  %v10166 = vld [vmem:[%s10120 + $0x30f] sm:$0xff]
  %v10167 = vld [vmem:[%s10120 + $0x327] sm:$0xff]
  %v10168 = vld [vmem:[%s10120 + $0x32f] sm:$0xff]
  %v10169 = vld [vmem:[%s10120 + $0x347] sm:$0xff]
  %v10170 = vld [vmem:[%s10120 + $0x34f] sm:$0xff]
  %v10171 = vld [vmem:[%s10120 + $0x367] sm:$0xff]
  %v10172 = vld [vmem:[%s10120 + $0x36f] sm:$0xff]
  %v10173 = vld [vmem:[%s10120 + $0x387] sm:$0xff]
  %v10174 = vld [vmem:[%s10120 + $0x38f] sm:$0xff]
  %v10175 = vld [vmem:[%s10120 + $0x3a7] sm:$0xff]
  %v10176 = vld [vmem:[%s10120 + $0x3af] sm:$0xff]
  %v10177 = vld [vmem:[%s10120 + $0x3c7] sm:$0xff]
  %v10178 = vld [vmem:[%s10120 + $0x3cf] sm:$0xff]
  %v10179 = vld [vmem:[%s10120 + $0x3e7] sm:$0xff]
  %v10180 = vld [vmem:[%s10120 + $0x3ef] sm:$0xff]
  %v10181 = vld [vmem:[%s10120 + $0x407] sm:$0xff]
  %v10182 = vld [vmem:[%s10120 + $0x40f] sm:$0xff]
  %v10183 = vld [vmem:[%s10120 + $0x427] sm:$0xff]
  %v10184 = vld [vmem:[%s10120 + $0x42f] sm:$0xff]
  %v10185 = vld [vmem:[%s10120 + $0x8] sm:$0xff]
  %v10186 = vld [vmem:[%s10120 + $0x10] sm:$0xff]
  %v10187 = vld [vmem:[%s10120 + $0x28] sm:$0xff]
  %v10188 = vld [vmem:[%s10120 + $0x30] sm:$0xff]
  %v10189 = vld [vmem:[%s10120 + $0x48] sm:$0xff]
  %v10190 = vld [vmem:[%s10120 + $0x50] sm:$0xff]
  %v10191 = vld [vmem:[%s10120 + $0x68] sm:$0xff]
  %v10192 = vld [vmem:[%s10120 + $0x70] sm:$0xff]
  %v10193 = vld [vmem:[%s10120 + $0x88] sm:$0xff]
  %v10194 = vld [vmem:[%s10120 + $0x90] sm:$0xff]
  %v10195 = vld [vmem:[%s10120 + $0xa8] sm:$0xff]
  %v10196 = vld [vmem:[%s10120 + $0xb0] sm:$0xff]
  %v10197 = vld [vmem:[%s10120 + $0xc8] sm:$0xff]
  %v10198 = vld [vmem:[%s10120 + $0xd0] sm:$0xff]
  %v10199 = vld [vmem:[%s10120 + $0xe8] sm:$0xff]
  %v10200 = vld [vmem:[%s10120 + $0xf0] sm:$0xff]
  %v10201 = vld [vmem:[%s10120 + $0x108] sm:$0xff]
  %v10202 = vld [vmem:[%s10120 + $0x110] sm:$0xff]
  %v10203 = vld [vmem:[%s10120 + $0x128] sm:$0xff]
  %v10204 = vld [vmem:[%s10120 + $0x130] sm:$0xff]
  %v10205 = vld [vmem:[%s10120 + $0x148] sm:$0xff]
  %v10206 = vld [vmem:[%s10120 + $0x150] sm:$0xff]
  %v10207 = vld [vmem:[%s10120 + $0x168] sm:$0xff]
  %v10208 = vld [vmem:[%s10120 + $0x170] sm:$0xff]
  %v10209 = vld [vmem:[%s10120 + $0x188] sm:$0xff]
  %v10210 = vld [vmem:[%s10120 + $0x190] sm:$0xff]
  %v10211 = vld [vmem:[%s10120 + $0x1a8] sm:$0xff]
  %v10212 = vld [vmem:[%s10120 + $0x1b0] sm:$0xff]
  %v10213 = vld [vmem:[%s10120 + $0x1c8] sm:$0xff]
  %v10214 = vld [vmem:[%s10120 + $0x1d0] sm:$0xff]
  %v10215 = vld [vmem:[%s10120 + $0x1e8] sm:$0xff]
  %v10216 = vld [vmem:[%s10120 + $0x1f0] sm:$0xff]
  %v10217 = vld [vmem:[%s10120 + $0x248] sm:$0xff]
  %v10218 = vld [vmem:[%s10120 + $0x250] sm:$0xff]
  %v10219 = vld [vmem:[%s10120 + $0x268] sm:$0xff]
  %v10220 = vld [vmem:[%s10120 + $0x270] sm:$0xff]
  %v10221 = vld [vmem:[%s10120 + $0x288] sm:$0xff]
  %v10222 = vld [vmem:[%s10120 + $0x290] sm:$0xff]
  %v10223 = vld [vmem:[%s10120 + $0x2a8] sm:$0xff]
  %v10224 = vld [vmem:[%s10120 + $0x2b0] sm:$0xff]
  %v10225 = vld [vmem:[%s10120 + $0x2c8] sm:$0xff]
  %v10226 = vld [vmem:[%s10120 + $0x2d0] sm:$0xff]
  %v10227 = vld [vmem:[%s10120 + $0x2e8] sm:$0xff]
  %v10228 = vld [vmem:[%s10120 + $0x2f0] sm:$0xff]
  %v10229 = vld [vmem:[%s10120 + $0x308] sm:$0xff]
  %v10230 = vld [vmem:[%s10120 + $0x310] sm:$0xff]
  %v10231 = vld [vmem:[%s10120 + $0x328] sm:$0xff]
  %v10232 = vld [vmem:[%s10120 + $0x330] sm:$0xff]
  %v10233 = vld [vmem:[%s10120 + $0x348] sm:$0xff]
  %v10234 = vld [vmem:[%s10120 + $0x350] sm:$0xff]
  %v10235 = vld [vmem:[%s10120 + $0x368] sm:$0xff]
  %v10236 = vld [vmem:[%s10120 + $0x370] sm:$0xff]
  %v10237 = vld [vmem:[%s10120 + $0x388] sm:$0xff]
  %v10238 = vld [vmem:[%s10120 + $0x390] sm:$0xff]
  %v10239 = vld [vmem:[%s10120 + $0x3a8] sm:$0xff]
  %v10240 = vld [vmem:[%s10120 + $0x3b0] sm:$0xff]
  %v10241 = vld [vmem:[%s10120 + $0x3c8] sm:$0xff]
  %v10242 = vld [vmem:[%s10120 + $0x3d0] sm:$0xff]
  %v10243 = vld [vmem:[%s10120 + $0x3e8] sm:$0xff]
  %v10244 = vld [vmem:[%s10120 + $0x3f0] sm:$0xff]
  %v10245 = vld [vmem:[%s10120 + $0x408] sm:$0xff]
  %v10246 = vld [vmem:[%s10120 + $0x410] sm:$0xff]
  %v10247 = vld [vmem:[%s10120 + $0x428] sm:$0xff]
  %v10248 = vld [vmem:[%s10120 + $0x430] sm:$0xff]
  %v10249 = vld [vmem:[%s10120 + $0x9] sm:$0xff]
  %v10250 = vld [vmem:[%s10120 + $0x11] sm:$0xff]
  %v10251 = vld [vmem:[%s10120 + $0x29] sm:$0xff]
  %v10252 = vld [vmem:[%s10120 + $0x31] sm:$0xff]
  %v10253 = vld [vmem:[%s10120 + $0x49] sm:$0xff]
  %v10254 = vld [vmem:[%s10120 + $0x51] sm:$0xff]
  %v10255 = vld [vmem:[%s10120 + $0x69] sm:$0xff]
  %v10256 = vld [vmem:[%s10120 + $0x71] sm:$0xff]
  %v10257 = vld [vmem:[%s10120 + $0x89] sm:$0xff]
  %v10258 = vld [vmem:[%s10120 + $0x91] sm:$0xff]
  %v10259 = vld [vmem:[%s10120 + $0xa9] sm:$0xff]
  %v10260 = vld [vmem:[%s10120 + $0xb1] sm:$0xff]
  %v10261 = vld [vmem:[%s10120 + $0xc9] sm:$0xff]
  %v10262 = vld [vmem:[%s10120 + $0xd1] sm:$0xff]
  %v10263 = vld [vmem:[%s10120 + $0xe9] sm:$0xff]
  %v10264 = vld [vmem:[%s10120 + $0xf1] sm:$0xff]
  %v10265 = vld [vmem:[%s10120 + $0x109] sm:$0xff]
  %v10266 = vld [vmem:[%s10120 + $0x111] sm:$0xff]
  %v10267 = vld [vmem:[%s10120 + $0x129] sm:$0xff]
  %v10268 = vld [vmem:[%s10120 + $0x131] sm:$0xff]
  %v10269 = vld [vmem:[%s10120 + $0x149] sm:$0xff]
  %v10270 = vld [vmem:[%s10120 + $0x151] sm:$0xff]
  %v10271 = vld [vmem:[%s10120 + $0x169] sm:$0xff]
  %v10272 = vld [vmem:[%s10120 + $0x171] sm:$0xff]
  %v10273 = vld [vmem:[%s10120 + $0x189] sm:$0xff]
  %v10274 = vld [vmem:[%s10120 + $0x191] sm:$0xff]
  %v10275 = vld [vmem:[%s10120 + $0x1a9] sm:$0xff]
  %v10276 = vld [vmem:[%s10120 + $0x1b1] sm:$0xff]
  %v10277 = vld [vmem:[%s10120 + $0x1c9] sm:$0xff]
  %v10278 = vld [vmem:[%s10120 + $0x1d1] sm:$0xff]
  %v10279 = vld [vmem:[%s10120 + $0x1e9] sm:$0xff]
  %v10280 = vld [vmem:[%s10120 + $0x1f1] sm:$0xff]
  %v10281 = vld [vmem:[%s10120 + $0x249] sm:$0xff]
  %v10282 = vld [vmem:[%s10120 + $0x251] sm:$0xff]
  %v10283 = vld [vmem:[%s10120 + $0x269] sm:$0xff]
  %v10284 = vld [vmem:[%s10120 + $0x271] sm:$0xff]
  %v10285 = vld [vmem:[%s10120 + $0x289] sm:$0xff]
  %v10286 = vld [vmem:[%s10120 + $0x291] sm:$0xff]
  %v10287 = vld [vmem:[%s10120 + $0x2a9] sm:$0xff]
  %v10288 = vld [vmem:[%s10120 + $0x2b1] sm:$0xff]
  %v10289 = vld [vmem:[%s10120 + $0x2c9] sm:$0xff]
  %v10290 = vld [vmem:[%s10120 + $0x2d1] sm:$0xff]
  %v10291 = vld [vmem:[%s10120 + $0x2e9] sm:$0xff]
  %v10292 = vld [vmem:[%s10120 + $0x2f1] sm:$0xff]
  %v10293 = vld [vmem:[%s10120 + $0x309] sm:$0xff]
  %v10294 = vld [vmem:[%s10120 + $0x311] sm:$0xff]
  %v10295 = vld [vmem:[%s10120 + $0x329] sm:$0xff]
  %v10296 = vld [vmem:[%s10120 + $0x331] sm:$0xff]
  %v10297 = vld [vmem:[%s10120 + $0x349] sm:$0xff]
  %v10298 = vld [vmem:[%s10120 + $0x351] sm:$0xff]
  %v10299 = vld [vmem:[%s10120 + $0x369] sm:$0xff]
  %v10300 = vld [vmem:[%s10120 + $0x371] sm:$0xff]
  %v10301 = vld [vmem:[%s10120 + $0x389] sm:$0xff]
  %v10302 = vld [vmem:[%s10120 + $0x391] sm:$0xff]
  %v10303 = vld [vmem:[%s10120 + $0x3a9] sm:$0xff]
  %v10304 = vld [vmem:[%s10120 + $0x3b1] sm:$0xff]
  %v10305 = vld [vmem:[%s10120 + $0x3c9] sm:$0xff]
  %v10306 = vld [vmem:[%s10120 + $0x3d1] sm:$0xff]
  %v10307 = vld [vmem:[%s10120 + $0x3e9] sm:$0xff]
  %v10308 = vld [vmem:[%s10120 + $0x3f1] sm:$0xff]
  %v10309 = vld [vmem:[%s10120 + $0x409] sm:$0xff]
  %v10310 = vld [vmem:[%s10120 + $0x411] sm:$0xff]
  %v10311 = vld [vmem:[%s10120 + $0x429] sm:$0xff]
  %v10312 = vld [vmem:[%s10120 + $0x431] sm:$0xff]
  %10377 = vrot.lane.b32.xlu0 %v9800, 32
  %v10378 = vpop.permute.xlu0 %10377
  %10379 = vrot.lane.b32.xlu0 %v9801, 32
  %v10380 = vpop.permute.xlu0 %10379
  %10381 = vrot.lane.b32.xlu0 %v9802, 32
  %v10382 = vpop.permute.xlu0 %10381
  %10383 = vrot.lane.b32.xlu0 %v9803, 32
  %v10384 = vpop.permute.xlu0 %10383
  %10385 = vrot.lane.b32.xlu0 %v9804, 32
  %v10386 = vpop.permute.xlu0 %10385
  %10387 = vrot.lane.b32.xlu0 %v9805, 32
  %v10388 = vpop.permute.xlu0 %10387
  %10389 = vrot.lane.b32.xlu0 %v9806, 32
  %v10390 = vpop.permute.xlu0 %10389
  %10391 = vrot.lane.b32.xlu0 %v9807, 32
  %v10392 = vpop.permute.xlu0 %10391
  %10393 = vrot.lane.b32.xlu0 %v9808, 32
  %v10394 = vpop.permute.xlu0 %10393
  %10395 = vrot.lane.b32.xlu0 %v9809, 32
  %v10396 = vpop.permute.xlu0 %10395
  %10397 = vrot.lane.b32.xlu0 %v9810, 32
  %v10398 = vpop.permute.xlu0 %10397
  %10399 = vrot.lane.b32.xlu0 %v9811, 32
  %v10400 = vpop.permute.xlu0 %10399
  %10401 = vrot.lane.b32.xlu0 %v9812, 32
  %v10402 = vpop.permute.xlu0 %10401
  %10403 = vrot.lane.b32.xlu0 %v9813, 32
  %v10404 = vpop.permute.xlu0 %10403
  %10405 = vrot.lane.b32.xlu0 %v9814, 32
  %v10406 = vpop.permute.xlu0 %10405
  %10407 = vrot.lane.b32.xlu0 %v9815, 32
  %v10408 = vpop.permute.xlu0 %10407
  %10409 = vrot.lane.b32.xlu0 %v9816, 32
  %v10410 = vpop.permute.xlu0 %10409
  %10411 = vrot.lane.b32.xlu0 %v9817, 32
  %v10412 = vpop.permute.xlu0 %10411
  %10413 = vrot.lane.b32.xlu0 %v9818, 32
  %v10414 = vpop.permute.xlu0 %10413
  %10415 = vrot.lane.b32.xlu0 %v9819, 32
  %v10416 = vpop.permute.xlu0 %10415
  %10417 = vrot.lane.b32.xlu0 %v9820, 32
  %v10418 = vpop.permute.xlu0 %10417
  %10419 = vrot.lane.b32.xlu0 %v9821, 32
  %v10420 = vpop.permute.xlu0 %10419
  %10421 = vrot.lane.b32.xlu0 %v9822, 32
  %v10422 = vpop.permute.xlu0 %10421
  %10423 = vrot.lane.b32.xlu0 %v9823, 32
  %v10424 = vpop.permute.xlu0 %10423
  %10425 = vrot.lane.b32.xlu0 %v9824, 32
  %v10426 = vpop.permute.xlu0 %10425
  %10427 = vrot.lane.b32.xlu0 %v9825, 32
  %v10428 = vpop.permute.xlu0 %10427
  %10429 = vrot.lane.b32.xlu0 %v9826, 32
  %v10430 = vpop.permute.xlu0 %10429
  %10431 = vrot.lane.b32.xlu0 %v9827, 32
  %v10432 = vpop.permute.xlu0 %10431
  %10433 = vrot.lane.b32.xlu0 %v9828, 32
  %v10434 = vpop.permute.xlu0 %10433
  %10435 = vrot.lane.b32.xlu0 %v9829, 32
  %v10436 = vpop.permute.xlu0 %10435
  %10437 = vrot.lane.b32.xlu0 %v9830, 32
  %v10438 = vpop.permute.xlu0 %10437
  %10439 = vrot.lane.b32.xlu0 %v9831, 32
  %v10440 = vpop.permute.xlu0 %10439
  %10441 = vrot.lane.b32.xlu0 %v9832, 32
  %v10442 = vpop.permute.xlu0 %10441
  %10443 = vrot.lane.b32.xlu0 %v9833, 32
  %v10444 = vpop.permute.xlu0 %10443
  %10445 = vrot.lane.b32.xlu0 %v9834, 32
  %v10446 = vpop.permute.xlu0 %10445
  %10447 = vrot.lane.b32.xlu0 %v9835, 32
  %v10448 = vpop.permute.xlu0 %10447
  %10449 = vrot.lane.b32.xlu0 %v9836, 32
  %v10450 = vpop.permute.xlu0 %10449
  %10451 = vrot.lane.b32.xlu0 %v9837, 32
  %v10452 = vpop.permute.xlu0 %10451
  %10453 = vrot.lane.b32.xlu0 %v9838, 32
  %v10454 = vpop.permute.xlu0 %10453
  %10455 = vrot.lane.b32.xlu0 %v9839, 32
  %v10456 = vpop.permute.xlu0 %10455
  %10457 = vrot.lane.b32.xlu0 %v9840, 32
  %v10458 = vpop.permute.xlu0 %10457
  %10459 = vrot.lane.b32.xlu0 %v9841, 32
  %v10460 = vpop.permute.xlu0 %10459
  %10461 = vrot.lane.b32.xlu0 %v9842, 32
  %v10462 = vpop.permute.xlu0 %10461
  %10463 = vrot.lane.b32.xlu0 %v9843, 32
  %v10464 = vpop.permute.xlu0 %10463
  %10465 = vrot.lane.b32.xlu0 %v9844, 32
  %v10466 = vpop.permute.xlu0 %10465
  %10467 = vrot.lane.b32.xlu0 %v9845, 32
  %v10468 = vpop.permute.xlu0 %10467
  %10469 = vrot.lane.b32.xlu0 %v9846, 32
  %v10470 = vpop.permute.xlu0 %10469
  %10471 = vrot.lane.b32.xlu0 %v9847, 32
  %v10472 = vpop.permute.xlu0 %10471
  %10473 = vrot.lane.b32.xlu0 %v9848, 32
  %v10474 = vpop.permute.xlu0 %10473
  %10475 = vrot.lane.b32.xlu0 %v9849, 32
  %v10476 = vpop.permute.xlu0 %10475
  %10477 = vrot.lane.b32.xlu0 %v9850, 32
  %v10478 = vpop.permute.xlu0 %10477
  %10479 = vrot.lane.b32.xlu0 %v9851, 32
  %v10480 = vpop.permute.xlu0 %10479
  %10481 = vrot.lane.b32.xlu0 %v9852, 32
  %v10482 = vpop.permute.xlu0 %10481
  %10483 = vrot.lane.b32.xlu0 %v9853, 32
  %v10484 = vpop.permute.xlu0 %10483
  %10485 = vrot.lane.b32.xlu0 %v9854, 32
  %v10486 = vpop.permute.xlu0 %10485
  %10487 = vrot.lane.b32.xlu0 %v9855, 32
  %v10488 = vpop.permute.xlu0 %10487
  %10489 = vrot.lane.b32.xlu0 %v9856, 32
  %v10490 = vpop.permute.xlu0 %10489
  %10491 = vrot.lane.b32.xlu0 %v9857, 32
  %v10492 = vpop.permute.xlu0 %10491
  %10493 = vrot.lane.b32.xlu0 %v9858, 32
  %v10494 = vpop.permute.xlu0 %10493
  %10495 = vrot.lane.b32.xlu0 %v9859, 32
  %v10496 = vpop.permute.xlu0 %10495
  %10497 = vrot.lane.b32.xlu0 %v9860, 32
  %v10498 = vpop.permute.xlu0 %10497
  %10499 = vrot.lane.b32.xlu0 %v9861, 32
  %v10500 = vpop.permute.xlu0 %10499
  %10501 = vrot.lane.b32.xlu0 %v9862, 32
  %v10502 = vpop.permute.xlu0 %10501
  %10503 = vrot.lane.b32.xlu0 %v9863, 32
  %v10504 = vpop.permute.xlu0 %10503
  %10633 = vrot.lane.b32.xlu0 %v9864, 64
  %v10634 = vpop.permute.xlu0 %10633
  %10635 = vrot.lane.b32.xlu0 %v9865, 64
  %v10636 = vpop.permute.xlu0 %10635
  %10637 = vrot.lane.b32.xlu0 %v9866, 64
  %v10638 = vpop.permute.xlu0 %10637
  %10639 = vrot.lane.b32.xlu0 %v9867, 64
  %v10640 = vpop.permute.xlu0 %10639
  %10641 = vrot.lane.b32.xlu0 %v9868, 64
  %v10642 = vpop.permute.xlu0 %10641
  %10643 = vrot.lane.b32.xlu0 %v9869, 64
  %v10644 = vpop.permute.xlu0 %10643
  %10645 = vrot.lane.b32.xlu0 %v9870, 64
  %v10646 = vpop.permute.xlu0 %10645
  %10647 = vrot.lane.b32.xlu0 %v9871, 64
  %v10648 = vpop.permute.xlu0 %10647
  %10649 = vrot.lane.b32.xlu0 %v9872, 64
  %v10650 = vpop.permute.xlu0 %10649
  %10651 = vrot.lane.b32.xlu0 %v9873, 64
  %v10652 = vpop.permute.xlu0 %10651
  %10653 = vrot.lane.b32.xlu0 %v9874, 64
  %v10654 = vpop.permute.xlu0 %10653
  %10655 = vrot.lane.b32.xlu0 %v9875, 64
  %v10656 = vpop.permute.xlu0 %10655
  %10657 = vrot.lane.b32.xlu0 %v9876, 64
  %v10658 = vpop.permute.xlu0 %10657
  %10659 = vrot.lane.b32.xlu0 %v9877, 64
  %v10660 = vpop.permute.xlu0 %10659
  %10661 = vrot.lane.b32.xlu0 %v9878, 64
  %v10662 = vpop.permute.xlu0 %10661
  %10663 = vrot.lane.b32.xlu0 %v9879, 64
  %v10664 = vpop.permute.xlu0 %10663
  %10665 = vrot.lane.b32.xlu0 %v9880, 64
  %v10666 = vpop.permute.xlu0 %10665
  %10667 = vrot.lane.b32.xlu0 %v9881, 64
  %v10668 = vpop.permute.xlu0 %10667
  %10669 = vrot.lane.b32.xlu0 %v9882, 64
  %v10670 = vpop.permute.xlu0 %10669
  %10671 = vrot.lane.b32.xlu0 %v9883, 64
  %v10672 = vpop.permute.xlu0 %10671
  %10673 = vrot.lane.b32.xlu0 %v9884, 64
  %v10674 = vpop.permute.xlu0 %10673
  %10675 = vrot.lane.b32.xlu0 %v9885, 64
  %v10676 = vpop.permute.xlu0 %10675
  %10677 = vrot.lane.b32.xlu0 %v9886, 64
  %v10678 = vpop.permute.xlu0 %10677
  %10679 = vrot.lane.b32.xlu0 %v9887, 64
  %v10680 = vpop.permute.xlu0 %10679
  %10681 = vrot.lane.b32.xlu0 %v9888, 64
  %v10682 = vpop.permute.xlu0 %10681
  %10683 = vrot.lane.b32.xlu0 %v9889, 64
  %v10684 = vpop.permute.xlu0 %10683
  %10685 = vrot.lane.b32.xlu0 %v9890, 64
  %v10686 = vpop.permute.xlu0 %10685
  %10687 = vrot.lane.b32.xlu0 %v9891, 64
  %v10688 = vpop.permute.xlu0 %10687
  %10689 = vrot.lane.b32.xlu0 %v9892, 64
  %v10690 = vpop.permute.xlu0 %10689
  %10691 = vrot.lane.b32.xlu0 %v9893, 64
  %v10692 = vpop.permute.xlu0 %10691
  %10693 = vrot.lane.b32.xlu0 %v9894, 64
  %v10694 = vpop.permute.xlu0 %10693
  %10695 = vrot.lane.b32.xlu0 %v9895, 64
  %v10696 = vpop.permute.xlu0 %10695
  %10697 = vrot.lane.b32.xlu0 %v9896, 64
  %v10698 = vpop.permute.xlu0 %10697
  %10699 = vrot.lane.b32.xlu0 %v9897, 64
  %v10700 = vpop.permute.xlu0 %10699
  %10701 = vrot.lane.b32.xlu0 %v9898, 64
  %v10702 = vpop.permute.xlu0 %10701
  %10703 = vrot.lane.b32.xlu0 %v9899, 64
  %v10704 = vpop.permute.xlu0 %10703
  %10705 = vrot.lane.b32.xlu0 %v9900, 64
  %v10706 = vpop.permute.xlu0 %10705
  %10707 = vrot.lane.b32.xlu0 %v9901, 64
  %v10708 = vpop.permute.xlu0 %10707
  %10709 = vrot.lane.b32.xlu0 %v9902, 64
  %v10710 = vpop.permute.xlu0 %10709
  %10711 = vrot.lane.b32.xlu0 %v9903, 64
  %v10712 = vpop.permute.xlu0 %10711
  %10713 = vrot.lane.b32.xlu0 %v9904, 64
  %v10714 = vpop.permute.xlu0 %10713
  %10715 = vrot.lane.b32.xlu0 %v9905, 64
  %v10716 = vpop.permute.xlu0 %10715
  %10717 = vrot.lane.b32.xlu0 %v9906, 64
  %v10718 = vpop.permute.xlu0 %10717
  %10719 = vrot.lane.b32.xlu0 %v9907, 64
  %v10720 = vpop.permute.xlu0 %10719
  %10721 = vrot.lane.b32.xlu0 %v9908, 64
  %v10722 = vpop.permute.xlu0 %10721
  %10723 = vrot.lane.b32.xlu0 %v9909, 64
  %v10724 = vpop.permute.xlu0 %10723
  %10725 = vrot.lane.b32.xlu0 %v9910, 64
  %v10726 = vpop.permute.xlu0 %10725
  %10727 = vrot.lane.b32.xlu0 %v9911, 64
  %v10728 = vpop.permute.xlu0 %10727
  %10729 = vrot.lane.b32.xlu0 %v9912, 64
  %v10730 = vpop.permute.xlu0 %10729
  %10731 = vrot.lane.b32.xlu0 %v9913, 64
  %v10732 = vpop.permute.xlu0 %10731
  %10733 = vrot.lane.b32.xlu0 %v9914, 64
  %v10734 = vpop.permute.xlu0 %10733
  %10735 = vrot.lane.b32.xlu0 %v9915, 64
  %v10736 = vpop.permute.xlu0 %10735
  %10737 = vrot.lane.b32.xlu0 %v9916, 64
  %v10738 = vpop.permute.xlu0 %10737
  %10739 = vrot.lane.b32.xlu0 %v9917, 64
  %v10740 = vpop.permute.xlu0 %10739
  %10741 = vrot.lane.b32.xlu0 %v9918, 64
  %v10742 = vpop.permute.xlu0 %10741
  %10743 = vrot.lane.b32.xlu0 %v9919, 64
  %v10744 = vpop.permute.xlu0 %10743
  %10745 = vrot.lane.b32.xlu0 %v9920, 64
  %v10746 = vpop.permute.xlu0 %10745
  %10747 = vrot.lane.b32.xlu0 %v9921, 64
  %v10748 = vpop.permute.xlu0 %10747
  %10749 = vrot.lane.b32.xlu0 %v9922, 64
  %v10750 = vpop.permute.xlu0 %10749
  %10751 = vrot.lane.b32.xlu0 %v9923, 64
  %v10752 = vpop.permute.xlu0 %10751
  %10753 = vrot.lane.b32.xlu0 %v9924, 64
  %v10754 = vpop.permute.xlu0 %10753
  %10755 = vrot.lane.b32.xlu0 %v9925, 64
  %v10756 = vpop.permute.xlu0 %10755
  %10757 = vrot.lane.b32.xlu0 %v9926, 64
  %v10758 = vpop.permute.xlu0 %10757
  %10759 = vrot.lane.b32.xlu0 %v9927, 64
  %v10760 = vpop.permute.xlu0 %10759
  %10889 = vrot.lane.b32.xlu0 %v9928, 96
  %v10890 = vpop.permute.xlu0 %10889
  %10891 = vrot.lane.b32.xlu0 %v9929, 96
  %v10892 = vpop.permute.xlu0 %10891
  %10893 = vrot.lane.b32.xlu0 %v9930, 96
  %v10894 = vpop.permute.xlu0 %10893
  %10895 = vrot.lane.b32.xlu0 %v9931, 96
  %v10896 = vpop.permute.xlu0 %10895
  %10897 = vrot.lane.b32.xlu0 %v9932, 96
  %v10898 = vpop.permute.xlu0 %10897
  %10899 = vrot.lane.b32.xlu0 %v9933, 96
  %v10900 = vpop.permute.xlu0 %10899
  %10901 = vrot.lane.b32.xlu0 %v9934, 96
  %v10902 = vpop.permute.xlu0 %10901
  %10903 = vrot.lane.b32.xlu0 %v9935, 96
  %v10904 = vpop.permute.xlu0 %10903
  %10905 = vrot.lane.b32.xlu0 %v9936, 96
  %v10906 = vpop.permute.xlu0 %10905
  %10907 = vrot.lane.b32.xlu0 %v9937, 96
  %v10908 = vpop.permute.xlu0 %10907
  %10909 = vrot.lane.b32.xlu0 %v9938, 96
  %v10910 = vpop.permute.xlu0 %10909
  %10911 = vrot.lane.b32.xlu0 %v9939, 96
  %v10912 = vpop.permute.xlu0 %10911
  %10913 = vrot.lane.b32.xlu0 %v9940, 96
  %v10914 = vpop.permute.xlu0 %10913
  %10915 = vrot.lane.b32.xlu0 %v9941, 96
  %v10916 = vpop.permute.xlu0 %10915
  %10917 = vrot.lane.b32.xlu0 %v9942, 96
  %v10918 = vpop.permute.xlu0 %10917
  %10919 = vrot.lane.b32.xlu0 %v9943, 96
  %v10920 = vpop.permute.xlu0 %10919
  %10921 = vrot.lane.b32.xlu0 %v9944, 96
  %v10922 = vpop.permute.xlu0 %10921
  %10923 = vrot.lane.b32.xlu0 %v9945, 96
  %v10924 = vpop.permute.xlu0 %10923
  %10925 = vrot.lane.b32.xlu0 %v9946, 96
  %v10926 = vpop.permute.xlu0 %10925
  %10927 = vrot.lane.b32.xlu0 %v9947, 96
  %v10928 = vpop.permute.xlu0 %10927
  %10929 = vrot.lane.b32.xlu0 %v9948, 96
  %v10930 = vpop.permute.xlu0 %10929
  %10931 = vrot.lane.b32.xlu0 %v9949, 96
  %v10932 = vpop.permute.xlu0 %10931
  %10933 = vrot.lane.b32.xlu0 %v9950, 96
  %v10934 = vpop.permute.xlu0 %10933
  %10935 = vrot.lane.b32.xlu0 %v9951, 96
  %v10936 = vpop.permute.xlu0 %10935
  %10937 = vrot.lane.b32.xlu0 %v9952, 96
  %v10938 = vpop.permute.xlu0 %10937
  %10939 = vrot.lane.b32.xlu0 %v9953, 96
  %v10940 = vpop.permute.xlu0 %10939
  %10941 = vrot.lane.b32.xlu0 %v9954, 96
  %v10942 = vpop.permute.xlu0 %10941
  %10943 = vrot.lane.b32.xlu0 %v9955, 96
  %v10944 = vpop.permute.xlu0 %10943
  %10945 = vrot.lane.b32.xlu0 %v9956, 96
  %v10946 = vpop.permute.xlu0 %10945
  %10947 = vrot.lane.b32.xlu0 %v9957, 96
  %v10948 = vpop.permute.xlu0 %10947
  %10949 = vrot.lane.b32.xlu0 %v9958, 96
  %v10950 = vpop.permute.xlu0 %10949
  %10951 = vrot.lane.b32.xlu0 %v9959, 96
  %v10952 = vpop.permute.xlu0 %10951
  %10953 = vrot.lane.b32.xlu0 %v9960, 96
  %v10954 = vpop.permute.xlu0 %10953
  %10955 = vrot.lane.b32.xlu0 %v9961, 96
  %v10956 = vpop.permute.xlu0 %10955
  %10957 = vrot.lane.b32.xlu0 %v9962, 96
  %v10958 = vpop.permute.xlu0 %10957
  %10959 = vrot.lane.b32.xlu0 %v9963, 96
  %v10960 = vpop.permute.xlu0 %10959
  %10961 = vrot.lane.b32.xlu0 %v9964, 96
  %v10962 = vpop.permute.xlu0 %10961
  %10963 = vrot.lane.b32.xlu0 %v9965, 96
  %v10964 = vpop.permute.xlu0 %10963
  %10965 = vrot.lane.b32.xlu0 %v9966, 96
  %v10966 = vpop.permute.xlu0 %10965
  %10967 = vrot.lane.b32.xlu0 %v9967, 96
  %v10968 = vpop.permute.xlu0 %10967
  %10969 = vrot.lane.b32.xlu0 %v9968, 96
  %v10970 = vpop.permute.xlu0 %10969
  %10971 = vrot.lane.b32.xlu0 %v9969, 96
  %v10972 = vpop.permute.xlu0 %10971
  %10973 = vrot.lane.b32.xlu0 %v9970, 96
  %v10974 = vpop.permute.xlu0 %10973
  %10975 = vrot.lane.b32.xlu0 %v9971, 96
  %v10976 = vpop.permute.xlu0 %10975
  %10977 = vrot.lane.b32.xlu0 %v9972, 96
  %v10978 = vpop.permute.xlu0 %10977
  %10979 = vrot.lane.b32.xlu0 %v9973, 96
  %v10980 = vpop.permute.xlu0 %10979
  %10981 = vrot.lane.b32.xlu0 %v9974, 96
  %v10982 = vpop.permute.xlu0 %10981
  %10983 = vrot.lane.b32.xlu0 %v9975, 96
  %v10984 = vpop.permute.xlu0 %10983
  %10985 = vrot.lane.b32.xlu0 %v9976, 96
  %v10986 = vpop.permute.xlu0 %10985
  %10987 = vrot.lane.b32.xlu0 %v9977, 96
  %v10988 = vpop.permute.xlu0 %10987
  %10989 = vrot.lane.b32.xlu0 %v9978, 96
  %v10990 = vpop.permute.xlu0 %10989
  %10991 = vrot.lane.b32.xlu0 %v9979, 96
  %v10992 = vpop.permute.xlu0 %10991
  %10993 = vrot.lane.b32.xlu0 %v9980, 96
  %v10994 = vpop.permute.xlu0 %10993
  %10995 = vrot.lane.b32.xlu0 %v9981, 96
  %v10996 = vpop.permute.xlu0 %10995
  %10997 = vrot.lane.b32.xlu0 %v9982, 96
  %v10998 = vpop.permute.xlu0 %10997
  %10999 = vrot.lane.b32.xlu0 %v9983, 96
  %v11000 = vpop.permute.xlu0 %10999
  %11001 = vrot.lane.b32.xlu0 %v9984, 96
  %v11002 = vpop.permute.xlu0 %11001
  %11003 = vrot.lane.b32.xlu0 %v9985, 96
  %v11004 = vpop.permute.xlu0 %11003
  %11005 = vrot.lane.b32.xlu0 %v9986, 96
  %v11006 = vpop.permute.xlu0 %11005
  %11007 = vrot.lane.b32.xlu0 %v9987, 96
  %v11008 = vpop.permute.xlu0 %11007
  %11009 = vrot.lane.b32.xlu0 %v9988, 96
  %v11010 = vpop.permute.xlu0 %11009
  %11011 = vrot.lane.b32.xlu0 %v9989, 96
  %v11012 = vpop.permute.xlu0 %11011
  %11013 = vrot.lane.b32.xlu0 %v9990, 96
  %v11014 = vpop.permute.xlu0 %11013
  %11015 = vrot.lane.b32.xlu0 %v9991, 96
  %v11016 = vpop.permute.xlu0 %11015
  %11145 = vrot.lane.b32.xlu0 %v10056, 32
  %v11146 = vpop.permute.xlu0 %11145
  %11147 = vrot.lane.b32.xlu0 %v10057, 32
  %v11148 = vpop.permute.xlu0 %11147
  %11149 = vrot.lane.b32.xlu0 %v10058, 32
  %v11150 = vpop.permute.xlu0 %11149
  %11151 = vrot.lane.b32.xlu0 %v10059, 32
  %v11152 = vpop.permute.xlu0 %11151
  %11153 = vrot.lane.b32.xlu0 %v10060, 32
  %v11154 = vpop.permute.xlu0 %11153
  %11155 = vrot.lane.b32.xlu0 %v10061, 32
  %v11156 = vpop.permute.xlu0 %11155
  %11157 = vrot.lane.b32.xlu0 %v10062, 32
  %v11158 = vpop.permute.xlu0 %11157
  %11159 = vrot.lane.b32.xlu0 %v10063, 32
  %v11160 = vpop.permute.xlu0 %11159
  %11161 = vrot.lane.b32.xlu0 %v10064, 32
  %v11162 = vpop.permute.xlu0 %11161
  %11163 = vrot.lane.b32.xlu0 %v10065, 32
  %v11164 = vpop.permute.xlu0 %11163
  %11165 = vrot.lane.b32.xlu0 %v10066, 32
  %v11166 = vpop.permute.xlu0 %11165
  %11167 = vrot.lane.b32.xlu0 %v10067, 32
  %v11168 = vpop.permute.xlu0 %11167
  %11169 = vrot.lane.b32.xlu0 %v10068, 32
  %v11170 = vpop.permute.xlu0 %11169
  %11171 = vrot.lane.b32.xlu0 %v10069, 32
  %v11172 = vpop.permute.xlu0 %11171
  %11173 = vrot.lane.b32.xlu0 %v10070, 32
  %v11174 = vpop.permute.xlu0 %11173
  %11175 = vrot.lane.b32.xlu0 %v10071, 32
  %v11176 = vpop.permute.xlu0 %11175
  %11177 = vrot.lane.b32.xlu0 %v10072, 32
  %v11178 = vpop.permute.xlu0 %11177
  %11179 = vrot.lane.b32.xlu0 %v10073, 32
  %v11180 = vpop.permute.xlu0 %11179
  %11181 = vrot.lane.b32.xlu0 %v10074, 32
  %v11182 = vpop.permute.xlu0 %11181
  %11183 = vrot.lane.b32.xlu0 %v10075, 32
  %v11184 = vpop.permute.xlu0 %11183
  %11185 = vrot.lane.b32.xlu0 %v10076, 32
  %v11186 = vpop.permute.xlu0 %11185
  %11187 = vrot.lane.b32.xlu0 %v10077, 32
  %v11188 = vpop.permute.xlu0 %11187
  %11189 = vrot.lane.b32.xlu0 %v10078, 32
  %v11190 = vpop.permute.xlu0 %11189
  %11191 = vrot.lane.b32.xlu0 %v10079, 32
  %v11192 = vpop.permute.xlu0 %11191
  %11193 = vrot.lane.b32.xlu0 %v10080, 32
  %v11194 = vpop.permute.xlu0 %11193
  %11195 = vrot.lane.b32.xlu0 %v10081, 32
  %v11196 = vpop.permute.xlu0 %11195
  %11197 = vrot.lane.b32.xlu0 %v10082, 32
  %v11198 = vpop.permute.xlu0 %11197
  %11199 = vrot.lane.b32.xlu0 %v10083, 32
  %v11200 = vpop.permute.xlu0 %11199
  %11201 = vrot.lane.b32.xlu0 %v10084, 32
  %v11202 = vpop.permute.xlu0 %11201
  %11203 = vrot.lane.b32.xlu0 %v10085, 32
  %v11204 = vpop.permute.xlu0 %11203
  %11205 = vrot.lane.b32.xlu0 %v10086, 32
  %v11206 = vpop.permute.xlu0 %11205
  %11207 = vrot.lane.b32.xlu0 %v10087, 32
  %v11208 = vpop.permute.xlu0 %11207
  %11209 = vrot.lane.b32.xlu0 %v10088, 32
  %v11210 = vpop.permute.xlu0 %11209
  %11211 = vrot.lane.b32.xlu0 %v10089, 32
  %v11212 = vpop.permute.xlu0 %11211
  %11213 = vrot.lane.b32.xlu0 %v10090, 32
  %v11214 = vpop.permute.xlu0 %11213
  %11215 = vrot.lane.b32.xlu0 %v10091, 32
  %v11216 = vpop.permute.xlu0 %11215
  %11217 = vrot.lane.b32.xlu0 %v10092, 32
  %v11218 = vpop.permute.xlu0 %11217
  %11219 = vrot.lane.b32.xlu0 %v10093, 32
  %v11220 = vpop.permute.xlu0 %11219
  %11221 = vrot.lane.b32.xlu0 %v10094, 32
  %v11222 = vpop.permute.xlu0 %11221
  %11223 = vrot.lane.b32.xlu0 %v10095, 32
  %v11224 = vpop.permute.xlu0 %11223
  %11225 = vrot.lane.b32.xlu0 %v10096, 32
  %v11226 = vpop.permute.xlu0 %11225
  %11227 = vrot.lane.b32.xlu0 %v10097, 32
  %v11228 = vpop.permute.xlu0 %11227
  %11229 = vrot.lane.b32.xlu0 %v10098, 32
  %v11230 = vpop.permute.xlu0 %11229
  %11231 = vrot.lane.b32.xlu0 %v10099, 32
  %v11232 = vpop.permute.xlu0 %11231
  %11233 = vrot.lane.b32.xlu0 %v10100, 32
  %v11234 = vpop.permute.xlu0 %11233
  %11235 = vrot.lane.b32.xlu0 %v10101, 32
  %v11236 = vpop.permute.xlu0 %11235
  %11237 = vrot.lane.b32.xlu0 %v10102, 32
  %v11238 = vpop.permute.xlu0 %11237
  %11239 = vrot.lane.b32.xlu0 %v10103, 32
  %v11240 = vpop.permute.xlu0 %11239
  %11241 = vrot.lane.b32.xlu0 %v10104, 32
  %v11242 = vpop.permute.xlu0 %11241
  %11243 = vrot.lane.b32.xlu0 %v10105, 32
  %v11244 = vpop.permute.xlu0 %11243
  %11245 = vrot.lane.b32.xlu0 %v10106, 32
  %v11246 = vpop.permute.xlu0 %11245
  %11247 = vrot.lane.b32.xlu0 %v10107, 32
  %v11248 = vpop.permute.xlu0 %11247
  %11249 = vrot.lane.b32.xlu0 %v10108, 32
  %v11250 = vpop.permute.xlu0 %11249
  %11251 = vrot.lane.b32.xlu0 %v10109, 32
  %v11252 = vpop.permute.xlu0 %11251
  %11253 = vrot.lane.b32.xlu0 %v10110, 32
  %v11254 = vpop.permute.xlu0 %11253
  %11255 = vrot.lane.b32.xlu0 %v10111, 32
  %v11256 = vpop.permute.xlu0 %11255
  %11257 = vrot.lane.b32.xlu0 %v10112, 32
  %v11258 = vpop.permute.xlu0 %11257
  %11259 = vrot.lane.b32.xlu0 %v10113, 32
  %v11260 = vpop.permute.xlu0 %11259
  %11261 = vrot.lane.b32.xlu0 %v10114, 32
  %v11262 = vpop.permute.xlu0 %11261
  %11263 = vrot.lane.b32.xlu0 %v10115, 32
  %v11264 = vpop.permute.xlu0 %11263
  %11265 = vrot.lane.b32.xlu0 %v10116, 32
  %v11266 = vpop.permute.xlu0 %11265
  %11267 = vrot.lane.b32.xlu0 %v10117, 32
  %v11268 = vpop.permute.xlu0 %11267
  %11269 = vrot.lane.b32.xlu0 %v10118, 32
  %v11270 = vpop.permute.xlu0 %11269
  %11271 = vrot.lane.b32.xlu0 %v10119, 32
  %v11272 = vpop.permute.xlu0 %11271
  %11401 = vrot.lane.b32.xlu0 %v10121, 64
  %v11402 = vpop.permute.xlu0 %11401
  %11403 = vrot.lane.b32.xlu0 %v10122, 64
  %v11404 = vpop.permute.xlu0 %11403
  %11405 = vrot.lane.b32.xlu0 %v10123, 64
  %v11406 = vpop.permute.xlu0 %11405
  %11407 = vrot.lane.b32.xlu0 %v10124, 64
  %v11408 = vpop.permute.xlu0 %11407
  %11409 = vrot.lane.b32.xlu0 %v10125, 64
  %v11410 = vpop.permute.xlu0 %11409
  %11411 = vrot.lane.b32.xlu0 %v10126, 64
  %v11412 = vpop.permute.xlu0 %11411
  %11413 = vrot.lane.b32.xlu0 %v10127, 64
  %v11414 = vpop.permute.xlu0 %11413
  %11415 = vrot.lane.b32.xlu0 %v10128, 64
  %v11416 = vpop.permute.xlu0 %11415
  %11417 = vrot.lane.b32.xlu0 %v10129, 64
  %v11418 = vpop.permute.xlu0 %11417
  %11419 = vrot.lane.b32.xlu0 %v10130, 64
  %v11420 = vpop.permute.xlu0 %11419
  %11421 = vrot.lane.b32.xlu0 %v10131, 64
  %v11422 = vpop.permute.xlu0 %11421
  %11423 = vrot.lane.b32.xlu0 %v10132, 64
  %v11424 = vpop.permute.xlu0 %11423
  %11425 = vrot.lane.b32.xlu0 %v10133, 64
  %v11426 = vpop.permute.xlu0 %11425
  %11427 = vrot.lane.b32.xlu0 %v10134, 64
  %v11428 = vpop.permute.xlu0 %11427
  %11429 = vrot.lane.b32.xlu0 %v10135, 64
  %v11430 = vpop.permute.xlu0 %11429
  %11431 = vrot.lane.b32.xlu0 %v10136, 64
  %v11432 = vpop.permute.xlu0 %11431
  %11433 = vrot.lane.b32.xlu0 %v10137, 64
  %v11434 = vpop.permute.xlu0 %11433
  %11435 = vrot.lane.b32.xlu0 %v10138, 64
  %v11436 = vpop.permute.xlu0 %11435
  %11437 = vrot.lane.b32.xlu0 %v10139, 64
  %v11438 = vpop.permute.xlu0 %11437
  %11439 = vrot.lane.b32.xlu0 %v10140, 64
  %v11440 = vpop.permute.xlu0 %11439
  %11441 = vrot.lane.b32.xlu0 %v10141, 64
  %v11442 = vpop.permute.xlu0 %11441
  %11443 = vrot.lane.b32.xlu0 %v10142, 64
  %v11444 = vpop.permute.xlu0 %11443
  %11445 = vrot.lane.b32.xlu0 %v10143, 64
  %v11446 = vpop.permute.xlu0 %11445
  %11447 = vrot.lane.b32.xlu0 %v10144, 64
  %v11448 = vpop.permute.xlu0 %11447
  %11449 = vrot.lane.b32.xlu0 %v10145, 64
  %v11450 = vpop.permute.xlu0 %11449
  %11451 = vrot.lane.b32.xlu0 %v10146, 64
  %v11452 = vpop.permute.xlu0 %11451
  %11453 = vrot.lane.b32.xlu0 %v10147, 64
  %v11454 = vpop.permute.xlu0 %11453
  %11455 = vrot.lane.b32.xlu0 %v10148, 64
  %v11456 = vpop.permute.xlu0 %11455
  %11457 = vrot.lane.b32.xlu0 %v10149, 64
  %v11458 = vpop.permute.xlu0 %11457
  %11459 = vrot.lane.b32.xlu0 %v10150, 64
  %v11460 = vpop.permute.xlu0 %11459
  %11461 = vrot.lane.b32.xlu0 %v10151, 64
  %v11462 = vpop.permute.xlu0 %11461
  %11463 = vrot.lane.b32.xlu0 %v10152, 64
  %v11464 = vpop.permute.xlu0 %11463
  %11465 = vrot.lane.b32.xlu0 %v10153, 64
  %v11466 = vpop.permute.xlu0 %11465
  %11467 = vrot.lane.b32.xlu0 %v10154, 64
  %v11468 = vpop.permute.xlu0 %11467
  %11469 = vrot.lane.b32.xlu0 %v10155, 64
  %v11470 = vpop.permute.xlu0 %11469
  %11471 = vrot.lane.b32.xlu0 %v10156, 64
  %v11472 = vpop.permute.xlu0 %11471
  %11473 = vrot.lane.b32.xlu0 %v10157, 64
  %v11474 = vpop.permute.xlu0 %11473
  %11475 = vrot.lane.b32.xlu0 %v10158, 64
  %v11476 = vpop.permute.xlu0 %11475
  %11477 = vrot.lane.b32.xlu0 %v10159, 64
  %v11478 = vpop.permute.xlu0 %11477
  %11479 = vrot.lane.b32.xlu0 %v10160, 64
  %v11480 = vpop.permute.xlu0 %11479
  %11481 = vrot.lane.b32.xlu0 %v10161, 64
  %v11482 = vpop.permute.xlu0 %11481
  %11483 = vrot.lane.b32.xlu0 %v10162, 64
  %v11484 = vpop.permute.xlu0 %11483
  %11485 = vrot.lane.b32.xlu0 %v10163, 64
  %v11486 = vpop.permute.xlu0 %11485
  %11487 = vrot.lane.b32.xlu0 %v10164, 64
  %v11488 = vpop.permute.xlu0 %11487
  %11489 = vrot.lane.b32.xlu0 %v10165, 64
  %v11490 = vpop.permute.xlu0 %11489
  %11491 = vrot.lane.b32.xlu0 %v10166, 64
  %v11492 = vpop.permute.xlu0 %11491
  %11493 = vrot.lane.b32.xlu0 %v10167, 64
  %v11494 = vpop.permute.xlu0 %11493
  %11495 = vrot.lane.b32.xlu0 %v10168, 64
  %v11496 = vpop.permute.xlu0 %11495
  %11497 = vrot.lane.b32.xlu0 %v10169, 64
  %v11498 = vpop.permute.xlu0 %11497
  %11499 = vrot.lane.b32.xlu0 %v10170, 64
  %v11500 = vpop.permute.xlu0 %11499
  %11501 = vrot.lane.b32.xlu0 %v10171, 64
  %v11502 = vpop.permute.xlu0 %11501
  %11503 = vrot.lane.b32.xlu0 %v10172, 64
  %v11504 = vpop.permute.xlu0 %11503
  %11505 = vrot.lane.b32.xlu0 %v10173, 64
  %v11506 = vpop.permute.xlu0 %11505
  %11507 = vrot.lane.b32.xlu0 %v10174, 64
  %v11508 = vpop.permute.xlu0 %11507
  %11509 = vrot.lane.b32.xlu0 %v10175, 64
  %v11510 = vpop.permute.xlu0 %11509
  %11511 = vrot.lane.b32.xlu0 %v10176, 64
  %v11512 = vpop.permute.xlu0 %11511
  %11513 = vrot.lane.b32.xlu0 %v10177, 64
  %v11514 = vpop.permute.xlu0 %11513
  %11515 = vrot.lane.b32.xlu0 %v10178, 64
  %v11516 = vpop.permute.xlu0 %11515
  %11517 = vrot.lane.b32.xlu0 %v10179, 64
  %v11518 = vpop.permute.xlu0 %11517
  %11519 = vrot.lane.b32.xlu0 %v10180, 64
  %v11520 = vpop.permute.xlu0 %11519
  %11521 = vrot.lane.b32.xlu0 %v10181, 64
  %v11522 = vpop.permute.xlu0 %11521
  %11523 = vrot.lane.b32.xlu0 %v10182, 64
  %v11524 = vpop.permute.xlu0 %11523
  %11525 = vrot.lane.b32.xlu0 %v10183, 64
  %v11526 = vpop.permute.xlu0 %11525
  %11527 = vrot.lane.b32.xlu0 %v10184, 64
  %v11528 = vpop.permute.xlu0 %11527
  %11657 = vrot.lane.b32.xlu0 %v10185, 96
  %v11658 = vpop.permute.xlu0 %11657
  %11659 = vrot.lane.b32.xlu0 %v10186, 96
  %v11660 = vpop.permute.xlu0 %11659
  %11661 = vrot.lane.b32.xlu0 %v10187, 96
  %v11662 = vpop.permute.xlu0 %11661
  %11663 = vrot.lane.b32.xlu0 %v10188, 96
  %v11664 = vpop.permute.xlu0 %11663
  %11665 = vrot.lane.b32.xlu0 %v10189, 96
  %v11666 = vpop.permute.xlu0 %11665
  %11667 = vrot.lane.b32.xlu0 %v10190, 96
  %v11668 = vpop.permute.xlu0 %11667
  %11669 = vrot.lane.b32.xlu0 %v10191, 96
  %v11670 = vpop.permute.xlu0 %11669
  %11671 = vrot.lane.b32.xlu0 %v10192, 96
  %v11672 = vpop.permute.xlu0 %11671
  %11673 = vrot.lane.b32.xlu0 %v10193, 96
  %v11674 = vpop.permute.xlu0 %11673
  %11675 = vrot.lane.b32.xlu0 %v10194, 96
  %v11676 = vpop.permute.xlu0 %11675
  %11677 = vrot.lane.b32.xlu0 %v10195, 96
  %v11678 = vpop.permute.xlu0 %11677
  %11679 = vrot.lane.b32.xlu0 %v10196, 96
  %v11680 = vpop.permute.xlu0 %11679
  %11681 = vrot.lane.b32.xlu0 %v10197, 96
  %v11682 = vpop.permute.xlu0 %11681
  %11683 = vrot.lane.b32.xlu0 %v10198, 96
  %v11684 = vpop.permute.xlu0 %11683
  %11685 = vrot.lane.b32.xlu0 %v10199, 96
  %v11686 = vpop.permute.xlu0 %11685
  %11687 = vrot.lane.b32.xlu0 %v10200, 96
  %v11688 = vpop.permute.xlu0 %11687
  %11689 = vrot.lane.b32.xlu0 %v10201, 96
  %v11690 = vpop.permute.xlu0 %11689
  %11691 = vrot.lane.b32.xlu0 %v10202, 96
  %v11692 = vpop.permute.xlu0 %11691
  %11693 = vrot.lane.b32.xlu0 %v10203, 96
  %v11694 = vpop.permute.xlu0 %11693
  %11695 = vrot.lane.b32.xlu0 %v10204, 96
  %v11696 = vpop.permute.xlu0 %11695
  %11697 = vrot.lane.b32.xlu0 %v10205, 96
  %v11698 = vpop.permute.xlu0 %11697
  %11699 = vrot.lane.b32.xlu0 %v10206, 96
  %v11700 = vpop.permute.xlu0 %11699
  %11701 = vrot.lane.b32.xlu0 %v10207, 96
  %v11702 = vpop.permute.xlu0 %11701
  %11703 = vrot.lane.b32.xlu0 %v10208, 96
  %v11704 = vpop.permute.xlu0 %11703
  %11705 = vrot.lane.b32.xlu0 %v10209, 96
  %v11706 = vpop.permute.xlu0 %11705
  %11707 = vrot.lane.b32.xlu0 %v10210, 96
  %v11708 = vpop.permute.xlu0 %11707
  %11709 = vrot.lane.b32.xlu0 %v10211, 96
  %v11710 = vpop.permute.xlu0 %11709
  %11711 = vrot.lane.b32.xlu0 %v10212, 96
  %v11712 = vpop.permute.xlu0 %11711
  %11713 = vrot.lane.b32.xlu0 %v10213, 96
  %v11714 = vpop.permute.xlu0 %11713
  %11715 = vrot.lane.b32.xlu0 %v10214, 96
  %v11716 = vpop.permute.xlu0 %11715
  %11717 = vrot.lane.b32.xlu0 %v10215, 96
  %v11718 = vpop.permute.xlu0 %11717
  %11719 = vrot.lane.b32.xlu0 %v10216, 96
  %v11720 = vpop.permute.xlu0 %11719
  %11721 = vrot.lane.b32.xlu0 %v10217, 96
  %v11722 = vpop.permute.xlu0 %11721
  %11723 = vrot.lane.b32.xlu0 %v10218, 96
  %v11724 = vpop.permute.xlu0 %11723
  %11725 = vrot.lane.b32.xlu0 %v10219, 96
  %v11726 = vpop.permute.xlu0 %11725
  %11727 = vrot.lane.b32.xlu0 %v10220, 96
  %v11728 = vpop.permute.xlu0 %11727
  %11729 = vrot.lane.b32.xlu0 %v10221, 96
  %v11730 = vpop.permute.xlu0 %11729
  %11731 = vrot.lane.b32.xlu0 %v10222, 96
  %v11732 = vpop.permute.xlu0 %11731
  %11733 = vrot.lane.b32.xlu0 %v10223, 96
  %v11734 = vpop.permute.xlu0 %11733
  %11735 = vrot.lane.b32.xlu0 %v10224, 96
  %v11736 = vpop.permute.xlu0 %11735
  %11737 = vrot.lane.b32.xlu0 %v10225, 96
  %v11738 = vpop.permute.xlu0 %11737
  %11739 = vrot.lane.b32.xlu0 %v10226, 96
  %v11740 = vpop.permute.xlu0 %11739
  %11741 = vrot.lane.b32.xlu0 %v10227, 96
  %v11742 = vpop.permute.xlu0 %11741
  %11743 = vrot.lane.b32.xlu0 %v10228, 96
  %v11744 = vpop.permute.xlu0 %11743
  %11745 = vrot.lane.b32.xlu0 %v10229, 96
  %v11746 = vpop.permute.xlu0 %11745
  %11747 = vrot.lane.b32.xlu0 %v10230, 96
  %v11748 = vpop.permute.xlu0 %11747
  %11749 = vrot.lane.b32.xlu0 %v10231, 96
  %v11750 = vpop.permute.xlu0 %11749
  %11751 = vrot.lane.b32.xlu0 %v10232, 96
  %v11752 = vpop.permute.xlu0 %11751
  %11753 = vrot.lane.b32.xlu0 %v10233, 96
  %v11754 = vpop.permute.xlu0 %11753
  %11755 = vrot.lane.b32.xlu0 %v10234, 96
  %v11756 = vpop.permute.xlu0 %11755
  %11757 = vrot.lane.b32.xlu0 %v10235, 96
  %v11758 = vpop.permute.xlu0 %11757
  %11759 = vrot.lane.b32.xlu0 %v10236, 96
  %v11760 = vpop.permute.xlu0 %11759
  %11761 = vrot.lane.b32.xlu0 %v10237, 96
  %v11762 = vpop.permute.xlu0 %11761
  %11763 = vrot.lane.b32.xlu0 %v10238, 96
  %v11764 = vpop.permute.xlu0 %11763
  %11765 = vrot.lane.b32.xlu0 %v10239, 96
  %v11766 = vpop.permute.xlu0 %11765
  %11767 = vrot.lane.b32.xlu0 %v10240, 96
  %v11768 = vpop.permute.xlu0 %11767
  %11769 = vrot.lane.b32.xlu0 %v10241, 96
  %v11770 = vpop.permute.xlu0 %11769
  %11771 = vrot.lane.b32.xlu0 %v10242, 96
  %v11772 = vpop.permute.xlu0 %11771
  %11773 = vrot.lane.b32.xlu0 %v10243, 96
  %v11774 = vpop.permute.xlu0 %11773
  %11775 = vrot.lane.b32.xlu0 %v10244, 96
  %v11776 = vpop.permute.xlu0 %11775
  %11777 = vrot.lane.b32.xlu0 %v10245, 96
  %v11778 = vpop.permute.xlu0 %11777
  %11779 = vrot.lane.b32.xlu0 %v10246, 96
  %v11780 = vpop.permute.xlu0 %11779
  %11781 = vrot.lane.b32.xlu0 %v10247, 96
  %v11782 = vpop.permute.xlu0 %11781
  %11783 = vrot.lane.b32.xlu0 %v10248, 96
  %v11784 = vpop.permute.xlu0 %11783
  %v11849 = vsel %vm20, %v9736, %v10378
  %v11850 = vsel %vm20, %v9737, %v10380
  %v11851 = vsel %vm20, %v9738, %v10382
  %v11852 = vsel %vm20, %v9739, %v10384
  %v11853 = vsel %vm20, %v9740, %v10386
  %v11854 = vsel %vm20, %v9741, %v10388
  %v11855 = vsel %vm20, %v9742, %v10390
  %v11856 = vsel %vm20, %v9743, %v10392
  %v11857 = vsel %vm20, %v9744, %v10394
  %v11858 = vsel %vm20, %v9745, %v10396
  %v11859 = vsel %vm20, %v9746, %v10398
  %v11860 = vsel %vm20, %v9747, %v10400
  %v11861 = vsel %vm20, %v9748, %v10402
  %v11862 = vsel %vm20, %v9749, %v10404
  %v11863 = vsel %vm20, %v9750, %v10406
  %v11864 = vsel %vm20, %v9751, %v10408
  %v11865 = vsel %vm20, %v9752, %v10410
  %v11866 = vsel %vm20, %v9753, %v10412
  %v11867 = vsel %vm20, %v9754, %v10414
  %v11868 = vsel %vm20, %v9755, %v10416
  %v11869 = vsel %vm20, %v9756, %v10418
  %v11870 = vsel %vm20, %v9757, %v10420
  %v11871 = vsel %vm20, %v9758, %v10422
  %v11872 = vsel %vm20, %v9759, %v10424
  %v11873 = vsel %vm20, %v9760, %v10426
  %v11874 = vsel %vm20, %v9761, %v10428
  %v11875 = vsel %vm20, %v9762, %v10430
  %v11876 = vsel %vm20, %v9763, %v10432
  %v11877 = vsel %vm20, %v9764, %v10434
  %v11878 = vsel %vm20, %v9765, %v10436
  %v11879 = vsel %vm20, %v9766, %v10438
  %v11880 = vsel %vm20, %v9767, %v10440
  %v11881 = vsel %vm20, %v9768, %v10442
  %v11882 = vsel %vm20, %v9769, %v10444
  %v11883 = vsel %vm20, %v9770, %v10446
  %v11884 = vsel %vm20, %v9771, %v10448
  %v11885 = vsel %vm20, %v9772, %v10450
  %v11886 = vsel %vm20, %v9773, %v10452
  %v11887 = vsel %vm20, %v9774, %v10454
  %v11888 = vsel %vm20, %v9775, %v10456
  %v11889 = vsel %vm20, %v9776, %v10458
  %v11890 = vsel %vm20, %v9777, %v10460
  %v11891 = vsel %vm20, %v9778, %v10462
  %v11892 = vsel %vm20, %v9779, %v10464
  %v11893 = vsel %vm20, %v9780, %v10466
  %v11894 = vsel %vm20, %v9781, %v10468
  %v11895 = vsel %vm20, %v9782, %v10470
  %v11896 = vsel %vm20, %v9783, %v10472
  %v11897 = vsel %vm20, %v9784, %v10474
  %v11898 = vsel %vm20, %v9785, %v10476
  %v11899 = vsel %vm20, %v9786, %v10478
  %v11900 = vsel %vm20, %v9787, %v10480
  %v11901 = vsel %vm20, %v9788, %v10482
  %v11902 = vsel %vm20, %v9789, %v10484
  %v11903 = vsel %vm20, %v9790, %v10486
  %v11904 = vsel %vm20, %v9791, %v10488
  %v11905 = vsel %vm20, %v9792, %v10490
  %v11906 = vsel %vm20, %v9793, %v10492
  %v11907 = vsel %vm20, %v9794, %v10494
  %v11908 = vsel %vm20, %v9795, %v10496
  %v11909 = vsel %vm20, %v9796, %v10498
  %v11910 = vsel %vm20, %v9797, %v10500
  %v11911 = vsel %vm20, %v9798, %v10502
  %v11912 = vsel %vm20, %v9799, %v10504
  %v11913 = vsel %vm5068, %v11849, %v10634
  %v11914 = vsel %vm5068, %v11850, %v10636
  %v11915 = vsel %vm5068, %v11851, %v10638
  %v11916 = vsel %vm5068, %v11852, %v10640
  %v11917 = vsel %vm5068, %v11853, %v10642
  %v11918 = vsel %vm5068, %v11854, %v10644
  %v11919 = vsel %vm5068, %v11855, %v10646
  %v11920 = vsel %vm5068, %v11856, %v10648
  %v11921 = vsel %vm5068, %v11857, %v10650
  %v11922 = vsel %vm5068, %v11858, %v10652
  %v11923 = vsel %vm5068, %v11859, %v10654
  %v11924 = vsel %vm5068, %v11860, %v10656
  %v11925 = vsel %vm5068, %v11861, %v10658
  %v11926 = vsel %vm5068, %v11862, %v10660
  %v11927 = vsel %vm5068, %v11863, %v10662
  %v11928 = vsel %vm5068, %v11864, %v10664
  %v11929 = vsel %vm5068, %v11865, %v10666
  %v11930 = vsel %vm5068, %v11866, %v10668
  %v11931 = vsel %vm5068, %v11867, %v10670
  %v11932 = vsel %vm5068, %v11868, %v10672
  %v11933 = vsel %vm5068, %v11869, %v10674
  %v11934 = vsel %vm5068, %v11870, %v10676
  %v11935 = vsel %vm5068, %v11871, %v10678
  %v11936 = vsel %vm5068, %v11872, %v10680
  %v11937 = vsel %vm5068, %v11873, %v10682
  %v11938 = vsel %vm5068, %v11874, %v10684
  %v11939 = vsel %vm5068, %v11875, %v10686
  %v11940 = vsel %vm5068, %v11876, %v10688
  %v11941 = vsel %vm5068, %v11877, %v10690
  %v11942 = vsel %vm5068, %v11878, %v10692
  %v11943 = vsel %vm5068, %v11879, %v10694
  %v11944 = vsel %vm5068, %v11880, %v10696
  %v11945 = vsel %vm5068, %v11881, %v10698
  %v11946 = vsel %vm5068, %v11882, %v10700
  %v11947 = vsel %vm5068, %v11883, %v10702
  %v11948 = vsel %vm5068, %v11884, %v10704
  %v11949 = vsel %vm5068, %v11885, %v10706
  %v11950 = vsel %vm5068, %v11886, %v10708
  %v11951 = vsel %vm5068, %v11887, %v10710
  %v11952 = vsel %vm5068, %v11888, %v10712
  %v11953 = vsel %vm5068, %v11889, %v10714
  %v11954 = vsel %vm5068, %v11890, %v10716
  %v11955 = vsel %vm5068, %v11891, %v10718
  %v11956 = vsel %vm5068, %v11892, %v10720
  %v11957 = vsel %vm5068, %v11893, %v10722
  %v11958 = vsel %vm5068, %v11894, %v10724
  %v11959 = vsel %vm5068, %v11895, %v10726
  %v11960 = vsel %vm5068, %v11896, %v10728
  %v11961 = vsel %vm5068, %v11897, %v10730
  %v11962 = vsel %vm5068, %v11898, %v10732
  %v11963 = vsel %vm5068, %v11899, %v10734
  %v11964 = vsel %vm5068, %v11900, %v10736
  %v11965 = vsel %vm5068, %v11901, %v10738
  %v11966 = vsel %vm5068, %v11902, %v10740
  %v11967 = vsel %vm5068, %v11903, %v10742
  %v11968 = vsel %vm5068, %v11904, %v10744
  %v11969 = vsel %vm5068, %v11905, %v10746
  %v11970 = vsel %vm5068, %v11906, %v10748
  %v11971 = vsel %vm5068, %v11907, %v10750
  %v11972 = vsel %vm5068, %v11908, %v10752
  %v11973 = vsel %vm5068, %v11909, %v10754
  %v11974 = vsel %vm5068, %v11910, %v10756
  %v11975 = vsel %vm5068, %v11911, %v10758
  %v11976 = vsel %vm5068, %v11912, %v10760
  %v11977 = vsel %vm5133, %v11913, %v10890
  %v11978 = vsel %vm5133, %v11914, %v10892
  %v11979 = vsel %vm5133, %v11915, %v10894
  %v11980 = vsel %vm5133, %v11916, %v10896
  %v11981 = vsel %vm5133, %v11917, %v10898
  %v11982 = vsel %vm5133, %v11918, %v10900
  %v11983 = vsel %vm5133, %v11919, %v10902
  %v11984 = vsel %vm5133, %v11920, %v10904
  %v11985 = vsel %vm5133, %v11921, %v10906
  %v11986 = vsel %vm5133, %v11922, %v10908
  %v11987 = vsel %vm5133, %v11923, %v10910
  %v11988 = vsel %vm5133, %v11924, %v10912
  %v11989 = vsel %vm5133, %v11925, %v10914
  %v11990 = vsel %vm5133, %v11926, %v10916
  %v11991 = vsel %vm5133, %v11927, %v10918
  %v11992 = vsel %vm5133, %v11928, %v10920
  %v11993 = vsel %vm5133, %v11929, %v10922
  %v11994 = vsel %vm5133, %v11930, %v10924
  %v11995 = vsel %vm5133, %v11931, %v10926
  %v11996 = vsel %vm5133, %v11932, %v10928
  %v11997 = vsel %vm5133, %v11933, %v10930
  %v11998 = vsel %vm5133, %v11934, %v10932
  %v11999 = vsel %vm5133, %v11935, %v10934
  %v12000 = vsel %vm5133, %v11936, %v10936
  %v12001 = vsel %vm5133, %v11937, %v10938
  %v12002 = vsel %vm5133, %v11938, %v10940
  %v12003 = vsel %vm5133, %v11939, %v10942
  %v12004 = vsel %vm5133, %v11940, %v10944
  %v12005 = vsel %vm5133, %v11941, %v10946
  %v12006 = vsel %vm5133, %v11942, %v10948
  %v12007 = vsel %vm5133, %v11943, %v10950
  %v12008 = vsel %vm5133, %v11944, %v10952
  %v12009 = vsel %vm5133, %v11945, %v10954
  %v12010 = vsel %vm5133, %v11946, %v10956
  %v12011 = vsel %vm5133, %v11947, %v10958
  %v12012 = vsel %vm5133, %v11948, %v10960
  %v12013 = vsel %vm5133, %v11949, %v10962
  %v12014 = vsel %vm5133, %v11950, %v10964
  %v12015 = vsel %vm5133, %v11951, %v10966
  %v12016 = vsel %vm5133, %v11952, %v10968
  %v12017 = vsel %vm5133, %v11953, %v10970
  %v12018 = vsel %vm5133, %v11954, %v10972
  %v12019 = vsel %vm5133, %v11955, %v10974
  %v12020 = vsel %vm5133, %v11956, %v10976
  %v12021 = vsel %vm5133, %v11957, %v10978
  %v12022 = vsel %vm5133, %v11958, %v10980
  %v12023 = vsel %vm5133, %v11959, %v10982
  %v12024 = vsel %vm5133, %v11960, %v10984
  %v12025 = vsel %vm5133, %v11961, %v10986
  %v12026 = vsel %vm5133, %v11962, %v10988
  %v12027 = vsel %vm5133, %v11963, %v10990
  %v12028 = vsel %vm5133, %v11964, %v10992
  %v12029 = vsel %vm5133, %v11965, %v10994
  %v12030 = vsel %vm5133, %v11966, %v10996
  %v12031 = vsel %vm5133, %v11967, %v10998
  %v12032 = vsel %vm5133, %v11968, %v11000
  %v12033 = vsel %vm5133, %v11969, %v11002
  %v12034 = vsel %vm5133, %v11970, %v11004
  %v12035 = vsel %vm5133, %v11971, %v11006
  %v12036 = vsel %vm5133, %v11972, %v11008
  %v12037 = vsel %vm5133, %v11973, %v11010
  %v12038 = vsel %vm5133, %v11974, %v11012
  %v12039 = vsel %vm5133, %v11975, %v11014
  %v12040 = vsel %vm5133, %v11976, %v11016
  %v12041 = vsel %vm20, %v9992, %v11146
  %v12042 = vsel %vm20, %v9993, %v11148
  %v12043 = vsel %vm20, %v9994, %v11150
  %v12044 = vsel %vm20, %v9995, %v11152
  %v12045 = vsel %vm20, %v9996, %v11154
  %v12046 = vsel %vm20, %v9997, %v11156
  %v12047 = vsel %vm20, %v9998, %v11158
  %v12048 = vsel %vm20, %v9999, %v11160
  %v12049 = vsel %vm20, %v10000, %v11162
  %v12050 = vsel %vm20, %v10001, %v11164
  %v12051 = vsel %vm20, %v10002, %v11166
  %v12052 = vsel %vm20, %v10003, %v11168
  %v12053 = vsel %vm20, %v10004, %v11170
  %v12054 = vsel %vm20, %v10005, %v11172
  %v12055 = vsel %vm20, %v10006, %v11174
  %v12056 = vsel %vm20, %v10007, %v11176
  %v12057 = vsel %vm20, %v10008, %v11178
  %v12058 = vsel %vm20, %v10009, %v11180
  %v12059 = vsel %vm20, %v10010, %v11182
  %v12060 = vsel %vm20, %v10011, %v11184
  %v12061 = vsel %vm20, %v10012, %v11186
  %v12062 = vsel %vm20, %v10013, %v11188
  %v12063 = vsel %vm20, %v10014, %v11190
  %v12064 = vsel %vm20, %v10015, %v11192
  %v12065 = vsel %vm20, %v10016, %v11194
  %v12066 = vsel %vm20, %v10017, %v11196
  %v12067 = vsel %vm20, %v10018, %v11198
  %v12068 = vsel %vm20, %v10019, %v11200
  %v12069 = vsel %vm20, %v10020, %v11202
  %v12070 = vsel %vm20, %v10021, %v11204
  %v12071 = vsel %vm20, %v10022, %v11206
  %v12072 = vsel %vm20, %v10023, %v11208
  %v12073 = vsel %vm20, %v10024, %v11210
  %v12074 = vsel %vm20, %v10025, %v11212
  %v12075 = vsel %vm20, %v10026, %v11214
  %v12076 = vsel %vm20, %v10027, %v11216
  %v12077 = vsel %vm20, %v10028, %v11218
  %v12078 = vsel %vm20, %v10029, %v11220
  %v12079 = vsel %vm20, %v10030, %v11222
  %v12080 = vsel %vm20, %v10031, %v11224
  %v12081 = vsel %vm20, %v10032, %v11226
  %v12082 = vsel %vm20, %v10033, %v11228
  %v12083 = vsel %vm20, %v10034, %v11230
  %v12084 = vsel %vm20, %v10035, %v11232
  %v12085 = vsel %vm20, %v10036, %v11234
  %v12086 = vsel %vm20, %v10037, %v11236
  %v12087 = vsel %vm20, %v10038, %v11238
  %v12088 = vsel %vm20, %v10039, %v11240
  %v12089 = vsel %vm20, %v10040, %v11242
  %v12090 = vsel %vm20, %v10041, %v11244
  %v12091 = vsel %vm20, %v10042, %v11246
  %v12092 = vsel %vm20, %v10043, %v11248
  %v12093 = vsel %vm20, %v10044, %v11250
  %v12094 = vsel %vm20, %v10045, %v11252
  %v12095 = vsel %vm20, %v10046, %v11254
  %v12096 = vsel %vm20, %v10047, %v11256
  %v12097 = vsel %vm20, %v10048, %v11258
  %v12098 = vsel %vm20, %v10049, %v11260
  %v12099 = vsel %vm20, %v10050, %v11262
  %v12100 = vsel %vm20, %v10051, %v11264
  %v12101 = vsel %vm20, %v10052, %v11266
  %v12102 = vsel %vm20, %v10053, %v11268
  %v12103 = vsel %vm20, %v10054, %v11270
  %v12104 = vsel %vm20, %v10055, %v11272
  %v12105 = vsel %vm5068, %v12041, %v11402
  %v12106 = vsel %vm5068, %v12042, %v11404
  %v12107 = vsel %vm5068, %v12043, %v11406
  %v12108 = vsel %vm5068, %v12044, %v11408
  %v12109 = vsel %vm5068, %v12045, %v11410
  %v12110 = vsel %vm5068, %v12046, %v11412
  %v12111 = vsel %vm5068, %v12047, %v11414
  %v12112 = vsel %vm5068, %v12048, %v11416
  %v12113 = vsel %vm5068, %v12049, %v11418
  %v12114 = vsel %vm5068, %v12050, %v11420
  %v12115 = vsel %vm5068, %v12051, %v11422
  %v12116 = vsel %vm5068, %v12052, %v11424
  %v12117 = vsel %vm5068, %v12053, %v11426
  %v12118 = vsel %vm5068, %v12054, %v11428
  %v12119 = vsel %vm5068, %v12055, %v11430
  %v12120 = vsel %vm5068, %v12056, %v11432
  %v12121 = vsel %vm5068, %v12057, %v11434
  %v12122 = vsel %vm5068, %v12058, %v11436
  %v12123 = vsel %vm5068, %v12059, %v11438
  %v12124 = vsel %vm5068, %v12060, %v11440
  %v12125 = vsel %vm5068, %v12061, %v11442
  %v12126 = vsel %vm5068, %v12062, %v11444
  %v12127 = vsel %vm5068, %v12063, %v11446
  %v12128 = vsel %vm5068, %v12064, %v11448
  %v12129 = vsel %vm5068, %v12065, %v11450
  %v12130 = vsel %vm5068, %v12066, %v11452
  %v12131 = vsel %vm5068, %v12067, %v11454
  %v12132 = vsel %vm5068, %v12068, %v11456
  %v12133 = vsel %vm5068, %v12069, %v11458
  %v12134 = vsel %vm5068, %v12070, %v11460
  %v12135 = vsel %vm5068, %v12071, %v11462
  %v12136 = vsel %vm5068, %v12072, %v11464
  %v12137 = vsel %vm5068, %v12073, %v11466
  %v12138 = vsel %vm5068, %v12074, %v11468
  %v12139 = vsel %vm5068, %v12075, %v11470
  %v12140 = vsel %vm5068, %v12076, %v11472
  %v12141 = vsel %vm5068, %v12077, %v11474
  %v12142 = vsel %vm5068, %v12078, %v11476
  %v12143 = vsel %vm5068, %v12079, %v11478
  %v12144 = vsel %vm5068, %v12080, %v11480
  %v12145 = vsel %vm5068, %v12081, %v11482
  %v12146 = vsel %vm5068, %v12082, %v11484
  %v12147 = vsel %vm5068, %v12083, %v11486
  %v12148 = vsel %vm5068, %v12084, %v11488
  %v12149 = vsel %vm5068, %v12085, %v11490
  %v12150 = vsel %vm5068, %v12086, %v11492
  %v12151 = vsel %vm5068, %v12087, %v11494
  %v12152 = vsel %vm5068, %v12088, %v11496
  %v12153 = vsel %vm5068, %v12089, %v11498
  %v12154 = vsel %vm5068, %v12090, %v11500
  %v12155 = vsel %vm5068, %v12091, %v11502
  %v12156 = vsel %vm5068, %v12092, %v11504
  %v12157 = vsel %vm5068, %v12093, %v11506
  %v12158 = vsel %vm5068, %v12094, %v11508
  %v12159 = vsel %vm5068, %v12095, %v11510
  %v12160 = vsel %vm5068, %v12096, %v11512
  %v12161 = vsel %vm5068, %v12097, %v11514
  %v12162 = vsel %vm5068, %v12098, %v11516
  %v12163 = vsel %vm5068, %v12099, %v11518
  %v12164 = vsel %vm5068, %v12100, %v11520
  %v12165 = vsel %vm5068, %v12101, %v11522
  %v12166 = vsel %vm5068, %v12102, %v11524
  %v12167 = vsel %vm5068, %v12103, %v11526
  %v12168 = vsel %vm5068, %v12104, %v11528
  %v12169 = vsel %vm5133, %v12105, %v11658
  %v12170 = vsel %vm5133, %v12106, %v11660
  %v12171 = vsel %vm5133, %v12107, %v11662
  %v12172 = vsel %vm5133, %v12108, %v11664
  %v12173 = vsel %vm5133, %v12109, %v11666
  %v12174 = vsel %vm5133, %v12110, %v11668
  %v12175 = vsel %vm5133, %v12111, %v11670
  %v12176 = vsel %vm5133, %v12112, %v11672
  %v12177 = vsel %vm5133, %v12113, %v11674
  %v12178 = vsel %vm5133, %v12114, %v11676
  %v12179 = vsel %vm5133, %v12115, %v11678
  %v12180 = vsel %vm5133, %v12116, %v11680
  %v12181 = vsel %vm5133, %v12117, %v11682
  %v12182 = vsel %vm5133, %v12118, %v11684
  %v12183 = vsel %vm5133, %v12119, %v11686
  %v12184 = vsel %vm5133, %v12120, %v11688
  %v12185 = vsel %vm5133, %v12121, %v11690
  %v12186 = vsel %vm5133, %v12122, %v11692
  %v12187 = vsel %vm5133, %v12123, %v11694
  %v12188 = vsel %vm5133, %v12124, %v11696
  %v12189 = vsel %vm5133, %v12125, %v11698
  %v12190 = vsel %vm5133, %v12126, %v11700
  %v12191 = vsel %vm5133, %v12127, %v11702
  %v12192 = vsel %vm5133, %v12128, %v11704
  %v12193 = vsel %vm5133, %v12129, %v11706
  %v12194 = vsel %vm5133, %v12130, %v11708
  %v12195 = vsel %vm5133, %v12131, %v11710
  %v12196 = vsel %vm5133, %v12132, %v11712
  %v12197 = vsel %vm5133, %v12133, %v11714
  %v12198 = vsel %vm5133, %v12134, %v11716
  %v12199 = vsel %vm5133, %v12135, %v11718
  %v12200 = vsel %vm5133, %v12136, %v11720
  %v12201 = vsel %vm5133, %v12137, %v11722
  %v12202 = vsel %vm5133, %v12138, %v11724
  %v12203 = vsel %vm5133, %v12139, %v11726
  %v12204 = vsel %vm5133, %v12140, %v11728
  %v12205 = vsel %vm5133, %v12141, %v11730
  %v12206 = vsel %vm5133, %v12142, %v11732
  %v12207 = vsel %vm5133, %v12143, %v11734
  %v12208 = vsel %vm5133, %v12144, %v11736
  %v12209 = vsel %vm5133, %v12145, %v11738
  %v12210 = vsel %vm5133, %v12146, %v11740
  %v12211 = vsel %vm5133, %v12147, %v11742
  %v12212 = vsel %vm5133, %v12148, %v11744
  %v12213 = vsel %vm5133, %v12149, %v11746
  %v12214 = vsel %vm5133, %v12150, %v11748
  %v12215 = vsel %vm5133, %v12151, %v11750
  %v12216 = vsel %vm5133, %v12152, %v11752
  %v12217 = vsel %vm5133, %v12153, %v11754
  %v12218 = vsel %vm5133, %v12154, %v11756
  %v12219 = vsel %vm5133, %v12155, %v11758
  %v12220 = vsel %vm5133, %v12156, %v11760
  %v12221 = vsel %vm5133, %v12157, %v11762
  %v12222 = vsel %vm5133, %v12158, %v11764
  %v12223 = vsel %vm5133, %v12159, %v11766
  %v12224 = vsel %vm5133, %v12160, %v11768
  %v12225 = vsel %vm5133, %v12161, %v11770
  %v12226 = vsel %vm5133, %v12162, %v11772
  %v12227 = vsel %vm5133, %v12163, %v11774
  %v12228 = vsel %vm5133, %v12164, %v11776
  %v12229 = vsel %vm5133, %v12165, %v11778
  %v12230 = vsel %vm5133, %v12166, %v11780
  %v12231 = vsel %vm5133, %v12167, %v11782
  %v12232 = vsel %vm5133, %v12168, %v11784
  %v12233 = vld [vmem:[%s2] sm:$0xff]
  %v12234 = vld [vmem:[%s2 + $0x8] sm:$0xff]
  %v12235 = vld [vmem:[%s2 + $0x10] sm:$0xff]
  %v12237 = vsel %vm20, %v12235, 0
  %v12240 = vsel %vm20, %v10249, 0
  %v12243 = vsel %vm20, %v10250, 0
  %v12246 = vsel %vm20, %v10251, 0
  %v12249 = vsel %vm20, %v10252, 0
  %v12252 = vsel %vm20, %v10253, 0
  %v12255 = vsel %vm20, %v10254, 0
  %v12258 = vsel %vm20, %v10255, 0
  %v12261 = vsel %vm20, %v10256, 0
  %v12264 = vsel %vm20, %v10257, 0
  %v12267 = vsel %vm20, %v10258, 0
  %v12270 = vsel %vm20, %v10259, 0
  %v12273 = vsel %vm20, %v10260, 0
  %v12276 = vsel %vm20, %v10261, 0
  %v12279 = vsel %vm20, %v10262, 0
  %v12282 = vsel %vm20, %v10263, 0
  %v12285 = vsel %vm20, %v10264, 0
  %v12288 = vsel %vm20, %v10265, 0
  %v12291 = vsel %vm20, %v10266, 0
  %v12294 = vsel %vm20, %v10267, 0
  %v12297 = vsel %vm20, %v10268, 0
  %v12300 = vsel %vm20, %v10269, 0
  %v12303 = vsel %vm20, %v10270, 0
  %v12306 = vsel %vm20, %v10271, 0
  %v12309 = vsel %vm20, %v10272, 0
  %v12312 = vsel %vm20, %v10273, 0
  %v12315 = vsel %vm20, %v10274, 0
  %v12318 = vsel %vm20, %v10275, 0
  %v12321 = vsel %vm20, %v10276, 0
  %v12324 = vsel %vm20, %v10277, 0
  %v12327 = vsel %vm20, %v10278, 0
  %v12330 = vsel %vm20, %v10279, 0
  %v12333 = vsel %vm20, %v10280, 0
  %v12336 = vsel %vm20, %v10281, 0
  %v12339 = vsel %vm20, %v10282, 0
  %v12342 = vsel %vm20, %v10283, 0
  %v12345 = vsel %vm20, %v10284, 0
  %v12348 = vsel %vm20, %v10285, 0
  %v12351 = vsel %vm20, %v10286, 0
  %v12354 = vsel %vm20, %v10287, 0
  %v12357 = vsel %vm20, %v10288, 0
  %v12360 = vsel %vm20, %v10289, 0
  %v12363 = vsel %vm20, %v10290, 0
  %v12366 = vsel %vm20, %v10291, 0
  %v12369 = vsel %vm20, %v10292, 0
  %v12372 = vsel %vm20, %v10293, 0
  %v12375 = vsel %vm20, %v10294, 0
  %v12378 = vsel %vm20, %v10295, 0
  %v12381 = vsel %vm20, %v10296, 0
  %v12384 = vsel %vm20, %v10297, 0
  %v12387 = vsel %vm20, %v10298, 0
  %v12390 = vsel %vm20, %v10299, 0
  %v12393 = vsel %vm20, %v10300, 0
  %v12396 = vsel %vm20, %v10301, 0
  %v12399 = vsel %vm20, %v10302, 0
  %v12402 = vsel %vm20, %v10303, 0
  %v12405 = vsel %vm20, %v10304, 0
  %v12408 = vsel %vm20, %v10305, 0
  %v12411 = vsel %vm20, %v10306, 0
  %v12414 = vsel %vm20, %v10307, 0
  %v12417 = vsel %vm20, %v10308, 0
  %v12420 = vsel %vm20, %v10309, 0
  %v12423 = vsel %vm20, %v10310, 0
  %v12426 = vsel %vm20, %v10311, 0
  %v12429 = vsel %vm20, %v10312, 0
  %12431 = vmatprep.subr.mxu0 %v12169
  %12432 = vmatpush1.xpose.msra.mxu0 %v11977
  %12433 = vmatprep.subr.mxu0 %v12170
  %12434 = vmatpush1.xpose.msra.mxu0 %v11978
  %12435 = vmatprep.subr.mxu0 %v12171
  %12436 = vmatpush1.xpose.msra.mxu0 %v11979
  %12437 = vmatprep.subr.mxu0 %v12172
  %12438 = vmatpush1.xpose.msra.mxu0 %v11980
  %12439 = vmatprep.subr.mxu0 %v12173
  %12440 = vmatpush1.xpose.msra.mxu0 %v11981
  %12441 = vmatprep.subr.mxu0 %v12174
  %12442 = vmatpush1.xpose.msra.mxu0 %v11982
  %12443 = vmatprep.subr.mxu0 %v12175
  %12444 = vmatpush1.xpose.msra.mxu0 %v11983
  %12445 = vmatprep.subr.mxu0 %v12176
  %12446 = vmatpush1.xpose.msra.mxu0 %v11984
  %12447 = vmatprep.subr.mxu0 %v12177
  %12448 = vmatpush1.xpose.msra.mxu0 %v11985
  %12449 = vmatprep.subr.mxu0 %v12178
  %12450 = vmatpush1.xpose.msra.mxu0 %v11986
  %12451 = vmatprep.subr.mxu0 %v12179
  %12452 = vmatpush1.xpose.msra.mxu0 %v11987
  %12453 = vmatprep.subr.mxu0 %v12180
  %12454 = vmatpush1.xpose.msra.mxu0 %v11988
  %12455 = vmatprep.subr.mxu0 %v12181
  %12456 = vmatpush1.xpose.msra.mxu0 %v11989
  %12457 = vmatprep.subr.mxu0 %v12182
  %12458 = vmatpush1.xpose.msra.mxu0 %v11990
  %12459 = vmatprep.subr.mxu0 %v12183
  %12460 = vmatpush1.xpose.msra.mxu0 %v11991
  %12461 = vmatprep.subr.mxu0 %v12184
  %12462 = vmatpush1.xpose.msra.mxu0 %v11992
  %12463 = vmatprep.subr.mxu0 %v12185
  %12464 = vmatpush1.xpose.msra.mxu0 %v11993
  %12465 = vmatprep.subr.mxu0 %v12186
  %12466 = vmatpush1.xpose.msra.mxu0 %v11994
  %12467 = vmatprep.subr.mxu0 %v12187
  %12468 = vmatpush1.xpose.msra.mxu0 %v11995
  %12469 = vmatprep.subr.mxu0 %v12188
  %12470 = vmatpush1.xpose.msra.mxu0 %v11996
  %12471 = vmatprep.subr.mxu0 %v12189
  %12472 = vmatpush1.xpose.msra.mxu0 %v11997
  %12473 = vmatprep.subr.mxu0 %v12190
  %12474 = vmatpush1.xpose.msra.mxu0 %v11998
  %12475 = vmatprep.subr.mxu0 %v12191
  %12476 = vmatpush1.xpose.msra.mxu0 %v11999
  %12477 = vmatprep.subr.mxu0 %v12192
  %12478 = vmatpush1.xpose.msra.mxu0 %v12000
  %12479 = vmatprep.subr.mxu0 %v12193
  %12480 = vmatpush1.xpose.msra.mxu0 %v12001
  %12481 = vmatprep.subr.mxu0 %v12194
  %12482 = vmatpush1.xpose.msra.mxu0 %v12002
  %12483 = vmatprep.subr.mxu0 %v12195
  %12484 = vmatpush1.xpose.msra.mxu0 %v12003
  %12485 = vmatprep.subr.mxu0 %v12196
  %12486 = vmatpush1.xpose.msra.mxu0 %v12004
  %12487 = vmatprep.subr.mxu0 %v12197
  %12488 = vmatpush1.xpose.msra.mxu0 %v12005
  %12489 = vmatprep.subr.mxu0 %v12198
  %12490 = vmatpush1.xpose.msra.mxu0 %v12006
  %12491 = vmatprep.subr.mxu0 %v12199
  %12492 = vmatpush1.xpose.msra.mxu0 %v12007
  %12493 = vmatprep.subr.mxu0 %v12200
  %12494 = vmatpush1.xpose.msra.mxu0 %v12008
  %12495 = vmatprep.mubr.f32.mxu0 %v12234
  %12496 = vmatmul.mubr.f32.gmra.mrb[0].mxu0 %v12233
  %v12497 = vpop.f32.mrb[0].mxu0
  %v12498 = vadd.f32 0.0, %v12497
  %v12499 = vpop.f32.mrb[0].mxu0
  %v12500 = vadd.f32 0.0, %v12499
  %12501 = vdwg.mxu0
  %12502 = vmatprep.subr.mxu0 0.0
  %12503 = vmatpush1.xpose.msra.mxu0 %v12240
  %12504 = vmatprep.subr.mxu0 0.0
  %12505 = vmatpush1.xpose.msra.mxu0 %v12243
  %12506 = vmatprep.subr.mxu0 0.0
  %12507 = vmatpush1.xpose.msra.mxu0 %v12246
  %12508 = vmatprep.subr.mxu0 0.0
  %12509 = vmatpush1.xpose.msra.mxu0 %v12249
  %12510 = vmatprep.subr.mxu0 0.0
  %12511 = vmatpush1.xpose.msra.mxu0 %v12252
  %12512 = vmatprep.subr.mxu0 0.0
  %12513 = vmatpush1.xpose.msra.mxu0 %v12255
  %12514 = vmatprep.subr.mxu0 0.0
  %12515 = vmatpush1.xpose.msra.mxu0 %v12258
  %12516 = vmatprep.subr.mxu0 0.0
  %12517 = vmatpush1.xpose.msra.mxu0 %v12261
  %12518 = vmatprep.subr.mxu0 0.0
  %12519 = vmatpush1.xpose.msra.mxu0 %v12264
  %12520 = vmatprep.subr.mxu0 0.0
  %12521 = vmatpush1.xpose.msra.mxu0 %v12267
  %12522 = vmatprep.subr.mxu0 0.0
  %12523 = vmatpush1.xpose.msra.mxu0 %v12270
  %12524 = vmatprep.subr.mxu0 0.0
  %12525 = vmatpush1.xpose.msra.mxu0 %v12273
  %12526 = vmatprep.subr.mxu0 0.0
  %12527 = vmatpush1.xpose.msra.mxu0 %v12276
  %12528 = vmatprep.subr.mxu0 0.0
  %12529 = vmatpush1.xpose.msra.mxu0 %v12279
  %12530 = vmatprep.subr.mxu0 0.0
  %12531 = vmatpush1.xpose.msra.mxu0 %v12282
  %12532 = vmatprep.subr.mxu0 0.0
  %12533 = vmatpush1.xpose.msra.mxu0 %v12285
  %12534 = vmatprep.subr.mxu0 0.0
  %12535 = vmatpush1.xpose.msra.mxu0 %v12288
  %12536 = vmatprep.subr.mxu0 0.0
  %12537 = vmatpush1.xpose.msra.mxu0 %v12291
  %12538 = vmatprep.subr.mxu0 0.0
  %12539 = vmatpush1.xpose.msra.mxu0 %v12294
  %12540 = vmatprep.subr.mxu0 0.0
  %12541 = vmatpush1.xpose.msra.mxu0 %v12297
  %12542 = vmatprep.subr.mxu0 0.0
  %12543 = vmatpush1.xpose.msra.mxu0 %v12300
  %12544 = vmatprep.subr.mxu0 0.0
  %12545 = vmatpush1.xpose.msra.mxu0 %v12303
  %12546 = vmatprep.subr.mxu0 0.0
  %12547 = vmatpush1.xpose.msra.mxu0 %v12306
  %12548 = vmatprep.subr.mxu0 0.0
  %12549 = vmatpush1.xpose.msra.mxu0 %v12309
  %12550 = vmatprep.subr.mxu0 0.0
  %12551 = vmatpush1.xpose.msra.mxu0 %v12312
  %12552 = vmatprep.subr.mxu0 0.0
  %12553 = vmatpush1.xpose.msra.mxu0 %v12315
  %12554 = vmatprep.subr.mxu0 0.0
  %12555 = vmatpush1.xpose.msra.mxu0 %v12318
  %12556 = vmatprep.subr.mxu0 0.0
  %12557 = vmatpush1.xpose.msra.mxu0 %v12321
  %12558 = vmatprep.subr.mxu0 0.0
  %12559 = vmatpush1.xpose.msra.mxu0 %v12324
  %12560 = vmatprep.subr.mxu0 0.0
  %12561 = vmatpush1.xpose.msra.mxu0 %v12327
  %12562 = vmatprep.subr.mxu0 0.0
  %12563 = vmatpush1.xpose.msra.mxu0 %v12330
  %12564 = vmatprep.subr.mxu0 0.0
  %12565 = vmatpush1.xpose.msra.mxu0 %v12333
  %12566 = vmatprep.mubr.f32.mxu0 0.0
  %12567 = vmatmul.mubr.f32.gmra.mrb[0].mxu0 %v12237
  %v12568 = vpop.f32.mrb[0].mxu0
  %v12569 = vadd.f32 %v12498, %v12568
  %v12570 = vpop.f32.mrb[0].mxu0
  %v12571 = vadd.f32 %v12500, %v12570
  %12572 = vdwg.mxu0
  %12573 = vmatprep.subr.mxu0 %v12201
  %12574 = vmatpush1.xpose.msra.mxu0 %v12009
  %12575 = vmatprep.subr.mxu0 %v12202
  %12576 = vmatpush1.xpose.msra.mxu0 %v12010
  %12577 = vmatprep.subr.mxu0 %v12203
  %12578 = vmatpush1.xpose.msra.mxu0 %v12011
  %12579 = vmatprep.subr.mxu0 %v12204
  %12580 = vmatpush1.xpose.msra.mxu0 %v12012
  %12581 = vmatprep.subr.mxu0 %v12205
  %12582 = vmatpush1.xpose.msra.mxu0 %v12013
  %12583 = vmatprep.subr.mxu0 %v12206
  %12584 = vmatpush1.xpose.msra.mxu0 %v12014
  %12585 = vmatprep.subr.mxu0 %v12207
  %12586 = vmatpush1.xpose.msra.mxu0 %v12015
  %12587 = vmatprep.subr.mxu0 %v12208
  %12588 = vmatpush1.xpose.msra.mxu0 %v12016
  %12589 = vmatprep.subr.mxu0 %v12209
  %12590 = vmatpush1.xpose.msra.mxu0 %v12017
  %12591 = vmatprep.subr.mxu0 %v12210
  %12592 = vmatpush1.xpose.msra.mxu0 %v12018
  %12593 = vmatprep.subr.mxu0 %v12211
  %12594 = vmatpush1.xpose.msra.mxu0 %v12019
  %12595 = vmatprep.subr.mxu0 %v12212
  %12596 = vmatpush1.xpose.msra.mxu0 %v12020
  %12597 = vmatprep.subr.mxu0 %v12213
  %12598 = vmatpush1.xpose.msra.mxu0 %v12021
  %12599 = vmatprep.subr.mxu0 %v12214
  %12600 = vmatpush1.xpose.msra.mxu0 %v12022
  %12601 = vmatprep.subr.mxu0 %v12215
  %12602 = vmatpush1.xpose.msra.mxu0 %v12023
  %12603 = vmatprep.subr.mxu0 %v12216
  %12604 = vmatpush1.xpose.msra.mxu0 %v12024
  %12605 = vmatprep.subr.mxu0 %v12217
  %12606 = vmatpush1.xpose.msra.mxu0 %v12025
  %12607 = vmatprep.subr.mxu0 %v12218
  %12608 = vmatpush1.xpose.msra.mxu0 %v12026
  %12609 = vmatprep.subr.mxu0 %v12219
  %12610 = vmatpush1.xpose.msra.mxu0 %v12027
  %12611 = vmatprep.subr.mxu0 %v12220
  %12612 = vmatpush1.xpose.msra.mxu0 %v12028
  %12613 = vmatprep.subr.mxu0 %v12221
  %12614 = vmatpush1.xpose.msra.mxu0 %v12029
  %12615 = vmatprep.subr.mxu0 %v12222
  %12616 = vmatpush1.xpose.msra.mxu0 %v12030
  %12617 = vmatprep.subr.mxu0 %v12223
  %12618 = vmatpush1.xpose.msra.mxu0 %v12031
  %12619 = vmatprep.subr.mxu0 %v12224
  %12620 = vmatpush1.xpose.msra.mxu0 %v12032
  %12621 = vmatprep.subr.mxu0 %v12225
  %12622 = vmatpush1.xpose.msra.mxu0 %v12033
  %12623 = vmatprep.subr.mxu0 %v12226
  %12624 = vmatpush1.xpose.msra.mxu0 %v12034
  %12625 = vmatprep.subr.mxu0 %v12227
  %12626 = vmatpush1.xpose.msra.mxu0 %v12035
  %12627 = vmatprep.subr.mxu0 %v12228
  %12628 = vmatpush1.xpose.msra.mxu0 %v12036
  %12629 = vmatprep.subr.mxu0 %v12229
  %12630 = vmatpush1.xpose.msra.mxu0 %v12037
  %12631 = vmatprep.subr.mxu0 %v12230
  %12632 = vmatpush1.xpose.msra.mxu0 %v12038
  %12633 = vmatprep.subr.mxu0 %v12231
  %12634 = vmatpush1.xpose.msra.mxu0 %v12039
  %12635 = vmatprep.subr.mxu0 %v12232
  %12636 = vmatpush1.xpose.msra.mxu0 %v12040
  %12637 = vmatprep.mubr.f32.mxu0 %v12234
  %12638 = vmatmul.mubr.f32.gmra.mrb[0].mxu0 %v12233
  %v12639 = vpop.f32.mrb[0].mxu0
  %v12640 = vadd.f32 0.0, %v12639
  %v12641 = vpop.f32.mrb[0].mxu0
  %v12642 = vadd.f32 0.0, %v12641
  %12643 = vdwg.mxu0
  %12644 = vmatprep.subr.mxu0 0.0
  %12645 = vmatpush1.xpose.msra.mxu0 %v12336
  %12646 = vmatprep.subr.mxu0 0.0
  %12647 = vmatpush1.xpose.msra.mxu0 %v12339
  %12648 = vmatprep.subr.mxu0 0.0
  %12649 = vmatpush1.xpose.msra.mxu0 %v12342
  %12650 = vmatprep.subr.mxu0 0.0
  %12651 = vmatpush1.xpose.msra.mxu0 %v12345
  %12652 = vmatprep.subr.mxu0 0.0
  %12653 = vmatpush1.xpose.msra.mxu0 %v12348
  %12654 = vmatprep.subr.mxu0 0.0
  %12655 = vmatpush1.xpose.msra.mxu0 %v12351
  %12656 = vmatprep.subr.mxu0 0.0
  %12657 = vmatpush1.xpose.msra.mxu0 %v12354
  %12658 = vmatprep.subr.mxu0 0.0
  %12659 = vmatpush1.xpose.msra.mxu0 %v12357
  %12660 = vmatprep.subr.mxu0 0.0
  %12661 = vmatpush1.xpose.msra.mxu0 %v12360
  %12662 = vmatprep.subr.mxu0 0.0
  %12663 = vmatpush1.xpose.msra.mxu0 %v12363
  %12664 = vmatprep.subr.mxu0 0.0
  %12665 = vmatpush1.xpose.msra.mxu0 %v12366
  %12666 = vmatprep.subr.mxu0 0.0
  %12667 = vmatpush1.xpose.msra.mxu0 %v12369
  %12668 = vmatprep.subr.mxu0 0.0
  %12669 = vmatpush1.xpose.msra.mxu0 %v12372
  %12670 = vmatprep.subr.mxu0 0.0
  %12671 = vmatpush1.xpose.msra.mxu0 %v12375
  %12672 = vmatprep.subr.mxu0 0.0
  %12673 = vmatpush1.xpose.msra.mxu0 %v12378
  %12674 = vmatprep.subr.mxu0 0.0
  %12675 = vmatpush1.xpose.msra.mxu0 %v12381
  %12676 = vmatprep.subr.mxu0 0.0
  %12677 = vmatpush1.xpose.msra.mxu0 %v12384
  %12678 = vmatprep.subr.mxu0 0.0
  %12679 = vmatpush1.xpose.msra.mxu0 %v12387
  %12680 = vmatprep.subr.mxu0 0.0
  %12681 = vmatpush1.xpose.msra.mxu0 %v12390
  %12682 = vmatprep.subr.mxu0 0.0
  %12683 = vmatpush1.xpose.msra.mxu0 %v12393
  %12684 = vmatprep.subr.mxu0 0.0
  %12685 = vmatpush1.xpose.msra.mxu0 %v12396
  %12686 = vmatprep.subr.mxu0 0.0
  %12687 = vmatpush1.xpose.msra.mxu0 %v12399
  %12688 = vmatprep.subr.mxu0 0.0
  %12689 = vmatpush1.xpose.msra.mxu0 %v12402
  %12690 = vmatprep.subr.mxu0 0.0
  %12691 = vmatpush1.xpose.msra.mxu0 %v12405
  %12692 = vmatprep.subr.mxu0 0.0
  %12693 = vmatpush1.xpose.msra.mxu0 %v12408
  %12694 = vmatprep.subr.mxu0 0.0
  %12695 = vmatpush1.xpose.msra.mxu0 %v12411
  %12696 = vmatprep.subr.mxu0 0.0
  %12697 = vmatpush1.xpose.msra.mxu0 %v12414
  %12698 = vmatprep.subr.mxu0 0.0
  %12699 = vmatpush1.xpose.msra.mxu0 %v12417
  %12700 = vmatprep.subr.mxu0 0.0
  %12701 = vmatpush1.xpose.msra.mxu0 %v12420
  %12702 = vmatprep.subr.mxu0 0.0
  %12703 = vmatpush1.xpose.msra.mxu0 %v12423
  %12704 = vmatprep.subr.mxu0 0.0
  %12705 = vmatpush1.xpose.msra.mxu0 %v12426
  %12706 = vmatprep.subr.mxu0 0.0
  %12707 = vmatpush1.xpose.msra.mxu0 %v12429
  %12708 = vmatprep.mubr.f32.mxu0 0.0
  %12709 = vmatmul.mubr.f32.gmra.mrb[0].mxu0 %v12237
  %v12710 = vpop.f32.mrb[0].mxu0
  %v12711 = vadd.f32 %v12640, %v12710
  %v12712 = vpop.f32.mrb[0].mxu0
  %v12713 = vadd.f32 %v12642, %v12712
  %12714 = vdwg.mxu0
  %v12715 = vadd.f32 %v12569, %v12571
  %v12716 = vadd.f32 %v12715, %v12711
  %v12717 = vadd.f32 %v12716, %v12713
  %12718 = vadd.xlane.f32.xlu0 %v12717
  %v12719 = vpop.xlane.xlu0 %12718
  %v12720 = vrcp.pop 512.0
  %v12721 = vmul.f32 %v12719, %v12720
  %v12722 = vsub.f32 %v12569, %v12721
  %v12723 = vsub.f32 %v12571, %v12721
  %v12724 = vsub.f32 %v12711, %v12721
  %v12725 = vsub.f32 %v12713, %v12721
  %v12726 = vmul.f32 %v12722, %v12722
  %v12727 = vmul.f32 %v12723, %v12723
  %v12728 = vmul.f32 %v12724, %v12724
  %v12729 = vmul.f32 %v12725, %v12725
  %v12730 = vadd.f32 %v12726, %v12727
  %v12731 = vadd.f32 %v12730, %v12728
  %v12732 = vadd.f32 %v12731, %v12729
  %12733 = vadd.xlane.f32.xlu0 %v12732
  %v12734 = vpop.xlane.xlu0 %12733
  %v12735 = vmul.f32 %v12734, %v12720
  %v12736 = vadd.f32 %v12735, 1e-05
  %v12737 = vrsqrt.pop %v12736
  %v12738 = vmul.f32 %v12722, %v12737
  %v12739 = vmul.f32 %v12723, %v12737
  %v12740 = vmul.f32 %v12724, %v12737
  %v12741 = vmul.f32 %v12725, %v12737
  %v12742 = vld [vmem:[%s3] sm:$0xff]
  %12744 = vset.pattern.permute.xlu0 0
  %12745 = vperm.xlu0 %12744, %v12742
  %v12746 = vpop.permute.xlu0 %12745
  %v12748 = vmul.f32 %v12738, %v12746
  %v12749 = vmul.f32 %v12739, %v12746
  %v12750 = vmul.f32 %v12740, %v12746
  %v12751 = vmul.f32 %v12741, %v12746
  %v12752 = vld [vmem:[%s4] sm:$0xff]
  %12754 = vset.pattern.permute.xlu0 0
  %12755 = vperm.xlu0 %12754, %v12752
  %v12756 = vpop.permute.xlu0 %12755
  %v12758 = vadd.f32 %v12748, %v12756
  %v12759 = vadd.f32 %v12749, %v12756
  %v12760 = vadd.f32 %v12750, %v12756
  %v12761 = vadd.f32 %v12751, %v12756
  %v12762 = vmax.f32 %v12758, 0.0
  %v12763 = vmax.f32 %v12759, 0.0
  %v12764 = vmax.f32 %v12760, 0.0
  %v12765 = vmax.f32 %v12761, 0.0
  %12766 = vst [vmem:[%s5] sm:$0xff] %v12762
  %12767 = vst [vmem:[%s5 + $0x8] sm:$0xff] %v12763
  %12768 = vst [vmem:[%s5 + $0x10] sm:$0xff] %v12764
  %12769 = vst [vmem:[%s5 + $0x18] sm:$0xff] %v12765
  // Predicated region
  $region22: #{cpfe_forward.1} parent=0 // pred_check
    _
  $region23: #{cpfe_forward.1} parent=0 // pred_check_branch
    %12771 = sbr.rel (0) target = $region25
  $region24: #{cpfe_forward.1} parent=0 // pred_region
    _
  $region25: #{cpfe_forward.1} parent=0 // pred_fallthru
    _
  // Predicated region
  $region26: #{cpfe_forward.1} parent=0 // pred_check
    _
  $region27: #{cpfe_forward.1} parent=0 // pred_check_branch
    %12773 = sbr.rel (0) target = $region29
  $region28: #{cpfe_forward.1} parent=0 // pred_region
    _
  $region29: #{cpfe_forward.1} parent=0 // pred_fallthru
    _

</llo_original>
